<compile_context>
chip_gen: v5e
topology: v5e:2x2
jax: 0.10.0
libtpu: 0.0.40
codegen_flags: <defaults>
</compile_context>

<pallas_src>
import functools

import jax
import jax.numpy as jnp
from jax.experimental import pallas as pl
from jax.experimental.pallas import tpu as pltpu

# MXU operand dtype (accumulation is always f32 via preferred_element_type).
# Set to jnp.float32 for bit-exact f32 matmuls.
MXU_DTYPE = jnp.bfloat16


# ------------------------------- fused kernel ------------------------------- #

def _group_block_kernel(xg_ref, wqkv_ref, w1_ref, s1_ref, b1_ref,
                        w2_ref, s2_ref, b2_ref,
                        out_ref, hatt_ref, watt_ref, *, num_heads, scale):
    """Whole GroupBlock forward for one batch element, fully resident in VMEM.

    xg_ref:   (1, W, H, C)     input in H-grouped layout (= x.permute(0,3,2,1))
    wqkv_ref: (2, C, 3C)       qkv weights: [0]=HAttention, [1]=WAttention
    w1/w2:    (4, C, Ch)/(4, Ch, C)  Conv1x1 weights [mlp_h, mlp1, mlp_w, mlp2]
    s1/b1:    (4, 1, Ch)       folded eval-mode BN1 scale / bias
    s2/b2:    (4, 1, C)        folded eval-mode BN2 scale / bias
    out_ref:  (1, H, W, C)     output (NHWC layout)
    hatt_ref: (1, nh, W, H, H) pre-softmax scaled logits of HAttention
    watt_ref: (1, nh, H, W, W) pre-softmax scaled logits of WAttention
    """
    _, W, H, C = xg_ref.shape

    def conv1x1(a, i):
        # Conv1x1 block (1x1 conv -> BN -> ReLU -> 1x1 conv -> BN); BN folded.
        z = jnp.dot(a.astype(MXU_DTYPE), w1_ref[i],
                    preferred_element_type=jnp.float32)            # (N, Ch)
        z = jnp.maximum(z * s1_ref[i] + b1_ref[i], 0.0)
        y = jnp.dot(z.astype(MXU_DTYPE), w2_ref[i],
                    preferred_element_type=jnp.float32)            # (N, C)
        return y * s2_ref[i] + b2_ref[i]

    def attention(xg, wq, att_ref):
        # xg: (G, S, C) f32.  Self-attention within each group along S.
        G, S, Cd = xg.shape
        hd = Cd // num_heads
        # Single QKV projection for all groups of this batch element.
        qkv = jnp.dot(xg.reshape(G * S, Cd).astype(MXU_DTYPE), wq,
                      preferred_element_type=jnp.float32)          # (G*S, 3C)
        outs = []
        for head in range(num_heads):                              # static, nh=4
            q = qkv[:, head * hd:(head + 1) * hd].reshape(G, S, hd)
            k = qkv[:, Cd + head * hd:Cd + (head + 1) * hd].reshape(G, S, hd)
            v = qkv[:, 2 * Cd + head * hd:2 * Cd + (head + 1) * hd].reshape(G, S, hd)
            logits = jnp.einsum('gsd,gtd->gst', q, k,
                                preferred_element_type=jnp.float32) * scale
            att_ref[0, head] = logits.astype(att_ref.dtype)        # (G, S, S) slab
            m = jnp.max(logits, axis=-1, keepdims=True)
            p = jnp.exp(logits - m)
            p = p * pl.reciprocal(jnp.sum(p, axis=-1, keepdims=True), approx=True)
            outs.append(jnp.einsum('gst,gtd->gsd', p, v,
                                   preferred_element_type=jnp.float32))
        return jnp.concatenate(outs, axis=-1)                      # (G, S, C)

    # ---- HAttention branch: groups = W columns, sequence along H ----
    x_wh = xg_ref[0].astype(jnp.float32)                           # (W, H, C)
    a_h = attention(x_wh, wqkv_ref[0], hatt_ref)                   # (W, H, C)
    x2 = x_wh.reshape(W * H, C)                                    # W-major pixels
    h_x = jnp.maximum(x2 + conv1x1(a_h.reshape(W * H, C), 0), 0.0)  # relu(x + mlp_h(.))
    x2 = jnp.maximum(x2 + h_x, 0.0)                                # relu(x + h_x)
    x2 = jnp.maximum(x2 + conv1x1(x2, 1), 0.0)                     # relu(x + mlp1(x))

    # ---- relayout (W, H, C) -> (H, W, C) between branches.  Done manually via
    #      static slices + stack (keeps the Mosaic lowering simple/safe). ----
    x_wh3 = x2.reshape(W, H, C)
    x_hw = jnp.stack([x_wh3[:, r, :] for r in range(H)], axis=0)   # (H, W, C)

    # ---- WAttention branch: groups = H rows, sequence along W ----
    a_w = attention(x_hw, wqkv_ref[1], watt_ref)                   # (H, W, C)
    x2 = x_hw.reshape(H * W, C)                                    # H-major pixels
    w_x = jnp.maximum(x2 + conv1x1(a_w.reshape(H * W, C), 2), 0.0)  # relu(x + mlp_w(.))
    x2 = jnp.maximum(x2 + w_x, 0.0)                                # relu(x + w_x)
    x2 = jnp.maximum(x2 + conv1x1(x2, 3), 0.0)                     # relu(x + mlp2(x))

    out_ref[0] = x2.reshape(H, W, C).astype(out_ref.dtype)


# ------------------------------ wrapper / params ---------------------------- #

def group_block_forward(x_nchw, params, num_heads):
    B, C, H, W = x_nchw.shape
    assert C % num_heads == 0
    nh = num_heads
    Ch = params["w1"].shape[-1]
    scale = (C // nh) ** (-0.5)

    # H-grouped layout, mirroring the reference's x.permute(0, 3, 2, 1).
    xg = jnp.transpose(x_nchw, (0, 3, 2, 1))                       # (B, W, H, C)

    kernel = functools.partial(_group_block_kernel, num_heads=nh, scale=scale)
    out_nhwc, hatt, watt = pl.pallas_call(
        kernel,
        out_shape=(jax.ShapeDtypeStruct((B, H, W, C), x_nchw.dtype),
                   jax.ShapeDtypeStruct((B, nh, W, H, H), jnp.float32),
                   jax.ShapeDtypeStruct((B, nh, H, W, W), jnp.float32)),
        grid=(B,),
        in_specs=[
            pl.BlockSpec((1, W, H, C), lambda b: (b, 0, 0, 0)),
            pl.BlockSpec((2, C, 3 * C), lambda b: (0, 0, 0)),
            pl.BlockSpec((4, C, Ch), lambda b: (0, 0, 0)),
            pl.BlockSpec((4, 1, Ch), lambda b: (0, 0, 0)),
            pl.BlockSpec((4, 1, Ch), lambda b: (0, 0, 0)),
            pl.BlockSpec((4, Ch, C), lambda b: (0, 0, 0)),
            pl.BlockSpec((4, 1, C), lambda b: (0, 0, 0)),
            pl.BlockSpec((4, 1, C), lambda b: (0, 0, 0)),
        ],
        out_specs=(
            pl.BlockSpec((1, H, W, C), lambda b: (b, 0, 0, 0)),
            pl.BlockSpec((1, nh, W, H, H), lambda b: (b, 0, 0, 0, 0)),
            pl.BlockSpec((1, nh, H, W, W), lambda b: (b, 0, 0, 0, 0)),
        ),
        compiler_params=pltpu.CompilerParams(
            dimension_semantics=("parallel",)),
    )(xg, params["wqkv"], params["w1"], params["s1"], params["b1"],
      params["w2"], params["s2"], params["b2"])

    out = jnp.transpose(out_nhwc, (0, 3, 1, 2))                    # NCHW
    h_att = jnp.transpose(hatt, (0, 2, 1, 3, 4))                   # (B, W, nh, H, H)
    w_att = jnp.transpose(watt, (0, 2, 1, 3, 4))                   # (B, H, nh, W, W)
    return out, h_att, w_att


def init_params(key, dim, mlp_ratio):
    """GroupBlock parameters.

    qkv weights are stored pre-transposed ((C, 3C) = nn.Linear.weight.T, no
    bias) and stacked [attnh.qkv, attnw.qkv].  Conv1x1 weights are stored
    pre-transposed ((Cin, Cout) = conv.weight[:, :, 0, 0].T, no bias) and
    stacked in order [attnh.mlp, mlp1, attnw.mlp, mlp2].  BatchNorm2d
    (eval-mode, __init__ stats: gamma=1, beta=0, mean=0, var=1, eps=1e-3) is
    folded into per-channel scale/bias vectors.
    """
    Ch = dim * mlp_ratio
    bn_scale = (1.0 + 1e-3) ** (-0.5)
    ks = jax.random.split(key, 10)
    wqkv = jnp.stack([jax.random.normal(ks[i], (dim, 3 * dim), jnp.float32) * 0.05
                      for i in range(2)])
    w1 = jnp.stack([jax.random.normal(ks[2 + i], (dim, Ch), jnp.float32) * 0.05
                    for i in range(4)])
    w2 = jnp.stack([jax.random.normal(ks[6 + i], (Ch, dim), jnp.float32) * 0.05
                    for i in range(4)])
    return dict(
        wqkv=wqkv.astype(MXU_DTYPE),
        w1=w1.astype(MXU_DTYPE),
        w2=w2.astype(MXU_DTYPE),
        s1=jnp.full((4, 1, Ch), bn_scale, jnp.float32),
        b1=jnp.zeros((4, 1, Ch), jnp.float32),
        s2=jnp.full((4, 1, dim), bn_scale, jnp.float32),
        b2=jnp.zeros((4, 1, dim), jnp.float32),
    )


# ---------------------------------- main ------------------------------------ #

if __name__ == "__main__":
    B, C, H, W = 2, 32, 8, 8          # dim = 32
    num_heads = 4                     # head_dim = 8
    mlp_ratio = 4                     # Conv1x1 hidden = 128

    key = jax.random.PRNGKey(0)
    kx, kp = jax.random.split(key)
    x = jax.random.normal(kx, (B, C, H, W), jnp.float32)
    params = init_params(kp, C, mlp_ratio)

    fwd = jax.jit(functools.partial(group_block_forward, num_heads=num_heads))
    out, h_att, w_att = fwd(x, params)
    jax.block_until_ready((out, h_att, w_att))

    assert out.shape == (B, C, H, W)
    assert h_att.shape == (B, W, num_heads, H, H)
    assert w_att.shape == (B, H, num_heads, W, W)
    assert bool(jnp.isfinite(out).all())
    print("KERNEL_OK")
</pallas_src>

<mosaic_0001>
module attributes {stable_mosaic.version = 11 : i64} {
  func.func @_group_block_kernel(%arg0: i32, %arg1: memref<1x8x8x32xf32, #tpu.memory_space<vmem>>, %arg2: memref<2x32x96xbf16, #tpu.memory_space<vmem>>, %arg3: memref<4x32x128xbf16, #tpu.memory_space<vmem>>, %arg4: memref<4x1x128xf32, #tpu.memory_space<vmem>>, %arg5: memref<4x1x128xf32, #tpu.memory_space<vmem>>, %arg6: memref<4x128x32xbf16, #tpu.memory_space<vmem>>, %arg7: memref<4x1x32xf32, #tpu.memory_space<vmem>>, %arg8: memref<4x1x32xf32, #tpu.memory_space<vmem>>, %arg9: memref<1x8x8x32xf32, #tpu.memory_space<vmem>>, %arg10: memref<1x4x8x8x8xf32, #tpu.memory_space<vmem>>, %arg11: memref<1x4x8x8x8xf32, #tpu.memory_space<vmem>>) attributes {dimension_semantics = [#tpu.dimension_semantics<parallel>], iteration_bounds = array<i64: 2>, scalar_prefetch = 0 : i64, scratch_operands = 0 : i64, tpu.core_type = #tpu.core_type<tc>, window_params = [{transform_indices = @transform_0, window_bounds = array<i64: 1, 8, 8, 32>}, {pipeline_mode = #tpu.pipeline_mode<synchronous>, transform_indices = @transform_1, window_bounds = array<i64: 2, 32, 96>}, {pipeline_mode = #tpu.pipeline_mode<synchronous>, transform_indices = @transform_2, window_bounds = array<i64: 4, 32, 128>}, {pipeline_mode = #tpu.pipeline_mode<synchronous>, transform_indices = @transform_3, window_bounds = array<i64: 4, 1, 128>}, {pipeline_mode = #tpu.pipeline_mode<synchronous>, transform_indices = @transform_4, window_bounds = array<i64: 4, 1, 128>}, {pipeline_mode = #tpu.pipeline_mode<synchronous>, transform_indices = @transform_5, window_bounds = array<i64: 4, 128, 32>}, {pipeline_mode = #tpu.pipeline_mode<synchronous>, transform_indices = @transform_6, window_bounds = array<i64: 4, 1, 32>}, {pipeline_mode = #tpu.pipeline_mode<synchronous>, transform_indices = @transform_7, window_bounds = array<i64: 4, 1, 32>}, {transform_indices = @transform_8, window_bounds = array<i64: 1, 8, 8, 32>}, {transform_indices = @transform_9, window_bounds = array<i64: 1, 4, 8, 8, 8>}, {transform_indices = @transform_10, window_bounds = array<i64: 1, 4, 8, 8, 8>}]} {
    %c0 = arith.constant 0 : index
    %c0_0 = arith.constant 0 : index
    %c0_1 = arith.constant 0 : index
    %c0_2 = arith.constant 0 : index
    %0 = vector.load %arg1[%c0, %c0_0, %c0_1, %c0_2] : memref<1x8x8x32xf32, #tpu.memory_space<vmem>>, vector<1x8x8x32xf32>
    %1 = vector.shape_cast %0 : vector<1x8x8x32xf32> to vector<8x8x32xf32>
    %c0_3 = arith.constant 0 : index
    %c0_4 = arith.constant 0 : index
    %c0_5 = arith.constant 0 : index
    %2 = vector.load %arg2[%c0_3, %c0_4, %c0_5] : memref<2x32x96xbf16, #tpu.memory_space<vmem>>, vector<1x32x96xbf16>
    %3 = vector.shape_cast %2 : vector<1x32x96xbf16> to vector<32x96xbf16>
    %4 = vector.shape_cast %1 : vector<8x8x32xf32> to vector<64x32xf32>
    %5 = arith.truncf %4 : vector<64x32xf32> to vector<64x32xbf16>
    %cst = arith.constant dense<0.000000e+00> : vector<64x96xf32>
    %6 = tpu.matmul %5, %3, %cst {dimension_numbers = #tpu.dot_dimension_numbers<[1], [0], [0], [1], [0, 0, 1, 1], [], []>} : vector<64x32xbf16>, vector<32x96xbf16>, vector<64x96xf32> -> vector<64x96xf32>
    %7 = vector.extract_strided_slice %6 {offsets = [0, 0], sizes = [64, 8], strides = [1, 1]} : vector<64x96xf32> to vector<64x8xf32>
    %8 = vector.shape_cast %7 : vector<64x8xf32> to vector<8x8x8xf32>
    %9 = vector.extract_strided_slice %6 {offsets = [0, 32], sizes = [64, 8], strides = [1, 1]} : vector<64x96xf32> to vector<64x8xf32>
    %10 = vector.shape_cast %9 : vector<64x8xf32> to vector<8x8x8xf32>
    %11 = vector.extract_strided_slice %6 {offsets = [0, 64], sizes = [64, 8], strides = [1, 1]} : vector<64x96xf32> to vector<64x8xf32>
    %12 = vector.shape_cast %11 : vector<64x8xf32> to vector<8x8x8xf32>
    "tpu.trace_start"() <{level = 10 : i32, message = "gsd,gtd->gst"}> : () -> ()
    %cst_6 = arith.constant dense<0.000000e+00> : vector<8x8x8xf32>
    %13 = tpu.matmul %8, %10, %cst_6 {dimension_numbers = #tpu.dot_dimension_numbers<[2], [2], [1], [1], [0, 0, 0, 1, 1, 1], [0], [0]>} : vector<8x8x8xf32>, vector<8x8x8xf32>, vector<8x8x8xf32> -> vector<8x8x8xf32>
    "tpu.trace_stop"() : () -> ()
    %cst_7 = arith.constant 0.353553385 : f32
    %14 = vector.broadcast %cst_7 : f32 to vector<8x8x8xf32>
    %15 = arith.mulf %13, %14 : vector<8x8x8xf32>
    %c0_8 = arith.constant 0 : index
    %c0_9 = arith.constant 0 : index
    %c0_10 = arith.constant 0 : index
    %c0_11 = arith.constant 0 : index
    %c0_12 = arith.constant 0 : index
    %16 = vector.load %arg10[%c0_8, %c0_9, %c0_10, %c0_11, %c0_12] : memref<1x4x8x8x8xf32, #tpu.memory_space<vmem>>, vector<1x1x8x8x8xf32>
    %17 = vector.shape_cast %16 : vector<1x1x8x8x8xf32> to vector<8x8x8xf32>
    %18 = vector.shape_cast %15 : vector<8x8x8xf32> to vector<1x1x8x8x8xf32>
    tpu.vector_store %arg10[%c0_8, %c0_9, %c0_10, %c0_11, %c0_12], %18 {strides = array<i32>} : memref<1x4x8x8x8xf32, #tpu.memory_space<vmem>>, vector<1x1x8x8x8xf32>,
    %cst_13 = arith.constant dense<0xFF800000> : vector<8x8xf32>
    %19 = vector.multi_reduction <maximumf>, %15, %cst_13 [2] : vector<8x8x8xf32> to vector<8x8xf32>
    %20 = vector.shape_cast %19 : vector<8x8xf32> to vector<8x8x1xf32>
    %21 = vector.broadcast %20 : vector<8x8x1xf32> to vector<8x8x8xf32>
    %22 = arith.subf %15, %21 : vector<8x8x8xf32>
    %23 = math.exp %22 : vector<8x8x8xf32>
    %cst_14 = arith.constant dense<0.000000e+00> : vector<8x8xf32>
    %24 = vector.multi_reduction <add>, %23, %cst_14 [2] : vector<8x8x8xf32> to vector<8x8xf32>
    %25 = vector.shape_cast %24 : vector<8x8xf32> to vector<8x8x1xf32>
    %26 = tpu.reciprocal %25 {approx = true} : vector<8x8x1xf32> -> vector<8x8x1xf32>
    %27 = vector.broadcast %26 : vector<8x8x1xf32> to vector<8x8x8xf32>
    %28 = arith.mulf %23, %27 : vector<8x8x8xf32>
    "tpu.trace_start"() <{level = 10 : i32, message = "gst,gtd->gsd"}> : () -> ()
    %cst_15 = arith.constant dense<0.000000e+00> : vector<8x8x8xf32>
    %29 = tpu.matmul %28, %12, %cst_15 {dimension_numbers = #tpu.dot_dimension_numbers<[2], [1], [1], [2], [0, 0, 0, 1, 1, 2], [0], [0]>} : vector<8x8x8xf32>, vector<8x8x8xf32>, vector<8x8x8xf32> -> vector<8x8x8xf32>
    "tpu.trace_stop"() : () -> ()
    %30 = vector.extract_strided_slice %6 {offsets = [0, 8], sizes = [64, 8], strides = [1, 1]} : vector<64x96xf32> to vector<64x8xf32>
    %31 = vector.shape_cast %30 : vector<64x8xf32> to vector<8x8x8xf32>
    %32 = vector.extract_strided_slice %6 {offsets = [0, 40], sizes = [64, 8], strides = [1, 1]} : vector<64x96xf32> to vector<64x8xf32>
    %33 = vector.shape_cast %32 : vector<64x8xf32> to vector<8x8x8xf32>
    %34 = vector.extract_strided_slice %6 {offsets = [0, 72], sizes = [64, 8], strides = [1, 1]} : vector<64x96xf32> to vector<64x8xf32>
    %35 = vector.shape_cast %34 : vector<64x8xf32> to vector<8x8x8xf32>
    "tpu.trace_start"() <{level = 10 : i32, message = "gsd,gtd->gst"}> : () -> ()
    %cst_16 = arith.constant dense<0.000000e+00> : vector<8x8x8xf32>
    %36 = tpu.matmul %31, %33, %cst_16 {dimension_numbers = #tpu.dot_dimension_numbers<[2], [2], [1], [1], [0, 0, 0, 1, 1, 1], [0], [0]>} : vector<8x8x8xf32>, vector<8x8x8xf32>, vector<8x8x8xf32> -> vector<8x8x8xf32>
    "tpu.trace_stop"() : () -> ()
    %cst_17 = arith.constant 0.353553385 : f32
    %37 = vector.broadcast %cst_17 : f32 to vector<8x8x8xf32>
    %38 = arith.mulf %36, %37 : vector<8x8x8xf32>
    %c0_18 = arith.constant 0 : index
    %c1 = arith.constant 1 : index
    %c0_19 = arith.constant 0 : index
    %c0_20 = arith.constant 0 : index
    %c0_21 = arith.constant 0 : index
    %39 = vector.load %arg10[%c0_18, %c1, %c0_19, %c0_20, %c0_21] : memref<1x4x8x8x8xf32, #tpu.memory_space<vmem>>, vector<1x1x8x8x8xf32>
    %40 = vector.shape_cast %39 : vector<1x1x8x8x8xf32> to vector<8x8x8xf32>
    %41 = vector.shape_cast %38 : vector<8x8x8xf32> to vector<1x1x8x8x8xf32>
    tpu.vector_store %arg10[%c0_18, %c1, %c0_19, %c0_20, %c0_21], %41 {strides = array<i32>} : memref<1x4x8x8x8xf32, #tpu.memory_space<vmem>>, vector<1x1x8x8x8xf32>,
    %cst_22 = arith.constant dense<0xFF800000> : vector<8x8xf32>
    %42 = vector.multi_reduction <maximumf>, %38, %cst_22 [2] : vector<8x8x8xf32> to vector<8x8xf32>
    %43 = vector.shape_cast %42 : vector<8x8xf32> to vector<8x8x1xf32>
    %44 = vector.broadcast %43 : vector<8x8x1xf32> to vector<8x8x8xf32>
    %45 = arith.subf %38, %44 : vector<8x8x8xf32>
    %46 = math.exp %45 : vector<8x8x8xf32>
    %cst_23 = arith.constant dense<0.000000e+00> : vector<8x8xf32>
    %47 = vector.multi_reduction <add>, %46, %cst_23 [2] : vector<8x8x8xf32> to vector<8x8xf32>
    %48 = vector.shape_cast %47 : vector<8x8xf32> to vector<8x8x1xf32>
    %49 = tpu.reciprocal %48 {approx = true} : vector<8x8x1xf32> -> vector<8x8x1xf32>
    %50 = vector.broadcast %49 : vector<8x8x1xf32> to vector<8x8x8xf32>
    %51 = arith.mulf %46, %50 : vector<8x8x8xf32>
    "tpu.trace_start"() <{level = 10 : i32, message = "gst,gtd->gsd"}> : () -> ()
    %cst_24 = arith.constant dense<0.000000e+00> : vector<8x8x8xf32>
    %52 = tpu.matmul %51, %35, %cst_24 {dimension_numbers = #tpu.dot_dimension_numbers<[2], [1], [1], [2], [0, 0, 0, 1, 1, 2], [0], [0]>} : vector<8x8x8xf32>, vector<8x8x8xf32>, vector<8x8x8xf32> -> vector<8x8x8xf32>
    "tpu.trace_stop"() : () -> ()
    %53 = vector.extract_strided_slice %6 {offsets = [0, 16], sizes = [64, 8], strides = [1, 1]} : vector<64x96xf32> to vector<64x8xf32>
    %54 = vector.shape_cast %53 : vector<64x8xf32> to vector<8x8x8xf32>
    %55 = vector.extract_strided_slice %6 {offsets = [0, 48], sizes = [64, 8], strides = [1, 1]} : vector<64x96xf32> to vector<64x8xf32>
    %56 = vector.shape_cast %55 : vector<64x8xf32> to vector<8x8x8xf32>
    %57 = vector.extract_strided_slice %6 {offsets = [0, 80], sizes = [64, 8], strides = [1, 1]} : vector<64x96xf32> to vector<64x8xf32>
    %58 = vector.shape_cast %57 : vector<64x8xf32> to vector<8x8x8xf32>
    "tpu.trace_start"() <{level = 10 : i32, message = "gsd,gtd->gst"}> : () -> ()
    %cst_25 = arith.constant dense<0.000000e+00> : vector<8x8x8xf32>
    %59 = tpu.matmul %54, %56, %cst_25 {dimension_numbers = #tpu.dot_dimension_numbers<[2], [2], [1], [1], [0, 0, 0, 1, 1, 1], [0], [0]>} : vector<8x8x8xf32>, vector<8x8x8xf32>, vector<8x8x8xf32> -> vector<8x8x8xf32>
    "tpu.trace_stop"() : () -> ()
    %cst_26 = arith.constant 0.353553385 : f32
    %60 = vector.broadcast %cst_26 : f32 to vector<8x8x8xf32>
    %61 = arith.mulf %59, %60 : vector<8x8x8xf32>
    %c0_27 = arith.constant 0 : index
    %c2 = arith.constant 2 : index
    %c0_28 = arith.constant 0 : index
    %c0_29 = arith.constant 0 : index
    %c0_30 = arith.constant 0 : index
    %62 = vector.load %arg10[%c0_27, %c2, %c0_28, %c0_29, %c0_30] : memref<1x4x8x8x8xf32, #tpu.memory_space<vmem>>, vector<1x1x8x8x8xf32>
    %63 = vector.shape_cast %62 : vector<1x1x8x8x8xf32> to vector<8x8x8xf32>
    %64 = vector.shape_cast %61 : vector<8x8x8xf32> to vector<1x1x8x8x8xf32>
    tpu.vector_store %arg10[%c0_27, %c2, %c0_28, %c0_29, %c0_30], %64 {strides = array<i32>} : memref<1x4x8x8x8xf32, #tpu.memory_space<vmem>>, vector<1x1x8x8x8xf32>,
    %cst_31 = arith.constant dense<0xFF800000> : vector<8x8xf32>
    %65 = vector.multi_reduction <maximumf>, %61, %cst_31 [2] : vector<8x8x8xf32> to vector<8x8xf32>
    %66 = vector.shape_cast %65 : vector<8x8xf32> to vector<8x8x1xf32>
    %67 = vector.broadcast %66 : vector<8x8x1xf32> to vector<8x8x8xf32>
    %68 = arith.subf %61, %67 : vector<8x8x8xf32>
    %69 = math.exp %68 : vector<8x8x8xf32>
    %cst_32 = arith.constant dense<0.000000e+00> : vector<8x8xf32>
    %70 = vector.multi_reduction <add>, %69, %cst_32 [2] : vector<8x8x8xf32> to vector<8x8xf32>
    %71 = vector.shape_cast %70 : vector<8x8xf32> to vector<8x8x1xf32>
    %72 = tpu.reciprocal %71 {approx = true} : vector<8x8x1xf32> -> vector<8x8x1xf32>
    %73 = vector.broadcast %72 : vector<8x8x1xf32> to vector<8x8x8xf32>
    %74 = arith.mulf %69, %73 : vector<8x8x8xf32>
    "tpu.trace_start"() <{level = 10 : i32, message = "gst,gtd->gsd"}> : () -> ()
    %cst_33 = arith.constant dense<0.000000e+00> : vector<8x8x8xf32>
    %75 = tpu.matmul %74, %58, %cst_33 {dimension_numbers = #tpu.dot_dimension_numbers<[2], [1], [1], [2], [0, 0, 0, 1, 1, 2], [0], [0]>} : vector<8x8x8xf32>, vector<8x8x8xf32>, vector<8x8x8xf32> -> vector<8x8x8xf32>
    "tpu.trace_stop"() : () -> ()
    %76 = vector.extract_strided_slice %6 {offsets = [0, 24], sizes = [64, 8], strides = [1, 1]} : vector<64x96xf32> to vector<64x8xf32>
    %77 = vector.shape_cast %76 : vector<64x8xf32> to vector<8x8x8xf32>
    %78 = vector.extract_strided_slice %6 {offsets = [0, 56], sizes = [64, 8], strides = [1, 1]} : vector<64x96xf32> to vector<64x8xf32>
    %79 = vector.shape_cast %78 : vector<64x8xf32> to vector<8x8x8xf32>
    %80 = vector.extract_strided_slice %6 {offsets = [0, 88], sizes = [64, 8], strides = [1, 1]} : vector<64x96xf32> to vector<64x8xf32>
    %81 = vector.shape_cast %80 : vector<64x8xf32> to vector<8x8x8xf32>
    "tpu.trace_start"() <{level = 10 : i32, message = "gsd,gtd->gst"}> : () -> ()
    %cst_34 = arith.constant dense<0.000000e+00> : vector<8x8x8xf32>
    %82 = tpu.matmul %77, %79, %cst_34 {dimension_numbers = #tpu.dot_dimension_numbers<[2], [2], [1], [1], [0, 0, 0, 1, 1, 1], [0], [0]>} : vector<8x8x8xf32>, vector<8x8x8xf32>, vector<8x8x8xf32> -> vector<8x8x8xf32>
    "tpu.trace_stop"() : () -> ()
    %cst_35 = arith.constant 0.353553385 : f32
    %83 = vector.broadcast %cst_35 : f32 to vector<8x8x8xf32>
    %84 = arith.mulf %82, %83 : vector<8x8x8xf32>
    %c0_36 = arith.constant 0 : index
    %c3 = arith.constant 3 : index
    %c0_37 = arith.constant 0 : index
    %c0_38 = arith.constant 0 : index
    %c0_39 = arith.constant 0 : index
    %85 = vector.load %arg10[%c0_36, %c3, %c0_37, %c0_38, %c0_39] : memref<1x4x8x8x8xf32, #tpu.memory_space<vmem>>, vector<1x1x8x8x8xf32>
    %86 = vector.shape_cast %85 : vector<1x1x8x8x8xf32> to vector<8x8x8xf32>
    %87 = vector.shape_cast %84 : vector<8x8x8xf32> to vector<1x1x8x8x8xf32>
    tpu.vector_store %arg10[%c0_36, %c3, %c0_37, %c0_38, %c0_39], %87 {strides = array<i32>} : memref<1x4x8x8x8xf32, #tpu.memory_space<vmem>>, vector<1x1x8x8x8xf32>,
    %cst_40 = arith.constant dense<0xFF800000> : vector<8x8xf32>
    %88 = vector.multi_reduction <maximumf>, %84, %cst_40 [2] : vector<8x8x8xf32> to vector<8x8xf32>
    %89 = vector.shape_cast %88 : vector<8x8xf32> to vector<8x8x1xf32>
    %90 = vector.broadcast %89 : vector<8x8x1xf32> to vector<8x8x8xf32>
    %91 = arith.subf %84, %90 : vector<8x8x8xf32>
    %92 = math.exp %91 : vector<8x8x8xf32>
    %cst_41 = arith.constant dense<0.000000e+00> : vector<8x8xf32>
    %93 = vector.multi_reduction <add>, %92, %cst_41 [2] : vector<8x8x8xf32> to vector<8x8xf32>
    %94 = vector.shape_cast %93 : vector<8x8xf32> to vector<8x8x1xf32>
    %95 = tpu.reciprocal %94 {approx = true} : vector<8x8x1xf32> -> vector<8x8x1xf32>
    %96 = vector.broadcast %95 : vector<8x8x1xf32> to vector<8x8x8xf32>
    %97 = arith.mulf %92, %96 : vector<8x8x8xf32>
    "tpu.trace_start"() <{level = 10 : i32, message = "gst,gtd->gsd"}> : () -> ()
    %cst_42 = arith.constant dense<0.000000e+00> : vector<8x8x8xf32>
    %98 = tpu.matmul %97, %81, %cst_42 {dimension_numbers = #tpu.dot_dimension_numbers<[2], [1], [1], [2], [0, 0, 0, 1, 1, 2], [0], [0]>} : vector<8x8x8xf32>, vector<8x8x8xf32>, vector<8x8x8xf32> -> vector<8x8x8xf32>
    "tpu.trace_stop"() : () -> ()
    %99 = tpu.concatenate %29, %52, %75, %98 in 2 : vector<8x8x8xf32>, vector<8x8x8xf32>, vector<8x8x8xf32>, vector<8x8x8xf32> -> vector<8x8x32xf32>
    %100 = vector.shape_cast %1 : vector<8x8x32xf32> to vector<64x32xf32>
    %101 = vector.shape_cast %99 : vector<8x8x32xf32> to vector<64x32xf32>
    %102 = arith.truncf %101 : vector<64x32xf32> to vector<64x32xbf16>
    %c0_43 = arith.constant 0 : index
    %c0_44 = arith.constant 0 : index
    %c0_45 = arith.constant 0 : index
    %103 = vector.load %arg3[%c0_43, %c0_44, %c0_45] : memref<4x32x128xbf16, #tpu.memory_space<vmem>>, vector<1x32x128xbf16>
    %104 = vector.shape_cast %103 : vector<1x32x128xbf16> to vector<32x128xbf16>
    %cst_46 = arith.constant dense<0.000000e+00> : vector<64x128xf32>
    %105 = tpu.matmul %102, %104, %cst_46 {dimension_numbers = #tpu.dot_dimension_numbers<[1], [0], [0], [1], [0, 0, 1, 1], [], []>} : vector<64x32xbf16>, vector<32x128xbf16>, vector<64x128xf32> -> vector<64x128xf32>
    %c0_47 = arith.constant 0 : index
    %c0_48 = arith.constant 0 : index
    %c0_49 = arith.constant 0 : index
    %106 = vector.load %arg4[%c0_47, %c0_48, %c0_49] : memref<4x1x128xf32, #tpu.memory_space<vmem>>, vector<1x1x128xf32>
    %107 = vector.shape_cast %106 : vector<1x1x128xf32> to vector<1x128xf32>
    %108 = vector.broadcast %107 : vector<1x128xf32> to vector<64x128xf32>
    %109 = arith.mulf %105, %108 : vector<64x128xf32>
    %c0_50 = arith.constant 0 : index
    %c0_51 = arith.constant 0 : index
    %c0_52 = arith.constant 0 : index
    %110 = vector.load %arg5[%c0_50, %c0_51, %c0_52] : memref<4x1x128xf32, #tpu.memory_space<vmem>>, vector<1x1x128xf32>
    %111 = vector.shape_cast %110 : vector<1x1x128xf32> to vector<1x128xf32>
    %112 = vector.broadcast %111 : vector<1x128xf32> to vector<64x128xf32>
    %113 = arith.addf %109, %112 : vector<64x128xf32>
    %cst_53 = arith.constant 0.000000e+00 : f32
    %114 = vector.broadcast %cst_53 : f32 to vector<64x128xf32>
    %115 = arith.maximumf %113, %114 : vector<64x128xf32>
    %116 = arith.truncf %115 : vector<64x128xf32> to vector<64x128xbf16>
    %c0_54 = arith.constant 0 : index
    %c0_55 = arith.constant 0 : index
    %c0_56 = arith.constant 0 : index
    %117 = vector.load %arg6[%c0_54, %c0_55, %c0_56] : memref<4x128x32xbf16, #tpu.memory_space<vmem>>, vector<1x128x32xbf16>
    %118 = vector.shape_cast %117 : vector<1x128x32xbf16> to vector<128x32xbf16>
    %cst_57 = arith.constant dense<0.000000e+00> : vector<64x32xf32>
    %119 = tpu.matmul %116, %118, %cst_57 {dimension_numbers = #tpu.dot_dimension_numbers<[1], [0], [0], [1], [0, 0, 1, 1], [], []>} : vector<64x128xbf16>, vector<128x32xbf16>, vector<64x32xf32> -> vector<64x32xf32>
    %c0_58 = arith.constant 0 : index
    %c0_59 = arith.constant 0 : index
    %c0_60 = arith.constant 0 : index
    %120 = vector.load %arg7[%c0_58, %c0_59, %c0_60] : memref<4x1x32xf32, #tpu.memory_space<vmem>>, vector<1x1x32xf32>
    %121 = vector.shape_cast %120 : vector<1x1x32xf32> to vector<1x32xf32>
    %122 = vector.broadcast %121 : vector<1x32xf32> to vector<64x32xf32>
    %123 = arith.mulf %119, %122 : vector<64x32xf32>
    %c0_61 = arith.constant 0 : index
    %c0_62 = arith.constant 0 : index
    %c0_63 = arith.constant 0 : index
    %124 = vector.load %arg8[%c0_61, %c0_62, %c0_63] : memref<4x1x32xf32, #tpu.memory_space<vmem>>, vector<1x1x32xf32>
    %125 = vector.shape_cast %124 : vector<1x1x32xf32> to vector<1x32xf32>
    %126 = vector.broadcast %125 : vector<1x32xf32> to vector<64x32xf32>
    %127 = arith.addf %123, %126 : vector<64x32xf32>
    %128 = arith.addf %100, %127 : vector<64x32xf32>
    %cst_64 = arith.constant 0.000000e+00 : f32
    %129 = vector.broadcast %cst_64 : f32 to vector<64x32xf32>
    %130 = arith.maximumf %128, %129 : vector<64x32xf32>
    %131 = arith.addf %100, %130 : vector<64x32xf32>
    %cst_65 = arith.constant 0.000000e+00 : f32
    %132 = vector.broadcast %cst_65 : f32 to vector<64x32xf32>
    %133 = arith.maximumf %131, %132 : vector<64x32xf32>
    %134 = arith.truncf %133 : vector<64x32xf32> to vector<64x32xbf16>
    %c1_66 = arith.constant 1 : index
    %c0_67 = arith.constant 0 : index
    %c0_68 = arith.constant 0 : index
    %135 = vector.load %arg3[%c1_66, %c0_67, %c0_68] : memref<4x32x128xbf16, #tpu.memory_space<vmem>>, vector<1x32x128xbf16>
    %136 = vector.shape_cast %135 : vector<1x32x128xbf16> to vector<32x128xbf16>
    %cst_69 = arith.constant dense<0.000000e+00> : vector<64x128xf32>
    %137 = tpu.matmul %134, %136, %cst_69 {dimension_numbers = #tpu.dot_dimension_numbers<[1], [0], [0], [1], [0, 0, 1, 1], [], []>} : vector<64x32xbf16>, vector<32x128xbf16>, vector<64x128xf32> -> vector<64x128xf32>
    %c1_70 = arith.constant 1 : index
    %c0_71 = arith.constant 0 : index
    %c0_72 = arith.constant 0 : index
    %138 = vector.load %arg4[%c1_70, %c0_71, %c0_72] : memref<4x1x128xf32, #tpu.memory_space<vmem>>, vector<1x1x128xf32>
    %139 = vector.shape_cast %138 : vector<1x1x128xf32> to vector<1x128xf32>
    %140 = vector.broadcast %139 : vector<1x128xf32> to vector<64x128xf32>
    %141 = arith.mulf %137, %140 : vector<64x128xf32>
    %c1_73 = arith.constant 1 : index
    %c0_74 = arith.constant 0 : index
    %c0_75 = arith.constant 0 : index
    %142 = vector.load %arg5[%c1_73, %c0_74, %c0_75] : memref<4x1x128xf32, #tpu.memory_space<vmem>>, vector<1x1x128xf32>
    %143 = vector.shape_cast %142 : vector<1x1x128xf32> to vector<1x128xf32>
    %144 = vector.broadcast %143 : vector<1x128xf32> to vector<64x128xf32>
    %145 = arith.addf %141, %144 : vector<64x128xf32>
    %cst_76 = arith.constant 0.000000e+00 : f32
    %146 = vector.broadcast %cst_76 : f32 to vector<64x128xf32>
    %147 = arith.maximumf %145, %146 : vector<64x128xf32>
    %148 = arith.truncf %147 : vector<64x128xf32> to vector<64x128xbf16>
    %c1_77 = arith.constant 1 : index
    %c0_78 = arith.constant 0 : index
    %c0_79 = arith.constant 0 : index
    %149 = vector.load %arg6[%c1_77, %c0_78, %c0_79] : memref<4x128x32xbf16, #tpu.memory_space<vmem>>, vector<1x128x32xbf16>
    %150 = vector.shape_cast %149 : vector<1x128x32xbf16> to vector<128x32xbf16>
    %cst_80 = arith.constant dense<0.000000e+00> : vector<64x32xf32>
    %151 = tpu.matmul %148, %150, %cst_80 {dimension_numbers = #tpu.dot_dimension_numbers<[1], [0], [0], [1], [0, 0, 1, 1], [], []>} : vector<64x128xbf16>, vector<128x32xbf16>, vector<64x32xf32> -> vector<64x32xf32>
    %c1_81 = arith.constant 1 : index
    %c0_82 = arith.constant 0 : index
    %c0_83 = arith.constant 0 : index
    %152 = vector.load %arg7[%c1_81, %c0_82, %c0_83] : memref<4x1x32xf32, #tpu.memory_space<vmem>>, vector<1x1x32xf32>
    %153 = vector.shape_cast %152 : vector<1x1x32xf32> to vector<1x32xf32>
    %154 = vector.broadcast %153 : vector<1x32xf32> to vector<64x32xf32>
    %155 = arith.mulf %151, %154 : vector<64x32xf32>
    %c1_84 = arith.constant 1 : index
    %c0_85 = arith.constant 0 : index
    %c0_86 = arith.constant 0 : index
    %156 = vector.load %arg8[%c1_84, %c0_85, %c0_86] : memref<4x1x32xf32, #tpu.memory_space<vmem>>, vector<1x1x32xf32>
    %157 = vector.shape_cast %156 : vector<1x1x32xf32> to vector<1x32xf32>
    %158 = vector.broadcast %157 : vector<1x32xf32> to vector<64x32xf32>
    %159 = arith.addf %155, %158 : vector<64x32xf32>
    %160 = arith.addf %133, %159 : vector<64x32xf32>
    %cst_87 = arith.constant 0.000000e+00 : f32
    %161 = vector.broadcast %cst_87 : f32 to vector<64x32xf32>
    %162 = arith.maximumf %160, %161 : vector<64x32xf32>
    %163 = vector.shape_cast %162 : vector<64x32xf32> to vector<8x8x32xf32>
    %164 = vector.extract_strided_slice %163 {offsets = [0, 0, 0], sizes = [8, 1, 32], strides = [1, 1, 1]} : vector<8x8x32xf32> to vector<8x1x32xf32>
    %165 = vector.shape_cast %164 : vector<8x1x32xf32> to vector<8x32xf32>
    %166 = vector.extract_strided_slice %163 {offsets = [0, 1, 0], sizes = [8, 1, 32], strides = [1, 1, 1]} : vector<8x8x32xf32> to vector<8x1x32xf32>
    %167 = vector.shape_cast %166 : vector<8x1x32xf32> to vector<8x32xf32>
    %168 = vector.extract_strided_slice %163 {offsets = [0, 2, 0], sizes = [8, 1, 32], strides = [1, 1, 1]} : vector<8x8x32xf32> to vector<8x1x32xf32>
    %169 = vector.shape_cast %168 : vector<8x1x32xf32> to vector<8x32xf32>
    %170 = vector.extract_strided_slice %163 {offsets = [0, 3, 0], sizes = [8, 1, 32], strides = [1, 1, 1]} : vector<8x8x32xf32> to vector<8x1x32xf32>
    %171 = vector.shape_cast %170 : vector<8x1x32xf32> to vector<8x32xf32>
    %172 = vector.extract_strided_slice %163 {offsets = [0, 4, 0], sizes = [8, 1, 32], strides = [1, 1, 1]} : vector<8x8x32xf32> to vector<8x1x32xf32>
    %173 = vector.shape_cast %172 : vector<8x1x32xf32> to vector<8x32xf32>
    %174 = vector.extract_strided_slice %163 {offsets = [0, 5, 0], sizes = [8, 1, 32], strides = [1, 1, 1]} : vector<8x8x32xf32> to vector<8x1x32xf32>
    %175 = vector.shape_cast %174 : vector<8x1x32xf32> to vector<8x32xf32>
    %176 = vector.extract_strided_slice %163 {offsets = [0, 6, 0], sizes = [8, 1, 32], strides = [1, 1, 1]} : vector<8x8x32xf32> to vector<8x1x32xf32>
    %177 = vector.shape_cast %176 : vector<8x1x32xf32> to vector<8x32xf32>
    %178 = vector.extract_strided_slice %163 {offsets = [0, 7, 0], sizes = [8, 1, 32], strides = [1, 1, 1]} : vector<8x8x32xf32> to vector<8x1x32xf32>
    %179 = vector.shape_cast %178 : vector<8x1x32xf32> to vector<8x32xf32>
    %180 = vector.shape_cast %165 : vector<8x32xf32> to vector<1x8x32xf32>
    %181 = vector.shape_cast %167 : vector<8x32xf32> to vector<1x8x32xf32>
    %182 = vector.shape_cast %169 : vector<8x32xf32> to vector<1x8x32xf32>
    %183 = vector.shape_cast %171 : vector<8x32xf32> to vector<1x8x32xf32>
    %184 = vector.shape_cast %173 : vector<8x32xf32> to vector<1x8x32xf32>
    %185 = vector.shape_cast %175 : vector<8x32xf32> to vector<1x8x32xf32>
    %186 = vector.shape_cast %177 : vector<8x32xf32> to vector<1x8x32xf32>
    %187 = vector.shape_cast %179 : vector<8x32xf32> to vector<1x8x32xf32>
    %188 = tpu.concatenate %180, %181, %182, %183, %184, %185, %186, %187 in 0 : vector<1x8x32xf32>, vector<1x8x32xf32>, vector<1x8x32xf32>, vector<1x8x32xf32>, vector<1x8x32xf32>, vector<1x8x32xf32>, vector<1x8x32xf32>, vector<1x8x32xf32> -> vector<8x8x32xf32>
    %c1_88 = arith.constant 1 : index
    %c0_89 = arith.constant 0 : index
    %c0_90 = arith.constant 0 : index
    %189 = vector.load %arg2[%c1_88, %c0_89, %c0_90] : memref<2x32x96xbf16, #tpu.memory_space<vmem>>, vector<1x32x96xbf16>
    %190 = vector.shape_cast %189 : vector<1x32x96xbf16> to vector<32x96xbf16>
    %191 = vector.shape_cast %188 : vector<8x8x32xf32> to vector<64x32xf32>
    %192 = arith.truncf %191 : vector<64x32xf32> to vector<64x32xbf16>
    %cst_91 = arith.constant dense<0.000000e+00> : vector<64x96xf32>
    %193 = tpu.matmul %192, %190, %cst_91 {dimension_numbers = #tpu.dot_dimension_numbers<[1], [0], [0], [1], [0, 0, 1, 1], [], []>} : vector<64x32xbf16>, vector<32x96xbf16>, vector<64x96xf32> -> vector<64x96xf32>
    %194 = vector.extract_strided_slice %193 {offsets = [0, 0], sizes = [64, 8], strides = [1, 1]} : vector<64x96xf32> to vector<64x8xf32>
    %195 = vector.shape_cast %194 : vector<64x8xf32> to vector<8x8x8xf32>
    %196 = vector.extract_strided_slice %193 {offsets = [0, 32], sizes = [64, 8], strides = [1, 1]} : vector<64x96xf32> to vector<64x8xf32>
    %197 = vector.shape_cast %196 : vector<64x8xf32> to vector<8x8x8xf32>
    %198 = vector.extract_strided_slice %193 {offsets = [0, 64], sizes = [64, 8], strides = [1, 1]} : vector<64x96xf32> to vector<64x8xf32>
    %199 = vector.shape_cast %198 : vector<64x8xf32> to vector<8x8x8xf32>
    "tpu.trace_start"() <{level = 10 : i32, message = "gsd,gtd->gst"}> : () -> ()
    %cst_92 = arith.constant dense<0.000000e+00> : vector<8x8x8xf32>
    %200 = tpu.matmul %195, %197, %cst_92 {dimension_numbers = #tpu.dot_dimension_numbers<[2], [2], [1], [1], [0, 0, 0, 1, 1, 1], [0], [0]>} : vector<8x8x8xf32>, vector<8x8x8xf32>, vector<8x8x8xf32> -> vector<8x8x8xf32>
    "tpu.trace_stop"() : () -> ()
    %cst_93 = arith.constant 0.353553385 : f32
    %201 = vector.broadcast %cst_93 : f32 to vector<8x8x8xf32>
    %202 = arith.mulf %200, %201 : vector<8x8x8xf32>
    %c0_94 = arith.constant 0 : index
    %c0_95 = arith.constant 0 : index
    %c0_96 = arith.constant 0 : index
    %c0_97 = arith.constant 0 : index
    %c0_98 = arith.constant 0 : index
    %203 = vector.load %arg11[%c0_94, %c0_95, %c0_96, %c0_97, %c0_98] : memref<1x4x8x8x8xf32, #tpu.memory_space<vmem>>, vector<1x1x8x8x8xf32>
    %204 = vector.shape_cast %203 : vector<1x1x8x8x8xf32> to vector<8x8x8xf32>
    %205 = vector.shape_cast %202 : vector<8x8x8xf32> to vector<1x1x8x8x8xf32>
    tpu.vector_store %arg11[%c0_94, %c0_95, %c0_96, %c0_97, %c0_98], %205 {strides = array<i32>} : memref<1x4x8x8x8xf32, #tpu.memory_space<vmem>>, vector<1x1x8x8x8xf32>,
    %cst_99 = arith.constant dense<0xFF800000> : vector<8x8xf32>
    %206 = vector.multi_reduction <maximumf>, %202, %cst_99 [2] : vector<8x8x8xf32> to vector<8x8xf32>
    %207 = vector.shape_cast %206 : vector<8x8xf32> to vector<8x8x1xf32>
    %208 = vector.broadcast %207 : vector<8x8x1xf32> to vector<8x8x8xf32>
    %209 = arith.subf %202, %208 : vector<8x8x8xf32>
    %210 = math.exp %209 : vector<8x8x8xf32>
    %cst_100 = arith.constant dense<0.000000e+00> : vector<8x8xf32>
    %211 = vector.multi_reduction <add>, %210, %cst_100 [2] : vector<8x8x8xf32> to vector<8x8xf32>
    %212 = vector.shape_cast %211 : vector<8x8xf32> to vector<8x8x1xf32>
    %213 = tpu.reciprocal %212 {approx = true} : vector<8x8x1xf32> -> vector<8x8x1xf32>
    %214 = vector.broadcast %213 : vector<8x8x1xf32> to vector<8x8x8xf32>
    %215 = arith.mulf %210, %214 : vector<8x8x8xf32>
    "tpu.trace_start"() <{level = 10 : i32, message = "gst,gtd->gsd"}> : () -> ()
    %cst_101 = arith.constant dense<0.000000e+00> : vector<8x8x8xf32>
    %216 = tpu.matmul %215, %199, %cst_101 {dimension_numbers = #tpu.dot_dimension_numbers<[2], [1], [1], [2], [0, 0, 0, 1, 1, 2], [0], [0]>} : vector<8x8x8xf32>, vector<8x8x8xf32>, vector<8x8x8xf32> -> vector<8x8x8xf32>
    "tpu.trace_stop"() : () -> ()
    %217 = vector.extract_strided_slice %193 {offsets = [0, 8], sizes = [64, 8], strides = [1, 1]} : vector<64x96xf32> to vector<64x8xf32>
    %218 = vector.shape_cast %217 : vector<64x8xf32> to vector<8x8x8xf32>
    %219 = vector.extract_strided_slice %193 {offsets = [0, 40], sizes = [64, 8], strides = [1, 1]} : vector<64x96xf32> to vector<64x8xf32>
    %220 = vector.shape_cast %219 : vector<64x8xf32> to vector<8x8x8xf32>
    %221 = vector.extract_strided_slice %193 {offsets = [0, 72], sizes = [64, 8], strides = [1, 1]} : vector<64x96xf32> to vector<64x8xf32>
    %222 = vector.shape_cast %221 : vector<64x8xf32> to vector<8x8x8xf32>
    "tpu.trace_start"() <{level = 10 : i32, message = "gsd,gtd->gst"}> : () -> ()
    %cst_102 = arith.constant dense<0.000000e+00> : vector<8x8x8xf32>
    %223 = tpu.matmul %218, %220, %cst_102 {dimension_numbers = #tpu.dot_dimension_numbers<[2], [2], [1], [1], [0, 0, 0, 1, 1, 1], [0], [0]>} : vector<8x8x8xf32>, vector<8x8x8xf32>, vector<8x8x8xf32> -> vector<8x8x8xf32>
    "tpu.trace_stop"() : () -> ()
    %cst_103 = arith.constant 0.353553385 : f32
    %224 = vector.broadcast %cst_103 : f32 to vector<8x8x8xf32>
    %225 = arith.mulf %223, %224 : vector<8x8x8xf32>
    %c0_104 = arith.constant 0 : index
    %c1_105 = arith.constant 1 : index
    %c0_106 = arith.constant 0 : index
    %c0_107 = arith.constant 0 : index
    %c0_108 = arith.constant 0 : index
    %226 = vector.load %arg11[%c0_104, %c1_105, %c0_106, %c0_107, %c0_108] : memref<1x4x8x8x8xf32, #tpu.memory_space<vmem>>, vector<1x1x8x8x8xf32>
    %227 = vector.shape_cast %226 : vector<1x1x8x8x8xf32> to vector<8x8x8xf32>
    %228 = vector.shape_cast %225 : vector<8x8x8xf32> to vector<1x1x8x8x8xf32>
    tpu.vector_store %arg11[%c0_104, %c1_105, %c0_106, %c0_107, %c0_108], %228 {strides = array<i32>} : memref<1x4x8x8x8xf32, #tpu.memory_space<vmem>>, vector<1x1x8x8x8xf32>,
    %cst_109 = arith.constant dense<0xFF800000> : vector<8x8xf32>
    %229 = vector.multi_reduction <maximumf>, %225, %cst_109 [2] : vector<8x8x8xf32> to vector<8x8xf32>
    %230 = vector.shape_cast %229 : vector<8x8xf32> to vector<8x8x1xf32>
    %231 = vector.broadcast %230 : vector<8x8x1xf32> to vector<8x8x8xf32>
    %232 = arith.subf %225, %231 : vector<8x8x8xf32>
    %233 = math.exp %232 : vector<8x8x8xf32>
    %cst_110 = arith.constant dense<0.000000e+00> : vector<8x8xf32>
    %234 = vector.multi_reduction <add>, %233, %cst_110 [2] : vector<8x8x8xf32> to vector<8x8xf32>
    %235 = vector.shape_cast %234 : vector<8x8xf32> to vector<8x8x1xf32>
    %236 = tpu.reciprocal %235 {approx = true} : vector<8x8x1xf32> -> vector<8x8x1xf32>
    %237 = vector.broadcast %236 : vector<8x8x1xf32> to vector<8x8x8xf32>
    %238 = arith.mulf %233, %237 : vector<8x8x8xf32>
    "tpu.trace_start"() <{level = 10 : i32, message = "gst,gtd->gsd"}> : () -> ()
    %cst_111 = arith.constant dense<0.000000e+00> : vector<8x8x8xf32>
    %239 = tpu.matmul %238, %222, %cst_111 {dimension_numbers = #tpu.dot_dimension_numbers<[2], [1], [1], [2], [0, 0, 0, 1, 1, 2], [0], [0]>} : vector<8x8x8xf32>, vector<8x8x8xf32>, vector<8x8x8xf32> -> vector<8x8x8xf32>
    "tpu.trace_stop"() : () -> ()
    %240 = vector.extract_strided_slice %193 {offsets = [0, 16], sizes = [64, 8], strides = [1, 1]} : vector<64x96xf32> to vector<64x8xf32>
    %241 = vector.shape_cast %240 : vector<64x8xf32> to vector<8x8x8xf32>
    %242 = vector.extract_strided_slice %193 {offsets = [0, 48], sizes = [64, 8], strides = [1, 1]} : vector<64x96xf32> to vector<64x8xf32>
    %243 = vector.shape_cast %242 : vector<64x8xf32> to vector<8x8x8xf32>
    %244 = vector.extract_strided_slice %193 {offsets = [0, 80], sizes = [64, 8], strides = [1, 1]} : vector<64x96xf32> to vector<64x8xf32>
    %245 = vector.shape_cast %244 : vector<64x8xf32> to vector<8x8x8xf32>
    "tpu.trace_start"() <{level = 10 : i32, message = "gsd,gtd->gst"}> : () -> ()
    %cst_112 = arith.constant dense<0.000000e+00> : vector<8x8x8xf32>
    %246 = tpu.matmul %241, %243, %cst_112 {dimension_numbers = #tpu.dot_dimension_numbers<[2], [2], [1], [1], [0, 0, 0, 1, 1, 1], [0], [0]>} : vector<8x8x8xf32>, vector<8x8x8xf32>, vector<8x8x8xf32> -> vector<8x8x8xf32>
    "tpu.trace_stop"() : () -> ()
    %cst_113 = arith.constant 0.353553385 : f32
    %247 = vector.broadcast %cst_113 : f32 to vector<8x8x8xf32>
    %248 = arith.mulf %246, %247 : vector<8x8x8xf32>
    %c0_114 = arith.constant 0 : index
    %c2_115 = arith.constant 2 : index
    %c0_116 = arith.constant 0 : index
    %c0_117 = arith.constant 0 : index
    %c0_118 = arith.constant 0 : index
    %249 = vector.load %arg11[%c0_114, %c2_115, %c0_116, %c0_117, %c0_118] : memref<1x4x8x8x8xf32, #tpu.memory_space<vmem>>, vector<1x1x8x8x8xf32>
    %250 = vector.shape_cast %249 : vector<1x1x8x8x8xf32> to vector<8x8x8xf32>
    %251 = vector.shape_cast %248 : vector<8x8x8xf32> to vector<1x1x8x8x8xf32>
    tpu.vector_store %arg11[%c0_114, %c2_115, %c0_116, %c0_117, %c0_118], %251 {strides = array<i32>} : memref<1x4x8x8x8xf32, #tpu.memory_space<vmem>>, vector<1x1x8x8x8xf32>,
    %cst_119 = arith.constant dense<0xFF800000> : vector<8x8xf32>
    %252 = vector.multi_reduction <maximumf>, %248, %cst_119 [2] : vector<8x8x8xf32> to vector<8x8xf32>
    %253 = vector.shape_cast %252 : vector<8x8xf32> to vector<8x8x1xf32>
    %254 = vector.broadcast %253 : vector<8x8x1xf32> to vector<8x8x8xf32>
    %255 = arith.subf %248, %254 : vector<8x8x8xf32>
    %256 = math.exp %255 : vector<8x8x8xf32>
    %cst_120 = arith.constant dense<0.000000e+00> : vector<8x8xf32>
    %257 = vector.multi_reduction <add>, %256, %cst_120 [2] : vector<8x8x8xf32> to vector<8x8xf32>
    %258 = vector.shape_cast %257 : vector<8x8xf32> to vector<8x8x1xf32>
    %259 = tpu.reciprocal %258 {approx = true} : vector<8x8x1xf32> -> vector<8x8x1xf32>
    %260 = vector.broadcast %259 : vector<8x8x1xf32> to vector<8x8x8xf32>
    %261 = arith.mulf %256, %260 : vector<8x8x8xf32>
    "tpu.trace_start"() <{level = 10 : i32, message = "gst,gtd->gsd"}> : () -> ()
    %cst_121 = arith.constant dense<0.000000e+00> : vector<8x8x8xf32>
    %262 = tpu.matmul %261, %245, %cst_121 {dimension_numbers = #tpu.dot_dimension_numbers<[2], [1], [1], [2], [0, 0, 0, 1, 1, 2], [0], [0]>} : vector<8x8x8xf32>, vector<8x8x8xf32>, vector<8x8x8xf32> -> vector<8x8x8xf32>
    "tpu.trace_stop"() : () -> ()
    %263 = vector.extract_strided_slice %193 {offsets = [0, 24], sizes = [64, 8], strides = [1, 1]} : vector<64x96xf32> to vector<64x8xf32>
    %264 = vector.shape_cast %263 : vector<64x8xf32> to vector<8x8x8xf32>
    %265 = vector.extract_strided_slice %193 {offsets = [0, 56], sizes = [64, 8], strides = [1, 1]} : vector<64x96xf32> to vector<64x8xf32>
    %266 = vector.shape_cast %265 : vector<64x8xf32> to vector<8x8x8xf32>
    %267 = vector.extract_strided_slice %193 {offsets = [0, 88], sizes = [64, 8], strides = [1, 1]} : vector<64x96xf32> to vector<64x8xf32>
    %268 = vector.shape_cast %267 : vector<64x8xf32> to vector<8x8x8xf32>
    "tpu.trace_start"() <{level = 10 : i32, message = "gsd,gtd->gst"}> : () -> ()
    %cst_122 = arith.constant dense<0.000000e+00> : vector<8x8x8xf32>
    %269 = tpu.matmul %264, %266, %cst_122 {dimension_numbers = #tpu.dot_dimension_numbers<[2], [2], [1], [1], [0, 0, 0, 1, 1, 1], [0], [0]>} : vector<8x8x8xf32>, vector<8x8x8xf32>, vector<8x8x8xf32> -> vector<8x8x8xf32>
    "tpu.trace_stop"() : () -> ()
    %cst_123 = arith.constant 0.353553385 : f32
    %270 = vector.broadcast %cst_123 : f32 to vector<8x8x8xf32>
    %271 = arith.mulf %269, %270 : vector<8x8x8xf32>
    %c0_124 = arith.constant 0 : index
    %c3_125 = arith.constant 3 : index
    %c0_126 = arith.constant 0 : index
    %c0_127 = arith.constant 0 : index
    %c0_128 = arith.constant 0 : index
    %272 = vector.load %arg11[%c0_124, %c3_125, %c0_126, %c0_127, %c0_128] : memref<1x4x8x8x8xf32, #tpu.memory_space<vmem>>, vector<1x1x8x8x8xf32>
    %273 = vector.shape_cast %272 : vector<1x1x8x8x8xf32> to vector<8x8x8xf32>
    %274 = vector.shape_cast %271 : vector<8x8x8xf32> to vector<1x1x8x8x8xf32>
    tpu.vector_store %arg11[%c0_124, %c3_125, %c0_126, %c0_127, %c0_128], %274 {strides = array<i32>} : memref<1x4x8x8x8xf32, #tpu.memory_space<vmem>>, vector<1x1x8x8x8xf32>,
    %cst_129 = arith.constant dense<0xFF800000> : vector<8x8xf32>
    %275 = vector.multi_reduction <maximumf>, %271, %cst_129 [2] : vector<8x8x8xf32> to vector<8x8xf32>
    %276 = vector.shape_cast %275 : vector<8x8xf32> to vector<8x8x1xf32>
    %277 = vector.broadcast %276 : vector<8x8x1xf32> to vector<8x8x8xf32>
    %278 = arith.subf %271, %277 : vector<8x8x8xf32>
    %279 = math.exp %278 : vector<8x8x8xf32>
    %cst_130 = arith.constant dense<0.000000e+00> : vector<8x8xf32>
    %280 = vector.multi_reduction <add>, %279, %cst_130 [2] : vector<8x8x8xf32> to vector<8x8xf32>
    %281 = vector.shape_cast %280 : vector<8x8xf32> to vector<8x8x1xf32>
    %282 = tpu.reciprocal %281 {approx = true} : vector<8x8x1xf32> -> vector<8x8x1xf32>
    %283 = vector.broadcast %282 : vector<8x8x1xf32> to vector<8x8x8xf32>
    %284 = arith.mulf %279, %283 : vector<8x8x8xf32>
    "tpu.trace_start"() <{level = 10 : i32, message = "gst,gtd->gsd"}> : () -> ()
    %cst_131 = arith.constant dense<0.000000e+00> : vector<8x8x8xf32>
    %285 = tpu.matmul %284, %268, %cst_131 {dimension_numbers = #tpu.dot_dimension_numbers<[2], [1], [1], [2], [0, 0, 0, 1, 1, 2], [0], [0]>} : vector<8x8x8xf32>, vector<8x8x8xf32>, vector<8x8x8xf32> -> vector<8x8x8xf32>
    "tpu.trace_stop"() : () -> ()
    %286 = tpu.concatenate %216, %239, %262, %285 in 2 : vector<8x8x8xf32>, vector<8x8x8xf32>, vector<8x8x8xf32>, vector<8x8x8xf32> -> vector<8x8x32xf32>
    %287 = vector.shape_cast %188 : vector<8x8x32xf32> to vector<64x32xf32>
    %288 = vector.shape_cast %286 : vector<8x8x32xf32> to vector<64x32xf32>
    %289 = arith.truncf %288 : vector<64x32xf32> to vector<64x32xbf16>
    %c2_132 = arith.constant 2 : index
    %c0_133 = arith.constant 0 : index
    %c0_134 = arith.constant 0 : index
    %290 = vector.load %arg3[%c2_132, %c0_133, %c0_134] : memref<4x32x128xbf16, #tpu.memory_space<vmem>>, vector<1x32x128xbf16>
    %291 = vector.shape_cast %290 : vector<1x32x128xbf16> to vector<32x128xbf16>
    %cst_135 = arith.constant dense<0.000000e+00> : vector<64x128xf32>
    %292 = tpu.matmul %289, %291, %cst_135 {dimension_numbers = #tpu.dot_dimension_numbers<[1], [0], [0], [1], [0, 0, 1, 1], [], []>} : vector<64x32xbf16>, vector<32x128xbf16>, vector<64x128xf32> -> vector<64x128xf32>
    %c2_136 = arith.constant 2 : index
    %c0_137 = arith.constant 0 : index
    %c0_138 = arith.constant 0 : index
    %293 = vector.load %arg4[%c2_136, %c0_137, %c0_138] : memref<4x1x128xf32, #tpu.memory_space<vmem>>, vector<1x1x128xf32>
    %294 = vector.shape_cast %293 : vector<1x1x128xf32> to vector<1x128xf32>
    %295 = vector.broadcast %294 : vector<1x128xf32> to vector<64x128xf32>
    %296 = arith.mulf %292, %295 : vector<64x128xf32>
    %c2_139 = arith.constant 2 : index
    %c0_140 = arith.constant 0 : index
    %c0_141 = arith.constant 0 : index
    %297 = vector.load %arg5[%c2_139, %c0_140, %c0_141] : memref<4x1x128xf32, #tpu.memory_space<vmem>>, vector<1x1x128xf32>
    %298 = vector.shape_cast %297 : vector<1x1x128xf32> to vector<1x128xf32>
    %299 = vector.broadcast %298 : vector<1x128xf32> to vector<64x128xf32>
    %300 = arith.addf %296, %299 : vector<64x128xf32>
    %cst_142 = arith.constant 0.000000e+00 : f32
    %301 = vector.broadcast %cst_142 : f32 to vector<64x128xf32>
    %302 = arith.maximumf %300, %301 : vector<64x128xf32>
    %303 = arith.truncf %302 : vector<64x128xf32> to vector<64x128xbf16>
    %c2_143 = arith.constant 2 : index
    %c0_144 = arith.constant 0 : index
    %c0_145 = arith.constant 0 : index
    %304 = vector.load %arg6[%c2_143, %c0_144, %c0_145] : memref<4x128x32xbf16, #tpu.memory_space<vmem>>, vector<1x128x32xbf16>
    %305 = vector.shape_cast %304 : vector<1x128x32xbf16> to vector<128x32xbf16>
    %cst_146 = arith.constant dense<0.000000e+00> : vector<64x32xf32>
    %306 = tpu.matmul %303, %305, %cst_146 {dimension_numbers = #tpu.dot_dimension_numbers<[1], [0], [0], [1], [0, 0, 1, 1], [], []>} : vector<64x128xbf16>, vector<128x32xbf16>, vector<64x32xf32> -> vector<64x32xf32>
    %c2_147 = arith.constant 2 : index
    %c0_148 = arith.constant 0 : index
    %c0_149 = arith.constant 0 : index
    %307 = vector.load %arg7[%c2_147, %c0_148, %c0_149] : memref<4x1x32xf32, #tpu.memory_space<vmem>>, vector<1x1x32xf32>
    %308 = vector.shape_cast %307 : vector<1x1x32xf32> to vector<1x32xf32>
    %309 = vector.broadcast %308 : vector<1x32xf32> to vector<64x32xf32>
    %310 = arith.mulf %306, %309 : vector<64x32xf32>
    %c2_150 = arith.constant 2 : index
    %c0_151 = arith.constant 0 : index
    %c0_152 = arith.constant 0 : index
    %311 = vector.load %arg8[%c2_150, %c0_151, %c0_152] : memref<4x1x32xf32, #tpu.memory_space<vmem>>, vector<1x1x32xf32>
    %312 = vector.shape_cast %311 : vector<1x1x32xf32> to vector<1x32xf32>
    %313 = vector.broadcast %312 : vector<1x32xf32> to vector<64x32xf32>
    %314 = arith.addf %310, %313 : vector<64x32xf32>
    %315 = arith.addf %287, %314 : vector<64x32xf32>
    %cst_153 = arith.constant 0.000000e+00 : f32
    %316 = vector.broadcast %cst_153 : f32 to vector<64x32xf32>
    %317 = arith.maximumf %315, %316 : vector<64x32xf32>
    %318 = arith.addf %287, %317 : vector<64x32xf32>
    %cst_154 = arith.constant 0.000000e+00 : f32
    %319 = vector.broadcast %cst_154 : f32 to vector<64x32xf32>
    %320 = arith.maximumf %318, %319 : vector<64x32xf32>
    %321 = arith.truncf %320 : vector<64x32xf32> to vector<64x32xbf16>
    %c3_155 = arith.constant 3 : index
    %c0_156 = arith.constant 0 : index
    %c0_157 = arith.constant 0 : index
    %322 = vector.load %arg3[%c3_155, %c0_156, %c0_157] : memref<4x32x128xbf16, #tpu.memory_space<vmem>>, vector<1x32x128xbf16>
    %323 = vector.shape_cast %322 : vector<1x32x128xbf16> to vector<32x128xbf16>
    %cst_158 = arith.constant dense<0.000000e+00> : vector<64x128xf32>
    %324 = tpu.matmul %321, %323, %cst_158 {dimension_numbers = #tpu.dot_dimension_numbers<[1], [0], [0], [1], [0, 0, 1, 1], [], []>} : vector<64x32xbf16>, vector<32x128xbf16>, vector<64x128xf32> -> vector<64x128xf32>
    %c3_159 = arith.constant 3 : index
    %c0_160 = arith.constant 0 : index
    %c0_161 = arith.constant 0 : index
    %325 = vector.load %arg4[%c3_159, %c0_160, %c0_161] : memref<4x1x128xf32, #tpu.memory_space<vmem>>, vector<1x1x128xf32>
    %326 = vector.shape_cast %325 : vector<1x1x128xf32> to vector<1x128xf32>
    %327 = vector.broadcast %326 : vector<1x128xf32> to vector<64x128xf32>
    %328 = arith.mulf %324, %327 : vector<64x128xf32>
    %c3_162 = arith.constant 3 : index
    %c0_163 = arith.constant 0 : index
    %c0_164 = arith.constant 0 : index
    %329 = vector.load %arg5[%c3_162, %c0_163, %c0_164] : memref<4x1x128xf32, #tpu.memory_space<vmem>>, vector<1x1x128xf32>
    %330 = vector.shape_cast %329 : vector<1x1x128xf32> to vector<1x128xf32>
    %331 = vector.broadcast %330 : vector<1x128xf32> to vector<64x128xf32>
    %332 = arith.addf %328, %331 : vector<64x128xf32>
    %cst_165 = arith.constant 0.000000e+00 : f32
    %333 = vector.broadcast %cst_165 : f32 to vector<64x128xf32>
    %334 = arith.maximumf %332, %333 : vector<64x128xf32>
    %335 = arith.truncf %334 : vector<64x128xf32> to vector<64x128xbf16>
    %c3_166 = arith.constant 3 : index
    %c0_167 = arith.constant 0 : index
    %c0_168 = arith.constant 0 : index
    %336 = vector.load %arg6[%c3_166, %c0_167, %c0_168] : memref<4x128x32xbf16, #tpu.memory_space<vmem>>, vector<1x128x32xbf16>
    %337 = vector.shape_cast %336 : vector<1x128x32xbf16> to vector<128x32xbf16>
    %cst_169 = arith.constant dense<0.000000e+00> : vector<64x32xf32>
    %338 = tpu.matmul %335, %337, %cst_169 {dimension_numbers = #tpu.dot_dimension_numbers<[1], [0], [0], [1], [0, 0, 1, 1], [], []>} : vector<64x128xbf16>, vector<128x32xbf16>, vector<64x32xf32> -> vector<64x32xf32>
    %c3_170 = arith.constant 3 : index
    %c0_171 = arith.constant 0 : index
    %c0_172 = arith.constant 0 : index
    %339 = vector.load %arg7[%c3_170, %c0_171, %c0_172] : memref<4x1x32xf32, #tpu.memory_space<vmem>>, vector<1x1x32xf32>
    %340 = vector.shape_cast %339 : vector<1x1x32xf32> to vector<1x32xf32>
    %341 = vector.broadcast %340 : vector<1x32xf32> to vector<64x32xf32>
    %342 = arith.mulf %338, %341 : vector<64x32xf32>
    %c3_173 = arith.constant 3 : index
    %c0_174 = arith.constant 0 : index
    %c0_175 = arith.constant 0 : index
    %343 = vector.load %arg8[%c3_173, %c0_174, %c0_175] : memref<4x1x32xf32, #tpu.memory_space<vmem>>, vector<1x1x32xf32>
    %344 = vector.shape_cast %343 : vector<1x1x32xf32> to vector<1x32xf32>
    %345 = vector.broadcast %344 : vector<1x32xf32> to vector<64x32xf32>
    %346 = arith.addf %342, %345 : vector<64x32xf32>
    %347 = arith.addf %320, %346 : vector<64x32xf32>
    %cst_176 = arith.constant 0.000000e+00 : f32
    %348 = vector.broadcast %cst_176 : f32 to vector<64x32xf32>
    %349 = arith.maximumf %347, %348 : vector<64x32xf32>
    %350 = vector.shape_cast %349 : vector<64x32xf32> to vector<8x8x32xf32>
    %c0_177 = arith.constant 0 : index
    %c0_178 = arith.constant 0 : index
    %c0_179 = arith.constant 0 : index
    %c0_180 = arith.constant 0 : index
    %351 = vector.load %arg9[%c0_177, %c0_178, %c0_179, %c0_180] : memref<1x8x8x32xf32, #tpu.memory_space<vmem>>, vector<1x8x8x32xf32>
    %352 = vector.shape_cast %351 : vector<1x8x8x32xf32> to vector<8x8x32xf32>
    %353 = vector.shape_cast %350 : vector<8x8x32xf32> to vector<1x8x8x32xf32>
    tpu.vector_store %arg9[%c0_177, %c0_178, %c0_179, %c0_180], %353 {strides = array<i32>} : memref<1x8x8x32xf32, #tpu.memory_space<vmem>>, vector<1x8x8x32xf32>,
    return
  }
  func.func @transform_0(%arg0: i32) -> (i32, i32, i32, i32) {
    %c0_i32 = arith.constant 0 : i32
    %c0_i32_0 = arith.constant 0 : i32
    %c0_i32_1 = arith.constant 0 : i32
    %c0_i32_2 = arith.constant 0 : i32
    return %arg0, %c0_i32, %c0_i32_0, %c0_i32_1 : i32, i32, i32, i32
  }
  func.func @transform_1(%arg0: i32) -> (i32, i32, i32) {
    %c0_i32 = arith.constant 0 : i32
    %c0_i32_0 = arith.constant 0 : i32
    %c0_i32_1 = arith.constant 0 : i32
    %c0_i32_2 = arith.constant 0 : i32
    return %c0_i32, %c0_i32_0, %c0_i32_1 : i32, i32, i32
  }
  func.func @transform_2(%arg0: i32) -> (i32, i32, i32) {
    %c0_i32 = arith.constant 0 : i32
    %c0_i32_0 = arith.constant 0 : i32
    %c0_i32_1 = arith.constant 0 : i32
    %c0_i32_2 = arith.constant 0 : i32
    return %c0_i32, %c0_i32_0, %c0_i32_1 : i32, i32, i32
  }
  func.func @transform_3(%arg0: i32) -> (i32, i32, i32) {
    %c0_i32 = arith.constant 0 : i32
    %c0_i32_0 = arith.constant 0 : i32
    %c0_i32_1 = arith.constant 0 : i32
    %c0_i32_2 = arith.constant 0 : i32
    return %c0_i32, %c0_i32_0, %c0_i32_1 : i32, i32, i32
  }
  func.func @transform_4(%arg0: i32) -> (i32, i32, i32) {
    %c0_i32 = arith.constant 0 : i32
    %c0_i32_0 = arith.constant 0 : i32
    %c0_i32_1 = arith.constant 0 : i32
    %c0_i32_2 = arith.constant 0 : i32
    return %c0_i32, %c0_i32_0, %c0_i32_1 : i32, i32, i32
  }
  func.func @transform_5(%arg0: i32) -> (i32, i32, i32) {
    %c0_i32 = arith.constant 0 : i32
    %c0_i32_0 = arith.constant 0 : i32
    %c0_i32_1 = arith.constant 0 : i32
    %c0_i32_2 = arith.constant 0 : i32
    return %c0_i32, %c0_i32_0, %c0_i32_1 : i32, i32, i32
  }
  func.func @transform_6(%arg0: i32) -> (i32, i32, i32) {
    %c0_i32 = arith.constant 0 : i32
    %c0_i32_0 = arith.constant 0 : i32
    %c0_i32_1 = arith.constant 0 : i32
    %c0_i32_2 = arith.constant 0 : i32
    return %c0_i32, %c0_i32_0, %c0_i32_1 : i32, i32, i32
  }
  func.func @transform_7(%arg0: i32) -> (i32, i32, i32) {
    %c0_i32 = arith.constant 0 : i32
    %c0_i32_0 = arith.constant 0 : i32
    %c0_i32_1 = arith.constant 0 : i32
    %c0_i32_2 = arith.constant 0 : i32
    return %c0_i32, %c0_i32_0, %c0_i32_1 : i32, i32, i32
  }
  func.func @transform_8(%arg0: i32) -> (i32, i32, i32, i32) {
    %c0_i32 = arith.constant 0 : i32
    %c0_i32_0 = arith.constant 0 : i32
    %c0_i32_1 = arith.constant 0 : i32
    %c0_i32_2 = arith.constant 0 : i32
    return %arg0, %c0_i32, %c0_i32_0, %c0_i32_1 : i32, i32, i32, i32
  }
  func.func @transform_9(%arg0: i32) -> (i32, i32, i32, i32, i32) {
    %c0_i32 = arith.constant 0 : i32
    %c0_i32_0 = arith.constant 0 : i32
    %c0_i32_1 = arith.constant 0 : i32
    %c0_i32_2 = arith.constant 0 : i32
    %c0_i32_3 = arith.constant 0 : i32
    return %arg0, %c0_i32, %c0_i32_0, %c0_i32_1, %c0_i32_2 : i32, i32, i32, i32, i32
  }
  func.func @transform_10(%arg0: i32) -> (i32, i32, i32, i32, i32) {
    %c0_i32 = arith.constant 0 : i32
    %c0_i32_0 = arith.constant 0 : i32
    %c0_i32_1 = arith.constant 0 : i32
    %c0_i32_2 = arith.constant 0 : i32
    %c0_i32_3 = arith.constant 0 : i32
    return %arg0, %c0_i32, %c0_i32_0, %c0_i32_1, %c0_i32_2 : i32, i32, i32, i32, i32
  }
}

</mosaic_0001>

<llo_original>
// kernel: group_block_forward.1
$region0: #{group_block_forward.1}
  #allocation0 [shape = 'u32[]', space=smem, size = 0x4, offset = 0x4, fixed_abs, tag = 'smem constant byte address 0x4 - core index']
  #allocation1 [shape = 'u32[72,128]{1,0:T(1,128)}', space=vmem, size = 0x9000, scoped, tag = 'internal scratch']
  %s0 = inlined_call_operand.vmem [shape: f32[2,8,8,32], index: 0, kind: input, shape index: {}]
  %s1 = inlined_call_operand.vmem [shape: bf16[2,32,96], index: 1, kind: input, shape index: {}]
  %s2 = inlined_call_operand.vmem [shape: bf16[4,32,128], index: 2, kind: input, shape index: {}]
  %s3 = inlined_call_operand.vmem [shape: f32[4,1,128], index: 3, kind: input, shape index: {}]
  %s4 = inlined_call_operand.vmem [shape: f32[4,1,128], index: 4, kind: input, shape index: {}]
  %s5 = inlined_call_operand.vmem [shape: bf16[4,128,32], index: 5, kind: input, shape index: {}]
  %s6 = inlined_call_operand.vmem [shape: f32[4,1,32], index: 6, kind: input, shape index: {}]
  %s7 = inlined_call_operand.vmem [shape: f32[4,1,32], index: 7, kind: input, shape index: {}]
  %s8 = inlined_call_operand.hbm [shape: f32[2,8,8,32], index: 8, kind: output, shape index: {0}]
  %s9 = inlined_call_operand.vmem [shape: f32[2,4,8,8,8], index: 9, kind: output, shape index: {1}]
  %s10 = inlined_call_operand.vmem [shape: f32[2,4,8,8,8], index: 10, kind: output, shape index: {2}]
  %11 = xla_tuple %s8, %s9, %s10
  %s12 = sld [smem:[#allocation0]]
  $region81: #{group_block_forward.1} parent=0
    _
  %s14 = ssub.s32 1, %s12
  %s15 = scalar_select 0, %s14, %s12
  $region1: #{group_block_forward.1} parent=0
    #allocation2 [shape = 'u8[65536]{0}', space=vmem, size = 0x10000, scoped, tag = 'output window, operand 0']
    #allocation3 [shape = 's32[2]{0}', space=sflag, size = 0x8, scoped, tag = 'scoped memory for group_block_forward.1']
    %16 = vsyncpa [#allocation3], 0
    %s17 = scalar_lea.sflag [#allocation3], 1
    %18 = vsyncpa %s17, 0
    loop: start=0, step=1, limit=4
    $region2: #{group_block_forward.1} parent=1 // loop_pre_header
      _
    $region3: #{group_block_forward.1} parent=1 // loop_header
      %s20 = sphi 0, %s24
      %p21 = scmp.ge.s32.totalorder %s20, 4
      %s30 = sphi 0, %s32
      %s33 = sphi 0, %s30
      %s34 = sphi 0, %s33
      %s50 = sphi 0, %s34
      %s54 = sphi 0, %s54
      %s56 = sphi 0, %s54
      %s57 = sphi 0, %s56
      %s71 = sphi 0, %s57
      %s75 = sphi 0, %s75
      %s77 = sphi 0, %s75
      %s78 = sphi 0, %s77
      %s92 = sphi 0, %s78
      %s96 = sphi 0, %s96
      %s98 = sphi 0, %s96
      %s99 = sphi 0, %s98
      %s113 = sphi 0, %s99
      %s117 = sphi 0, %s117
      %s119 = sphi 0, %s117
      %s120 = sphi 0, %s119
      %s134 = sphi 0, %s120
      %s138 = sphi 0, %s138
      %s140 = sphi 0, %s138
      %s141 = sphi 0, %s140
      %s155 = sphi 0, %s141
      %s159 = sphi 0, %s159
      %s161 = sphi 0, %s159
      %s162 = sphi 0, %s161
      %s176 = sphi 0, %s162
      %s180 = sphi 0, %s180
      %s182 = sphi 0, %s180
      %s183 = sphi 0, %s182
      %s197 = sphi 0, %s183
      %s203 = sphi 0, %s205
      %s206 = sphi 0, %s203
      %s207 = sphi 0, %s206
      %s223 = sphi 0, %s207
      %s229 = sphi 0, %s231
      %s232 = sphi 0, %s229
      %s233 = sphi 0, %s232
      %s249 = sphi 0, %s233
      %s255 = sphi 0, %s257
      %s258 = sphi 0, %s255
      %s259 = sphi 0, %s258
      %s275 = sphi 0, %s259
    $region4: #{group_block_forward.1} parent=1 // loop_header_branch
      %23 = sbr.rel (%p21) target = $region8
    $region5: #{group_block_forward.1} parent=1 // loop_body
      %s25 = ssub.s32 %s20, 1
      %s26 = ssub.s32 %s20, 2
      %s27 = sadd.s32 %s20, 1
      %s28 = ssub.s32 %s20, %s27
      %p29 = scmp.eq.s32.totalorder %s28, 0
      %s31 = sadd.s32 %s30, 1
      %s32 = scalar_select %p29, %s30, %s31
      %p35 = pneg %p29
      %p36 = scmp.eq.s32.totalorder %s20, 1
      %p37 = por %p35, %p36
      %p38 = scmp.ne.s32.totalorder %s30, %s33
      %p39 = scmp.eq.s32.totalorder %s20, 0
      %p40 = por %p38, %p39
      %p41 = scmp.ne.s32.totalorder %s30, %s33
      %p42 = scmp.eq.s32.totalorder %s25, 1
      %p43 = por %p41, %p42
      %p44 = scmp.ne.s32.totalorder %s33, %s34
      %p45 = scmp.eq.s32.totalorder %s25, 0
      %p46 = por %p44, %p45
      %p47 = scmp.ne.s32.totalorder %s33, %s34
      %p48 = scmp.eq.s32.totalorder %s26, 1
      %p49 = por %p47, %p48
      %p51 = scmp.ne.s32.totalorder %s34, %s50
      %p52 = scmp.eq.s32.totalorder %s26, 0
      %p53 = por %p51, %p52
      %s55 = sadd.s32 %s54, 1
      %p58 = scmp.eq.s32.totalorder %s20, 1
      %p59 = scmp.ne.s32.totalorder %s54, %s56
      %p60 = scmp.eq.s32.totalorder %s20, 0
      %p61 = por %p59, %p60
      %p62 = scmp.ne.s32.totalorder %s54, %s56
      %p63 = scmp.eq.s32.totalorder %s25, 1
      %p64 = por %p62, %p63
      %p65 = scmp.ne.s32.totalorder %s56, %s57
      %p66 = scmp.eq.s32.totalorder %s25, 0
      %p67 = por %p65, %p66
      %p68 = scmp.ne.s32.totalorder %s56, %s57
      %p69 = scmp.eq.s32.totalorder %s26, 1
      %p70 = por %p68, %p69
      %p72 = scmp.ne.s32.totalorder %s57, %s71
      %p73 = scmp.eq.s32.totalorder %s26, 0
      %p74 = por %p72, %p73
      %s76 = sadd.s32 %s75, 1
      %p79 = scmp.eq.s32.totalorder %s20, 1
      %p80 = scmp.ne.s32.totalorder %s75, %s77
      %p81 = scmp.eq.s32.totalorder %s20, 0
      %p82 = por %p80, %p81
      %p83 = scmp.ne.s32.totalorder %s75, %s77
      %p84 = scmp.eq.s32.totalorder %s25, 1
      %p85 = por %p83, %p84
      %p86 = scmp.ne.s32.totalorder %s77, %s78
      %p87 = scmp.eq.s32.totalorder %s25, 0
      %p88 = por %p86, %p87
      %p89 = scmp.ne.s32.totalorder %s77, %s78
      %p90 = scmp.eq.s32.totalorder %s26, 1
      %p91 = por %p89, %p90
      %p93 = scmp.ne.s32.totalorder %s78, %s92
      %p94 = scmp.eq.s32.totalorder %s26, 0
      %p95 = por %p93, %p94
      %s97 = sadd.s32 %s96, 1
      %p100 = scmp.eq.s32.totalorder %s20, 1
      %p101 = scmp.ne.s32.totalorder %s96, %s98
      %p102 = scmp.eq.s32.totalorder %s20, 0
      %p103 = por %p101, %p102
      %p104 = scmp.ne.s32.totalorder %s96, %s98
      %p105 = scmp.eq.s32.totalorder %s25, 1
      %p106 = por %p104, %p105
      %p107 = scmp.ne.s32.totalorder %s98, %s99
      %p108 = scmp.eq.s32.totalorder %s25, 0
      %p109 = por %p107, %p108
      %p110 = scmp.ne.s32.totalorder %s98, %s99
      %p111 = scmp.eq.s32.totalorder %s26, 1
      %p112 = por %p110, %p111
      %p114 = scmp.ne.s32.totalorder %s99, %s113
      %p115 = scmp.eq.s32.totalorder %s26, 0
      %p116 = por %p114, %p115
      %s118 = sadd.s32 %s117, 1
      %p121 = scmp.eq.s32.totalorder %s20, 1
      %p122 = scmp.ne.s32.totalorder %s117, %s119
      %p123 = scmp.eq.s32.totalorder %s20, 0
      %p124 = por %p122, %p123
      %p125 = scmp.ne.s32.totalorder %s117, %s119
      %p126 = scmp.eq.s32.totalorder %s25, 1
      %p127 = por %p125, %p126
      %p128 = scmp.ne.s32.totalorder %s119, %s120
      %p129 = scmp.eq.s32.totalorder %s25, 0
      %p130 = por %p128, %p129
      %p131 = scmp.ne.s32.totalorder %s119, %s120
      %p132 = scmp.eq.s32.totalorder %s26, 1
      %p133 = por %p131, %p132
      %p135 = scmp.ne.s32.totalorder %s120, %s134
      %p136 = scmp.eq.s32.totalorder %s26, 0
      %p137 = por %p135, %p136
      %s139 = sadd.s32 %s138, 1
      %p142 = scmp.eq.s32.totalorder %s20, 1
      %p143 = scmp.ne.s32.totalorder %s138, %s140
      %p144 = scmp.eq.s32.totalorder %s20, 0
      %p145 = por %p143, %p144
      %p146 = scmp.ne.s32.totalorder %s138, %s140
      %p147 = scmp.eq.s32.totalorder %s25, 1
      %p148 = por %p146, %p147
      %p149 = scmp.ne.s32.totalorder %s140, %s141
      %p150 = scmp.eq.s32.totalorder %s25, 0
      %p151 = por %p149, %p150
      %p152 = scmp.ne.s32.totalorder %s140, %s141
      %p153 = scmp.eq.s32.totalorder %s26, 1
      %p154 = por %p152, %p153
      %p156 = scmp.ne.s32.totalorder %s141, %s155
      %p157 = scmp.eq.s32.totalorder %s26, 0
      %p158 = por %p156, %p157
      %s160 = sadd.s32 %s159, 1
      %p163 = scmp.eq.s32.totalorder %s20, 1
      %p164 = scmp.ne.s32.totalorder %s159, %s161
      %p165 = scmp.eq.s32.totalorder %s20, 0
      %p166 = por %p164, %p165
      %p167 = scmp.ne.s32.totalorder %s159, %s161
      %p168 = scmp.eq.s32.totalorder %s25, 1
      %p169 = por %p167, %p168
      %p170 = scmp.ne.s32.totalorder %s161, %s162
      %p171 = scmp.eq.s32.totalorder %s25, 0
      %p172 = por %p170, %p171
      %p173 = scmp.ne.s32.totalorder %s161, %s162
      %p174 = scmp.eq.s32.totalorder %s26, 1
      %p175 = por %p173, %p174
      %p177 = scmp.ne.s32.totalorder %s162, %s176
      %p178 = scmp.eq.s32.totalorder %s26, 0
      %p179 = por %p177, %p178
      %s181 = sadd.s32 %s180, 1
      %p184 = scmp.eq.s32.totalorder %s20, 1
      %p185 = scmp.ne.s32.totalorder %s180, %s182
      %p186 = scmp.eq.s32.totalorder %s20, 0
      %p187 = por %p185, %p186
      %p188 = scmp.ne.s32.totalorder %s180, %s182
      %p189 = scmp.eq.s32.totalorder %s25, 1
      %p190 = por %p188, %p189
      %p191 = scmp.ne.s32.totalorder %s182, %s183
      %p192 = scmp.eq.s32.totalorder %s25, 0
      %p193 = por %p191, %p192
      %p194 = scmp.ne.s32.totalorder %s182, %s183
      %p195 = scmp.eq.s32.totalorder %s26, 1
      %p196 = por %p194, %p195
      %p198 = scmp.ne.s32.totalorder %s183, %s197
      %p199 = scmp.eq.s32.totalorder %s26, 0
      %p200 = por %p198, %p199
      %s201 = ssub.s32 %s20, %s27
      %p202 = scmp.eq.s32.totalorder %s201, 0
      %s204 = sadd.s32 %s203, 1
      %s205 = scalar_select %p202, %s203, %s204
      %p208 = pneg %p202
      %p209 = scmp.eq.s32.totalorder %s20, 1
      %p210 = por %p208, %p209
      %p211 = scmp.ne.s32.totalorder %s203, %s206
      %p212 = scmp.eq.s32.totalorder %s20, 0
      %p213 = por %p211, %p212
      %p214 = scmp.ne.s32.totalorder %s203, %s206
      %p215 = scmp.eq.s32.totalorder %s25, 1
      %p216 = por %p214, %p215
      %p217 = scmp.ne.s32.totalorder %s206, %s207
      %p218 = scmp.eq.s32.totalorder %s25, 0
      %p219 = por %p217, %p218
      %p220 = scmp.ne.s32.totalorder %s206, %s207
      %p221 = scmp.eq.s32.totalorder %s26, 1
      %p222 = por %p220, %p221
      %p224 = scmp.ne.s32.totalorder %s207, %s223
      %p225 = scmp.eq.s32.totalorder %s26, 0
      %p226 = por %p224, %p225
      %s227 = ssub.s32 %s20, %s27
      %p228 = scmp.eq.s32.totalorder %s227, 0
      %s230 = sadd.s32 %s229, 1
      %s231 = scalar_select %p228, %s229, %s230
      %p234 = pneg %p228
      %p235 = scmp.eq.s32.totalorder %s20, 1
      %p236 = por %p234, %p235
      %p237 = scmp.ne.s32.totalorder %s229, %s232
      %p238 = scmp.eq.s32.totalorder %s20, 0
      %p239 = por %p237, %p238
      %p240 = scmp.ne.s32.totalorder %s229, %s232
      %p241 = scmp.eq.s32.totalorder %s25, 1
      %p242 = por %p240, %p241
      %p243 = scmp.ne.s32.totalorder %s232, %s233
      %p244 = scmp.eq.s32.totalorder %s25, 0
      %p245 = por %p243, %p244
      %p246 = scmp.ne.s32.totalorder %s232, %s233
      %p247 = scmp.eq.s32.totalorder %s26, 1
      %p248 = por %p246, %p247
      %p250 = scmp.ne.s32.totalorder %s233, %s249
      %p251 = scmp.eq.s32.totalorder %s26, 0
      %p252 = por %p250, %p251
      %s253 = ssub.s32 %s20, %s27
      %p254 = scmp.eq.s32.totalorder %s253, 0
      %s256 = sadd.s32 %s255, 1
      %s257 = scalar_select %p254, %s255, %s256
      %p260 = pneg %p254
      %p261 = scmp.eq.s32.totalorder %s20, 1
      %p262 = por %p260, %p261
      %p263 = scmp.ne.s32.totalorder %s255, %s258
      %p264 = scmp.eq.s32.totalorder %s20, 0
      %p265 = por %p263, %p264
      %p266 = scmp.ne.s32.totalorder %s255, %s258
      %p267 = scmp.eq.s32.totalorder %s25, 1
      %p268 = por %p266, %p267
      %p269 = scmp.ne.s32.totalorder %s258, %s259
      %p270 = scmp.eq.s32.totalorder %s25, 0
      %p271 = por %p269, %p270
      %p272 = scmp.ne.s32.totalorder %s258, %s259
      %p273 = scmp.eq.s32.totalorder %s26, 1
      %p274 = por %p272, %p273
      %p276 = scmp.ne.s32.totalorder %s259, %s275
      %p277 = scmp.eq.s32.totalorder %s26, 0
      %p278 = por %p276, %p277
      %p279 = scmp.le.s32.totalorder 1, %s20
      %p280 = scmp.lt.s32.totalorder %s20, 3
      %p281 = pnand %p279, %p280
      %p282 = pneg %p281
      // Predicated region
      $region9: #{group_block_forward.1} parent=5 // pred_check
        _
      $region10: #{group_block_forward.1} parent=5 // pred_check_branch
        %284 = sbr.rel (%p281) target = $region12
      $region11: #{group_block_forward.1} parent=5 // pred_region
        %s285 = ssub.s32 %s20, 1
        // Predicated region
        $region13: #{group_block_forward.1} parent=11 // pred_check
          %p286 = pneg %p67
        $region14: #{group_block_forward.1} parent=11 // pred_check_branch
          %288 = sbr.rel (%p286) target = $region16
        $region15: #{group_block_forward.1} parent=11 // pred_region
          _
        $region16: #{group_block_forward.1} parent=11 // pred_fallthru
          _
        // Predicated region
        $region17: #{group_block_forward.1} parent=11 // pred_check
          %p289 = pneg %p88
        $region18: #{group_block_forward.1} parent=11 // pred_check_branch
          %291 = sbr.rel (%p289) target = $region20
        $region19: #{group_block_forward.1} parent=11 // pred_region
          _
        $region20: #{group_block_forward.1} parent=11 // pred_fallthru
          _
        // Predicated region
        $region21: #{group_block_forward.1} parent=11 // pred_check
          %p292 = pneg %p109
        $region22: #{group_block_forward.1} parent=11 // pred_check_branch
          %294 = sbr.rel (%p292) target = $region24
        $region23: #{group_block_forward.1} parent=11 // pred_region
          _
        $region24: #{group_block_forward.1} parent=11 // pred_fallthru
          _
        // Predicated region
        $region25: #{group_block_forward.1} parent=11 // pred_check
          %p295 = pneg %p130
        $region26: #{group_block_forward.1} parent=11 // pred_check_branch
          %297 = sbr.rel (%p295) target = $region28
        $region27: #{group_block_forward.1} parent=11 // pred_region
          _
        $region28: #{group_block_forward.1} parent=11 // pred_fallthru
          _
        // Predicated region
        $region29: #{group_block_forward.1} parent=11 // pred_check
          %p298 = pneg %p151
        $region30: #{group_block_forward.1} parent=11 // pred_check_branch
          %300 = sbr.rel (%p298) target = $region32
        $region31: #{group_block_forward.1} parent=11 // pred_region
          _
        $region32: #{group_block_forward.1} parent=11 // pred_fallthru
          _
        // Predicated region
        $region33: #{group_block_forward.1} parent=11 // pred_check
          %p301 = pneg %p172
        $region34: #{group_block_forward.1} parent=11 // pred_check_branch
          %303 = sbr.rel (%p301) target = $region36
        $region35: #{group_block_forward.1} parent=11 // pred_region
          _
        $region36: #{group_block_forward.1} parent=11 // pred_fallthru
          _
        // Predicated region
        $region37: #{group_block_forward.1} parent=11 // pred_check
          %p304 = pneg %p193
        $region38: #{group_block_forward.1} parent=11 // pred_check_branch
          %306 = sbr.rel (%p304) target = $region40
        $region39: #{group_block_forward.1} parent=11 // pred_region
          _
        $region40: #{group_block_forward.1} parent=11 // pred_fallthru
          _
      $region12: #{group_block_forward.1} parent=5 // pred_fallthru
        _
      %p307 = scmp.lt.s32.totalorder %s20, 2
      // Predicated region
      $region41: #{group_block_forward.1} parent=5 // pred_check
        %p308 = pneg %p307
      $region42: #{group_block_forward.1} parent=5 // pred_check_branch
        %310 = sbr.rel (%p308) target = $region44
      $region43: #{group_block_forward.1} parent=5 // pred_region
        // Predicated region
        $region45: #{group_block_forward.1} parent=43 // pred_check
          %p311 = pneg %p40
        $region46: #{group_block_forward.1} parent=43 // pred_check_branch
          %313 = sbr.rel (%p311) target = $region48
        $region47: #{group_block_forward.1} parent=43 // pred_region
          %p314 = scmp.lt.s32.totalorder %s20, 1
          %s315 = scalar_select %p314, %s20, 1
          %s316 = smul.addr %s315, 8
          %s317 = smul.addr %s316, 8
          %s318 = scalar_lea.vmem %s0, %s317
        $region48: #{group_block_forward.1} parent=43 // pred_fallthru
          _
      $region44: #{group_block_forward.1} parent=5 // pred_fallthru
        _
      %p319 = scmp.le.s32.totalorder 1, %s20
      %p320 = scmp.lt.s32.totalorder %s20, 3
      %p321 = pnand %p319, %p320
      %p322 = pneg %p321
      // Predicated region
      $region49: #{group_block_forward.1} parent=5 // pred_check
        _
      $region50: #{group_block_forward.1} parent=5 // pred_check_branch
        %324 = sbr.rel (%p321) target = $region52
      $region51: #{group_block_forward.1} parent=5 // pred_region
        %s325 = ssub.s32 %s20, 1
        %p326 = scmp.lt.s32.totalorder %s25, 1
        %s327 = scalar_select %p326, %s25, 1
        %s328 = smul.addr %s327, 8
        %s329 = smul.addr %s328, 8
        %s330 = scalar_lea.vmem %s0, %s329
        %p331 = pneg %p46
        %p332 = pneg %p43
        %p333 = pneg %p67
        %p334 = pneg %p64
        %p335 = pneg %p88
        %p336 = pneg %p85
        %p337 = pneg %p109
        %p338 = pneg %p106
        %p339 = pneg %p130
        %p340 = pneg %p127
        %p341 = pneg %p151
        %p342 = pneg %p148
        %p343 = pneg %p172
        %p344 = pneg %p169
        %p345 = pneg %p193
        %p346 = pneg %p190
        %p347 = pneg %p219
        %p348 = pneg %p216
        %s349 = sand.u32 %s206, 1
        %s350 = scalar_lea.sflag [#allocation3], %s349
        %s351 = sand.u32 %s206, 1
        %s352 = smul.addr %s351, 64
        %s353 = scalar_lea.vmem [#allocation2], %s352
        %p354 = pneg %p245
        %p355 = pneg %p242
        %p356 = scmp.lt.s32.totalorder %s25, 1
        %s357 = scalar_select %p356, %s25, 1
        %s358 = smul.addr %s357, 32
        %s359 = smul.addr %s358, 8
        %s360 = scalar_lea.vmem %s9, %s359
        %p361 = pneg %p271
        %p362 = pneg %p268
        %p363 = scmp.lt.s32.totalorder %s25, 1
        %s364 = scalar_select %p363, %s25, 1
        %s365 = smul.addr %s364, 32
        %s366 = smul.addr %s365, 8
        %s367 = scalar_lea.vmem %s10, %s366
        %p368 = scmp.lt.s32.totalorder %s25, 1
        %s369 = scalar_select %p368, %s25, 1
        %s370 = smul.addr %s369, 8
        %s371 = smul.addr %s370, 8
        %s372 = scalar_lea.vmem %s0, %s371
        %p373 = scmp.lt.s32.totalorder %s25, 1
        %s374 = scalar_select %p373, %s25, 1
        %s375 = smul.addr %s374, 32
        %s376 = smul.addr %s375, 8
        %s377 = scalar_lea.vmem %s9, %s376
        %p378 = scmp.lt.s32.totalorder %s25, 1
        %s379 = scalar_select %p378, %s25, 1
        %s380 = smul.addr %s379, 32
        %s381 = smul.addr %s380, 8
        %s382 = scalar_lea.vmem %s10, %s381
        %v384 = vld [vmem:[%s372] sm:$0xff]
        %v385 = vld [vmem:[%s372 + $0x8] sm:$0xff]
        %v386 = vld [vmem:[%s372 + $0x10] sm:$0xff]
        %v387 = vld [vmem:[%s372 + $0x18] sm:$0xff]
        %v388 = vld [vmem:[%s372 + $0x20] sm:$0xff]
        %v389 = vld [vmem:[%s372 + $0x28] sm:$0xff]
        %v390 = vld [vmem:[%s372 + $0x30] sm:$0xff]
        %v391 = vld [vmem:[%s372 + $0x38] sm:$0xff]
        %v392 = vld [vmem:[%s1] sm:$0xf]
        %v393 = vld [vmem:[%s1 + $0x4] sm:$0xf]
        %v394 = vld [vmem:[%s1 + $0x8] sm:$0xf]
        %v395 = vld [vmem:[%s1 + $0xc] sm:$0xf]
        %v396 = vpack.c.bf16 %v385, %v384
        %v397 = vpack.c.bf16 %v387, %v386
        %v398 = vpack.c.bf16 %v389, %v388
        %v399 = vpack.c.bf16 %v391, %v390
        %v404 = vunpack.c.l.b16 %v392
        %v405 = vunpack.c.l.b16 %v393
        %v406 = vunpack.c.l.b16 %v394
        %v407 = vunpack.c.l.b16 %v395
        %v408 = vpack.c.b16 %v405, %v404
        %v409 = vpack.c.b16 %v407, %v406
        %vm412 = vcmask 261120
        %v414 = vsel %vm412, %v396, 0
        %v417 = vsel %vm412, %v397, 0
        %v420 = vsel %vm412, %v398, 0
        %v423 = vsel %vm412, %v399, 0
        %425 = vmatpush.bf16.msra.mxu0 0
        %426 = vmatpush.bf16.msra.mxu0 0
        %427 = vmatpush.bf16.msra.mxu0 0
        %428 = vmatpush.bf16.msra.mxu0 0
        %429 = vmatpush.bf16.msra.mxu0 0
        %430 = vmatpush.bf16.msra.mxu0 0
        %431 = vmatpush.bf16.msra.mxu0 %v409
        %432 = vmatpush.bf16.msra.mxu0 %v408
        %433 = vmatmul.bf16.gmra.mxu0 %v414
        %v434 = vpop.f32.mrf.mxu0
        %v435 = vadd.f32 0.0, %v434
        %v436 = vpop.f32.mrf.mxu0
        %v437 = vadd.f32 0.0, %v436
        %438 = vmatmul.bf16.gmra.mxu0 %v417
        %v439 = vpop.f32.mrf.mxu0
        %v440 = vadd.f32 0.0, %v439
        %v441 = vpop.f32.mrf.mxu0
        %v442 = vadd.f32 0.0, %v441
        %443 = vmatmul.bf16.gmra.mxu0 %v420
        %v444 = vpop.f32.mrf.mxu0
        %v445 = vadd.f32 0.0, %v444
        %v446 = vpop.f32.mrf.mxu0
        %v447 = vadd.f32 0.0, %v446
        %448 = vmatmul.bf16.gmra.mxu0 %v423
        %v449 = vpop.f32.mrf.mxu0
        %v450 = vadd.f32 0.0, %v449
        %v451 = vpop.f32.mrf.mxu0
        %v452 = vadd.f32 0.0, %v451
        %453 = vdwg.mxu0
        %455 = vrot.lane.b32.xlu0 %v435, 96
        %v456 = vpop.permute.xlu0 %455
        %vm457 = vcmask 64512
        %v458 = vsel %vm457, %v435, 0
        %v460 = vsel %vm457, %v456, 0
        %462 = vmatpush.xpose.msra.mxu0 0.0
        %463 = vmatpush.xpose.msra.mxu0 0.0
        %464 = vmatpush.xpose.msra.mxu0 0.0
        %465 = vmatpush.xpose.msra.mxu0 0.0
        %466 = vmatpush.xpose.msra.mxu0 0.0
        %467 = vmatpush.xpose.msra.mxu0 0.0
        %468 = vmatpush.xpose.msra.mxu0 0.0
        %469 = vmatpush.xpose.msra.mxu0 0.0
        %470 = vmatpush.xpose.msra.mxu0 0.0
        %471 = vmatpush.xpose.msra.mxu0 0.0
        %472 = vmatpush.xpose.msra.mxu0 0.0
        %473 = vmatpush.xpose.msra.mxu0 0.0
        %474 = vmatpush.xpose.msra.mxu0 0.0
        %475 = vmatpush.xpose.msra.mxu0 0.0
        %476 = vmatpush.xpose.msra.mxu0 0.0
        %477 = vmatpush.xpose.msra.mxu0 %v460
        %478 = vmatmul.f32.gmra.mxu0 %v458
        %v479 = vpop.f32.mrf.mxu0
        %v480 = vadd.f32 0.0, %v479
        %481 = vdwg.mxu0
        %483 = vrot.lane.b32.xlu0 %v437, 96
        %v484 = vpop.permute.xlu0 %483
        %v485 = vsel %vm457, %v437, 0
        %v487 = vsel %vm457, %v484, 0
        %489 = vmatpush.xpose.msra.mxu0 0.0
        %490 = vmatpush.xpose.msra.mxu0 0.0
        %491 = vmatpush.xpose.msra.mxu0 0.0
        %492 = vmatpush.xpose.msra.mxu0 0.0
        %493 = vmatpush.xpose.msra.mxu0 0.0
        %494 = vmatpush.xpose.msra.mxu0 0.0
        %495 = vmatpush.xpose.msra.mxu0 0.0
        %496 = vmatpush.xpose.msra.mxu0 0.0
        %497 = vmatpush.xpose.msra.mxu0 0.0
        %498 = vmatpush.xpose.msra.mxu0 0.0
        %499 = vmatpush.xpose.msra.mxu0 0.0
        %500 = vmatpush.xpose.msra.mxu0 0.0
        %501 = vmatpush.xpose.msra.mxu0 0.0
        %502 = vmatpush.xpose.msra.mxu0 0.0
        %503 = vmatpush.xpose.msra.mxu0 0.0
        %504 = vmatpush.xpose.msra.mxu0 %v487
        %505 = vmatmul.f32.gmra.mxu0 %v485
        %v506 = vpop.f32.mrf.mxu0
        %v507 = vadd.f32 0.0, %v506
        %508 = vdwg.mxu0
        %510 = vrot.lane.b32.xlu0 %v440, 96
        %v511 = vpop.permute.xlu0 %510
        %v512 = vsel %vm457, %v440, 0
        %v514 = vsel %vm457, %v511, 0
        %516 = vmatpush.xpose.msra.mxu0 0.0
        %517 = vmatpush.xpose.msra.mxu0 0.0
        %518 = vmatpush.xpose.msra.mxu0 0.0
        %519 = vmatpush.xpose.msra.mxu0 0.0
        %520 = vmatpush.xpose.msra.mxu0 0.0
        %521 = vmatpush.xpose.msra.mxu0 0.0
        %522 = vmatpush.xpose.msra.mxu0 0.0
        %523 = vmatpush.xpose.msra.mxu0 0.0
        %524 = vmatpush.xpose.msra.mxu0 0.0
        %525 = vmatpush.xpose.msra.mxu0 0.0
        %526 = vmatpush.xpose.msra.mxu0 0.0
        %527 = vmatpush.xpose.msra.mxu0 0.0
        %528 = vmatpush.xpose.msra.mxu0 0.0
        %529 = vmatpush.xpose.msra.mxu0 0.0
        %530 = vmatpush.xpose.msra.mxu0 0.0
        %531 = vmatpush.xpose.msra.mxu0 %v514
        %532 = vmatmul.f32.gmra.mxu0 %v512
        %v533 = vpop.f32.mrf.mxu0
        %v534 = vadd.f32 0.0, %v533
        %535 = vdwg.mxu0
        %537 = vrot.lane.b32.xlu0 %v442, 96
        %v538 = vpop.permute.xlu0 %537
        %v539 = vsel %vm457, %v442, 0
        %v541 = vsel %vm457, %v538, 0
        %543 = vmatpush.xpose.msra.mxu0 0.0
        %544 = vmatpush.xpose.msra.mxu0 0.0
        %545 = vmatpush.xpose.msra.mxu0 0.0
        %546 = vmatpush.xpose.msra.mxu0 0.0
        %547 = vmatpush.xpose.msra.mxu0 0.0
        %548 = vmatpush.xpose.msra.mxu0 0.0
        %549 = vmatpush.xpose.msra.mxu0 0.0
        %550 = vmatpush.xpose.msra.mxu0 0.0
        %551 = vmatpush.xpose.msra.mxu0 0.0
        %552 = vmatpush.xpose.msra.mxu0 0.0
        %553 = vmatpush.xpose.msra.mxu0 0.0
        %554 = vmatpush.xpose.msra.mxu0 0.0
        %555 = vmatpush.xpose.msra.mxu0 0.0
        %556 = vmatpush.xpose.msra.mxu0 0.0
        %557 = vmatpush.xpose.msra.mxu0 0.0
        %558 = vmatpush.xpose.msra.mxu0 %v541
        %559 = vmatmul.f32.gmra.mxu0 %v539
        %v560 = vpop.f32.mrf.mxu0
        %v561 = vadd.f32 0.0, %v560
        %562 = vdwg.mxu0
        %564 = vrot.lane.b32.xlu0 %v445, 96
        %v565 = vpop.permute.xlu0 %564
        %v566 = vsel %vm457, %v445, 0
        %v568 = vsel %vm457, %v565, 0
        %570 = vmatpush.xpose.msra.mxu0 0.0
        %571 = vmatpush.xpose.msra.mxu0 0.0
        %572 = vmatpush.xpose.msra.mxu0 0.0
        %573 = vmatpush.xpose.msra.mxu0 0.0
        %574 = vmatpush.xpose.msra.mxu0 0.0
        %575 = vmatpush.xpose.msra.mxu0 0.0
        %576 = vmatpush.xpose.msra.mxu0 0.0
        %577 = vmatpush.xpose.msra.mxu0 0.0
        %578 = vmatpush.xpose.msra.mxu0 0.0
        %579 = vmatpush.xpose.msra.mxu0 0.0
        %580 = vmatpush.xpose.msra.mxu0 0.0
        %581 = vmatpush.xpose.msra.mxu0 0.0
        %582 = vmatpush.xpose.msra.mxu0 0.0
        %583 = vmatpush.xpose.msra.mxu0 0.0
        %584 = vmatpush.xpose.msra.mxu0 0.0
        %585 = vmatpush.xpose.msra.mxu0 %v568
        %586 = vmatmul.f32.gmra.mxu0 %v566
        %v587 = vpop.f32.mrf.mxu0
        %v588 = vadd.f32 0.0, %v587
        %589 = vdwg.mxu0
        %591 = vrot.lane.b32.xlu0 %v447, 96
        %v592 = vpop.permute.xlu0 %591
        %v593 = vsel %vm457, %v447, 0
        %v595 = vsel %vm457, %v592, 0
        %597 = vmatpush.xpose.msra.mxu0 0.0
        %598 = vmatpush.xpose.msra.mxu0 0.0
        %599 = vmatpush.xpose.msra.mxu0 0.0
        %600 = vmatpush.xpose.msra.mxu0 0.0
        %601 = vmatpush.xpose.msra.mxu0 0.0
        %602 = vmatpush.xpose.msra.mxu0 0.0
        %603 = vmatpush.xpose.msra.mxu0 0.0
        %604 = vmatpush.xpose.msra.mxu0 0.0
        %605 = vmatpush.xpose.msra.mxu0 0.0
        %606 = vmatpush.xpose.msra.mxu0 0.0
        %607 = vmatpush.xpose.msra.mxu0 0.0
        %608 = vmatpush.xpose.msra.mxu0 0.0
        %609 = vmatpush.xpose.msra.mxu0 0.0
        %610 = vmatpush.xpose.msra.mxu0 0.0
        %611 = vmatpush.xpose.msra.mxu0 0.0
        %612 = vmatpush.xpose.msra.mxu0 %v595
        %613 = vmatmul.f32.gmra.mxu0 %v593
        %v614 = vpop.f32.mrf.mxu0
        %v615 = vadd.f32 0.0, %v614
        %616 = vdwg.mxu0
        %618 = vrot.lane.b32.xlu0 %v450, 96
        %v619 = vpop.permute.xlu0 %618
        %v620 = vsel %vm457, %v450, 0
        %v622 = vsel %vm457, %v619, 0
        %624 = vmatpush.xpose.msra.mxu0 0.0
        %625 = vmatpush.xpose.msra.mxu0 0.0
        %626 = vmatpush.xpose.msra.mxu0 0.0
        %627 = vmatpush.xpose.msra.mxu0 0.0
        %628 = vmatpush.xpose.msra.mxu0 0.0
        %629 = vmatpush.xpose.msra.mxu0 0.0
        %630 = vmatpush.xpose.msra.mxu0 0.0
        %631 = vmatpush.xpose.msra.mxu0 0.0
        %632 = vmatpush.xpose.msra.mxu0 0.0
        %633 = vmatpush.xpose.msra.mxu0 0.0
        %634 = vmatpush.xpose.msra.mxu0 0.0
        %635 = vmatpush.xpose.msra.mxu0 0.0
        %636 = vmatpush.xpose.msra.mxu0 0.0
        %637 = vmatpush.xpose.msra.mxu0 0.0
        %638 = vmatpush.xpose.msra.mxu0 0.0
        %639 = vmatpush.xpose.msra.mxu0 %v622
        %640 = vmatmul.f32.gmra.mxu0 %v620
        %v641 = vpop.f32.mrf.mxu0
        %v642 = vadd.f32 0.0, %v641
        %643 = vdwg.mxu0
        %645 = vrot.lane.b32.xlu0 %v452, 96
        %v646 = vpop.permute.xlu0 %645
        %v647 = vsel %vm457, %v452, 0
        %v649 = vsel %vm457, %v646, 0
        %651 = vmatpush.xpose.msra.mxu0 0.0
        %652 = vmatpush.xpose.msra.mxu0 0.0
        %653 = vmatpush.xpose.msra.mxu0 0.0
        %654 = vmatpush.xpose.msra.mxu0 0.0
        %655 = vmatpush.xpose.msra.mxu0 0.0
        %656 = vmatpush.xpose.msra.mxu0 0.0
        %657 = vmatpush.xpose.msra.mxu0 0.0
        %658 = vmatpush.xpose.msra.mxu0 0.0
        %659 = vmatpush.xpose.msra.mxu0 0.0
        %660 = vmatpush.xpose.msra.mxu0 0.0
        %661 = vmatpush.xpose.msra.mxu0 0.0
        %662 = vmatpush.xpose.msra.mxu0 0.0
        %663 = vmatpush.xpose.msra.mxu0 0.0
        %664 = vmatpush.xpose.msra.mxu0 0.0
        %665 = vmatpush.xpose.msra.mxu0 0.0
        %666 = vmatpush.xpose.msra.mxu0 %v649
        %667 = vmatmul.f32.gmra.mxu0 %v647
        %v668 = vpop.f32.mrf.mxu0
        %v669 = vadd.f32 0.0, %v668
        %670 = vdwg.mxu0
        %v671 = vmul.f32 %v480, 0.35355338
        %v672 = vmul.f32 %v507, 0.35355338
        %v673 = vmul.f32 %v534, 0.35355338
        %v674 = vmul.f32 %v561, 0.35355338
        %v675 = vmul.f32 %v588, 0.35355338
        %v676 = vmul.f32 %v615, 0.35355338
        %v677 = vmul.f32 %v642, 0.35355338
        %v678 = vmul.f32 %v669, 0.35355338
        %679 = vst.msk [vmem:[%s377] sm:$0xff] %vm457, %v671
        %680 = vst.msk [vmem:[%s377 + $0x8] sm:$0xff] %vm457, %v672
        %681 = vst.msk [vmem:[%s377 + $0x10] sm:$0xff] %vm457, %v673
        %682 = vst.msk [vmem:[%s377 + $0x18] sm:$0xff] %vm457, %v674
        %683 = vst.msk [vmem:[%s377 + $0x20] sm:$0xff] %vm457, %v675
        %684 = vst.msk [vmem:[%s377 + $0x28] sm:$0xff] %vm457, %v676
        %685 = vst.msk [vmem:[%s377 + $0x30] sm:$0xff] %vm457, %v677
        %686 = vst.msk [vmem:[%s377 + $0x38] sm:$0xff] %vm457, %v678
        %v687 = vsel %vm457, %v671, -inf
        %688 = vmax.xlane.f32.xlu0 %v687
        %v689 = vpop.xlane.xlu0 %688
        %v690 = vsel %vm457, %v672, -inf
        %691 = vmax.xlane.f32.xlu0 %v690
        %v692 = vpop.xlane.xlu0 %691
        %v693 = vsel %vm457, %v673, -inf
        %694 = vmax.xlane.f32.xlu0 %v693
        %v695 = vpop.xlane.xlu0 %694
        %v696 = vsel %vm457, %v674, -inf
        %697 = vmax.xlane.f32.xlu0 %v696
        %v698 = vpop.xlane.xlu0 %697
        %v699 = vsel %vm457, %v675, -inf
        %700 = vmax.xlane.f32.xlu0 %v699
        %v701 = vpop.xlane.xlu0 %700
        %v702 = vsel %vm457, %v676, -inf
        %703 = vmax.xlane.f32.xlu0 %v702
        %v704 = vpop.xlane.xlu0 %703
        %v705 = vsel %vm457, %v677, -inf
        %706 = vmax.xlane.f32.xlu0 %v705
        %v707 = vpop.xlane.xlu0 %706
        %v708 = vsel %vm457, %v678, -inf
        %709 = vmax.xlane.f32.xlu0 %v708
        %v710 = vpop.xlane.xlu0 %709
        %v711 = vsub.f32 %v671, %v689
        %v712 = vsub.f32 %v672, %v692
        %v713 = vsub.f32 %v673, %v695
        %v714 = vsub.f32 %v674, %v698
        %v715 = vsub.f32 %v675, %v701
        %v716 = vsub.f32 %v676, %v704
        %v717 = vsub.f32 %v677, %v707
        %v718 = vsub.f32 %v678, %v710
        %v719 = vmul.f32 %v711, 1.442695
        %v720 = vpow.pop %v719
        %v721 = vmul.f32 %v712, 1.442695
        %v722 = vpow.pop %v721
        %v723 = vmul.f32 %v713, 1.442695
        %v724 = vpow.pop %v723
        %v725 = vmul.f32 %v714, 1.442695
        %v726 = vpow.pop %v725
        %v727 = vmul.f32 %v715, 1.442695
        %v728 = vpow.pop %v727
        %v729 = vmul.f32 %v716, 1.442695
        %v730 = vpow.pop %v729
        %v731 = vmul.f32 %v717, 1.442695
        %v732 = vpow.pop %v731
        %v733 = vmul.f32 %v718, 1.442695
        %v734 = vpow.pop %v733
        %v735 = vsel %vm457, %v720, 0.0
        %736 = vadd.xlane.f32.xlu0 %v735
        %v737 = vpop.xlane.xlu0 %736
        %v738 = vsel %vm457, %v722, 0.0
        %739 = vadd.xlane.f32.xlu0 %v738
        %v740 = vpop.xlane.xlu0 %739
        %v741 = vsel %vm457, %v724, 0.0
        %742 = vadd.xlane.f32.xlu0 %v741
        %v743 = vpop.xlane.xlu0 %742
        %v744 = vsel %vm457, %v726, 0.0
        %745 = vadd.xlane.f32.xlu0 %v744
        %v746 = vpop.xlane.xlu0 %745
        %v747 = vsel %vm457, %v728, 0.0
        %748 = vadd.xlane.f32.xlu0 %v747
        %v749 = vpop.xlane.xlu0 %748
        %v750 = vsel %vm457, %v730, 0.0
        %751 = vadd.xlane.f32.xlu0 %v750
        %v752 = vpop.xlane.xlu0 %751
        %v753 = vsel %vm457, %v732, 0.0
        %754 = vadd.xlane.f32.xlu0 %v753
        %v755 = vpop.xlane.xlu0 %754
        %v756 = vsel %vm457, %v734, 0.0
        %757 = vadd.xlane.f32.xlu0 %v756
        %v758 = vpop.xlane.xlu0 %757
        %v759 = vrcp.pop %v737
        %v760 = vrcp.pop %v740
        %v761 = vrcp.pop %v743
        %v762 = vrcp.pop %v746
        %v763 = vrcp.pop %v749
        %v764 = vrcp.pop %v752
        %v765 = vrcp.pop %v755
        %v766 = vrcp.pop %v758
        %v767 = vmul.f32 %v720, %v759
        %v768 = vmul.f32 %v722, %v760
        %v769 = vmul.f32 %v724, %v761
        %v770 = vmul.f32 %v726, %v762
        %v771 = vmul.f32 %v728, %v763
        %v772 = vmul.f32 %v730, %v764
        %v773 = vmul.f32 %v732, %v765
        %v774 = vmul.f32 %v734, %v766
        %775 = vrot.lane.b32.xlu0 %v435, 64
        %v776 = vpop.permute.xlu0 %775
        %v779 = vsel %vm457, %v767, 0
        %781 = vmatpush.msra.mxu0 0.0
        %782 = vmatpush.msra.mxu0 0.0
        %783 = vmatpush.msra.mxu0 0.0
        %784 = vmatpush.msra.mxu0 0.0
        %785 = vmatpush.msra.mxu0 0.0
        %786 = vmatpush.msra.mxu0 0.0
        %787 = vmatpush.msra.mxu0 0.0
        %788 = vmatpush.msra.mxu0 0.0
        %789 = vmatpush.msra.mxu0 0.0
        %790 = vmatpush.msra.mxu0 0.0
        %791 = vmatpush.msra.mxu0 0.0
        %792 = vmatpush.msra.mxu0 0.0
        %793 = vmatpush.msra.mxu0 0.0
        %794 = vmatpush.msra.mxu0 0.0
        %795 = vmatpush.msra.mxu0 0.0
        %796 = vmatpush.msra.mxu0 %v776
        %797 = vmatmul.f32.gmra.mxu0 %v779
        %v798 = vpop.f32.mrf.mxu0
        %v799 = vadd.f32 0.0, %v798
        %800 = vdwg.mxu0
        %801 = vrot.lane.b32.xlu0 %v437, 64
        %v802 = vpop.permute.xlu0 %801
        %v805 = vsel %vm457, %v768, 0
        %807 = vmatpush.msra.mxu0 0.0
        %808 = vmatpush.msra.mxu0 0.0
        %809 = vmatpush.msra.mxu0 0.0
        %810 = vmatpush.msra.mxu0 0.0
        %811 = vmatpush.msra.mxu0 0.0
        %812 = vmatpush.msra.mxu0 0.0
        %813 = vmatpush.msra.mxu0 0.0
        %814 = vmatpush.msra.mxu0 0.0
        %815 = vmatpush.msra.mxu0 0.0
        %816 = vmatpush.msra.mxu0 0.0
        %817 = vmatpush.msra.mxu0 0.0
        %818 = vmatpush.msra.mxu0 0.0
        %819 = vmatpush.msra.mxu0 0.0
        %820 = vmatpush.msra.mxu0 0.0
        %821 = vmatpush.msra.mxu0 0.0
        %822 = vmatpush.msra.mxu0 %v802
        %823 = vmatmul.f32.gmra.mxu0 %v805
        %v824 = vpop.f32.mrf.mxu0
        %v825 = vadd.f32 0.0, %v824
        %826 = vdwg.mxu0
        %827 = vrot.lane.b32.xlu0 %v440, 64
        %v828 = vpop.permute.xlu0 %827
        %v831 = vsel %vm457, %v769, 0
        %833 = vmatpush.msra.mxu0 0.0
        %834 = vmatpush.msra.mxu0 0.0
        %835 = vmatpush.msra.mxu0 0.0
        %836 = vmatpush.msra.mxu0 0.0
        %837 = vmatpush.msra.mxu0 0.0
        %838 = vmatpush.msra.mxu0 0.0
        %839 = vmatpush.msra.mxu0 0.0
        %840 = vmatpush.msra.mxu0 0.0
        %841 = vmatpush.msra.mxu0 0.0
        %842 = vmatpush.msra.mxu0 0.0
        %843 = vmatpush.msra.mxu0 0.0
        %844 = vmatpush.msra.mxu0 0.0
        %845 = vmatpush.msra.mxu0 0.0
        %846 = vmatpush.msra.mxu0 0.0
        %847 = vmatpush.msra.mxu0 0.0
        %848 = vmatpush.msra.mxu0 %v828
        %849 = vmatmul.f32.gmra.mxu0 %v831
        %v850 = vpop.f32.mrf.mxu0
        %v851 = vadd.f32 0.0, %v850
        %852 = vdwg.mxu0
        %853 = vrot.lane.b32.xlu0 %v442, 64
        %v854 = vpop.permute.xlu0 %853
        %v857 = vsel %vm457, %v770, 0
        %859 = vmatpush.msra.mxu0 0.0
        %860 = vmatpush.msra.mxu0 0.0
        %861 = vmatpush.msra.mxu0 0.0
        %862 = vmatpush.msra.mxu0 0.0
        %863 = vmatpush.msra.mxu0 0.0
        %864 = vmatpush.msra.mxu0 0.0
        %865 = vmatpush.msra.mxu0 0.0
        %866 = vmatpush.msra.mxu0 0.0
        %867 = vmatpush.msra.mxu0 0.0
        %868 = vmatpush.msra.mxu0 0.0
        %869 = vmatpush.msra.mxu0 0.0
        %870 = vmatpush.msra.mxu0 0.0
        %871 = vmatpush.msra.mxu0 0.0
        %872 = vmatpush.msra.mxu0 0.0
        %873 = vmatpush.msra.mxu0 0.0
        %874 = vmatpush.msra.mxu0 %v854
        %875 = vmatmul.f32.gmra.mxu0 %v857
        %v876 = vpop.f32.mrf.mxu0
        %v877 = vadd.f32 0.0, %v876
        %878 = vdwg.mxu0
        %879 = vrot.lane.b32.xlu0 %v445, 64
        %v880 = vpop.permute.xlu0 %879
        %v883 = vsel %vm457, %v771, 0
        %885 = vmatpush.msra.mxu0 0.0
        %886 = vmatpush.msra.mxu0 0.0
        %887 = vmatpush.msra.mxu0 0.0
        %888 = vmatpush.msra.mxu0 0.0
        %889 = vmatpush.msra.mxu0 0.0
        %890 = vmatpush.msra.mxu0 0.0
        %891 = vmatpush.msra.mxu0 0.0
        %892 = vmatpush.msra.mxu0 0.0
        %893 = vmatpush.msra.mxu0 0.0
        %894 = vmatpush.msra.mxu0 0.0
        %895 = vmatpush.msra.mxu0 0.0
        %896 = vmatpush.msra.mxu0 0.0
        %897 = vmatpush.msra.mxu0 0.0
        %898 = vmatpush.msra.mxu0 0.0
        %899 = vmatpush.msra.mxu0 0.0
        %900 = vmatpush.msra.mxu0 %v880
        %901 = vmatmul.f32.gmra.mxu0 %v883
        %v902 = vpop.f32.mrf.mxu0
        %v903 = vadd.f32 0.0, %v902
        %904 = vdwg.mxu0
        %905 = vrot.lane.b32.xlu0 %v447, 64
        %v906 = vpop.permute.xlu0 %905
        %v909 = vsel %vm457, %v772, 0
        %911 = vmatpush.msra.mxu0 0.0
        %912 = vmatpush.msra.mxu0 0.0
        %913 = vmatpush.msra.mxu0 0.0
        %914 = vmatpush.msra.mxu0 0.0
        %915 = vmatpush.msra.mxu0 0.0
        %916 = vmatpush.msra.mxu0 0.0
        %917 = vmatpush.msra.mxu0 0.0
        %918 = vmatpush.msra.mxu0 0.0
        %919 = vmatpush.msra.mxu0 0.0
        %920 = vmatpush.msra.mxu0 0.0
        %921 = vmatpush.msra.mxu0 0.0
        %922 = vmatpush.msra.mxu0 0.0
        %923 = vmatpush.msra.mxu0 0.0
        %924 = vmatpush.msra.mxu0 0.0
        %925 = vmatpush.msra.mxu0 0.0
        %926 = vmatpush.msra.mxu0 %v906
        %927 = vmatmul.f32.gmra.mxu0 %v909
        %v928 = vpop.f32.mrf.mxu0
        %v929 = vadd.f32 0.0, %v928
        %930 = vdwg.mxu0
        %931 = vrot.lane.b32.xlu0 %v450, 64
        %v932 = vpop.permute.xlu0 %931
        %v935 = vsel %vm457, %v773, 0
        %937 = vmatpush.msra.mxu0 0.0
        %938 = vmatpush.msra.mxu0 0.0
        %939 = vmatpush.msra.mxu0 0.0
        %940 = vmatpush.msra.mxu0 0.0
        %941 = vmatpush.msra.mxu0 0.0
        %942 = vmatpush.msra.mxu0 0.0
        %943 = vmatpush.msra.mxu0 0.0
        %944 = vmatpush.msra.mxu0 0.0
        %945 = vmatpush.msra.mxu0 0.0
        %946 = vmatpush.msra.mxu0 0.0
        %947 = vmatpush.msra.mxu0 0.0
        %948 = vmatpush.msra.mxu0 0.0
        %949 = vmatpush.msra.mxu0 0.0
        %950 = vmatpush.msra.mxu0 0.0
        %951 = vmatpush.msra.mxu0 0.0
        %952 = vmatpush.msra.mxu0 %v932
        %953 = vmatmul.f32.gmra.mxu0 %v935
        %v954 = vpop.f32.mrf.mxu0
        %v955 = vadd.f32 0.0, %v954
        %956 = vdwg.mxu0
        %957 = vrot.lane.b32.xlu0 %v452, 64
        %v958 = vpop.permute.xlu0 %957
        %v961 = vsel %vm457, %v774, 0
        %963 = vmatpush.msra.mxu0 0.0
        %964 = vmatpush.msra.mxu0 0.0
        %965 = vmatpush.msra.mxu0 0.0
        %966 = vmatpush.msra.mxu0 0.0
        %967 = vmatpush.msra.mxu0 0.0
        %968 = vmatpush.msra.mxu0 0.0
        %969 = vmatpush.msra.mxu0 0.0
        %970 = vmatpush.msra.mxu0 0.0
        %971 = vmatpush.msra.mxu0 0.0
        %972 = vmatpush.msra.mxu0 0.0
        %973 = vmatpush.msra.mxu0 0.0
        %974 = vmatpush.msra.mxu0 0.0
        %975 = vmatpush.msra.mxu0 0.0
        %976 = vmatpush.msra.mxu0 0.0
        %977 = vmatpush.msra.mxu0 0.0
        %978 = vmatpush.msra.mxu0 %v958
        %979 = vmatmul.f32.gmra.mxu0 %v961
        %v980 = vpop.f32.mrf.mxu0
        %v981 = vadd.f32 0.0, %v980
        %982 = vdwg.mxu0
        %983 = vrot.lane.b32.xlu0 %v435, 120
        %v984 = vpop.permute.xlu0 %983
        %985 = vrot.lane.b32.xlu0 %v435, 88
        %v986 = vpop.permute.xlu0 %985
        %v987 = vsel %vm457, %v984, 0
        %v989 = vsel %vm457, %v986, 0
        %991 = vmatpush.xpose.msra.mxu0 0.0
        %992 = vmatpush.xpose.msra.mxu0 0.0
        %993 = vmatpush.xpose.msra.mxu0 0.0
        %994 = vmatpush.xpose.msra.mxu0 0.0
        %995 = vmatpush.xpose.msra.mxu0 0.0
        %996 = vmatpush.xpose.msra.mxu0 0.0
        %997 = vmatpush.xpose.msra.mxu0 0.0
        %998 = vmatpush.xpose.msra.mxu0 0.0
        %999 = vmatpush.xpose.msra.mxu0 0.0
        %1000 = vmatpush.xpose.msra.mxu0 0.0
        %1001 = vmatpush.xpose.msra.mxu0 0.0
        %1002 = vmatpush.xpose.msra.mxu0 0.0
        %1003 = vmatpush.xpose.msra.mxu0 0.0
        %1004 = vmatpush.xpose.msra.mxu0 0.0
        %1005 = vmatpush.xpose.msra.mxu0 0.0
        %1006 = vmatpush.xpose.msra.mxu0 %v989
        %1007 = vmatmul.f32.gmra.mxu0 %v987
        %v1008 = vpop.f32.mrf.mxu0
        %v1009 = vadd.f32 0.0, %v1008
        %1010 = vdwg.mxu0
        %1011 = vrot.lane.b32.xlu0 %v437, 120
        %v1012 = vpop.permute.xlu0 %1011
        %1013 = vrot.lane.b32.xlu0 %v437, 88
        %v1014 = vpop.permute.xlu0 %1013
        %v1015 = vsel %vm457, %v1012, 0
        %v1017 = vsel %vm457, %v1014, 0
        %1019 = vmatpush.xpose.msra.mxu0 0.0
        %1020 = vmatpush.xpose.msra.mxu0 0.0
        %1021 = vmatpush.xpose.msra.mxu0 0.0
        %1022 = vmatpush.xpose.msra.mxu0 0.0
        %1023 = vmatpush.xpose.msra.mxu0 0.0
        %1024 = vmatpush.xpose.msra.mxu0 0.0
        %1025 = vmatpush.xpose.msra.mxu0 0.0
        %1026 = vmatpush.xpose.msra.mxu0 0.0
        %1027 = vmatpush.xpose.msra.mxu0 0.0
        %1028 = vmatpush.xpose.msra.mxu0 0.0
        %1029 = vmatpush.xpose.msra.mxu0 0.0
        %1030 = vmatpush.xpose.msra.mxu0 0.0
        %1031 = vmatpush.xpose.msra.mxu0 0.0
        %1032 = vmatpush.xpose.msra.mxu0 0.0
        %1033 = vmatpush.xpose.msra.mxu0 0.0
        %1034 = vmatpush.xpose.msra.mxu0 %v1017
        %1035 = vmatmul.f32.gmra.mxu0 %v1015
        %v1036 = vpop.f32.mrf.mxu0
        %v1037 = vadd.f32 0.0, %v1036
        %1038 = vdwg.mxu0
        %1039 = vrot.lane.b32.xlu0 %v440, 120
        %v1040 = vpop.permute.xlu0 %1039
        %1041 = vrot.lane.b32.xlu0 %v440, 88
        %v1042 = vpop.permute.xlu0 %1041
        %v1043 = vsel %vm457, %v1040, 0
        %v1045 = vsel %vm457, %v1042, 0
        %1047 = vmatpush.xpose.msra.mxu0 0.0
        %1048 = vmatpush.xpose.msra.mxu0 0.0
        %1049 = vmatpush.xpose.msra.mxu0 0.0
        %1050 = vmatpush.xpose.msra.mxu0 0.0
        %1051 = vmatpush.xpose.msra.mxu0 0.0
        %1052 = vmatpush.xpose.msra.mxu0 0.0
        %1053 = vmatpush.xpose.msra.mxu0 0.0
        %1054 = vmatpush.xpose.msra.mxu0 0.0
        %1055 = vmatpush.xpose.msra.mxu0 0.0
        %1056 = vmatpush.xpose.msra.mxu0 0.0
        %1057 = vmatpush.xpose.msra.mxu0 0.0
        %1058 = vmatpush.xpose.msra.mxu0 0.0
        %1059 = vmatpush.xpose.msra.mxu0 0.0
        %1060 = vmatpush.xpose.msra.mxu0 0.0
        %1061 = vmatpush.xpose.msra.mxu0 0.0
        %1062 = vmatpush.xpose.msra.mxu0 %v1045
        %1063 = vmatmul.f32.gmra.mxu0 %v1043
        %v1064 = vpop.f32.mrf.mxu0
        %v1065 = vadd.f32 0.0, %v1064
        %1066 = vdwg.mxu0
        %1067 = vrot.lane.b32.xlu0 %v442, 120
        %v1068 = vpop.permute.xlu0 %1067
        %1069 = vrot.lane.b32.xlu0 %v442, 88
        %v1070 = vpop.permute.xlu0 %1069
        %v1071 = vsel %vm457, %v1068, 0
        %v1073 = vsel %vm457, %v1070, 0
        %1075 = vmatpush.xpose.msra.mxu0 0.0
        %1076 = vmatpush.xpose.msra.mxu0 0.0
        %1077 = vmatpush.xpose.msra.mxu0 0.0
        %1078 = vmatpush.xpose.msra.mxu0 0.0
        %1079 = vmatpush.xpose.msra.mxu0 0.0
        %1080 = vmatpush.xpose.msra.mxu0 0.0
        %1081 = vmatpush.xpose.msra.mxu0 0.0
        %1082 = vmatpush.xpose.msra.mxu0 0.0
        %1083 = vmatpush.xpose.msra.mxu0 0.0
        %1084 = vmatpush.xpose.msra.mxu0 0.0
        %1085 = vmatpush.xpose.msra.mxu0 0.0
        %1086 = vmatpush.xpose.msra.mxu0 0.0
        %1087 = vmatpush.xpose.msra.mxu0 0.0
        %1088 = vmatpush.xpose.msra.mxu0 0.0
        %1089 = vmatpush.xpose.msra.mxu0 0.0
        %1090 = vmatpush.xpose.msra.mxu0 %v1073
        %1091 = vmatmul.f32.gmra.mxu0 %v1071
        %v1092 = vpop.f32.mrf.mxu0
        %v1093 = vadd.f32 0.0, %v1092
        %1094 = vdwg.mxu0
        %1095 = vrot.lane.b32.xlu0 %v445, 120
        %v1096 = vpop.permute.xlu0 %1095
        %1097 = vrot.lane.b32.xlu0 %v445, 88
        %v1098 = vpop.permute.xlu0 %1097
        %v1099 = vsel %vm457, %v1096, 0
        %v1101 = vsel %vm457, %v1098, 0
        %1103 = vmatpush.xpose.msra.mxu0 0.0
        %1104 = vmatpush.xpose.msra.mxu0 0.0
        %1105 = vmatpush.xpose.msra.mxu0 0.0
        %1106 = vmatpush.xpose.msra.mxu0 0.0
        %1107 = vmatpush.xpose.msra.mxu0 0.0
        %1108 = vmatpush.xpose.msra.mxu0 0.0
        %1109 = vmatpush.xpose.msra.mxu0 0.0
        %1110 = vmatpush.xpose.msra.mxu0 0.0
        %1111 = vmatpush.xpose.msra.mxu0 0.0
        %1112 = vmatpush.xpose.msra.mxu0 0.0
        %1113 = vmatpush.xpose.msra.mxu0 0.0
        %1114 = vmatpush.xpose.msra.mxu0 0.0
        %1115 = vmatpush.xpose.msra.mxu0 0.0
        %1116 = vmatpush.xpose.msra.mxu0 0.0
        %1117 = vmatpush.xpose.msra.mxu0 0.0
        %1118 = vmatpush.xpose.msra.mxu0 %v1101
        %1119 = vmatmul.f32.gmra.mxu0 %v1099
        %v1120 = vpop.f32.mrf.mxu0
        %v1121 = vadd.f32 0.0, %v1120
        %1122 = vdwg.mxu0
        %1123 = vrot.lane.b32.xlu0 %v447, 120
        %v1124 = vpop.permute.xlu0 %1123
        %1125 = vrot.lane.b32.xlu0 %v447, 88
        %v1126 = vpop.permute.xlu0 %1125
        %v1127 = vsel %vm457, %v1124, 0
        %v1129 = vsel %vm457, %v1126, 0
        %1131 = vmatpush.xpose.msra.mxu0 0.0
        %1132 = vmatpush.xpose.msra.mxu0 0.0
        %1133 = vmatpush.xpose.msra.mxu0 0.0
        %1134 = vmatpush.xpose.msra.mxu0 0.0
        %1135 = vmatpush.xpose.msra.mxu0 0.0
        %1136 = vmatpush.xpose.msra.mxu0 0.0
        %1137 = vmatpush.xpose.msra.mxu0 0.0
        %1138 = vmatpush.xpose.msra.mxu0 0.0
        %1139 = vmatpush.xpose.msra.mxu0 0.0
        %1140 = vmatpush.xpose.msra.mxu0 0.0
        %1141 = vmatpush.xpose.msra.mxu0 0.0
        %1142 = vmatpush.xpose.msra.mxu0 0.0
        %1143 = vmatpush.xpose.msra.mxu0 0.0
        %1144 = vmatpush.xpose.msra.mxu0 0.0
        %1145 = vmatpush.xpose.msra.mxu0 0.0
        %1146 = vmatpush.xpose.msra.mxu0 %v1129
        %1147 = vmatmul.f32.gmra.mxu0 %v1127
        %v1148 = vpop.f32.mrf.mxu0
        %v1149 = vadd.f32 0.0, %v1148
        %1150 = vdwg.mxu0
        %1151 = vrot.lane.b32.xlu0 %v450, 120
        %v1152 = vpop.permute.xlu0 %1151
        %1153 = vrot.lane.b32.xlu0 %v450, 88
        %v1154 = vpop.permute.xlu0 %1153
        %v1155 = vsel %vm457, %v1152, 0
        %v1157 = vsel %vm457, %v1154, 0
        %1159 = vmatpush.xpose.msra.mxu0 0.0
        %1160 = vmatpush.xpose.msra.mxu0 0.0
        %1161 = vmatpush.xpose.msra.mxu0 0.0
        %1162 = vmatpush.xpose.msra.mxu0 0.0
        %1163 = vmatpush.xpose.msra.mxu0 0.0
        %1164 = vmatpush.xpose.msra.mxu0 0.0
        %1165 = vmatpush.xpose.msra.mxu0 0.0
        %1166 = vmatpush.xpose.msra.mxu0 0.0
        %1167 = vmatpush.xpose.msra.mxu0 0.0
        %1168 = vmatpush.xpose.msra.mxu0 0.0
        %1169 = vmatpush.xpose.msra.mxu0 0.0
        %1170 = vmatpush.xpose.msra.mxu0 0.0
        %1171 = vmatpush.xpose.msra.mxu0 0.0
        %1172 = vmatpush.xpose.msra.mxu0 0.0
        %1173 = vmatpush.xpose.msra.mxu0 0.0
        %1174 = vmatpush.xpose.msra.mxu0 %v1157
        %1175 = vmatmul.f32.gmra.mxu0 %v1155
        %v1176 = vpop.f32.mrf.mxu0
        %v1177 = vadd.f32 0.0, %v1176
        %1178 = vdwg.mxu0
        %1179 = vrot.lane.b32.xlu0 %v452, 120
        %v1180 = vpop.permute.xlu0 %1179
        %1181 = vrot.lane.b32.xlu0 %v452, 88
        %v1182 = vpop.permute.xlu0 %1181
        %v1183 = vsel %vm457, %v1180, 0
        %v1185 = vsel %vm457, %v1182, 0
        %1187 = vmatpush.xpose.msra.mxu0 0.0
        %1188 = vmatpush.xpose.msra.mxu0 0.0
        %1189 = vmatpush.xpose.msra.mxu0 0.0
        %1190 = vmatpush.xpose.msra.mxu0 0.0
        %1191 = vmatpush.xpose.msra.mxu0 0.0
        %1192 = vmatpush.xpose.msra.mxu0 0.0
        %1193 = vmatpush.xpose.msra.mxu0 0.0
        %1194 = vmatpush.xpose.msra.mxu0 0.0
        %1195 = vmatpush.xpose.msra.mxu0 0.0
        %1196 = vmatpush.xpose.msra.mxu0 0.0
        %1197 = vmatpush.xpose.msra.mxu0 0.0
        %1198 = vmatpush.xpose.msra.mxu0 0.0
        %1199 = vmatpush.xpose.msra.mxu0 0.0
        %1200 = vmatpush.xpose.msra.mxu0 0.0
        %1201 = vmatpush.xpose.msra.mxu0 0.0
        %1202 = vmatpush.xpose.msra.mxu0 %v1185
        %1203 = vmatmul.f32.gmra.mxu0 %v1183
        %v1204 = vpop.f32.mrf.mxu0
        %v1205 = vadd.f32 0.0, %v1204
        %1206 = vdwg.mxu0
        %v1207 = vmul.f32 %v1009, 0.35355338
        %v1208 = vmul.f32 %v1037, 0.35355338
        %v1209 = vmul.f32 %v1065, 0.35355338
        %v1210 = vmul.f32 %v1093, 0.35355338
        %v1211 = vmul.f32 %v1121, 0.35355338
        %v1212 = vmul.f32 %v1149, 0.35355338
        %v1213 = vmul.f32 %v1177, 0.35355338
        %v1214 = vmul.f32 %v1205, 0.35355338
        %s1215 = scalar_lea.vmem %s377, 64
        %1216 = vst.msk [vmem:[%s1215] sm:$0xff] %vm457, %v1207
        %1217 = vst.msk [vmem:[%s1215 + $0x8] sm:$0xff] %vm457, %v1208
        %1218 = vst.msk [vmem:[%s1215 + $0x10] sm:$0xff] %vm457, %v1209
        %1219 = vst.msk [vmem:[%s1215 + $0x18] sm:$0xff] %vm457, %v1210
        %1220 = vst.msk [vmem:[%s1215 + $0x20] sm:$0xff] %vm457, %v1211
        %1221 = vst.msk [vmem:[%s1215 + $0x28] sm:$0xff] %vm457, %v1212
        %1222 = vst.msk [vmem:[%s1215 + $0x30] sm:$0xff] %vm457, %v1213
        %1223 = vst.msk [vmem:[%s1215 + $0x38] sm:$0xff] %vm457, %v1214
        %v1224 = vsel %vm457, %v1207, -inf
        %1225 = vmax.xlane.f32.xlu0 %v1224
        %v1226 = vpop.xlane.xlu0 %1225
        %v1227 = vsel %vm457, %v1208, -inf
        %1228 = vmax.xlane.f32.xlu0 %v1227
        %v1229 = vpop.xlane.xlu0 %1228
        %v1230 = vsel %vm457, %v1209, -inf
        %1231 = vmax.xlane.f32.xlu0 %v1230
        %v1232 = vpop.xlane.xlu0 %1231
        %v1233 = vsel %vm457, %v1210, -inf
        %1234 = vmax.xlane.f32.xlu0 %v1233
        %v1235 = vpop.xlane.xlu0 %1234
        %v1236 = vsel %vm457, %v1211, -inf
        %1237 = vmax.xlane.f32.xlu0 %v1236
        %v1238 = vpop.xlane.xlu0 %1237
        %v1239 = vsel %vm457, %v1212, -inf
        %1240 = vmax.xlane.f32.xlu0 %v1239
        %v1241 = vpop.xlane.xlu0 %1240
        %v1242 = vsel %vm457, %v1213, -inf
        %1243 = vmax.xlane.f32.xlu0 %v1242
        %v1244 = vpop.xlane.xlu0 %1243
        %v1245 = vsel %vm457, %v1214, -inf
        %1246 = vmax.xlane.f32.xlu0 %v1245
        %v1247 = vpop.xlane.xlu0 %1246
        %v1248 = vsub.f32 %v1207, %v1226
        %v1249 = vsub.f32 %v1208, %v1229
        %v1250 = vsub.f32 %v1209, %v1232
        %v1251 = vsub.f32 %v1210, %v1235
        %v1252 = vsub.f32 %v1211, %v1238
        %v1253 = vsub.f32 %v1212, %v1241
        %v1254 = vsub.f32 %v1213, %v1244
        %v1255 = vsub.f32 %v1214, %v1247
        %v1256 = vmul.f32 %v1248, 1.442695
        %v1257 = vpow.pop %v1256
        %v1258 = vmul.f32 %v1249, 1.442695
        %v1259 = vpow.pop %v1258
        %v1260 = vmul.f32 %v1250, 1.442695
        %v1261 = vpow.pop %v1260
        %v1262 = vmul.f32 %v1251, 1.442695
        %v1263 = vpow.pop %v1262
        %v1264 = vmul.f32 %v1252, 1.442695
        %v1265 = vpow.pop %v1264
        %v1266 = vmul.f32 %v1253, 1.442695
        %v1267 = vpow.pop %v1266
        %v1268 = vmul.f32 %v1254, 1.442695
        %v1269 = vpow.pop %v1268
        %v1270 = vmul.f32 %v1255, 1.442695
        %v1271 = vpow.pop %v1270
        %v1272 = vsel %vm457, %v1257, 0.0
        %1273 = vadd.xlane.f32.xlu0 %v1272
        %v1274 = vpop.xlane.xlu0 %1273
        %v1275 = vsel %vm457, %v1259, 0.0
        %1276 = vadd.xlane.f32.xlu0 %v1275
        %v1277 = vpop.xlane.xlu0 %1276
        %v1278 = vsel %vm457, %v1261, 0.0
        %1279 = vadd.xlane.f32.xlu0 %v1278
        %v1280 = vpop.xlane.xlu0 %1279
        %v1281 = vsel %vm457, %v1263, 0.0
        %1282 = vadd.xlane.f32.xlu0 %v1281
        %v1283 = vpop.xlane.xlu0 %1282
        %v1284 = vsel %vm457, %v1265, 0.0
        %1285 = vadd.xlane.f32.xlu0 %v1284
        %v1286 = vpop.xlane.xlu0 %1285
        %v1287 = vsel %vm457, %v1267, 0.0
        %1288 = vadd.xlane.f32.xlu0 %v1287
        %v1289 = vpop.xlane.xlu0 %1288
        %v1290 = vsel %vm457, %v1269, 0.0
        %1291 = vadd.xlane.f32.xlu0 %v1290
        %v1292 = vpop.xlane.xlu0 %1291
        %v1293 = vsel %vm457, %v1271, 0.0
        %1294 = vadd.xlane.f32.xlu0 %v1293
        %v1295 = vpop.xlane.xlu0 %1294
        %v1296 = vrcp.pop %v1274
        %v1297 = vrcp.pop %v1277
        %v1298 = vrcp.pop %v1280
        %v1299 = vrcp.pop %v1283
        %v1300 = vrcp.pop %v1286
        %v1301 = vrcp.pop %v1289
        %v1302 = vrcp.pop %v1292
        %v1303 = vrcp.pop %v1295
        %v1304 = vmul.f32 %v1257, %v1296
        %v1305 = vmul.f32 %v1259, %v1297
        %v1306 = vmul.f32 %v1261, %v1298
        %v1307 = vmul.f32 %v1263, %v1299
        %v1308 = vmul.f32 %v1265, %v1300
        %v1309 = vmul.f32 %v1267, %v1301
        %v1310 = vmul.f32 %v1269, %v1302
        %v1311 = vmul.f32 %v1271, %v1303
        %1312 = vrot.lane.b32.xlu0 %v435, 56
        %v1313 = vpop.permute.xlu0 %1312
        %v1316 = vsel %vm457, %v1304, 0
        %1318 = vmatpush.msra.mxu0 0.0
        %1319 = vmatpush.msra.mxu0 0.0
        %1320 = vmatpush.msra.mxu0 0.0
        %1321 = vmatpush.msra.mxu0 0.0
        %1322 = vmatpush.msra.mxu0 0.0
        %1323 = vmatpush.msra.mxu0 0.0
        %1324 = vmatpush.msra.mxu0 0.0
        %1325 = vmatpush.msra.mxu0 0.0
        %1326 = vmatpush.msra.mxu0 0.0
        %1327 = vmatpush.msra.mxu0 0.0
        %1328 = vmatpush.msra.mxu0 0.0
        %1329 = vmatpush.msra.mxu0 0.0
        %1330 = vmatpush.msra.mxu0 0.0
        %1331 = vmatpush.msra.mxu0 0.0
        %1332 = vmatpush.msra.mxu0 0.0
        %1333 = vmatpush.msra.mxu0 %v1313
        %1334 = vmatmul.f32.gmra.mxu0 %v1316
        %v1335 = vpop.f32.mrf.mxu0
        %v1336 = vadd.f32 0.0, %v1335
        %1337 = vdwg.mxu0
        %1338 = vrot.lane.b32.xlu0 %v437, 56
        %v1339 = vpop.permute.xlu0 %1338
        %v1342 = vsel %vm457, %v1305, 0
        %1344 = vmatpush.msra.mxu0 0.0
        %1345 = vmatpush.msra.mxu0 0.0
        %1346 = vmatpush.msra.mxu0 0.0
        %1347 = vmatpush.msra.mxu0 0.0
        %1348 = vmatpush.msra.mxu0 0.0
        %1349 = vmatpush.msra.mxu0 0.0
        %1350 = vmatpush.msra.mxu0 0.0
        %1351 = vmatpush.msra.mxu0 0.0
        %1352 = vmatpush.msra.mxu0 0.0
        %1353 = vmatpush.msra.mxu0 0.0
        %1354 = vmatpush.msra.mxu0 0.0
        %1355 = vmatpush.msra.mxu0 0.0
        %1356 = vmatpush.msra.mxu0 0.0
        %1357 = vmatpush.msra.mxu0 0.0
        %1358 = vmatpush.msra.mxu0 0.0
        %1359 = vmatpush.msra.mxu0 %v1339
        %1360 = vmatmul.f32.gmra.mxu0 %v1342
        %v1361 = vpop.f32.mrf.mxu0
        %v1362 = vadd.f32 0.0, %v1361
        %1363 = vdwg.mxu0
        %1364 = vrot.lane.b32.xlu0 %v440, 56
        %v1365 = vpop.permute.xlu0 %1364
        %v1368 = vsel %vm457, %v1306, 0
        %1370 = vmatpush.msra.mxu0 0.0
        %1371 = vmatpush.msra.mxu0 0.0
        %1372 = vmatpush.msra.mxu0 0.0
        %1373 = vmatpush.msra.mxu0 0.0
        %1374 = vmatpush.msra.mxu0 0.0
        %1375 = vmatpush.msra.mxu0 0.0
        %1376 = vmatpush.msra.mxu0 0.0
        %1377 = vmatpush.msra.mxu0 0.0
        %1378 = vmatpush.msra.mxu0 0.0
        %1379 = vmatpush.msra.mxu0 0.0
        %1380 = vmatpush.msra.mxu0 0.0
        %1381 = vmatpush.msra.mxu0 0.0
        %1382 = vmatpush.msra.mxu0 0.0
        %1383 = vmatpush.msra.mxu0 0.0
        %1384 = vmatpush.msra.mxu0 0.0
        %1385 = vmatpush.msra.mxu0 %v1365
        %1386 = vmatmul.f32.gmra.mxu0 %v1368
        %v1387 = vpop.f32.mrf.mxu0
        %v1388 = vadd.f32 0.0, %v1387
        %1389 = vdwg.mxu0
        %1390 = vrot.lane.b32.xlu0 %v442, 56
        %v1391 = vpop.permute.xlu0 %1390
        %v1394 = vsel %vm457, %v1307, 0
        %1396 = vmatpush.msra.mxu0 0.0
        %1397 = vmatpush.msra.mxu0 0.0
        %1398 = vmatpush.msra.mxu0 0.0
        %1399 = vmatpush.msra.mxu0 0.0
        %1400 = vmatpush.msra.mxu0 0.0
        %1401 = vmatpush.msra.mxu0 0.0
        %1402 = vmatpush.msra.mxu0 0.0
        %1403 = vmatpush.msra.mxu0 0.0
        %1404 = vmatpush.msra.mxu0 0.0
        %1405 = vmatpush.msra.mxu0 0.0
        %1406 = vmatpush.msra.mxu0 0.0
        %1407 = vmatpush.msra.mxu0 0.0
        %1408 = vmatpush.msra.mxu0 0.0
        %1409 = vmatpush.msra.mxu0 0.0
        %1410 = vmatpush.msra.mxu0 0.0
        %1411 = vmatpush.msra.mxu0 %v1391
        %1412 = vmatmul.f32.gmra.mxu0 %v1394
        %v1413 = vpop.f32.mrf.mxu0
        %v1414 = vadd.f32 0.0, %v1413
        %1415 = vdwg.mxu0
        %1416 = vrot.lane.b32.xlu0 %v445, 56
        %v1417 = vpop.permute.xlu0 %1416
        %v1420 = vsel %vm457, %v1308, 0
        %1422 = vmatpush.msra.mxu0 0.0
        %1423 = vmatpush.msra.mxu0 0.0
        %1424 = vmatpush.msra.mxu0 0.0
        %1425 = vmatpush.msra.mxu0 0.0
        %1426 = vmatpush.msra.mxu0 0.0
        %1427 = vmatpush.msra.mxu0 0.0
        %1428 = vmatpush.msra.mxu0 0.0
        %1429 = vmatpush.msra.mxu0 0.0
        %1430 = vmatpush.msra.mxu0 0.0
        %1431 = vmatpush.msra.mxu0 0.0
        %1432 = vmatpush.msra.mxu0 0.0
        %1433 = vmatpush.msra.mxu0 0.0
        %1434 = vmatpush.msra.mxu0 0.0
        %1435 = vmatpush.msra.mxu0 0.0
        %1436 = vmatpush.msra.mxu0 0.0
        %1437 = vmatpush.msra.mxu0 %v1417
        %1438 = vmatmul.f32.gmra.mxu0 %v1420
        %v1439 = vpop.f32.mrf.mxu0
        %v1440 = vadd.f32 0.0, %v1439
        %1441 = vdwg.mxu0
        %1442 = vrot.lane.b32.xlu0 %v447, 56
        %v1443 = vpop.permute.xlu0 %1442
        %v1446 = vsel %vm457, %v1309, 0
        %1448 = vmatpush.msra.mxu0 0.0
        %1449 = vmatpush.msra.mxu0 0.0
        %1450 = vmatpush.msra.mxu0 0.0
        %1451 = vmatpush.msra.mxu0 0.0
        %1452 = vmatpush.msra.mxu0 0.0
        %1453 = vmatpush.msra.mxu0 0.0
        %1454 = vmatpush.msra.mxu0 0.0
        %1455 = vmatpush.msra.mxu0 0.0
        %1456 = vmatpush.msra.mxu0 0.0
        %1457 = vmatpush.msra.mxu0 0.0
        %1458 = vmatpush.msra.mxu0 0.0
        %1459 = vmatpush.msra.mxu0 0.0
        %1460 = vmatpush.msra.mxu0 0.0
        %1461 = vmatpush.msra.mxu0 0.0
        %1462 = vmatpush.msra.mxu0 0.0
        %1463 = vmatpush.msra.mxu0 %v1443
        %1464 = vmatmul.f32.gmra.mxu0 %v1446
        %v1465 = vpop.f32.mrf.mxu0
        %v1466 = vadd.f32 0.0, %v1465
        %1467 = vdwg.mxu0
        %1468 = vrot.lane.b32.xlu0 %v450, 56
        %v1469 = vpop.permute.xlu0 %1468
        %v1472 = vsel %vm457, %v1310, 0
        %1474 = vmatpush.msra.mxu0 0.0
        %1475 = vmatpush.msra.mxu0 0.0
        %1476 = vmatpush.msra.mxu0 0.0
        %1477 = vmatpush.msra.mxu0 0.0
        %1478 = vmatpush.msra.mxu0 0.0
        %1479 = vmatpush.msra.mxu0 0.0
        %1480 = vmatpush.msra.mxu0 0.0
        %1481 = vmatpush.msra.mxu0 0.0
        %1482 = vmatpush.msra.mxu0 0.0
        %1483 = vmatpush.msra.mxu0 0.0
        %1484 = vmatpush.msra.mxu0 0.0
        %1485 = vmatpush.msra.mxu0 0.0
        %1486 = vmatpush.msra.mxu0 0.0
        %1487 = vmatpush.msra.mxu0 0.0
        %1488 = vmatpush.msra.mxu0 0.0
        %1489 = vmatpush.msra.mxu0 %v1469
        %1490 = vmatmul.f32.gmra.mxu0 %v1472
        %v1491 = vpop.f32.mrf.mxu0
        %v1492 = vadd.f32 0.0, %v1491
        %1493 = vdwg.mxu0
        %1494 = vrot.lane.b32.xlu0 %v452, 56
        %v1495 = vpop.permute.xlu0 %1494
        %v1498 = vsel %vm457, %v1311, 0
        %1500 = vmatpush.msra.mxu0 0.0
        %1501 = vmatpush.msra.mxu0 0.0
        %1502 = vmatpush.msra.mxu0 0.0
        %1503 = vmatpush.msra.mxu0 0.0
        %1504 = vmatpush.msra.mxu0 0.0
        %1505 = vmatpush.msra.mxu0 0.0
        %1506 = vmatpush.msra.mxu0 0.0
        %1507 = vmatpush.msra.mxu0 0.0
        %1508 = vmatpush.msra.mxu0 0.0
        %1509 = vmatpush.msra.mxu0 0.0
        %1510 = vmatpush.msra.mxu0 0.0
        %1511 = vmatpush.msra.mxu0 0.0
        %1512 = vmatpush.msra.mxu0 0.0
        %1513 = vmatpush.msra.mxu0 0.0
        %1514 = vmatpush.msra.mxu0 0.0
        %1515 = vmatpush.msra.mxu0 %v1495
        %1516 = vmatmul.f32.gmra.mxu0 %v1498
        %v1517 = vpop.f32.mrf.mxu0
        %v1518 = vadd.f32 0.0, %v1517
        %1519 = vdwg.mxu0
        %1520 = vrot.lane.b32.xlu0 %v435, 112
        %v1521 = vpop.permute.xlu0 %1520
        %1522 = vrot.lane.b32.xlu0 %v435, 80
        %v1523 = vpop.permute.xlu0 %1522
        %v1524 = vsel %vm457, %v1521, 0
        %v1526 = vsel %vm457, %v1523, 0
        %1528 = vmatpush.xpose.msra.mxu0 0.0
        %1529 = vmatpush.xpose.msra.mxu0 0.0
        %1530 = vmatpush.xpose.msra.mxu0 0.0
        %1531 = vmatpush.xpose.msra.mxu0 0.0
        %1532 = vmatpush.xpose.msra.mxu0 0.0
        %1533 = vmatpush.xpose.msra.mxu0 0.0
        %1534 = vmatpush.xpose.msra.mxu0 0.0
        %1535 = vmatpush.xpose.msra.mxu0 0.0
        %1536 = vmatpush.xpose.msra.mxu0 0.0
        %1537 = vmatpush.xpose.msra.mxu0 0.0
        %1538 = vmatpush.xpose.msra.mxu0 0.0
        %1539 = vmatpush.xpose.msra.mxu0 0.0
        %1540 = vmatpush.xpose.msra.mxu0 0.0
        %1541 = vmatpush.xpose.msra.mxu0 0.0
        %1542 = vmatpush.xpose.msra.mxu0 0.0
        %1543 = vmatpush.xpose.msra.mxu0 %v1526
        %1544 = vmatmul.f32.gmra.mxu0 %v1524
        %v1545 = vpop.f32.mrf.mxu0
        %v1546 = vadd.f32 0.0, %v1545
        %1547 = vdwg.mxu0
        %1548 = vrot.lane.b32.xlu0 %v437, 112
        %v1549 = vpop.permute.xlu0 %1548
        %1550 = vrot.lane.b32.xlu0 %v437, 80
        %v1551 = vpop.permute.xlu0 %1550
        %v1552 = vsel %vm457, %v1549, 0
        %v1554 = vsel %vm457, %v1551, 0
        %1556 = vmatpush.xpose.msra.mxu0 0.0
        %1557 = vmatpush.xpose.msra.mxu0 0.0
        %1558 = vmatpush.xpose.msra.mxu0 0.0
        %1559 = vmatpush.xpose.msra.mxu0 0.0
        %1560 = vmatpush.xpose.msra.mxu0 0.0
        %1561 = vmatpush.xpose.msra.mxu0 0.0
        %1562 = vmatpush.xpose.msra.mxu0 0.0
        %1563 = vmatpush.xpose.msra.mxu0 0.0
        %1564 = vmatpush.xpose.msra.mxu0 0.0
        %1565 = vmatpush.xpose.msra.mxu0 0.0
        %1566 = vmatpush.xpose.msra.mxu0 0.0
        %1567 = vmatpush.xpose.msra.mxu0 0.0
        %1568 = vmatpush.xpose.msra.mxu0 0.0
        %1569 = vmatpush.xpose.msra.mxu0 0.0
        %1570 = vmatpush.xpose.msra.mxu0 0.0
        %1571 = vmatpush.xpose.msra.mxu0 %v1554
        %1572 = vmatmul.f32.gmra.mxu0 %v1552
        %v1573 = vpop.f32.mrf.mxu0
        %v1574 = vadd.f32 0.0, %v1573
        %1575 = vdwg.mxu0
        %1576 = vrot.lane.b32.xlu0 %v440, 112
        %v1577 = vpop.permute.xlu0 %1576
        %1578 = vrot.lane.b32.xlu0 %v440, 80
        %v1579 = vpop.permute.xlu0 %1578
        %v1580 = vsel %vm457, %v1577, 0
        %v1582 = vsel %vm457, %v1579, 0
        %1584 = vmatpush.xpose.msra.mxu0 0.0
        %1585 = vmatpush.xpose.msra.mxu0 0.0
        %1586 = vmatpush.xpose.msra.mxu0 0.0
        %1587 = vmatpush.xpose.msra.mxu0 0.0
        %1588 = vmatpush.xpose.msra.mxu0 0.0
        %1589 = vmatpush.xpose.msra.mxu0 0.0
        %1590 = vmatpush.xpose.msra.mxu0 0.0
        %1591 = vmatpush.xpose.msra.mxu0 0.0
        %1592 = vmatpush.xpose.msra.mxu0 0.0
        %1593 = vmatpush.xpose.msra.mxu0 0.0
        %1594 = vmatpush.xpose.msra.mxu0 0.0
        %1595 = vmatpush.xpose.msra.mxu0 0.0
        %1596 = vmatpush.xpose.msra.mxu0 0.0
        %1597 = vmatpush.xpose.msra.mxu0 0.0
        %1598 = vmatpush.xpose.msra.mxu0 0.0
        %1599 = vmatpush.xpose.msra.mxu0 %v1582
        %1600 = vmatmul.f32.gmra.mxu0 %v1580
        %v1601 = vpop.f32.mrf.mxu0
        %v1602 = vadd.f32 0.0, %v1601
        %1603 = vdwg.mxu0
        %1604 = vrot.lane.b32.xlu0 %v442, 112
        %v1605 = vpop.permute.xlu0 %1604
        %1606 = vrot.lane.b32.xlu0 %v442, 80
        %v1607 = vpop.permute.xlu0 %1606
        %v1608 = vsel %vm457, %v1605, 0
        %v1610 = vsel %vm457, %v1607, 0
        %1612 = vmatpush.xpose.msra.mxu0 0.0
        %1613 = vmatpush.xpose.msra.mxu0 0.0
        %1614 = vmatpush.xpose.msra.mxu0 0.0
        %1615 = vmatpush.xpose.msra.mxu0 0.0
        %1616 = vmatpush.xpose.msra.mxu0 0.0
        %1617 = vmatpush.xpose.msra.mxu0 0.0
        %1618 = vmatpush.xpose.msra.mxu0 0.0
        %1619 = vmatpush.xpose.msra.mxu0 0.0
        %1620 = vmatpush.xpose.msra.mxu0 0.0
        %1621 = vmatpush.xpose.msra.mxu0 0.0
        %1622 = vmatpush.xpose.msra.mxu0 0.0
        %1623 = vmatpush.xpose.msra.mxu0 0.0
        %1624 = vmatpush.xpose.msra.mxu0 0.0
        %1625 = vmatpush.xpose.msra.mxu0 0.0
        %1626 = vmatpush.xpose.msra.mxu0 0.0
        %1627 = vmatpush.xpose.msra.mxu0 %v1610
        %1628 = vmatmul.f32.gmra.mxu0 %v1608
        %v1629 = vpop.f32.mrf.mxu0
        %v1630 = vadd.f32 0.0, %v1629
        %1631 = vdwg.mxu0
        %1632 = vrot.lane.b32.xlu0 %v445, 112
        %v1633 = vpop.permute.xlu0 %1632
        %1634 = vrot.lane.b32.xlu0 %v445, 80
        %v1635 = vpop.permute.xlu0 %1634
        %v1636 = vsel %vm457, %v1633, 0
        %v1638 = vsel %vm457, %v1635, 0
        %1640 = vmatpush.xpose.msra.mxu0 0.0
        %1641 = vmatpush.xpose.msra.mxu0 0.0
        %1642 = vmatpush.xpose.msra.mxu0 0.0
        %1643 = vmatpush.xpose.msra.mxu0 0.0
        %1644 = vmatpush.xpose.msra.mxu0 0.0
        %1645 = vmatpush.xpose.msra.mxu0 0.0
        %1646 = vmatpush.xpose.msra.mxu0 0.0
        %1647 = vmatpush.xpose.msra.mxu0 0.0
        %1648 = vmatpush.xpose.msra.mxu0 0.0
        %1649 = vmatpush.xpose.msra.mxu0 0.0
        %1650 = vmatpush.xpose.msra.mxu0 0.0
        %1651 = vmatpush.xpose.msra.mxu0 0.0
        %1652 = vmatpush.xpose.msra.mxu0 0.0
        %1653 = vmatpush.xpose.msra.mxu0 0.0
        %1654 = vmatpush.xpose.msra.mxu0 0.0
        %1655 = vmatpush.xpose.msra.mxu0 %v1638
        %1656 = vmatmul.f32.gmra.mxu0 %v1636
        %v1657 = vpop.f32.mrf.mxu0
        %v1658 = vadd.f32 0.0, %v1657
        %1659 = vdwg.mxu0
        %1660 = vrot.lane.b32.xlu0 %v447, 112
        %v1661 = vpop.permute.xlu0 %1660
        %1662 = vrot.lane.b32.xlu0 %v447, 80
        %v1663 = vpop.permute.xlu0 %1662
        %v1664 = vsel %vm457, %v1661, 0
        %v1666 = vsel %vm457, %v1663, 0
        %1668 = vmatpush.xpose.msra.mxu0 0.0
        %1669 = vmatpush.xpose.msra.mxu0 0.0
        %1670 = vmatpush.xpose.msra.mxu0 0.0
        %1671 = vmatpush.xpose.msra.mxu0 0.0
        %1672 = vmatpush.xpose.msra.mxu0 0.0
        %1673 = vmatpush.xpose.msra.mxu0 0.0
        %1674 = vmatpush.xpose.msra.mxu0 0.0
        %1675 = vmatpush.xpose.msra.mxu0 0.0
        %1676 = vmatpush.xpose.msra.mxu0 0.0
        %1677 = vmatpush.xpose.msra.mxu0 0.0
        %1678 = vmatpush.xpose.msra.mxu0 0.0
        %1679 = vmatpush.xpose.msra.mxu0 0.0
        %1680 = vmatpush.xpose.msra.mxu0 0.0
        %1681 = vmatpush.xpose.msra.mxu0 0.0
        %1682 = vmatpush.xpose.msra.mxu0 0.0
        %1683 = vmatpush.xpose.msra.mxu0 %v1666
        %1684 = vmatmul.f32.gmra.mxu0 %v1664
        %v1685 = vpop.f32.mrf.mxu0
        %v1686 = vadd.f32 0.0, %v1685
        %1687 = vdwg.mxu0
        %1688 = vrot.lane.b32.xlu0 %v450, 112
        %v1689 = vpop.permute.xlu0 %1688
        %1690 = vrot.lane.b32.xlu0 %v450, 80
        %v1691 = vpop.permute.xlu0 %1690
        %v1692 = vsel %vm457, %v1689, 0
        %v1694 = vsel %vm457, %v1691, 0
        %1696 = vmatpush.xpose.msra.mxu0 0.0
        %1697 = vmatpush.xpose.msra.mxu0 0.0
        %1698 = vmatpush.xpose.msra.mxu0 0.0
        %1699 = vmatpush.xpose.msra.mxu0 0.0
        %1700 = vmatpush.xpose.msra.mxu0 0.0
        %1701 = vmatpush.xpose.msra.mxu0 0.0
        %1702 = vmatpush.xpose.msra.mxu0 0.0
        %1703 = vmatpush.xpose.msra.mxu0 0.0
        %1704 = vmatpush.xpose.msra.mxu0 0.0
        %1705 = vmatpush.xpose.msra.mxu0 0.0
        %1706 = vmatpush.xpose.msra.mxu0 0.0
        %1707 = vmatpush.xpose.msra.mxu0 0.0
        %1708 = vmatpush.xpose.msra.mxu0 0.0
        %1709 = vmatpush.xpose.msra.mxu0 0.0
        %1710 = vmatpush.xpose.msra.mxu0 0.0
        %1711 = vmatpush.xpose.msra.mxu0 %v1694
        %1712 = vmatmul.f32.gmra.mxu0 %v1692
        %v1713 = vpop.f32.mrf.mxu0
        %v1714 = vadd.f32 0.0, %v1713
        %1715 = vdwg.mxu0
        %1716 = vrot.lane.b32.xlu0 %v452, 112
        %v1717 = vpop.permute.xlu0 %1716
        %1718 = vrot.lane.b32.xlu0 %v452, 80
        %v1719 = vpop.permute.xlu0 %1718
        %v1720 = vsel %vm457, %v1717, 0
        %v1722 = vsel %vm457, %v1719, 0
        %1724 = vmatpush.xpose.msra.mxu0 0.0
        %1725 = vmatpush.xpose.msra.mxu0 0.0
        %1726 = vmatpush.xpose.msra.mxu0 0.0
        %1727 = vmatpush.xpose.msra.mxu0 0.0
        %1728 = vmatpush.xpose.msra.mxu0 0.0
        %1729 = vmatpush.xpose.msra.mxu0 0.0
        %1730 = vmatpush.xpose.msra.mxu0 0.0
        %1731 = vmatpush.xpose.msra.mxu0 0.0
        %1732 = vmatpush.xpose.msra.mxu0 0.0
        %1733 = vmatpush.xpose.msra.mxu0 0.0
        %1734 = vmatpush.xpose.msra.mxu0 0.0
        %1735 = vmatpush.xpose.msra.mxu0 0.0
        %1736 = vmatpush.xpose.msra.mxu0 0.0
        %1737 = vmatpush.xpose.msra.mxu0 0.0
        %1738 = vmatpush.xpose.msra.mxu0 0.0
        %1739 = vmatpush.xpose.msra.mxu0 %v1722
        %1740 = vmatmul.f32.gmra.mxu0 %v1720
        %v1741 = vpop.f32.mrf.mxu0
        %v1742 = vadd.f32 0.0, %v1741
        %1743 = vdwg.mxu0
        %v1744 = vmul.f32 %v1546, 0.35355338
        %v1745 = vmul.f32 %v1574, 0.35355338
        %v1746 = vmul.f32 %v1602, 0.35355338
        %v1747 = vmul.f32 %v1630, 0.35355338
        %v1748 = vmul.f32 %v1658, 0.35355338
        %v1749 = vmul.f32 %v1686, 0.35355338
        %v1750 = vmul.f32 %v1714, 0.35355338
        %v1751 = vmul.f32 %v1742, 0.35355338
        %s1752 = scalar_lea.vmem %s377, 128
        %1753 = vst.msk [vmem:[%s1752] sm:$0xff] %vm457, %v1744
        %1754 = vst.msk [vmem:[%s1752 + $0x8] sm:$0xff] %vm457, %v1745
        %1755 = vst.msk [vmem:[%s1752 + $0x10] sm:$0xff] %vm457, %v1746
        %1756 = vst.msk [vmem:[%s1752 + $0x18] sm:$0xff] %vm457, %v1747
        %1757 = vst.msk [vmem:[%s1752 + $0x20] sm:$0xff] %vm457, %v1748
        %1758 = vst.msk [vmem:[%s1752 + $0x28] sm:$0xff] %vm457, %v1749
        %1759 = vst.msk [vmem:[%s1752 + $0x30] sm:$0xff] %vm457, %v1750
        %1760 = vst.msk [vmem:[%s1752 + $0x38] sm:$0xff] %vm457, %v1751
        %v1761 = vsel %vm457, %v1744, -inf
        %1762 = vmax.xlane.f32.xlu0 %v1761
        %v1763 = vpop.xlane.xlu0 %1762
        %v1764 = vsel %vm457, %v1745, -inf
        %1765 = vmax.xlane.f32.xlu0 %v1764
        %v1766 = vpop.xlane.xlu0 %1765
        %v1767 = vsel %vm457, %v1746, -inf
        %1768 = vmax.xlane.f32.xlu0 %v1767
        %v1769 = vpop.xlane.xlu0 %1768
        %v1770 = vsel %vm457, %v1747, -inf
        %1771 = vmax.xlane.f32.xlu0 %v1770
        %v1772 = vpop.xlane.xlu0 %1771
        %v1773 = vsel %vm457, %v1748, -inf
        %1774 = vmax.xlane.f32.xlu0 %v1773
        %v1775 = vpop.xlane.xlu0 %1774
        %v1776 = vsel %vm457, %v1749, -inf
        %1777 = vmax.xlane.f32.xlu0 %v1776
        %v1778 = vpop.xlane.xlu0 %1777
        %v1779 = vsel %vm457, %v1750, -inf
        %1780 = vmax.xlane.f32.xlu0 %v1779
        %v1781 = vpop.xlane.xlu0 %1780
        %v1782 = vsel %vm457, %v1751, -inf
        %1783 = vmax.xlane.f32.xlu0 %v1782
        %v1784 = vpop.xlane.xlu0 %1783
        %v1785 = vsub.f32 %v1744, %v1763
        %v1786 = vsub.f32 %v1745, %v1766
        %v1787 = vsub.f32 %v1746, %v1769
        %v1788 = vsub.f32 %v1747, %v1772
        %v1789 = vsub.f32 %v1748, %v1775
        %v1790 = vsub.f32 %v1749, %v1778
        %v1791 = vsub.f32 %v1750, %v1781
        %v1792 = vsub.f32 %v1751, %v1784
        %v1793 = vmul.f32 %v1785, 1.442695
        %v1794 = vpow.pop %v1793
        %v1795 = vmul.f32 %v1786, 1.442695
        %v1796 = vpow.pop %v1795
        %v1797 = vmul.f32 %v1787, 1.442695
        %v1798 = vpow.pop %v1797
        %v1799 = vmul.f32 %v1788, 1.442695
        %v1800 = vpow.pop %v1799
        %v1801 = vmul.f32 %v1789, 1.442695
        %v1802 = vpow.pop %v1801
        %v1803 = vmul.f32 %v1790, 1.442695
        %v1804 = vpow.pop %v1803
        %v1805 = vmul.f32 %v1791, 1.442695
        %v1806 = vpow.pop %v1805
        %v1807 = vmul.f32 %v1792, 1.442695
        %v1808 = vpow.pop %v1807
        %v1809 = vsel %vm457, %v1794, 0.0
        %1810 = vadd.xlane.f32.xlu0 %v1809
        %v1811 = vpop.xlane.xlu0 %1810
        %v1812 = vsel %vm457, %v1796, 0.0
        %1813 = vadd.xlane.f32.xlu0 %v1812
        %v1814 = vpop.xlane.xlu0 %1813
        %v1815 = vsel %vm457, %v1798, 0.0
        %1816 = vadd.xlane.f32.xlu0 %v1815
        %v1817 = vpop.xlane.xlu0 %1816
        %v1818 = vsel %vm457, %v1800, 0.0
        %1819 = vadd.xlane.f32.xlu0 %v1818
        %v1820 = vpop.xlane.xlu0 %1819
        %v1821 = vsel %vm457, %v1802, 0.0
        %1822 = vadd.xlane.f32.xlu0 %v1821
        %v1823 = vpop.xlane.xlu0 %1822
        %v1824 = vsel %vm457, %v1804, 0.0
        %1825 = vadd.xlane.f32.xlu0 %v1824
        %v1826 = vpop.xlane.xlu0 %1825
        %v1827 = vsel %vm457, %v1806, 0.0
        %1828 = vadd.xlane.f32.xlu0 %v1827
        %v1829 = vpop.xlane.xlu0 %1828
        %v1830 = vsel %vm457, %v1808, 0.0
        %1831 = vadd.xlane.f32.xlu0 %v1830
        %v1832 = vpop.xlane.xlu0 %1831
        %v1833 = vrcp.pop %v1811
        %v1834 = vrcp.pop %v1814
        %v1835 = vrcp.pop %v1817
        %v1836 = vrcp.pop %v1820
        %v1837 = vrcp.pop %v1823
        %v1838 = vrcp.pop %v1826
        %v1839 = vrcp.pop %v1829
        %v1840 = vrcp.pop %v1832
        %v1841 = vmul.f32 %v1794, %v1833
        %v1842 = vmul.f32 %v1796, %v1834
        %v1843 = vmul.f32 %v1798, %v1835
        %v1844 = vmul.f32 %v1800, %v1836
        %v1845 = vmul.f32 %v1802, %v1837
        %v1846 = vmul.f32 %v1804, %v1838
        %v1847 = vmul.f32 %v1806, %v1839
        %v1848 = vmul.f32 %v1808, %v1840
        %1849 = vrot.lane.b32.xlu0 %v435, 48
        %v1850 = vpop.permute.xlu0 %1849
        %v1853 = vsel %vm457, %v1841, 0
        %1855 = vmatpush.msra.mxu0 0.0
        %1856 = vmatpush.msra.mxu0 0.0
        %1857 = vmatpush.msra.mxu0 0.0
        %1858 = vmatpush.msra.mxu0 0.0
        %1859 = vmatpush.msra.mxu0 0.0
        %1860 = vmatpush.msra.mxu0 0.0
        %1861 = vmatpush.msra.mxu0 0.0
        %1862 = vmatpush.msra.mxu0 0.0
        %1863 = vmatpush.msra.mxu0 0.0
        %1864 = vmatpush.msra.mxu0 0.0
        %1865 = vmatpush.msra.mxu0 0.0
        %1866 = vmatpush.msra.mxu0 0.0
        %1867 = vmatpush.msra.mxu0 0.0
        %1868 = vmatpush.msra.mxu0 0.0
        %1869 = vmatpush.msra.mxu0 0.0
        %1870 = vmatpush.msra.mxu0 %v1850
        %1871 = vmatmul.f32.gmra.mxu0 %v1853
        %v1872 = vpop.f32.mrf.mxu0
        %v1873 = vadd.f32 0.0, %v1872
        %1874 = vdwg.mxu0
        %1875 = vrot.lane.b32.xlu0 %v437, 48
        %v1876 = vpop.permute.xlu0 %1875
        %v1879 = vsel %vm457, %v1842, 0
        %1881 = vmatpush.msra.mxu0 0.0
        %1882 = vmatpush.msra.mxu0 0.0
        %1883 = vmatpush.msra.mxu0 0.0
        %1884 = vmatpush.msra.mxu0 0.0
        %1885 = vmatpush.msra.mxu0 0.0
        %1886 = vmatpush.msra.mxu0 0.0
        %1887 = vmatpush.msra.mxu0 0.0
        %1888 = vmatpush.msra.mxu0 0.0
        %1889 = vmatpush.msra.mxu0 0.0
        %1890 = vmatpush.msra.mxu0 0.0
        %1891 = vmatpush.msra.mxu0 0.0
        %1892 = vmatpush.msra.mxu0 0.0
        %1893 = vmatpush.msra.mxu0 0.0
        %1894 = vmatpush.msra.mxu0 0.0
        %1895 = vmatpush.msra.mxu0 0.0
        %1896 = vmatpush.msra.mxu0 %v1876
        %1897 = vmatmul.f32.gmra.mxu0 %v1879
        %v1898 = vpop.f32.mrf.mxu0
        %v1899 = vadd.f32 0.0, %v1898
        %1900 = vdwg.mxu0
        %1901 = vrot.lane.b32.xlu0 %v440, 48
        %v1902 = vpop.permute.xlu0 %1901
        %v1905 = vsel %vm457, %v1843, 0
        %1907 = vmatpush.msra.mxu0 0.0
        %1908 = vmatpush.msra.mxu0 0.0
        %1909 = vmatpush.msra.mxu0 0.0
        %1910 = vmatpush.msra.mxu0 0.0
        %1911 = vmatpush.msra.mxu0 0.0
        %1912 = vmatpush.msra.mxu0 0.0
        %1913 = vmatpush.msra.mxu0 0.0
        %1914 = vmatpush.msra.mxu0 0.0
        %1915 = vmatpush.msra.mxu0 0.0
        %1916 = vmatpush.msra.mxu0 0.0
        %1917 = vmatpush.msra.mxu0 0.0
        %1918 = vmatpush.msra.mxu0 0.0
        %1919 = vmatpush.msra.mxu0 0.0
        %1920 = vmatpush.msra.mxu0 0.0
        %1921 = vmatpush.msra.mxu0 0.0
        %1922 = vmatpush.msra.mxu0 %v1902
        %1923 = vmatmul.f32.gmra.mxu0 %v1905
        %v1924 = vpop.f32.mrf.mxu0
        %v1925 = vadd.f32 0.0, %v1924
        %1926 = vdwg.mxu0
        %1927 = vrot.lane.b32.xlu0 %v442, 48
        %v1928 = vpop.permute.xlu0 %1927
        %v1931 = vsel %vm457, %v1844, 0
        %1933 = vmatpush.msra.mxu0 0.0
        %1934 = vmatpush.msra.mxu0 0.0
        %1935 = vmatpush.msra.mxu0 0.0
        %1936 = vmatpush.msra.mxu0 0.0
        %1937 = vmatpush.msra.mxu0 0.0
        %1938 = vmatpush.msra.mxu0 0.0
        %1939 = vmatpush.msra.mxu0 0.0
        %1940 = vmatpush.msra.mxu0 0.0
        %1941 = vmatpush.msra.mxu0 0.0
        %1942 = vmatpush.msra.mxu0 0.0
        %1943 = vmatpush.msra.mxu0 0.0
        %1944 = vmatpush.msra.mxu0 0.0
        %1945 = vmatpush.msra.mxu0 0.0
        %1946 = vmatpush.msra.mxu0 0.0
        %1947 = vmatpush.msra.mxu0 0.0
        %1948 = vmatpush.msra.mxu0 %v1928
        %1949 = vmatmul.f32.gmra.mxu0 %v1931
        %v1950 = vpop.f32.mrf.mxu0
        %v1951 = vadd.f32 0.0, %v1950
        %1952 = vdwg.mxu0
        %1953 = vrot.lane.b32.xlu0 %v445, 48
        %v1954 = vpop.permute.xlu0 %1953
        %v1957 = vsel %vm457, %v1845, 0
        %1959 = vmatpush.msra.mxu0 0.0
        %1960 = vmatpush.msra.mxu0 0.0
        %1961 = vmatpush.msra.mxu0 0.0
        %1962 = vmatpush.msra.mxu0 0.0
        %1963 = vmatpush.msra.mxu0 0.0
        %1964 = vmatpush.msra.mxu0 0.0
        %1965 = vmatpush.msra.mxu0 0.0
        %1966 = vmatpush.msra.mxu0 0.0
        %1967 = vmatpush.msra.mxu0 0.0
        %1968 = vmatpush.msra.mxu0 0.0
        %1969 = vmatpush.msra.mxu0 0.0
        %1970 = vmatpush.msra.mxu0 0.0
        %1971 = vmatpush.msra.mxu0 0.0
        %1972 = vmatpush.msra.mxu0 0.0
        %1973 = vmatpush.msra.mxu0 0.0
        %1974 = vmatpush.msra.mxu0 %v1954
        %1975 = vmatmul.f32.gmra.mxu0 %v1957
        %v1976 = vpop.f32.mrf.mxu0
        %v1977 = vadd.f32 0.0, %v1976
        %1978 = vdwg.mxu0
        %1979 = vrot.lane.b32.xlu0 %v447, 48
        %v1980 = vpop.permute.xlu0 %1979
        %v1983 = vsel %vm457, %v1846, 0
        %1985 = vmatpush.msra.mxu0 0.0
        %1986 = vmatpush.msra.mxu0 0.0
        %1987 = vmatpush.msra.mxu0 0.0
        %1988 = vmatpush.msra.mxu0 0.0
        %1989 = vmatpush.msra.mxu0 0.0
        %1990 = vmatpush.msra.mxu0 0.0
        %1991 = vmatpush.msra.mxu0 0.0
        %1992 = vmatpush.msra.mxu0 0.0
        %1993 = vmatpush.msra.mxu0 0.0
        %1994 = vmatpush.msra.mxu0 0.0
        %1995 = vmatpush.msra.mxu0 0.0
        %1996 = vmatpush.msra.mxu0 0.0
        %1997 = vmatpush.msra.mxu0 0.0
        %1998 = vmatpush.msra.mxu0 0.0
        %1999 = vmatpush.msra.mxu0 0.0
        %2000 = vmatpush.msra.mxu0 %v1980
        %2001 = vmatmul.f32.gmra.mxu0 %v1983
        %v2002 = vpop.f32.mrf.mxu0
        %v2003 = vadd.f32 0.0, %v2002
        %2004 = vdwg.mxu0
        %2005 = vrot.lane.b32.xlu0 %v450, 48
        %v2006 = vpop.permute.xlu0 %2005
        %v2009 = vsel %vm457, %v1847, 0
        %2011 = vmatpush.msra.mxu0 0.0
        %2012 = vmatpush.msra.mxu0 0.0
        %2013 = vmatpush.msra.mxu0 0.0
        %2014 = vmatpush.msra.mxu0 0.0
        %2015 = vmatpush.msra.mxu0 0.0
        %2016 = vmatpush.msra.mxu0 0.0
        %2017 = vmatpush.msra.mxu0 0.0
        %2018 = vmatpush.msra.mxu0 0.0
        %2019 = vmatpush.msra.mxu0 0.0
        %2020 = vmatpush.msra.mxu0 0.0
        %2021 = vmatpush.msra.mxu0 0.0
        %2022 = vmatpush.msra.mxu0 0.0
        %2023 = vmatpush.msra.mxu0 0.0
        %2024 = vmatpush.msra.mxu0 0.0
        %2025 = vmatpush.msra.mxu0 0.0
        %2026 = vmatpush.msra.mxu0 %v2006
        %2027 = vmatmul.f32.gmra.mxu0 %v2009
        %v2028 = vpop.f32.mrf.mxu0
        %v2029 = vadd.f32 0.0, %v2028
        %2030 = vdwg.mxu0
        %2031 = vrot.lane.b32.xlu0 %v452, 48
        %v2032 = vpop.permute.xlu0 %2031
        %v2035 = vsel %vm457, %v1848, 0
        %2037 = vmatpush.msra.mxu0 0.0
        %2038 = vmatpush.msra.mxu0 0.0
        %2039 = vmatpush.msra.mxu0 0.0
        %2040 = vmatpush.msra.mxu0 0.0
        %2041 = vmatpush.msra.mxu0 0.0
        %2042 = vmatpush.msra.mxu0 0.0
        %2043 = vmatpush.msra.mxu0 0.0
        %2044 = vmatpush.msra.mxu0 0.0
        %2045 = vmatpush.msra.mxu0 0.0
        %2046 = vmatpush.msra.mxu0 0.0
        %2047 = vmatpush.msra.mxu0 0.0
        %2048 = vmatpush.msra.mxu0 0.0
        %2049 = vmatpush.msra.mxu0 0.0
        %2050 = vmatpush.msra.mxu0 0.0
        %2051 = vmatpush.msra.mxu0 0.0
        %2052 = vmatpush.msra.mxu0 %v2032
        %2053 = vmatmul.f32.gmra.mxu0 %v2035
        %v2054 = vpop.f32.mrf.mxu0
        %v2055 = vadd.f32 0.0, %v2054
        %2056 = vdwg.mxu0
        %2057 = vrot.lane.b32.xlu0 %v435, 104
        %v2058 = vpop.permute.xlu0 %2057
        %2059 = vrot.lane.b32.xlu0 %v435, 72
        %v2060 = vpop.permute.xlu0 %2059
        %v2061 = vsel %vm457, %v2058, 0
        %v2063 = vsel %vm457, %v2060, 0
        %2065 = vmatpush.xpose.msra.mxu0 0.0
        %2066 = vmatpush.xpose.msra.mxu0 0.0
        %2067 = vmatpush.xpose.msra.mxu0 0.0
        %2068 = vmatpush.xpose.msra.mxu0 0.0
        %2069 = vmatpush.xpose.msra.mxu0 0.0
        %2070 = vmatpush.xpose.msra.mxu0 0.0
        %2071 = vmatpush.xpose.msra.mxu0 0.0
        %2072 = vmatpush.xpose.msra.mxu0 0.0
        %2073 = vmatpush.xpose.msra.mxu0 0.0
        %2074 = vmatpush.xpose.msra.mxu0 0.0
        %2075 = vmatpush.xpose.msra.mxu0 0.0
        %2076 = vmatpush.xpose.msra.mxu0 0.0
        %2077 = vmatpush.xpose.msra.mxu0 0.0
        %2078 = vmatpush.xpose.msra.mxu0 0.0
        %2079 = vmatpush.xpose.msra.mxu0 0.0
        %2080 = vmatpush.xpose.msra.mxu0 %v2063
        %2081 = vmatmul.f32.gmra.mxu0 %v2061
        %v2082 = vpop.f32.mrf.mxu0
        %v2083 = vadd.f32 0.0, %v2082
        %2084 = vdwg.mxu0
        %2085 = vrot.lane.b32.xlu0 %v437, 104
        %v2086 = vpop.permute.xlu0 %2085
        %2087 = vrot.lane.b32.xlu0 %v437, 72
        %v2088 = vpop.permute.xlu0 %2087
        %v2089 = vsel %vm457, %v2086, 0
        %v2091 = vsel %vm457, %v2088, 0
        %2093 = vmatpush.xpose.msra.mxu0 0.0
        %2094 = vmatpush.xpose.msra.mxu0 0.0
        %2095 = vmatpush.xpose.msra.mxu0 0.0
        %2096 = vmatpush.xpose.msra.mxu0 0.0
        %2097 = vmatpush.xpose.msra.mxu0 0.0
        %2098 = vmatpush.xpose.msra.mxu0 0.0
        %2099 = vmatpush.xpose.msra.mxu0 0.0
        %2100 = vmatpush.xpose.msra.mxu0 0.0
        %2101 = vmatpush.xpose.msra.mxu0 0.0
        %2102 = vmatpush.xpose.msra.mxu0 0.0
        %2103 = vmatpush.xpose.msra.mxu0 0.0
        %2104 = vmatpush.xpose.msra.mxu0 0.0
        %2105 = vmatpush.xpose.msra.mxu0 0.0
        %2106 = vmatpush.xpose.msra.mxu0 0.0
        %2107 = vmatpush.xpose.msra.mxu0 0.0
        %2108 = vmatpush.xpose.msra.mxu0 %v2091
        %2109 = vmatmul.f32.gmra.mxu0 %v2089
        %v2110 = vpop.f32.mrf.mxu0
        %v2111 = vadd.f32 0.0, %v2110
        %2112 = vdwg.mxu0
        %2113 = vrot.lane.b32.xlu0 %v440, 104
        %v2114 = vpop.permute.xlu0 %2113
        %2115 = vrot.lane.b32.xlu0 %v440, 72
        %v2116 = vpop.permute.xlu0 %2115
        %v2117 = vsel %vm457, %v2114, 0
        %v2119 = vsel %vm457, %v2116, 0
        %2121 = vmatpush.xpose.msra.mxu0 0.0
        %2122 = vmatpush.xpose.msra.mxu0 0.0
        %2123 = vmatpush.xpose.msra.mxu0 0.0
        %2124 = vmatpush.xpose.msra.mxu0 0.0
        %2125 = vmatpush.xpose.msra.mxu0 0.0
        %2126 = vmatpush.xpose.msra.mxu0 0.0
        %2127 = vmatpush.xpose.msra.mxu0 0.0
        %2128 = vmatpush.xpose.msra.mxu0 0.0
        %2129 = vmatpush.xpose.msra.mxu0 0.0
        %2130 = vmatpush.xpose.msra.mxu0 0.0
        %2131 = vmatpush.xpose.msra.mxu0 0.0
        %2132 = vmatpush.xpose.msra.mxu0 0.0
        %2133 = vmatpush.xpose.msra.mxu0 0.0
        %2134 = vmatpush.xpose.msra.mxu0 0.0
        %2135 = vmatpush.xpose.msra.mxu0 0.0
        %2136 = vmatpush.xpose.msra.mxu0 %v2119
        %2137 = vmatmul.f32.gmra.mxu0 %v2117
        %v2138 = vpop.f32.mrf.mxu0
        %v2139 = vadd.f32 0.0, %v2138
        %2140 = vdwg.mxu0
        %2141 = vrot.lane.b32.xlu0 %v442, 104
        %v2142 = vpop.permute.xlu0 %2141
        %2143 = vrot.lane.b32.xlu0 %v442, 72
        %v2144 = vpop.permute.xlu0 %2143
        %v2145 = vsel %vm457, %v2142, 0
        %v2147 = vsel %vm457, %v2144, 0
        %2149 = vmatpush.xpose.msra.mxu0 0.0
        %2150 = vmatpush.xpose.msra.mxu0 0.0
        %2151 = vmatpush.xpose.msra.mxu0 0.0
        %2152 = vmatpush.xpose.msra.mxu0 0.0
        %2153 = vmatpush.xpose.msra.mxu0 0.0
        %2154 = vmatpush.xpose.msra.mxu0 0.0
        %2155 = vmatpush.xpose.msra.mxu0 0.0
        %2156 = vmatpush.xpose.msra.mxu0 0.0
        %2157 = vmatpush.xpose.msra.mxu0 0.0
        %2158 = vmatpush.xpose.msra.mxu0 0.0
        %2159 = vmatpush.xpose.msra.mxu0 0.0
        %2160 = vmatpush.xpose.msra.mxu0 0.0
        %2161 = vmatpush.xpose.msra.mxu0 0.0
        %2162 = vmatpush.xpose.msra.mxu0 0.0
        %2163 = vmatpush.xpose.msra.mxu0 0.0
        %2164 = vmatpush.xpose.msra.mxu0 %v2147
        %2165 = vmatmul.f32.gmra.mxu0 %v2145
        %v2166 = vpop.f32.mrf.mxu0
        %v2167 = vadd.f32 0.0, %v2166
        %2168 = vdwg.mxu0
        %2169 = vrot.lane.b32.xlu0 %v445, 104
        %v2170 = vpop.permute.xlu0 %2169
        %2171 = vrot.lane.b32.xlu0 %v445, 72
        %v2172 = vpop.permute.xlu0 %2171
        %v2173 = vsel %vm457, %v2170, 0
        %v2175 = vsel %vm457, %v2172, 0
        %2177 = vmatpush.xpose.msra.mxu0 0.0
        %2178 = vmatpush.xpose.msra.mxu0 0.0
        %2179 = vmatpush.xpose.msra.mxu0 0.0
        %2180 = vmatpush.xpose.msra.mxu0 0.0
        %2181 = vmatpush.xpose.msra.mxu0 0.0
        %2182 = vmatpush.xpose.msra.mxu0 0.0
        %2183 = vmatpush.xpose.msra.mxu0 0.0
        %2184 = vmatpush.xpose.msra.mxu0 0.0
        %2185 = vmatpush.xpose.msra.mxu0 0.0
        %2186 = vmatpush.xpose.msra.mxu0 0.0
        %2187 = vmatpush.xpose.msra.mxu0 0.0
        %2188 = vmatpush.xpose.msra.mxu0 0.0
        %2189 = vmatpush.xpose.msra.mxu0 0.0
        %2190 = vmatpush.xpose.msra.mxu0 0.0
        %2191 = vmatpush.xpose.msra.mxu0 0.0
        %2192 = vmatpush.xpose.msra.mxu0 %v2175
        %2193 = vmatmul.f32.gmra.mxu0 %v2173
        %v2194 = vpop.f32.mrf.mxu0
        %v2195 = vadd.f32 0.0, %v2194
        %2196 = vdwg.mxu0
        %2197 = vrot.lane.b32.xlu0 %v447, 104
        %v2198 = vpop.permute.xlu0 %2197
        %2199 = vrot.lane.b32.xlu0 %v447, 72
        %v2200 = vpop.permute.xlu0 %2199
        %v2201 = vsel %vm457, %v2198, 0
        %v2203 = vsel %vm457, %v2200, 0
        %2205 = vmatpush.xpose.msra.mxu0 0.0
        %2206 = vmatpush.xpose.msra.mxu0 0.0
        %2207 = vmatpush.xpose.msra.mxu0 0.0
        %2208 = vmatpush.xpose.msra.mxu0 0.0
        %2209 = vmatpush.xpose.msra.mxu0 0.0
        %2210 = vmatpush.xpose.msra.mxu0 0.0
        %2211 = vmatpush.xpose.msra.mxu0 0.0
        %2212 = vmatpush.xpose.msra.mxu0 0.0
        %2213 = vmatpush.xpose.msra.mxu0 0.0
        %2214 = vmatpush.xpose.msra.mxu0 0.0
        %2215 = vmatpush.xpose.msra.mxu0 0.0
        %2216 = vmatpush.xpose.msra.mxu0 0.0
        %2217 = vmatpush.xpose.msra.mxu0 0.0
        %2218 = vmatpush.xpose.msra.mxu0 0.0
        %2219 = vmatpush.xpose.msra.mxu0 0.0
        %2220 = vmatpush.xpose.msra.mxu0 %v2203
        %2221 = vmatmul.f32.gmra.mxu0 %v2201
        %v2222 = vpop.f32.mrf.mxu0
        %v2223 = vadd.f32 0.0, %v2222
        %2224 = vdwg.mxu0
        %2225 = vrot.lane.b32.xlu0 %v450, 104
        %v2226 = vpop.permute.xlu0 %2225
        %2227 = vrot.lane.b32.xlu0 %v450, 72
        %v2228 = vpop.permute.xlu0 %2227
        %v2229 = vsel %vm457, %v2226, 0
        %v2231 = vsel %vm457, %v2228, 0
        %2233 = vmatpush.xpose.msra.mxu0 0.0
        %2234 = vmatpush.xpose.msra.mxu0 0.0
        %2235 = vmatpush.xpose.msra.mxu0 0.0
        %2236 = vmatpush.xpose.msra.mxu0 0.0
        %2237 = vmatpush.xpose.msra.mxu0 0.0
        %2238 = vmatpush.xpose.msra.mxu0 0.0
        %2239 = vmatpush.xpose.msra.mxu0 0.0
        %2240 = vmatpush.xpose.msra.mxu0 0.0
        %2241 = vmatpush.xpose.msra.mxu0 0.0
        %2242 = vmatpush.xpose.msra.mxu0 0.0
        %2243 = vmatpush.xpose.msra.mxu0 0.0
        %2244 = vmatpush.xpose.msra.mxu0 0.0
        %2245 = vmatpush.xpose.msra.mxu0 0.0
        %2246 = vmatpush.xpose.msra.mxu0 0.0
        %2247 = vmatpush.xpose.msra.mxu0 0.0
        %2248 = vmatpush.xpose.msra.mxu0 %v2231
        %2249 = vmatmul.f32.gmra.mxu0 %v2229
        %v2250 = vpop.f32.mrf.mxu0
        %v2251 = vadd.f32 0.0, %v2250
        %2252 = vdwg.mxu0
        %2253 = vrot.lane.b32.xlu0 %v452, 104
        %v2254 = vpop.permute.xlu0 %2253
        %2255 = vrot.lane.b32.xlu0 %v452, 72
        %v2256 = vpop.permute.xlu0 %2255
        %v2257 = vsel %vm457, %v2254, 0
        %v2259 = vsel %vm457, %v2256, 0
        %2261 = vmatpush.xpose.msra.mxu0 0.0
        %2262 = vmatpush.xpose.msra.mxu0 0.0
        %2263 = vmatpush.xpose.msra.mxu0 0.0
        %2264 = vmatpush.xpose.msra.mxu0 0.0
        %2265 = vmatpush.xpose.msra.mxu0 0.0
        %2266 = vmatpush.xpose.msra.mxu0 0.0
        %2267 = vmatpush.xpose.msra.mxu0 0.0
        %2268 = vmatpush.xpose.msra.mxu0 0.0
        %2269 = vmatpush.xpose.msra.mxu0 0.0
        %2270 = vmatpush.xpose.msra.mxu0 0.0
        %2271 = vmatpush.xpose.msra.mxu0 0.0
        %2272 = vmatpush.xpose.msra.mxu0 0.0
        %2273 = vmatpush.xpose.msra.mxu0 0.0
        %2274 = vmatpush.xpose.msra.mxu0 0.0
        %2275 = vmatpush.xpose.msra.mxu0 0.0
        %2276 = vmatpush.xpose.msra.mxu0 %v2259
        %2277 = vmatmul.f32.gmra.mxu0 %v2257
        %v2278 = vpop.f32.mrf.mxu0
        %v2279 = vadd.f32 0.0, %v2278
        %2280 = vdwg.mxu0
        %v2281 = vmul.f32 %v2083, 0.35355338
        %v2282 = vmul.f32 %v2111, 0.35355338
        %v2283 = vmul.f32 %v2139, 0.35355338
        %v2284 = vmul.f32 %v2167, 0.35355338
        %v2285 = vmul.f32 %v2195, 0.35355338
        %v2286 = vmul.f32 %v2223, 0.35355338
        %v2287 = vmul.f32 %v2251, 0.35355338
        %v2288 = vmul.f32 %v2279, 0.35355338
        %s2289 = scalar_lea.vmem %s377, 192
        %2290 = vst.msk [vmem:[%s2289] sm:$0xff] %vm457, %v2281
        %2291 = vst.msk [vmem:[%s2289 + $0x8] sm:$0xff] %vm457, %v2282
        %2292 = vst.msk [vmem:[%s2289 + $0x10] sm:$0xff] %vm457, %v2283
        %2293 = vst.msk [vmem:[%s2289 + $0x18] sm:$0xff] %vm457, %v2284
        %2294 = vst.msk [vmem:[%s2289 + $0x20] sm:$0xff] %vm457, %v2285
        %2295 = vst.msk [vmem:[%s2289 + $0x28] sm:$0xff] %vm457, %v2286
        %2296 = vst.msk [vmem:[%s2289 + $0x30] sm:$0xff] %vm457, %v2287
        %2297 = vst.msk [vmem:[%s2289 + $0x38] sm:$0xff] %vm457, %v2288
        %v2298 = vsel %vm457, %v2281, -inf
        %2299 = vmax.xlane.f32.xlu0 %v2298
        %v2300 = vpop.xlane.xlu0 %2299
        %v2301 = vsel %vm457, %v2282, -inf
        %2302 = vmax.xlane.f32.xlu0 %v2301
        %v2303 = vpop.xlane.xlu0 %2302
        %v2304 = vsel %vm457, %v2283, -inf
        %2305 = vmax.xlane.f32.xlu0 %v2304
        %v2306 = vpop.xlane.xlu0 %2305
        %v2307 = vsel %vm457, %v2284, -inf
        %2308 = vmax.xlane.f32.xlu0 %v2307
        %v2309 = vpop.xlane.xlu0 %2308
        %v2310 = vsel %vm457, %v2285, -inf
        %2311 = vmax.xlane.f32.xlu0 %v2310
        %v2312 = vpop.xlane.xlu0 %2311
        %v2313 = vsel %vm457, %v2286, -inf
        %2314 = vmax.xlane.f32.xlu0 %v2313
        %v2315 = vpop.xlane.xlu0 %2314
        %v2316 = vsel %vm457, %v2287, -inf
        %2317 = vmax.xlane.f32.xlu0 %v2316
        %v2318 = vpop.xlane.xlu0 %2317
        %v2319 = vsel %vm457, %v2288, -inf
        %2320 = vmax.xlane.f32.xlu0 %v2319
        %v2321 = vpop.xlane.xlu0 %2320
        %v2322 = vsub.f32 %v2281, %v2300
        %v2323 = vsub.f32 %v2282, %v2303
        %v2324 = vsub.f32 %v2283, %v2306
        %v2325 = vsub.f32 %v2284, %v2309
        %v2326 = vsub.f32 %v2285, %v2312
        %v2327 = vsub.f32 %v2286, %v2315
        %v2328 = vsub.f32 %v2287, %v2318
        %v2329 = vsub.f32 %v2288, %v2321
        %v2330 = vmul.f32 %v2322, 1.442695
        %v2331 = vpow.pop %v2330
        %v2332 = vmul.f32 %v2323, 1.442695
        %v2333 = vpow.pop %v2332
        %v2334 = vmul.f32 %v2324, 1.442695
        %v2335 = vpow.pop %v2334
        %v2336 = vmul.f32 %v2325, 1.442695
        %v2337 = vpow.pop %v2336
        %v2338 = vmul.f32 %v2326, 1.442695
        %v2339 = vpow.pop %v2338
        %v2340 = vmul.f32 %v2327, 1.442695
        %v2341 = vpow.pop %v2340
        %v2342 = vmul.f32 %v2328, 1.442695
        %v2343 = vpow.pop %v2342
        %v2344 = vmul.f32 %v2329, 1.442695
        %v2345 = vpow.pop %v2344
        %v2346 = vsel %vm457, %v2331, 0.0
        %2347 = vadd.xlane.f32.xlu0 %v2346
        %v2348 = vpop.xlane.xlu0 %2347
        %v2349 = vsel %vm457, %v2333, 0.0
        %2350 = vadd.xlane.f32.xlu0 %v2349
        %v2351 = vpop.xlane.xlu0 %2350
        %v2352 = vsel %vm457, %v2335, 0.0
        %2353 = vadd.xlane.f32.xlu0 %v2352
        %v2354 = vpop.xlane.xlu0 %2353
        %v2355 = vsel %vm457, %v2337, 0.0
        %2356 = vadd.xlane.f32.xlu0 %v2355
        %v2357 = vpop.xlane.xlu0 %2356
        %v2358 = vsel %vm457, %v2339, 0.0
        %2359 = vadd.xlane.f32.xlu0 %v2358
        %v2360 = vpop.xlane.xlu0 %2359
        %v2361 = vsel %vm457, %v2341, 0.0
        %2362 = vadd.xlane.f32.xlu0 %v2361
        %v2363 = vpop.xlane.xlu0 %2362
        %v2364 = vsel %vm457, %v2343, 0.0
        %2365 = vadd.xlane.f32.xlu0 %v2364
        %v2366 = vpop.xlane.xlu0 %2365
        %v2367 = vsel %vm457, %v2345, 0.0
        %2368 = vadd.xlane.f32.xlu0 %v2367
        %v2369 = vpop.xlane.xlu0 %2368
        %v2370 = vrcp.pop %v2348
        %v2371 = vrcp.pop %v2351
        %v2372 = vrcp.pop %v2354
        %v2373 = vrcp.pop %v2357
        %v2374 = vrcp.pop %v2360
        %v2375 = vrcp.pop %v2363
        %v2376 = vrcp.pop %v2366
        %v2377 = vrcp.pop %v2369
        %v2378 = vmul.f32 %v2331, %v2370
        %v2379 = vmul.f32 %v2333, %v2371
        %v2380 = vmul.f32 %v2335, %v2372
        %v2381 = vmul.f32 %v2337, %v2373
        %v2382 = vmul.f32 %v2339, %v2374
        %v2383 = vmul.f32 %v2341, %v2375
        %v2384 = vmul.f32 %v2343, %v2376
        %v2385 = vmul.f32 %v2345, %v2377
        %2386 = vrot.lane.b32.xlu0 %v435, 40
        %v2387 = vpop.permute.xlu0 %2386
        %v2390 = vsel %vm457, %v2378, 0
        %2392 = vmatpush.msra.mxu0 0.0
        %2393 = vmatpush.msra.mxu0 0.0
        %2394 = vmatpush.msra.mxu0 0.0
        %2395 = vmatpush.msra.mxu0 0.0
        %2396 = vmatpush.msra.mxu0 0.0
        %2397 = vmatpush.msra.mxu0 0.0
        %2398 = vmatpush.msra.mxu0 0.0
        %2399 = vmatpush.msra.mxu0 0.0
        %2400 = vmatpush.msra.mxu0 0.0
        %2401 = vmatpush.msra.mxu0 0.0
        %2402 = vmatpush.msra.mxu0 0.0
        %2403 = vmatpush.msra.mxu0 0.0
        %2404 = vmatpush.msra.mxu0 0.0
        %2405 = vmatpush.msra.mxu0 0.0
        %2406 = vmatpush.msra.mxu0 0.0
        %2407 = vmatpush.msra.mxu0 %v2387
        %2408 = vmatmul.f32.gmra.mxu0 %v2390
        %v2409 = vpop.f32.mrf.mxu0
        %v2410 = vadd.f32 0.0, %v2409
        %2411 = vdwg.mxu0
        %2412 = vrot.lane.b32.xlu0 %v437, 40
        %v2413 = vpop.permute.xlu0 %2412
        %v2416 = vsel %vm457, %v2379, 0
        %2418 = vmatpush.msra.mxu0 0.0
        %2419 = vmatpush.msra.mxu0 0.0
        %2420 = vmatpush.msra.mxu0 0.0
        %2421 = vmatpush.msra.mxu0 0.0
        %2422 = vmatpush.msra.mxu0 0.0
        %2423 = vmatpush.msra.mxu0 0.0
        %2424 = vmatpush.msra.mxu0 0.0
        %2425 = vmatpush.msra.mxu0 0.0
        %2426 = vmatpush.msra.mxu0 0.0
        %2427 = vmatpush.msra.mxu0 0.0
        %2428 = vmatpush.msra.mxu0 0.0
        %2429 = vmatpush.msra.mxu0 0.0
        %2430 = vmatpush.msra.mxu0 0.0
        %2431 = vmatpush.msra.mxu0 0.0
        %2432 = vmatpush.msra.mxu0 0.0
        %2433 = vmatpush.msra.mxu0 %v2413
        %2434 = vmatmul.f32.gmra.mxu0 %v2416
        %v2435 = vpop.f32.mrf.mxu0
        %v2436 = vadd.f32 0.0, %v2435
        %2437 = vdwg.mxu0
        %2438 = vrot.lane.b32.xlu0 %v440, 40
        %v2439 = vpop.permute.xlu0 %2438
        %v2442 = vsel %vm457, %v2380, 0
        %2444 = vmatpush.msra.mxu0 0.0
        %2445 = vmatpush.msra.mxu0 0.0
        %2446 = vmatpush.msra.mxu0 0.0
        %2447 = vmatpush.msra.mxu0 0.0
        %2448 = vmatpush.msra.mxu0 0.0
        %2449 = vmatpush.msra.mxu0 0.0
        %2450 = vmatpush.msra.mxu0 0.0
        %2451 = vmatpush.msra.mxu0 0.0
        %2452 = vmatpush.msra.mxu0 0.0
        %2453 = vmatpush.msra.mxu0 0.0
        %2454 = vmatpush.msra.mxu0 0.0
        %2455 = vmatpush.msra.mxu0 0.0
        %2456 = vmatpush.msra.mxu0 0.0
        %2457 = vmatpush.msra.mxu0 0.0
        %2458 = vmatpush.msra.mxu0 0.0
        %2459 = vmatpush.msra.mxu0 %v2439
        %2460 = vmatmul.f32.gmra.mxu0 %v2442
        %v2461 = vpop.f32.mrf.mxu0
        %v2462 = vadd.f32 0.0, %v2461
        %2463 = vdwg.mxu0
        %2464 = vrot.lane.b32.xlu0 %v442, 40
        %v2465 = vpop.permute.xlu0 %2464
        %v2468 = vsel %vm457, %v2381, 0
        %2470 = vmatpush.msra.mxu0 0.0
        %2471 = vmatpush.msra.mxu0 0.0
        %2472 = vmatpush.msra.mxu0 0.0
        %2473 = vmatpush.msra.mxu0 0.0
        %2474 = vmatpush.msra.mxu0 0.0
        %2475 = vmatpush.msra.mxu0 0.0
        %2476 = vmatpush.msra.mxu0 0.0
        %2477 = vmatpush.msra.mxu0 0.0
        %2478 = vmatpush.msra.mxu0 0.0
        %2479 = vmatpush.msra.mxu0 0.0
        %2480 = vmatpush.msra.mxu0 0.0
        %2481 = vmatpush.msra.mxu0 0.0
        %2482 = vmatpush.msra.mxu0 0.0
        %2483 = vmatpush.msra.mxu0 0.0
        %2484 = vmatpush.msra.mxu0 0.0
        %2485 = vmatpush.msra.mxu0 %v2465
        %2486 = vmatmul.f32.gmra.mxu0 %v2468
        %v2487 = vpop.f32.mrf.mxu0
        %v2488 = vadd.f32 0.0, %v2487
        %2489 = vdwg.mxu0
        %2490 = vrot.lane.b32.xlu0 %v445, 40
        %v2491 = vpop.permute.xlu0 %2490
        %v2494 = vsel %vm457, %v2382, 0
        %2496 = vmatpush.msra.mxu0 0.0
        %2497 = vmatpush.msra.mxu0 0.0
        %2498 = vmatpush.msra.mxu0 0.0
        %2499 = vmatpush.msra.mxu0 0.0
        %2500 = vmatpush.msra.mxu0 0.0
        %2501 = vmatpush.msra.mxu0 0.0
        %2502 = vmatpush.msra.mxu0 0.0
        %2503 = vmatpush.msra.mxu0 0.0
        %2504 = vmatpush.msra.mxu0 0.0
        %2505 = vmatpush.msra.mxu0 0.0
        %2506 = vmatpush.msra.mxu0 0.0
        %2507 = vmatpush.msra.mxu0 0.0
        %2508 = vmatpush.msra.mxu0 0.0
        %2509 = vmatpush.msra.mxu0 0.0
        %2510 = vmatpush.msra.mxu0 0.0
        %2511 = vmatpush.msra.mxu0 %v2491
        %2512 = vmatmul.f32.gmra.mxu0 %v2494
        %v2513 = vpop.f32.mrf.mxu0
        %v2514 = vadd.f32 0.0, %v2513
        %2515 = vdwg.mxu0
        %2516 = vrot.lane.b32.xlu0 %v447, 40
        %v2517 = vpop.permute.xlu0 %2516
        %v2520 = vsel %vm457, %v2383, 0
        %2522 = vmatpush.msra.mxu0 0.0
        %2523 = vmatpush.msra.mxu0 0.0
        %2524 = vmatpush.msra.mxu0 0.0
        %2525 = vmatpush.msra.mxu0 0.0
        %2526 = vmatpush.msra.mxu0 0.0
        %2527 = vmatpush.msra.mxu0 0.0
        %2528 = vmatpush.msra.mxu0 0.0
        %2529 = vmatpush.msra.mxu0 0.0
        %2530 = vmatpush.msra.mxu0 0.0
        %2531 = vmatpush.msra.mxu0 0.0
        %2532 = vmatpush.msra.mxu0 0.0
        %2533 = vmatpush.msra.mxu0 0.0
        %2534 = vmatpush.msra.mxu0 0.0
        %2535 = vmatpush.msra.mxu0 0.0
        %2536 = vmatpush.msra.mxu0 0.0
        %2537 = vmatpush.msra.mxu0 %v2517
        %2538 = vmatmul.f32.gmra.mxu0 %v2520
        %v2539 = vpop.f32.mrf.mxu0
        %v2540 = vadd.f32 0.0, %v2539
        %2541 = vdwg.mxu0
        %2542 = vrot.lane.b32.xlu0 %v450, 40
        %v2543 = vpop.permute.xlu0 %2542
        %v2546 = vsel %vm457, %v2384, 0
        %2548 = vmatpush.msra.mxu0 0.0
        %2549 = vmatpush.msra.mxu0 0.0
        %2550 = vmatpush.msra.mxu0 0.0
        %2551 = vmatpush.msra.mxu0 0.0
        %2552 = vmatpush.msra.mxu0 0.0
        %2553 = vmatpush.msra.mxu0 0.0
        %2554 = vmatpush.msra.mxu0 0.0
        %2555 = vmatpush.msra.mxu0 0.0
        %2556 = vmatpush.msra.mxu0 0.0
        %2557 = vmatpush.msra.mxu0 0.0
        %2558 = vmatpush.msra.mxu0 0.0
        %2559 = vmatpush.msra.mxu0 0.0
        %2560 = vmatpush.msra.mxu0 0.0
        %2561 = vmatpush.msra.mxu0 0.0
        %2562 = vmatpush.msra.mxu0 0.0
        %2563 = vmatpush.msra.mxu0 %v2543
        %2564 = vmatmul.f32.gmra.mxu0 %v2546
        %v2565 = vpop.f32.mrf.mxu0
        %v2566 = vadd.f32 0.0, %v2565
        %2567 = vdwg.mxu0
        %2568 = vrot.lane.b32.xlu0 %v452, 40
        %v2569 = vpop.permute.xlu0 %2568
        %v2572 = vsel %vm457, %v2385, 0
        %2574 = vmatpush.msra.mxu0 0.0
        %2575 = vmatpush.msra.mxu0 0.0
        %2576 = vmatpush.msra.mxu0 0.0
        %2577 = vmatpush.msra.mxu0 0.0
        %2578 = vmatpush.msra.mxu0 0.0
        %2579 = vmatpush.msra.mxu0 0.0
        %2580 = vmatpush.msra.mxu0 0.0
        %2581 = vmatpush.msra.mxu0 0.0
        %2582 = vmatpush.msra.mxu0 0.0
        %2583 = vmatpush.msra.mxu0 0.0
        %2584 = vmatpush.msra.mxu0 0.0
        %2585 = vmatpush.msra.mxu0 0.0
        %2586 = vmatpush.msra.mxu0 0.0
        %2587 = vmatpush.msra.mxu0 0.0
        %2588 = vmatpush.msra.mxu0 0.0
        %2589 = vmatpush.msra.mxu0 %v2569
        %2590 = vmatmul.f32.gmra.mxu0 %v2572
        %v2591 = vpop.f32.mrf.mxu0
        %v2592 = vadd.f32 0.0, %v2591
        %2593 = vdwg.mxu0
        %2602 = vrot.lane.b32.xlu0 %v1336, 8
        %v2603 = vpop.permute.xlu0 %2602
        %2604 = vrot.lane.b32.xlu0 %v1362, 8
        %v2605 = vpop.permute.xlu0 %2604
        %2606 = vrot.lane.b32.xlu0 %v1388, 8
        %v2607 = vpop.permute.xlu0 %2606
        %2608 = vrot.lane.b32.xlu0 %v1414, 8
        %v2609 = vpop.permute.xlu0 %2608
        %2610 = vrot.lane.b32.xlu0 %v1440, 8
        %v2611 = vpop.permute.xlu0 %2610
        %2612 = vrot.lane.b32.xlu0 %v1466, 8
        %v2613 = vpop.permute.xlu0 %2612
        %2614 = vrot.lane.b32.xlu0 %v1492, 8
        %v2615 = vpop.permute.xlu0 %2614
        %2616 = vrot.lane.b32.xlu0 %v1518, 8
        %v2617 = vpop.permute.xlu0 %2616
        %2634 = vrot.lane.b32.xlu0 %v1873, 16
        %v2635 = vpop.permute.xlu0 %2634
        %2636 = vrot.lane.b32.xlu0 %v1899, 16
        %v2637 = vpop.permute.xlu0 %2636
        %2638 = vrot.lane.b32.xlu0 %v1925, 16
        %v2639 = vpop.permute.xlu0 %2638
        %2640 = vrot.lane.b32.xlu0 %v1951, 16
        %v2641 = vpop.permute.xlu0 %2640
        %2642 = vrot.lane.b32.xlu0 %v1977, 16
        %v2643 = vpop.permute.xlu0 %2642
        %2644 = vrot.lane.b32.xlu0 %v2003, 16
        %v2645 = vpop.permute.xlu0 %2644
        %2646 = vrot.lane.b32.xlu0 %v2029, 16
        %v2647 = vpop.permute.xlu0 %2646
        %2648 = vrot.lane.b32.xlu0 %v2055, 16
        %v2649 = vpop.permute.xlu0 %2648
        %2666 = vrot.lane.b32.xlu0 %v2410, 24
        %v2667 = vpop.permute.xlu0 %2666
        %2668 = vrot.lane.b32.xlu0 %v2436, 24
        %v2669 = vpop.permute.xlu0 %2668
        %2670 = vrot.lane.b32.xlu0 %v2462, 24
        %v2671 = vpop.permute.xlu0 %2670
        %2672 = vrot.lane.b32.xlu0 %v2488, 24
        %v2673 = vpop.permute.xlu0 %2672
        %2674 = vrot.lane.b32.xlu0 %v2514, 24
        %v2675 = vpop.permute.xlu0 %2674
        %2676 = vrot.lane.b32.xlu0 %v2540, 24
        %v2677 = vpop.permute.xlu0 %2676
        %2678 = vrot.lane.b32.xlu0 %v2566, 24
        %v2679 = vpop.permute.xlu0 %2678
        %2680 = vrot.lane.b32.xlu0 %v2592, 24
        %v2681 = vpop.permute.xlu0 %2680
        %v2690 = vsel %vm457, %v799, %v2603
        %v2691 = vsel %vm457, %v825, %v2605
        %v2692 = vsel %vm457, %v851, %v2607
        %v2693 = vsel %vm457, %v877, %v2609
        %v2694 = vsel %vm457, %v903, %v2611
        %v2695 = vsel %vm457, %v929, %v2613
        %v2696 = vsel %vm457, %v955, %v2615
        %v2697 = vsel %vm457, %v981, %v2617
        %vm2698 = vcmask 130048
        %v2699 = vsel %vm2698, %v2690, %v2635
        %v2700 = vsel %vm2698, %v2691, %v2637
        %v2701 = vsel %vm2698, %v2692, %v2639
        %v2702 = vsel %vm2698, %v2693, %v2641
        %v2703 = vsel %vm2698, %v2694, %v2643
        %v2704 = vsel %vm2698, %v2695, %v2645
        %v2705 = vsel %vm2698, %v2696, %v2647
        %v2706 = vsel %vm2698, %v2697, %v2649
        %vm2707 = vcmask 195584
        %v2708 = vsel %vm2707, %v2699, %v2667
        %v2709 = vsel %vm2707, %v2700, %v2669
        %v2710 = vsel %vm2707, %v2701, %v2671
        %v2711 = vsel %vm2707, %v2702, %v2673
        %v2712 = vsel %vm2707, %v2703, %v2675
        %v2713 = vsel %vm2707, %v2704, %v2677
        %v2714 = vsel %vm2707, %v2705, %v2679
        %v2715 = vsel %vm2707, %v2706, %v2681
        %v2716 = vpack.c.bf16 %v2709, %v2708
        %v2717 = vpack.c.bf16 %v2711, %v2710
        %v2718 = vpack.c.bf16 %v2713, %v2712
        %v2719 = vpack.c.bf16 %v2715, %v2714
        %v2720 = vld [vmem:[%s2] sm:$0xf]
        %v2721 = vld [vmem:[%s2 + $0x4] sm:$0xf]
        %v2722 = vld [vmem:[%s2 + $0x8] sm:$0xf]
        %v2723 = vld [vmem:[%s2 + $0xc] sm:$0xf]
        %v2728 = vunpack.c.l.b16 %v2720
        %v2729 = vunpack.c.l.b16 %v2721
        %v2730 = vunpack.c.l.b16 %v2722
        %v2731 = vunpack.c.l.b16 %v2723
        %v2732 = vpack.c.b16 %v2729, %v2728
        %v2733 = vpack.c.b16 %v2731, %v2730
        %v2737 = vsel %vm412, %v2716, 0
        %v2740 = vsel %vm412, %v2717, 0
        %v2743 = vsel %vm412, %v2718, 0
        %v2746 = vsel %vm412, %v2719, 0
        %2748 = vmatpush.bf16.msra.mxu0 0
        %2749 = vmatpush.bf16.msra.mxu0 0
        %2750 = vmatpush.bf16.msra.mxu0 0
        %2751 = vmatpush.bf16.msra.mxu0 0
        %2752 = vmatpush.bf16.msra.mxu0 0
        %2753 = vmatpush.bf16.msra.mxu0 0
        %2754 = vmatpush.bf16.msra.mxu0 %v2733
        %2755 = vmatpush.bf16.msra.mxu0 %v2732
        %2756 = vmatmul.bf16.gmra.mxu0 %v2737
        %v2757 = vpop.f32.mrf.mxu0
        %v2758 = vadd.f32 0.0, %v2757
        %v2759 = vpop.f32.mrf.mxu0
        %v2760 = vadd.f32 0.0, %v2759
        %2761 = vmatmul.bf16.gmra.mxu0 %v2740
        %v2762 = vpop.f32.mrf.mxu0
        %v2763 = vadd.f32 0.0, %v2762
        %v2764 = vpop.f32.mrf.mxu0
        %v2765 = vadd.f32 0.0, %v2764
        %2766 = vmatmul.bf16.gmra.mxu0 %v2743
        %v2767 = vpop.f32.mrf.mxu0
        %v2768 = vadd.f32 0.0, %v2767
        %v2769 = vpop.f32.mrf.mxu0
        %v2770 = vadd.f32 0.0, %v2769
        %2771 = vmatmul.bf16.gmra.mxu0 %v2746
        %v2772 = vpop.f32.mrf.mxu0
        %v2773 = vadd.f32 0.0, %v2772
        %v2774 = vpop.f32.mrf.mxu0
        %v2775 = vadd.f32 0.0, %v2774
        %2776 = vdwg.mxu0
        %v2777 = vld [vmem:[%s3] sm:$0x1]
        %v2779 = vperm.slane %v2777, 0
        %v2781 = vmul.f32 %v2758, %v2779
        %v2782 = vmul.f32 %v2760, %v2779
        %v2783 = vmul.f32 %v2763, %v2779
        %v2784 = vmul.f32 %v2765, %v2779
        %v2785 = vmul.f32 %v2768, %v2779
        %v2786 = vmul.f32 %v2770, %v2779
        %v2787 = vmul.f32 %v2773, %v2779
        %v2788 = vmul.f32 %v2775, %v2779
        %v2789 = vld [vmem:[%s4] sm:$0x1]
        %v2791 = vperm.slane %v2789, 0
        %v2793 = vadd.f32 %v2781, %v2791
        %v2794 = vadd.f32 %v2782, %v2791
        %v2795 = vadd.f32 %v2783, %v2791
        %v2796 = vadd.f32 %v2784, %v2791
        %v2797 = vadd.f32 %v2785, %v2791
        %v2798 = vadd.f32 %v2786, %v2791
        %v2799 = vadd.f32 %v2787, %v2791
        %v2800 = vadd.f32 %v2788, %v2791
        %v2801 = vmax.f32 %v2793, 0.0
        %v2802 = vmax.f32 %v2794, 0.0
        %v2803 = vmax.f32 %v2795, 0.0
        %v2804 = vmax.f32 %v2796, 0.0
        %v2805 = vmax.f32 %v2797, 0.0
        %v2806 = vmax.f32 %v2798, 0.0
        %v2807 = vmax.f32 %v2799, 0.0
        %v2808 = vmax.f32 %v2800, 0.0
        %v2809 = vpack.c.bf16 %v2802, %v2801
        %v2810 = vpack.c.bf16 %v2804, %v2803
        %v2811 = vpack.c.bf16 %v2806, %v2805
        %v2812 = vpack.c.bf16 %v2808, %v2807
        %v2813 = vld [vmem:[%s5] sm:$0xf]
        %v2814 = vld [vmem:[%s5 + $0x4] sm:$0xf]
        %v2815 = vld [vmem:[%s5 + $0x8] sm:$0xf]
        %v2816 = vld [vmem:[%s5 + $0xc] sm:$0xf]
        %v2817 = vld [vmem:[%s5 + $0x10] sm:$0xf]
        %v2818 = vld [vmem:[%s5 + $0x14] sm:$0xf]
        %v2819 = vld [vmem:[%s5 + $0x18] sm:$0xf]
        %v2820 = vld [vmem:[%s5 + $0x1c] sm:$0xf]
        %v2821 = vld [vmem:[%s5 + $0x20] sm:$0xf]
        %v2822 = vld [vmem:[%s5 + $0x24] sm:$0xf]
        %v2823 = vld [vmem:[%s5 + $0x28] sm:$0xf]
        %v2824 = vld [vmem:[%s5 + $0x2c] sm:$0xf]
        %v2825 = vld [vmem:[%s5 + $0x30] sm:$0xf]
        %v2826 = vld [vmem:[%s5 + $0x34] sm:$0xf]
        %v2827 = vld [vmem:[%s5 + $0x38] sm:$0xf]
        %v2828 = vld [vmem:[%s5 + $0x3c] sm:$0xf]
        %v2845 = vunpack.c.l.b16 %v2813
        %v2846 = vunpack.c.l.b16 %v2814
        %v2847 = vunpack.c.l.b16 %v2815
        %v2848 = vunpack.c.l.b16 %v2816
        %v2849 = vunpack.c.l.b16 %v2817
        %v2850 = vunpack.c.l.b16 %v2818
        %v2851 = vunpack.c.l.b16 %v2819
        %v2852 = vunpack.c.l.b16 %v2820
        %v2853 = vunpack.c.l.b16 %v2821
        %v2854 = vunpack.c.l.b16 %v2822
        %v2855 = vunpack.c.l.b16 %v2823
        %v2856 = vunpack.c.l.b16 %v2824
        %v2857 = vunpack.c.l.b16 %v2825
        %v2858 = vunpack.c.l.b16 %v2826
        %v2859 = vunpack.c.l.b16 %v2827
        %v2860 = vunpack.c.l.b16 %v2828
        %v2861 = vpack.c.b16 %v2846, %v2845
        %v2862 = vpack.c.b16 %v2848, %v2847
        %v2863 = vpack.c.b16 %v2850, %v2849
        %v2864 = vpack.c.b16 %v2852, %v2851
        %v2865 = vpack.c.b16 %v2854, %v2853
        %v2866 = vpack.c.b16 %v2856, %v2855
        %v2867 = vpack.c.b16 %v2858, %v2857
        %v2868 = vpack.c.b16 %v2860, %v2859
        %2877 = vmatpush.bf16.msra.mxu0 %v2868
        %2878 = vmatpush.bf16.msra.mxu0 %v2867
        %2879 = vmatpush.bf16.msra.mxu0 %v2866
        %2880 = vmatpush.bf16.msra.mxu0 %v2865
        %2881 = vmatpush.bf16.msra.mxu0 %v2864
        %2882 = vmatpush.bf16.msra.mxu0 %v2863
        %2883 = vmatpush.bf16.msra.mxu0 %v2862
        %2884 = vmatpush.bf16.msra.mxu0 %v2861
        %2885 = vmatmul.bf16.gmra.mxu0 %v2809
        %v2886 = vpop.f32.mrf.mxu0
        %v2887 = vadd.f32 0.0, %v2886
        %v2888 = vpop.f32.mrf.mxu0
        %v2889 = vadd.f32 0.0, %v2888
        %2890 = vmatmul.bf16.gmra.mxu0 %v2810
        %v2891 = vpop.f32.mrf.mxu0
        %v2892 = vadd.f32 0.0, %v2891
        %v2893 = vpop.f32.mrf.mxu0
        %v2894 = vadd.f32 0.0, %v2893
        %2895 = vmatmul.bf16.gmra.mxu0 %v2811
        %v2896 = vpop.f32.mrf.mxu0
        %v2897 = vadd.f32 0.0, %v2896
        %v2898 = vpop.f32.mrf.mxu0
        %v2899 = vadd.f32 0.0, %v2898
        %2900 = vmatmul.bf16.gmra.mxu0 %v2812
        %v2901 = vpop.f32.mrf.mxu0
        %v2902 = vadd.f32 0.0, %v2901
        %v2903 = vpop.f32.mrf.mxu0
        %v2904 = vadd.f32 0.0, %v2903
        %2905 = vdwg.mxu0
        %v2906 = vld [vmem:[%s6] sm:$0x1]
        %v2908 = vperm.slane %v2906, 0
        %v2910 = vmul.f32 %v2887, %v2908
        %v2911 = vmul.f32 %v2889, %v2908
        %v2912 = vmul.f32 %v2892, %v2908
        %v2913 = vmul.f32 %v2894, %v2908
        %v2914 = vmul.f32 %v2897, %v2908
        %v2915 = vmul.f32 %v2899, %v2908
        %v2916 = vmul.f32 %v2902, %v2908
        %v2917 = vmul.f32 %v2904, %v2908
        %v2918 = vld [vmem:[%s7] sm:$0x1]
        %v2920 = vperm.slane %v2918, 0
        %v2922 = vadd.f32 %v2910, %v2920
        %v2923 = vadd.f32 %v2911, %v2920
        %v2924 = vadd.f32 %v2912, %v2920
        %v2925 = vadd.f32 %v2913, %v2920
        %v2926 = vadd.f32 %v2914, %v2920
        %v2927 = vadd.f32 %v2915, %v2920
        %v2928 = vadd.f32 %v2916, %v2920
        %v2929 = vadd.f32 %v2917, %v2920
        %v2930 = vadd.f32 %v384, %v2922
        %v2931 = vadd.f32 %v385, %v2923
        %v2932 = vadd.f32 %v386, %v2924
        %v2933 = vadd.f32 %v387, %v2925
        %v2934 = vadd.f32 %v388, %v2926
        %v2935 = vadd.f32 %v389, %v2927
        %v2936 = vadd.f32 %v390, %v2928
        %v2937 = vadd.f32 %v391, %v2929
        %v2938 = vmax.f32 %v2930, 0.0
        %v2939 = vmax.f32 %v2931, 0.0
        %v2940 = vmax.f32 %v2932, 0.0
        %v2941 = vmax.f32 %v2933, 0.0
        %v2942 = vmax.f32 %v2934, 0.0
        %v2943 = vmax.f32 %v2935, 0.0
        %v2944 = vmax.f32 %v2936, 0.0
        %v2945 = vmax.f32 %v2937, 0.0
        %v2946 = vadd.f32 %v384, %v2938
        %v2947 = vadd.f32 %v385, %v2939
        %v2948 = vadd.f32 %v386, %v2940
        %v2949 = vadd.f32 %v387, %v2941
        %v2950 = vadd.f32 %v388, %v2942
        %v2951 = vadd.f32 %v389, %v2943
        %v2952 = vadd.f32 %v390, %v2944
        %v2953 = vadd.f32 %v391, %v2945
        %v2954 = vmax.f32 %v2946, 0.0
        %v2955 = vmax.f32 %v2947, 0.0
        %v2956 = vmax.f32 %v2948, 0.0
        %v2957 = vmax.f32 %v2949, 0.0
        %v2958 = vmax.f32 %v2950, 0.0
        %v2959 = vmax.f32 %v2951, 0.0
        %v2960 = vmax.f32 %v2952, 0.0
        %v2961 = vmax.f32 %v2953, 0.0
        %v2962 = vpack.c.bf16 %v2955, %v2954
        %v2963 = vpack.c.bf16 %v2957, %v2956
        %v2964 = vpack.c.bf16 %v2959, %v2958
        %v2965 = vpack.c.bf16 %v2961, %v2960
        %s2966 = scalar_lea.vmem %s2, 16
        %v2967 = vld [vmem:[%s2966] sm:$0xf]
        %v2968 = vld [vmem:[%s2966 + $0x4] sm:$0xf]
        %v2969 = vld [vmem:[%s2966 + $0x8] sm:$0xf]
        %v2970 = vld [vmem:[%s2966 + $0xc] sm:$0xf]
        %v2975 = vunpack.c.l.b16 %v2967
        %v2976 = vunpack.c.l.b16 %v2968
        %v2977 = vunpack.c.l.b16 %v2969
        %v2978 = vunpack.c.l.b16 %v2970
        %v2979 = vpack.c.b16 %v2976, %v2975
        %v2980 = vpack.c.b16 %v2978, %v2977
        %v2984 = vsel %vm412, %v2962, 0
        %v2987 = vsel %vm412, %v2963, 0
        %v2990 = vsel %vm412, %v2964, 0
        %v2993 = vsel %vm412, %v2965, 0
        %2995 = vmatpush.bf16.msra.mxu0 0
        %2996 = vmatpush.bf16.msra.mxu0 0
        %2997 = vmatpush.bf16.msra.mxu0 0
        %2998 = vmatpush.bf16.msra.mxu0 0
        %2999 = vmatpush.bf16.msra.mxu0 0
        %3000 = vmatpush.bf16.msra.mxu0 0
        %3001 = vmatpush.bf16.msra.mxu0 %v2980
        %3002 = vmatpush.bf16.msra.mxu0 %v2979
        %3003 = vmatmul.bf16.gmra.mxu0 %v2984
        %v3004 = vpop.f32.mrf.mxu0
        %v3005 = vadd.f32 0.0, %v3004
        %v3006 = vpop.f32.mrf.mxu0
        %v3007 = vadd.f32 0.0, %v3006
        %3008 = vmatmul.bf16.gmra.mxu0 %v2987
        %v3009 = vpop.f32.mrf.mxu0
        %v3010 = vadd.f32 0.0, %v3009
        %v3011 = vpop.f32.mrf.mxu0
        %v3012 = vadd.f32 0.0, %v3011
        %3013 = vmatmul.bf16.gmra.mxu0 %v2990
        %v3014 = vpop.f32.mrf.mxu0
        %v3015 = vadd.f32 0.0, %v3014
        %v3016 = vpop.f32.mrf.mxu0
        %v3017 = vadd.f32 0.0, %v3016
        %3018 = vmatmul.bf16.gmra.mxu0 %v2993
        %v3019 = vpop.f32.mrf.mxu0
        %v3020 = vadd.f32 0.0, %v3019
        %v3021 = vpop.f32.mrf.mxu0
        %v3022 = vadd.f32 0.0, %v3021
        %3023 = vdwg.mxu0
        %s3024 = scalar_lea.vmem %s3, 1
        %v3025 = vld [vmem:[%s3024] sm:$0x1]
        %v3027 = vperm.slane %v3025, 0
        %v3029 = vmul.f32 %v3005, %v3027
        %v3030 = vmul.f32 %v3007, %v3027
        %v3031 = vmul.f32 %v3010, %v3027
        %v3032 = vmul.f32 %v3012, %v3027
        %v3033 = vmul.f32 %v3015, %v3027
        %v3034 = vmul.f32 %v3017, %v3027
        %v3035 = vmul.f32 %v3020, %v3027
        %v3036 = vmul.f32 %v3022, %v3027
        %s3037 = scalar_lea.vmem %s4, 1
        %v3038 = vld [vmem:[%s3037] sm:$0x1]
        %v3040 = vperm.slane %v3038, 0
        %v3042 = vadd.f32 %v3029, %v3040
        %v3043 = vadd.f32 %v3030, %v3040
        %v3044 = vadd.f32 %v3031, %v3040
        %v3045 = vadd.f32 %v3032, %v3040
        %v3046 = vadd.f32 %v3033, %v3040
        %v3047 = vadd.f32 %v3034, %v3040
        %v3048 = vadd.f32 %v3035, %v3040
        %v3049 = vadd.f32 %v3036, %v3040
        %v3050 = vmax.f32 %v3042, 0.0
        %v3051 = vmax.f32 %v3043, 0.0
        %v3052 = vmax.f32 %v3044, 0.0
        %v3053 = vmax.f32 %v3045, 0.0
        %v3054 = vmax.f32 %v3046, 0.0
        %v3055 = vmax.f32 %v3047, 0.0
        %v3056 = vmax.f32 %v3048, 0.0
        %v3057 = vmax.f32 %v3049, 0.0
        %v3058 = vpack.c.bf16 %v3051, %v3050
        %v3059 = vpack.c.bf16 %v3053, %v3052
        %v3060 = vpack.c.bf16 %v3055, %v3054
        %v3061 = vpack.c.bf16 %v3057, %v3056
        %s3062 = scalar_lea.vmem %s5, 64
        %v3063 = vld [vmem:[%s3062] sm:$0xf]
        %v3064 = vld [vmem:[%s3062 + $0x4] sm:$0xf]
        %v3065 = vld [vmem:[%s3062 + $0x8] sm:$0xf]
        %v3066 = vld [vmem:[%s3062 + $0xc] sm:$0xf]
        %v3067 = vld [vmem:[%s3062 + $0x10] sm:$0xf]
        %v3068 = vld [vmem:[%s3062 + $0x14] sm:$0xf]
        %v3069 = vld [vmem:[%s3062 + $0x18] sm:$0xf]
        %v3070 = vld [vmem:[%s3062 + $0x1c] sm:$0xf]
        %v3071 = vld [vmem:[%s3062 + $0x20] sm:$0xf]
        %v3072 = vld [vmem:[%s3062 + $0x24] sm:$0xf]
        %v3073 = vld [vmem:[%s3062 + $0x28] sm:$0xf]
        %v3074 = vld [vmem:[%s3062 + $0x2c] sm:$0xf]
        %v3075 = vld [vmem:[%s3062 + $0x30] sm:$0xf]
        %v3076 = vld [vmem:[%s3062 + $0x34] sm:$0xf]
        %v3077 = vld [vmem:[%s3062 + $0x38] sm:$0xf]
        %v3078 = vld [vmem:[%s3062 + $0x3c] sm:$0xf]
        %v3095 = vunpack.c.l.b16 %v3063
        %v3096 = vunpack.c.l.b16 %v3064
        %v3097 = vunpack.c.l.b16 %v3065
        %v3098 = vunpack.c.l.b16 %v3066
        %v3099 = vunpack.c.l.b16 %v3067
        %v3100 = vunpack.c.l.b16 %v3068
        %v3101 = vunpack.c.l.b16 %v3069
        %v3102 = vunpack.c.l.b16 %v3070
        %v3103 = vunpack.c.l.b16 %v3071
        %v3104 = vunpack.c.l.b16 %v3072
        %v3105 = vunpack.c.l.b16 %v3073
        %v3106 = vunpack.c.l.b16 %v3074
        %v3107 = vunpack.c.l.b16 %v3075
        %v3108 = vunpack.c.l.b16 %v3076
        %v3109 = vunpack.c.l.b16 %v3077
        %v3110 = vunpack.c.l.b16 %v3078
        %v3111 = vpack.c.b16 %v3096, %v3095
        %v3112 = vpack.c.b16 %v3098, %v3097
        %v3113 = vpack.c.b16 %v3100, %v3099
        %v3114 = vpack.c.b16 %v3102, %v3101
        %v3115 = vpack.c.b16 %v3104, %v3103
        %v3116 = vpack.c.b16 %v3106, %v3105
        %v3117 = vpack.c.b16 %v3108, %v3107
        %v3118 = vpack.c.b16 %v3110, %v3109
        %3127 = vmatpush.bf16.msra.mxu0 %v3118
        %3128 = vmatpush.bf16.msra.mxu0 %v3117
        %3129 = vmatpush.bf16.msra.mxu0 %v3116
        %3130 = vmatpush.bf16.msra.mxu0 %v3115
        %3131 = vmatpush.bf16.msra.mxu0 %v3114
        %3132 = vmatpush.bf16.msra.mxu0 %v3113
        %3133 = vmatpush.bf16.msra.mxu0 %v3112
        %3134 = vmatpush.bf16.msra.mxu0 %v3111
        %3135 = vmatmul.bf16.gmra.mxu0 %v3058
        %v3136 = vpop.f32.mrf.mxu0
        %v3137 = vadd.f32 0.0, %v3136
        %v3138 = vpop.f32.mrf.mxu0
        %v3139 = vadd.f32 0.0, %v3138
        %3140 = vmatmul.bf16.gmra.mxu0 %v3059
        %v3141 = vpop.f32.mrf.mxu0
        %v3142 = vadd.f32 0.0, %v3141
        %v3143 = vpop.f32.mrf.mxu0
        %v3144 = vadd.f32 0.0, %v3143
        %3145 = vmatmul.bf16.gmra.mxu0 %v3060
        %v3146 = vpop.f32.mrf.mxu0
        %v3147 = vadd.f32 0.0, %v3146
        %v3148 = vpop.f32.mrf.mxu0
        %v3149 = vadd.f32 0.0, %v3148
        %3150 = vmatmul.bf16.gmra.mxu0 %v3061
        %v3151 = vpop.f32.mrf.mxu0
        %v3152 = vadd.f32 0.0, %v3151
        %v3153 = vpop.f32.mrf.mxu0
        %v3154 = vadd.f32 0.0, %v3153
        %3155 = vdwg.mxu0
        %s3156 = scalar_lea.vmem %s6, 1
        %v3157 = vld [vmem:[%s3156] sm:$0x1]
        %v3159 = vperm.slane %v3157, 0
        %v3161 = vmul.f32 %v3137, %v3159
        %v3162 = vmul.f32 %v3139, %v3159
        %v3163 = vmul.f32 %v3142, %v3159
        %v3164 = vmul.f32 %v3144, %v3159
        %v3165 = vmul.f32 %v3147, %v3159
        %v3166 = vmul.f32 %v3149, %v3159
        %v3167 = vmul.f32 %v3152, %v3159
        %v3168 = vmul.f32 %v3154, %v3159
        %s3169 = scalar_lea.vmem %s7, 1
        %v3170 = vld [vmem:[%s3169] sm:$0x1]
        %v3172 = vperm.slane %v3170, 0
        %v3174 = vadd.f32 %v3161, %v3172
        %v3175 = vadd.f32 %v3162, %v3172
        %v3176 = vadd.f32 %v3163, %v3172
        %v3177 = vadd.f32 %v3164, %v3172
        %v3178 = vadd.f32 %v3165, %v3172
        %v3179 = vadd.f32 %v3166, %v3172
        %v3180 = vadd.f32 %v3167, %v3172
        %v3181 = vadd.f32 %v3168, %v3172
        %v3182 = vadd.f32 %v2954, %v3174
        %v3183 = vadd.f32 %v2955, %v3175
        %v3184 = vadd.f32 %v2956, %v3176
        %v3185 = vadd.f32 %v2957, %v3177
        %v3186 = vadd.f32 %v2958, %v3178
        %v3187 = vadd.f32 %v2959, %v3179
        %v3188 = vadd.f32 %v2960, %v3180
        %v3189 = vadd.f32 %v2961, %v3181
        %v3190 = vmax.f32 %v3182, 0.0
        %v3191 = vmax.f32 %v3183, 0.0
        %v3192 = vmax.f32 %v3184, 0.0
        %v3193 = vmax.f32 %v3185, 0.0
        %v3194 = vmax.f32 %v3186, 0.0
        %v3195 = vmax.f32 %v3187, 0.0
        %v3196 = vmax.f32 %v3188, 0.0
        %v3197 = vmax.f32 %v3189, 0.0
        %v3206 = vrot.slane %v3190, 1
        %v3207 = vrot.slane %v3191, 1
        %v3208 = vrot.slane %v3192, 1
        %v3209 = vrot.slane %v3193, 1
        %v3210 = vrot.slane %v3194, 1
        %v3211 = vrot.slane %v3195, 1
        %v3212 = vrot.slane %v3196, 1
        %v3213 = vrot.slane %v3197, 1
        %v3222 = vrot.slane %v3190, 2
        %v3223 = vrot.slane %v3191, 2
        %v3224 = vrot.slane %v3192, 2
        %v3225 = vrot.slane %v3193, 2
        %v3226 = vrot.slane %v3194, 2
        %v3227 = vrot.slane %v3195, 2
        %v3228 = vrot.slane %v3196, 2
        %v3229 = vrot.slane %v3197, 2
        %v3238 = vrot.slane %v3190, 3
        %v3239 = vrot.slane %v3191, 3
        %v3240 = vrot.slane %v3192, 3
        %v3241 = vrot.slane %v3193, 3
        %v3242 = vrot.slane %v3194, 3
        %v3243 = vrot.slane %v3195, 3
        %v3244 = vrot.slane %v3196, 3
        %v3245 = vrot.slane %v3197, 3
        %v3254 = vrot.slane %v3190, 4
        %v3255 = vrot.slane %v3191, 4
        %v3256 = vrot.slane %v3192, 4
        %v3257 = vrot.slane %v3193, 4
        %v3258 = vrot.slane %v3194, 4
        %v3259 = vrot.slane %v3195, 4
        %v3260 = vrot.slane %v3196, 4
        %v3261 = vrot.slane %v3197, 4
        %v3270 = vrot.slane %v3190, 5
        %v3271 = vrot.slane %v3191, 5
        %v3272 = vrot.slane %v3192, 5
        %v3273 = vrot.slane %v3193, 5
        %v3274 = vrot.slane %v3194, 5
        %v3275 = vrot.slane %v3195, 5
        %v3276 = vrot.slane %v3196, 5
        %v3277 = vrot.slane %v3197, 5
        %v3286 = vrot.slane %v3190, 6
        %v3287 = vrot.slane %v3191, 6
        %v3288 = vrot.slane %v3192, 6
        %v3289 = vrot.slane %v3193, 6
        %v3290 = vrot.slane %v3194, 6
        %v3291 = vrot.slane %v3195, 6
        %v3292 = vrot.slane %v3196, 6
        %v3293 = vrot.slane %v3197, 6
        %v3302 = vrot.slane %v3190, 7
        %v3303 = vrot.slane %v3191, 7
        %v3304 = vrot.slane %v3192, 7
        %v3305 = vrot.slane %v3193, 7
        %v3306 = vrot.slane %v3194, 7
        %v3307 = vrot.slane %v3195, 7
        %v3308 = vrot.slane %v3196, 7
        %v3309 = vrot.slane %v3197, 7
        %s3318 = scalar_lea.vmem %s1, 16
        %v3319 = vld [vmem:[%s3318] sm:$0xf]
        %v3320 = vld [vmem:[%s3318 + $0x4] sm:$0xf]
        %v3321 = vld [vmem:[%s3318 + $0x8] sm:$0xf]
        %v3322 = vld [vmem:[%s3318 + $0xc] sm:$0xf]
        %v3323 = vpack.c.bf16 %v3190, %v3190
        %v3324 = vpack.c.bf16 %v3191, %v3191
        %v3325 = vpack.c.bf16 %v3192, %v3192
        %v3326 = vpack.c.bf16 %v3193, %v3193
        %v3327 = vpack.c.bf16 %v3194, %v3194
        %v3328 = vpack.c.bf16 %v3195, %v3195
        %v3329 = vpack.c.bf16 %v3196, %v3196
        %v3330 = vpack.c.bf16 %v3197, %v3197
        %v3331 = vpack.c.bf16 %v3206, %v3206
        %v3332 = vpack.c.bf16 %v3207, %v3207
        %v3333 = vpack.c.bf16 %v3208, %v3208
        %v3334 = vpack.c.bf16 %v3209, %v3209
        %v3335 = vpack.c.bf16 %v3210, %v3210
        %v3336 = vpack.c.bf16 %v3211, %v3211
        %v3337 = vpack.c.bf16 %v3212, %v3212
        %v3338 = vpack.c.bf16 %v3213, %v3213
        %v3339 = vpack.c.bf16 %v3222, %v3222
        %v3340 = vpack.c.bf16 %v3223, %v3223
        %v3341 = vpack.c.bf16 %v3224, %v3224
        %v3342 = vpack.c.bf16 %v3225, %v3225
        %v3343 = vpack.c.bf16 %v3226, %v3226
        %v3344 = vpack.c.bf16 %v3227, %v3227
        %v3345 = vpack.c.bf16 %v3228, %v3228
        %v3346 = vpack.c.bf16 %v3229, %v3229
        %v3347 = vpack.c.bf16 %v3238, %v3238
        %v3348 = vpack.c.bf16 %v3239, %v3239
        %v3349 = vpack.c.bf16 %v3240, %v3240
        %v3350 = vpack.c.bf16 %v3241, %v3241
        %v3351 = vpack.c.bf16 %v3242, %v3242
        %v3352 = vpack.c.bf16 %v3243, %v3243
        %v3353 = vpack.c.bf16 %v3244, %v3244
        %v3354 = vpack.c.bf16 %v3245, %v3245
        %v3355 = vpack.c.bf16 %v3254, %v3254
        %v3356 = vpack.c.bf16 %v3255, %v3255
        %v3357 = vpack.c.bf16 %v3256, %v3256
        %v3358 = vpack.c.bf16 %v3257, %v3257
        %v3359 = vpack.c.bf16 %v3258, %v3258
        %v3360 = vpack.c.bf16 %v3259, %v3259
        %v3361 = vpack.c.bf16 %v3260, %v3260
        %v3362 = vpack.c.bf16 %v3261, %v3261
        %v3363 = vpack.c.bf16 %v3270, %v3270
        %v3364 = vpack.c.bf16 %v3271, %v3271
        %v3365 = vpack.c.bf16 %v3272, %v3272
        %v3366 = vpack.c.bf16 %v3273, %v3273
        %v3367 = vpack.c.bf16 %v3274, %v3274
        %v3368 = vpack.c.bf16 %v3275, %v3275
        %v3369 = vpack.c.bf16 %v3276, %v3276
        %v3370 = vpack.c.bf16 %v3277, %v3277
        %v3371 = vpack.c.bf16 %v3286, %v3286
        %v3372 = vpack.c.bf16 %v3287, %v3287
        %v3373 = vpack.c.bf16 %v3288, %v3288
        %v3374 = vpack.c.bf16 %v3289, %v3289
        %v3375 = vpack.c.bf16 %v3290, %v3290
        %v3376 = vpack.c.bf16 %v3291, %v3291
        %v3377 = vpack.c.bf16 %v3292, %v3292
        %v3378 = vpack.c.bf16 %v3293, %v3293
        %v3379 = vpack.c.bf16 %v3302, %v3302
        %v3380 = vpack.c.bf16 %v3303, %v3303
        %v3381 = vpack.c.bf16 %v3304, %v3304
        %v3382 = vpack.c.bf16 %v3305, %v3305
        %v3383 = vpack.c.bf16 %v3306, %v3306
        %v3384 = vpack.c.bf16 %v3307, %v3307
        %v3385 = vpack.c.bf16 %v3308, %v3308
        %v3386 = vpack.c.bf16 %v3309, %v3309
        %v3451 = vunpack.c.l.b16 %v3323
        %v3452 = vunpack.c.l.b16 %v3324
        %v3453 = vunpack.c.l.b16 %v3325
        %v3454 = vunpack.c.l.b16 %v3326
        %v3455 = vunpack.c.l.b16 %v3327
        %v3456 = vunpack.c.l.b16 %v3328
        %v3457 = vunpack.c.l.b16 %v3329
        %v3458 = vunpack.c.l.b16 %v3330
        %v3459 = vunpack.c.l.b16 %v3331
        %v3460 = vunpack.c.l.b16 %v3332
        %v3461 = vunpack.c.l.b16 %v3333
        %v3462 = vunpack.c.l.b16 %v3334
        %v3463 = vunpack.c.l.b16 %v3335
        %v3464 = vunpack.c.l.b16 %v3336
        %v3465 = vunpack.c.l.b16 %v3337
        %v3466 = vunpack.c.l.b16 %v3338
        %v3467 = vunpack.c.l.b16 %v3339
        %v3468 = vunpack.c.l.b16 %v3340
        %v3469 = vunpack.c.l.b16 %v3341
        %v3470 = vunpack.c.l.b16 %v3342
        %v3471 = vunpack.c.l.b16 %v3343
        %v3472 = vunpack.c.l.b16 %v3344
        %v3473 = vunpack.c.l.b16 %v3345
        %v3474 = vunpack.c.l.b16 %v3346
        %v3475 = vunpack.c.l.b16 %v3347
        %v3476 = vunpack.c.l.b16 %v3348
        %v3477 = vunpack.c.l.b16 %v3349
        %v3478 = vunpack.c.l.b16 %v3350
        %v3479 = vunpack.c.l.b16 %v3351
        %v3480 = vunpack.c.l.b16 %v3352
        %v3481 = vunpack.c.l.b16 %v3353
        %v3482 = vunpack.c.l.b16 %v3354
        %v3483 = vunpack.c.l.b16 %v3355
        %v3484 = vunpack.c.l.b16 %v3356
        %v3485 = vunpack.c.l.b16 %v3357
        %v3486 = vunpack.c.l.b16 %v3358
        %v3487 = vunpack.c.l.b16 %v3359
        %v3488 = vunpack.c.l.b16 %v3360
        %v3489 = vunpack.c.l.b16 %v3361
        %v3490 = vunpack.c.l.b16 %v3362
        %v3491 = vunpack.c.l.b16 %v3363
        %v3492 = vunpack.c.l.b16 %v3364
        %v3493 = vunpack.c.l.b16 %v3365
        %v3494 = vunpack.c.l.b16 %v3366
        %v3495 = vunpack.c.l.b16 %v3367
        %v3496 = vunpack.c.l.b16 %v3368
        %v3497 = vunpack.c.l.b16 %v3369
        %v3498 = vunpack.c.l.b16 %v3370
        %v3499 = vunpack.c.l.b16 %v3371
        %v3500 = vunpack.c.l.b16 %v3372
        %v3501 = vunpack.c.l.b16 %v3373
        %v3502 = vunpack.c.l.b16 %v3374
        %v3503 = vunpack.c.l.b16 %v3375
        %v3504 = vunpack.c.l.b16 %v3376
        %v3505 = vunpack.c.l.b16 %v3377
        %v3506 = vunpack.c.l.b16 %v3378
        %v3507 = vunpack.c.l.b16 %v3379
        %v3508 = vunpack.c.l.b16 %v3380
        %v3509 = vunpack.c.l.b16 %v3381
        %v3510 = vunpack.c.l.b16 %v3382
        %v3511 = vunpack.c.l.b16 %v3383
        %v3512 = vunpack.c.l.b16 %v3384
        %v3513 = vunpack.c.l.b16 %v3385
        %v3514 = vunpack.c.l.b16 %v3386
        %v3515 = vrot.slane %v3452, 7
        %vm3516 = vcmask 1041409
        %v3517 = vsel %vm3516, %v3515, %v3451
        %v3518 = vrot.slane %v3453, 6
        %vm3519 = vcmask 1042434
        %v3520 = vsel %vm3519, %v3518, %v3517
        %v3521 = vrot.slane %v3454, 5
        %vm3522 = vcmask 1043459
        %v3523 = vsel %vm3522, %v3521, %v3520
        %v3524 = vrot.slane %v3455, 4
        %vm3525 = vcmask 1044484
        %v3526 = vsel %vm3525, %v3524, %v3523
        %v3527 = vrot.slane %v3456, 3
        %vm3528 = vcmask 1045509
        %v3529 = vsel %vm3528, %v3527, %v3526
        %v3530 = vrot.slane %v3457, 2
        %vm3531 = vcmask 1046534
        %v3532 = vsel %vm3531, %v3530, %v3529
        %v3533 = vrot.slane %v3458, 1
        %vm3534 = vcmask 1047559
        %v3535 = vsel %vm3534, %v3533, %v3532
        %v3536 = vrot.slane %v3460, 7
        %v3537 = vsel %vm3516, %v3536, %v3459
        %v3538 = vrot.slane %v3461, 6
        %v3539 = vsel %vm3519, %v3538, %v3537
        %v3540 = vrot.slane %v3462, 5
        %v3541 = vsel %vm3522, %v3540, %v3539
        %v3542 = vrot.slane %v3463, 4
        %v3543 = vsel %vm3525, %v3542, %v3541
        %v3544 = vrot.slane %v3464, 3
        %v3545 = vsel %vm3528, %v3544, %v3543
        %v3546 = vrot.slane %v3465, 2
        %v3547 = vsel %vm3531, %v3546, %v3545
        %v3548 = vrot.slane %v3466, 1
        %v3549 = vsel %vm3534, %v3548, %v3547
        %v3550 = vrot.slane %v3468, 7
        %v3551 = vsel %vm3516, %v3550, %v3467
        %v3552 = vrot.slane %v3469, 6
        %v3553 = vsel %vm3519, %v3552, %v3551
        %v3554 = vrot.slane %v3470, 5
        %v3555 = vsel %vm3522, %v3554, %v3553
        %v3556 = vrot.slane %v3471, 4
        %v3557 = vsel %vm3525, %v3556, %v3555
        %v3558 = vrot.slane %v3472, 3
        %v3559 = vsel %vm3528, %v3558, %v3557
        %v3560 = vrot.slane %v3473, 2
        %v3561 = vsel %vm3531, %v3560, %v3559
        %v3562 = vrot.slane %v3474, 1
        %v3563 = vsel %vm3534, %v3562, %v3561
        %v3564 = vrot.slane %v3476, 7
        %v3565 = vsel %vm3516, %v3564, %v3475
        %v3566 = vrot.slane %v3477, 6
        %v3567 = vsel %vm3519, %v3566, %v3565
        %v3568 = vrot.slane %v3478, 5
        %v3569 = vsel %vm3522, %v3568, %v3567
        %v3570 = vrot.slane %v3479, 4
        %v3571 = vsel %vm3525, %v3570, %v3569
        %v3572 = vrot.slane %v3480, 3
        %v3573 = vsel %vm3528, %v3572, %v3571
        %v3574 = vrot.slane %v3481, 2
        %v3575 = vsel %vm3531, %v3574, %v3573
        %v3576 = vrot.slane %v3482, 1
        %v3577 = vsel %vm3534, %v3576, %v3575
        %v3578 = vrot.slane %v3484, 7
        %v3579 = vsel %vm3516, %v3578, %v3483
        %v3580 = vrot.slane %v3485, 6
        %v3581 = vsel %vm3519, %v3580, %v3579
        %v3582 = vrot.slane %v3486, 5
        %v3583 = vsel %vm3522, %v3582, %v3581
        %v3584 = vrot.slane %v3487, 4
        %v3585 = vsel %vm3525, %v3584, %v3583
        %v3586 = vrot.slane %v3488, 3
        %v3587 = vsel %vm3528, %v3586, %v3585
        %v3588 = vrot.slane %v3489, 2
        %v3589 = vsel %vm3531, %v3588, %v3587
        %v3590 = vrot.slane %v3490, 1
        %v3591 = vsel %vm3534, %v3590, %v3589
        %v3592 = vrot.slane %v3492, 7
        %v3593 = vsel %vm3516, %v3592, %v3491
        %v3594 = vrot.slane %v3493, 6
        %v3595 = vsel %vm3519, %v3594, %v3593
        %v3596 = vrot.slane %v3494, 5
        %v3597 = vsel %vm3522, %v3596, %v3595
        %v3598 = vrot.slane %v3495, 4
        %v3599 = vsel %vm3525, %v3598, %v3597
        %v3600 = vrot.slane %v3496, 3
        %v3601 = vsel %vm3528, %v3600, %v3599
        %v3602 = vrot.slane %v3497, 2
        %v3603 = vsel %vm3531, %v3602, %v3601
        %v3604 = vrot.slane %v3498, 1
        %v3605 = vsel %vm3534, %v3604, %v3603
        %v3606 = vrot.slane %v3500, 7
        %v3607 = vsel %vm3516, %v3606, %v3499
        %v3608 = vrot.slane %v3501, 6
        %v3609 = vsel %vm3519, %v3608, %v3607
        %v3610 = vrot.slane %v3502, 5
        %v3611 = vsel %vm3522, %v3610, %v3609
        %v3612 = vrot.slane %v3503, 4
        %v3613 = vsel %vm3525, %v3612, %v3611
        %v3614 = vrot.slane %v3504, 3
        %v3615 = vsel %vm3528, %v3614, %v3613
        %v3616 = vrot.slane %v3505, 2
        %v3617 = vsel %vm3531, %v3616, %v3615
        %v3618 = vrot.slane %v3506, 1
        %v3619 = vsel %vm3534, %v3618, %v3617
        %v3620 = vrot.slane %v3508, 7
        %v3621 = vsel %vm3516, %v3620, %v3507
        %v3622 = vrot.slane %v3509, 6
        %v3623 = vsel %vm3519, %v3622, %v3621
        %v3624 = vrot.slane %v3510, 5
        %v3625 = vsel %vm3522, %v3624, %v3623
        %v3626 = vrot.slane %v3511, 4
        %v3627 = vsel %vm3525, %v3626, %v3625
        %v3628 = vrot.slane %v3512, 3
        %v3629 = vsel %vm3528, %v3628, %v3627
        %v3630 = vrot.slane %v3513, 2
        %v3631 = vsel %vm3531, %v3630, %v3629
        %v3632 = vrot.slane %v3514, 1
        %v3633 = vsel %vm3534, %v3632, %v3631
        %v3634 = vpack.c.b16 %v3549, %v3535
        %v3635 = vpack.c.b16 %v3577, %v3563
        %v3636 = vpack.c.b16 %v3605, %v3591
        %v3637 = vpack.c.b16 %v3633, %v3619
        %v3642 = vunpack.c.l.b16 %v3319
        %v3643 = vunpack.c.l.b16 %v3320
        %v3644 = vunpack.c.l.b16 %v3321
        %v3645 = vunpack.c.l.b16 %v3322
        %v3646 = vpack.c.b16 %v3643, %v3642
        %v3647 = vpack.c.b16 %v3645, %v3644
        %v3651 = vsel %vm412, %v3634, 0
        %v3654 = vsel %vm412, %v3635, 0
        %v3657 = vsel %vm412, %v3636, 0
        %v3660 = vsel %vm412, %v3637, 0
        %3662 = vmatpush.bf16.msra.mxu0 0
        %3663 = vmatpush.bf16.msra.mxu0 0
        %3664 = vmatpush.bf16.msra.mxu0 0
        %3665 = vmatpush.bf16.msra.mxu0 0
        %3666 = vmatpush.bf16.msra.mxu0 0
        %3667 = vmatpush.bf16.msra.mxu0 0
        %3668 = vmatpush.bf16.msra.mxu0 %v3647
        %3669 = vmatpush.bf16.msra.mxu0 %v3646
        %3670 = vmatmul.bf16.gmra.mxu0 %v3651
        %v3671 = vpop.f32.mrf.mxu0
        %v3672 = vadd.f32 0.0, %v3671
        %v3673 = vpop.f32.mrf.mxu0
        %v3674 = vadd.f32 0.0, %v3673
        %3675 = vmatmul.bf16.gmra.mxu0 %v3654
        %v3676 = vpop.f32.mrf.mxu0
        %v3677 = vadd.f32 0.0, %v3676
        %v3678 = vpop.f32.mrf.mxu0
        %v3679 = vadd.f32 0.0, %v3678
        %3680 = vmatmul.bf16.gmra.mxu0 %v3657
        %v3681 = vpop.f32.mrf.mxu0
        %v3682 = vadd.f32 0.0, %v3681
        %v3683 = vpop.f32.mrf.mxu0
        %v3684 = vadd.f32 0.0, %v3683
        %3685 = vmatmul.bf16.gmra.mxu0 %v3660
        %v3686 = vpop.f32.mrf.mxu0
        %v3687 = vadd.f32 0.0, %v3686
        %v3688 = vpop.f32.mrf.mxu0
        %v3689 = vadd.f32 0.0, %v3688
        %3690 = vdwg.mxu0
        %3692 = vrot.lane.b32.xlu0 %v3672, 96
        %v3693 = vpop.permute.xlu0 %3692
        %v3694 = vsel %vm457, %v3672, 0
        %v3696 = vsel %vm457, %v3693, 0
        %3698 = vmatpush.xpose.msra.mxu0 0.0
        %3699 = vmatpush.xpose.msra.mxu0 0.0
        %3700 = vmatpush.xpose.msra.mxu0 0.0
        %3701 = vmatpush.xpose.msra.mxu0 0.0
        %3702 = vmatpush.xpose.msra.mxu0 0.0
        %3703 = vmatpush.xpose.msra.mxu0 0.0
        %3704 = vmatpush.xpose.msra.mxu0 0.0
        %3705 = vmatpush.xpose.msra.mxu0 0.0
        %3706 = vmatpush.xpose.msra.mxu0 0.0
        %3707 = vmatpush.xpose.msra.mxu0 0.0
        %3708 = vmatpush.xpose.msra.mxu0 0.0
        %3709 = vmatpush.xpose.msra.mxu0 0.0
        %3710 = vmatpush.xpose.msra.mxu0 0.0
        %3711 = vmatpush.xpose.msra.mxu0 0.0
        %3712 = vmatpush.xpose.msra.mxu0 0.0
        %3713 = vmatpush.xpose.msra.mxu0 %v3696
        %3714 = vmatmul.f32.gmra.mxu0 %v3694
        %v3715 = vpop.f32.mrf.mxu0
        %v3716 = vadd.f32 0.0, %v3715
        %3717 = vdwg.mxu0
        %3719 = vrot.lane.b32.xlu0 %v3674, 96
        %v3720 = vpop.permute.xlu0 %3719
        %v3721 = vsel %vm457, %v3674, 0
        %v3723 = vsel %vm457, %v3720, 0
        %3725 = vmatpush.xpose.msra.mxu0 0.0
        %3726 = vmatpush.xpose.msra.mxu0 0.0
        %3727 = vmatpush.xpose.msra.mxu0 0.0
        %3728 = vmatpush.xpose.msra.mxu0 0.0
        %3729 = vmatpush.xpose.msra.mxu0 0.0
        %3730 = vmatpush.xpose.msra.mxu0 0.0
        %3731 = vmatpush.xpose.msra.mxu0 0.0
        %3732 = vmatpush.xpose.msra.mxu0 0.0
        %3733 = vmatpush.xpose.msra.mxu0 0.0
        %3734 = vmatpush.xpose.msra.mxu0 0.0
        %3735 = vmatpush.xpose.msra.mxu0 0.0
        %3736 = vmatpush.xpose.msra.mxu0 0.0
        %3737 = vmatpush.xpose.msra.mxu0 0.0
        %3738 = vmatpush.xpose.msra.mxu0 0.0
        %3739 = vmatpush.xpose.msra.mxu0 0.0
        %3740 = vmatpush.xpose.msra.mxu0 %v3723
        %3741 = vmatmul.f32.gmra.mxu0 %v3721
        %v3742 = vpop.f32.mrf.mxu0
        %v3743 = vadd.f32 0.0, %v3742
        %3744 = vdwg.mxu0
        %3746 = vrot.lane.b32.xlu0 %v3677, 96
        %v3747 = vpop.permute.xlu0 %3746
        %v3748 = vsel %vm457, %v3677, 0
        %v3750 = vsel %vm457, %v3747, 0
        %3752 = vmatpush.xpose.msra.mxu0 0.0
        %3753 = vmatpush.xpose.msra.mxu0 0.0
        %3754 = vmatpush.xpose.msra.mxu0 0.0
        %3755 = vmatpush.xpose.msra.mxu0 0.0
        %3756 = vmatpush.xpose.msra.mxu0 0.0
        %3757 = vmatpush.xpose.msra.mxu0 0.0
        %3758 = vmatpush.xpose.msra.mxu0 0.0
        %3759 = vmatpush.xpose.msra.mxu0 0.0
        %3760 = vmatpush.xpose.msra.mxu0 0.0
        %3761 = vmatpush.xpose.msra.mxu0 0.0
        %3762 = vmatpush.xpose.msra.mxu0 0.0
        %3763 = vmatpush.xpose.msra.mxu0 0.0
        %3764 = vmatpush.xpose.msra.mxu0 0.0
        %3765 = vmatpush.xpose.msra.mxu0 0.0
        %3766 = vmatpush.xpose.msra.mxu0 0.0
        %3767 = vmatpush.xpose.msra.mxu0 %v3750
        %3768 = vmatmul.f32.gmra.mxu0 %v3748
        %v3769 = vpop.f32.mrf.mxu0
        %v3770 = vadd.f32 0.0, %v3769
        %3771 = vdwg.mxu0
        %3773 = vrot.lane.b32.xlu0 %v3679, 96
        %v3774 = vpop.permute.xlu0 %3773
        %v3775 = vsel %vm457, %v3679, 0
        %v3777 = vsel %vm457, %v3774, 0
        %3779 = vmatpush.xpose.msra.mxu0 0.0
        %3780 = vmatpush.xpose.msra.mxu0 0.0
        %3781 = vmatpush.xpose.msra.mxu0 0.0
        %3782 = vmatpush.xpose.msra.mxu0 0.0
        %3783 = vmatpush.xpose.msra.mxu0 0.0
        %3784 = vmatpush.xpose.msra.mxu0 0.0
        %3785 = vmatpush.xpose.msra.mxu0 0.0
        %3786 = vmatpush.xpose.msra.mxu0 0.0
        %3787 = vmatpush.xpose.msra.mxu0 0.0
        %3788 = vmatpush.xpose.msra.mxu0 0.0
        %3789 = vmatpush.xpose.msra.mxu0 0.0
        %3790 = vmatpush.xpose.msra.mxu0 0.0
        %3791 = vmatpush.xpose.msra.mxu0 0.0
        %3792 = vmatpush.xpose.msra.mxu0 0.0
        %3793 = vmatpush.xpose.msra.mxu0 0.0
        %3794 = vmatpush.xpose.msra.mxu0 %v3777
        %3795 = vmatmul.f32.gmra.mxu0 %v3775
        %v3796 = vpop.f32.mrf.mxu0
        %v3797 = vadd.f32 0.0, %v3796
        %3798 = vdwg.mxu0
        %3800 = vrot.lane.b32.xlu0 %v3682, 96
        %v3801 = vpop.permute.xlu0 %3800
        %v3802 = vsel %vm457, %v3682, 0
        %v3804 = vsel %vm457, %v3801, 0
        %3806 = vmatpush.xpose.msra.mxu0 0.0
        %3807 = vmatpush.xpose.msra.mxu0 0.0
        %3808 = vmatpush.xpose.msra.mxu0 0.0
        %3809 = vmatpush.xpose.msra.mxu0 0.0
        %3810 = vmatpush.xpose.msra.mxu0 0.0
        %3811 = vmatpush.xpose.msra.mxu0 0.0
        %3812 = vmatpush.xpose.msra.mxu0 0.0
        %3813 = vmatpush.xpose.msra.mxu0 0.0
        %3814 = vmatpush.xpose.msra.mxu0 0.0
        %3815 = vmatpush.xpose.msra.mxu0 0.0
        %3816 = vmatpush.xpose.msra.mxu0 0.0
        %3817 = vmatpush.xpose.msra.mxu0 0.0
        %3818 = vmatpush.xpose.msra.mxu0 0.0
        %3819 = vmatpush.xpose.msra.mxu0 0.0
        %3820 = vmatpush.xpose.msra.mxu0 0.0
        %3821 = vmatpush.xpose.msra.mxu0 %v3804
        %3822 = vmatmul.f32.gmra.mxu0 %v3802
        %v3823 = vpop.f32.mrf.mxu0
        %v3824 = vadd.f32 0.0, %v3823
        %3825 = vdwg.mxu0
        %3827 = vrot.lane.b32.xlu0 %v3684, 96
        %v3828 = vpop.permute.xlu0 %3827
        %v3829 = vsel %vm457, %v3684, 0
        %v3831 = vsel %vm457, %v3828, 0
        %3833 = vmatpush.xpose.msra.mxu0 0.0
        %3834 = vmatpush.xpose.msra.mxu0 0.0
        %3835 = vmatpush.xpose.msra.mxu0 0.0
        %3836 = vmatpush.xpose.msra.mxu0 0.0
        %3837 = vmatpush.xpose.msra.mxu0 0.0
        %3838 = vmatpush.xpose.msra.mxu0 0.0
        %3839 = vmatpush.xpose.msra.mxu0 0.0
        %3840 = vmatpush.xpose.msra.mxu0 0.0
        %3841 = vmatpush.xpose.msra.mxu0 0.0
        %3842 = vmatpush.xpose.msra.mxu0 0.0
        %3843 = vmatpush.xpose.msra.mxu0 0.0
        %3844 = vmatpush.xpose.msra.mxu0 0.0
        %3845 = vmatpush.xpose.msra.mxu0 0.0
        %3846 = vmatpush.xpose.msra.mxu0 0.0
        %3847 = vmatpush.xpose.msra.mxu0 0.0
        %3848 = vmatpush.xpose.msra.mxu0 %v3831
        %3849 = vmatmul.f32.gmra.mxu0 %v3829
        %v3850 = vpop.f32.mrf.mxu0
        %v3851 = vadd.f32 0.0, %v3850
        %3852 = vdwg.mxu0
        %3854 = vrot.lane.b32.xlu0 %v3687, 96
        %v3855 = vpop.permute.xlu0 %3854
        %v3856 = vsel %vm457, %v3687, 0
        %v3858 = vsel %vm457, %v3855, 0
        %3860 = vmatpush.xpose.msra.mxu0 0.0
        %3861 = vmatpush.xpose.msra.mxu0 0.0
        %3862 = vmatpush.xpose.msra.mxu0 0.0
        %3863 = vmatpush.xpose.msra.mxu0 0.0
        %3864 = vmatpush.xpose.msra.mxu0 0.0
        %3865 = vmatpush.xpose.msra.mxu0 0.0
        %3866 = vmatpush.xpose.msra.mxu0 0.0
        %3867 = vmatpush.xpose.msra.mxu0 0.0
        %3868 = vmatpush.xpose.msra.mxu0 0.0
        %3869 = vmatpush.xpose.msra.mxu0 0.0
        %3870 = vmatpush.xpose.msra.mxu0 0.0
        %3871 = vmatpush.xpose.msra.mxu0 0.0
        %3872 = vmatpush.xpose.msra.mxu0 0.0
        %3873 = vmatpush.xpose.msra.mxu0 0.0
        %3874 = vmatpush.xpose.msra.mxu0 0.0
        %3875 = vmatpush.xpose.msra.mxu0 %v3858
        %3876 = vmatmul.f32.gmra.mxu0 %v3856
        %v3877 = vpop.f32.mrf.mxu0
        %v3878 = vadd.f32 0.0, %v3877
        %3879 = vdwg.mxu0
        %3881 = vrot.lane.b32.xlu0 %v3689, 96
        %v3882 = vpop.permute.xlu0 %3881
        %v3883 = vsel %vm457, %v3689, 0
        %v3885 = vsel %vm457, %v3882, 0
        %3887 = vmatpush.xpose.msra.mxu0 0.0
        %3888 = vmatpush.xpose.msra.mxu0 0.0
        %3889 = vmatpush.xpose.msra.mxu0 0.0
        %3890 = vmatpush.xpose.msra.mxu0 0.0
        %3891 = vmatpush.xpose.msra.mxu0 0.0
        %3892 = vmatpush.xpose.msra.mxu0 0.0
        %3893 = vmatpush.xpose.msra.mxu0 0.0
        %3894 = vmatpush.xpose.msra.mxu0 0.0
        %3895 = vmatpush.xpose.msra.mxu0 0.0
        %3896 = vmatpush.xpose.msra.mxu0 0.0
        %3897 = vmatpush.xpose.msra.mxu0 0.0
        %3898 = vmatpush.xpose.msra.mxu0 0.0
        %3899 = vmatpush.xpose.msra.mxu0 0.0
        %3900 = vmatpush.xpose.msra.mxu0 0.0
        %3901 = vmatpush.xpose.msra.mxu0 0.0
        %3902 = vmatpush.xpose.msra.mxu0 %v3885
        %3903 = vmatmul.f32.gmra.mxu0 %v3883
        %v3904 = vpop.f32.mrf.mxu0
        %v3905 = vadd.f32 0.0, %v3904
        %3906 = vdwg.mxu0
        %v3907 = vmul.f32 %v3716, 0.35355338
        %v3908 = vmul.f32 %v3743, 0.35355338
        %v3909 = vmul.f32 %v3770, 0.35355338
        %v3910 = vmul.f32 %v3797, 0.35355338
        %v3911 = vmul.f32 %v3824, 0.35355338
        %v3912 = vmul.f32 %v3851, 0.35355338
        %v3913 = vmul.f32 %v3878, 0.35355338
        %v3914 = vmul.f32 %v3905, 0.35355338
        %3915 = vst.msk [vmem:[%s382] sm:$0xff] %vm457, %v3907
        %3916 = vst.msk [vmem:[%s382 + $0x8] sm:$0xff] %vm457, %v3908
        %3917 = vst.msk [vmem:[%s382 + $0x10] sm:$0xff] %vm457, %v3909
        %3918 = vst.msk [vmem:[%s382 + $0x18] sm:$0xff] %vm457, %v3910
        %3919 = vst.msk [vmem:[%s382 + $0x20] sm:$0xff] %vm457, %v3911
        %3920 = vst.msk [vmem:[%s382 + $0x28] sm:$0xff] %vm457, %v3912
        %3921 = vst.msk [vmem:[%s382 + $0x30] sm:$0xff] %vm457, %v3913
        %3922 = vst.msk [vmem:[%s382 + $0x38] sm:$0xff] %vm457, %v3914
        %v3923 = vsel %vm457, %v3907, -inf
        %3924 = vmax.xlane.f32.xlu0 %v3923
        %v3925 = vpop.xlane.xlu0 %3924
        %v3926 = vsel %vm457, %v3908, -inf
        %3927 = vmax.xlane.f32.xlu0 %v3926
        %v3928 = vpop.xlane.xlu0 %3927
        %v3929 = vsel %vm457, %v3909, -inf
        %3930 = vmax.xlane.f32.xlu0 %v3929
        %v3931 = vpop.xlane.xlu0 %3930
        %v3932 = vsel %vm457, %v3910, -inf
        %3933 = vmax.xlane.f32.xlu0 %v3932
        %v3934 = vpop.xlane.xlu0 %3933
        %v3935 = vsel %vm457, %v3911, -inf
        %3936 = vmax.xlane.f32.xlu0 %v3935
        %v3937 = vpop.xlane.xlu0 %3936
        %v3938 = vsel %vm457, %v3912, -inf
        %3939 = vmax.xlane.f32.xlu0 %v3938
        %v3940 = vpop.xlane.xlu0 %3939
        %v3941 = vsel %vm457, %v3913, -inf
        %3942 = vmax.xlane.f32.xlu0 %v3941
        %v3943 = vpop.xlane.xlu0 %3942
        %v3944 = vsel %vm457, %v3914, -inf
        %3945 = vmax.xlane.f32.xlu0 %v3944
        %v3946 = vpop.xlane.xlu0 %3945
        %v3947 = vsub.f32 %v3907, %v3925
        %v3948 = vsub.f32 %v3908, %v3928
        %v3949 = vsub.f32 %v3909, %v3931
        %v3950 = vsub.f32 %v3910, %v3934
        %v3951 = vsub.f32 %v3911, %v3937
        %v3952 = vsub.f32 %v3912, %v3940
        %v3953 = vsub.f32 %v3913, %v3943
        %v3954 = vsub.f32 %v3914, %v3946
        %v3955 = vmul.f32 %v3947, 1.442695
        %v3956 = vpow.pop %v3955
        %v3957 = vmul.f32 %v3948, 1.442695
        %v3958 = vpow.pop %v3957
        %v3959 = vmul.f32 %v3949, 1.442695
        %v3960 = vpow.pop %v3959
        %v3961 = vmul.f32 %v3950, 1.442695
        %v3962 = vpow.pop %v3961
        %v3963 = vmul.f32 %v3951, 1.442695
        %v3964 = vpow.pop %v3963
        %v3965 = vmul.f32 %v3952, 1.442695
        %v3966 = vpow.pop %v3965
        %v3967 = vmul.f32 %v3953, 1.442695
        %v3968 = vpow.pop %v3967
        %v3969 = vmul.f32 %v3954, 1.442695
        %v3970 = vpow.pop %v3969
        %v3971 = vsel %vm457, %v3956, 0.0
        %3972 = vadd.xlane.f32.xlu0 %v3971
        %v3973 = vpop.xlane.xlu0 %3972
        %v3974 = vsel %vm457, %v3958, 0.0
        %3975 = vadd.xlane.f32.xlu0 %v3974
        %v3976 = vpop.xlane.xlu0 %3975
        %v3977 = vsel %vm457, %v3960, 0.0
        %3978 = vadd.xlane.f32.xlu0 %v3977
        %v3979 = vpop.xlane.xlu0 %3978
        %v3980 = vsel %vm457, %v3962, 0.0
        %3981 = vadd.xlane.f32.xlu0 %v3980
        %v3982 = vpop.xlane.xlu0 %3981
        %v3983 = vsel %vm457, %v3964, 0.0
        %3984 = vadd.xlane.f32.xlu0 %v3983
        %v3985 = vpop.xlane.xlu0 %3984
        %v3986 = vsel %vm457, %v3966, 0.0
        %3987 = vadd.xlane.f32.xlu0 %v3986
        %v3988 = vpop.xlane.xlu0 %3987
        %v3989 = vsel %vm457, %v3968, 0.0
        %3990 = vadd.xlane.f32.xlu0 %v3989
        %v3991 = vpop.xlane.xlu0 %3990
        %v3992 = vsel %vm457, %v3970, 0.0
        %3993 = vadd.xlane.f32.xlu0 %v3992
        %v3994 = vpop.xlane.xlu0 %3993
        %v3995 = vrcp.pop %v3973
        %v3996 = vrcp.pop %v3976
        %v3997 = vrcp.pop %v3979
        %v3998 = vrcp.pop %v3982
        %v3999 = vrcp.pop %v3985
        %v4000 = vrcp.pop %v3988
        %v4001 = vrcp.pop %v3991
        %v4002 = vrcp.pop %v3994
        %v4003 = vmul.f32 %v3956, %v3995
        %v4004 = vmul.f32 %v3958, %v3996
        %v4005 = vmul.f32 %v3960, %v3997
        %v4006 = vmul.f32 %v3962, %v3998
        %v4007 = vmul.f32 %v3964, %v3999
        %v4008 = vmul.f32 %v3966, %v4000
        %v4009 = vmul.f32 %v3968, %v4001
        %v4010 = vmul.f32 %v3970, %v4002
        %4011 = vrot.lane.b32.xlu0 %v3672, 64
        %v4012 = vpop.permute.xlu0 %4011
        %v4015 = vsel %vm457, %v4003, 0
        %4017 = vmatpush.msra.mxu0 0.0
        %4018 = vmatpush.msra.mxu0 0.0
        %4019 = vmatpush.msra.mxu0 0.0
        %4020 = vmatpush.msra.mxu0 0.0
        %4021 = vmatpush.msra.mxu0 0.0
        %4022 = vmatpush.msra.mxu0 0.0
        %4023 = vmatpush.msra.mxu0 0.0
        %4024 = vmatpush.msra.mxu0 0.0
        %4025 = vmatpush.msra.mxu0 0.0
        %4026 = vmatpush.msra.mxu0 0.0
        %4027 = vmatpush.msra.mxu0 0.0
        %4028 = vmatpush.msra.mxu0 0.0
        %4029 = vmatpush.msra.mxu0 0.0
        %4030 = vmatpush.msra.mxu0 0.0
        %4031 = vmatpush.msra.mxu0 0.0
        %4032 = vmatpush.msra.mxu0 %v4012
        %4033 = vmatmul.f32.gmra.mxu0 %v4015
        %v4034 = vpop.f32.mrf.mxu0
        %v4035 = vadd.f32 0.0, %v4034
        %4036 = vdwg.mxu0
        %4037 = vrot.lane.b32.xlu0 %v3674, 64
        %v4038 = vpop.permute.xlu0 %4037
        %v4041 = vsel %vm457, %v4004, 0
        %4043 = vmatpush.msra.mxu0 0.0
        %4044 = vmatpush.msra.mxu0 0.0
        %4045 = vmatpush.msra.mxu0 0.0
        %4046 = vmatpush.msra.mxu0 0.0
        %4047 = vmatpush.msra.mxu0 0.0
        %4048 = vmatpush.msra.mxu0 0.0
        %4049 = vmatpush.msra.mxu0 0.0
        %4050 = vmatpush.msra.mxu0 0.0
        %4051 = vmatpush.msra.mxu0 0.0
        %4052 = vmatpush.msra.mxu0 0.0
        %4053 = vmatpush.msra.mxu0 0.0
        %4054 = vmatpush.msra.mxu0 0.0
        %4055 = vmatpush.msra.mxu0 0.0
        %4056 = vmatpush.msra.mxu0 0.0
        %4057 = vmatpush.msra.mxu0 0.0
        %4058 = vmatpush.msra.mxu0 %v4038
        %4059 = vmatmul.f32.gmra.mxu0 %v4041
        %v4060 = vpop.f32.mrf.mxu0
        %v4061 = vadd.f32 0.0, %v4060
        %4062 = vdwg.mxu0
        %4063 = vrot.lane.b32.xlu0 %v3677, 64
        %v4064 = vpop.permute.xlu0 %4063
        %v4067 = vsel %vm457, %v4005, 0
        %4069 = vmatpush.msra.mxu0 0.0
        %4070 = vmatpush.msra.mxu0 0.0
        %4071 = vmatpush.msra.mxu0 0.0
        %4072 = vmatpush.msra.mxu0 0.0
        %4073 = vmatpush.msra.mxu0 0.0
        %4074 = vmatpush.msra.mxu0 0.0
        %4075 = vmatpush.msra.mxu0 0.0
        %4076 = vmatpush.msra.mxu0 0.0
        %4077 = vmatpush.msra.mxu0 0.0
        %4078 = vmatpush.msra.mxu0 0.0
        %4079 = vmatpush.msra.mxu0 0.0
        %4080 = vmatpush.msra.mxu0 0.0
        %4081 = vmatpush.msra.mxu0 0.0
        %4082 = vmatpush.msra.mxu0 0.0
        %4083 = vmatpush.msra.mxu0 0.0
        %4084 = vmatpush.msra.mxu0 %v4064
        %4085 = vmatmul.f32.gmra.mxu0 %v4067
        %v4086 = vpop.f32.mrf.mxu0
        %v4087 = vadd.f32 0.0, %v4086
        %4088 = vdwg.mxu0
        %4089 = vrot.lane.b32.xlu0 %v3679, 64
        %v4090 = vpop.permute.xlu0 %4089
        %v4093 = vsel %vm457, %v4006, 0
        %4095 = vmatpush.msra.mxu0 0.0
        %4096 = vmatpush.msra.mxu0 0.0
        %4097 = vmatpush.msra.mxu0 0.0
        %4098 = vmatpush.msra.mxu0 0.0
        %4099 = vmatpush.msra.mxu0 0.0
        %4100 = vmatpush.msra.mxu0 0.0
        %4101 = vmatpush.msra.mxu0 0.0
        %4102 = vmatpush.msra.mxu0 0.0
        %4103 = vmatpush.msra.mxu0 0.0
        %4104 = vmatpush.msra.mxu0 0.0
        %4105 = vmatpush.msra.mxu0 0.0
        %4106 = vmatpush.msra.mxu0 0.0
        %4107 = vmatpush.msra.mxu0 0.0
        %4108 = vmatpush.msra.mxu0 0.0
        %4109 = vmatpush.msra.mxu0 0.0
        %4110 = vmatpush.msra.mxu0 %v4090
        %4111 = vmatmul.f32.gmra.mxu0 %v4093
        %v4112 = vpop.f32.mrf.mxu0
        %v4113 = vadd.f32 0.0, %v4112
        %4114 = vdwg.mxu0
        %4115 = vrot.lane.b32.xlu0 %v3682, 64
        %v4116 = vpop.permute.xlu0 %4115
        %v4119 = vsel %vm457, %v4007, 0
        %4121 = vmatpush.msra.mxu0 0.0
        %4122 = vmatpush.msra.mxu0 0.0
        %4123 = vmatpush.msra.mxu0 0.0
        %4124 = vmatpush.msra.mxu0 0.0
        %4125 = vmatpush.msra.mxu0 0.0
        %4126 = vmatpush.msra.mxu0 0.0
        %4127 = vmatpush.msra.mxu0 0.0
        %4128 = vmatpush.msra.mxu0 0.0
        %4129 = vmatpush.msra.mxu0 0.0
        %4130 = vmatpush.msra.mxu0 0.0
        %4131 = vmatpush.msra.mxu0 0.0
        %4132 = vmatpush.msra.mxu0 0.0
        %4133 = vmatpush.msra.mxu0 0.0
        %4134 = vmatpush.msra.mxu0 0.0
        %4135 = vmatpush.msra.mxu0 0.0
        %4136 = vmatpush.msra.mxu0 %v4116
        %4137 = vmatmul.f32.gmra.mxu0 %v4119
        %v4138 = vpop.f32.mrf.mxu0
        %v4139 = vadd.f32 0.0, %v4138
        %4140 = vdwg.mxu0
        %4141 = vrot.lane.b32.xlu0 %v3684, 64
        %v4142 = vpop.permute.xlu0 %4141
        %v4145 = vsel %vm457, %v4008, 0
        %4147 = vmatpush.msra.mxu0 0.0
        %4148 = vmatpush.msra.mxu0 0.0
        %4149 = vmatpush.msra.mxu0 0.0
        %4150 = vmatpush.msra.mxu0 0.0
        %4151 = vmatpush.msra.mxu0 0.0
        %4152 = vmatpush.msra.mxu0 0.0
        %4153 = vmatpush.msra.mxu0 0.0
        %4154 = vmatpush.msra.mxu0 0.0
        %4155 = vmatpush.msra.mxu0 0.0
        %4156 = vmatpush.msra.mxu0 0.0
        %4157 = vmatpush.msra.mxu0 0.0
        %4158 = vmatpush.msra.mxu0 0.0
        %4159 = vmatpush.msra.mxu0 0.0
        %4160 = vmatpush.msra.mxu0 0.0
        %4161 = vmatpush.msra.mxu0 0.0
        %4162 = vmatpush.msra.mxu0 %v4142
        %4163 = vmatmul.f32.gmra.mxu0 %v4145
        %v4164 = vpop.f32.mrf.mxu0
        %v4165 = vadd.f32 0.0, %v4164
        %4166 = vdwg.mxu0
        %4167 = vrot.lane.b32.xlu0 %v3687, 64
        %v4168 = vpop.permute.xlu0 %4167
        %v4171 = vsel %vm457, %v4009, 0
        %4173 = vmatpush.msra.mxu0 0.0
        %4174 = vmatpush.msra.mxu0 0.0
        %4175 = vmatpush.msra.mxu0 0.0
        %4176 = vmatpush.msra.mxu0 0.0
        %4177 = vmatpush.msra.mxu0 0.0
        %4178 = vmatpush.msra.mxu0 0.0
        %4179 = vmatpush.msra.mxu0 0.0
        %4180 = vmatpush.msra.mxu0 0.0
        %4181 = vmatpush.msra.mxu0 0.0
        %4182 = vmatpush.msra.mxu0 0.0
        %4183 = vmatpush.msra.mxu0 0.0
        %4184 = vmatpush.msra.mxu0 0.0
        %4185 = vmatpush.msra.mxu0 0.0
        %4186 = vmatpush.msra.mxu0 0.0
        %4187 = vmatpush.msra.mxu0 0.0
        %4188 = vmatpush.msra.mxu0 %v4168
        %4189 = vmatmul.f32.gmra.mxu0 %v4171
        %v4190 = vpop.f32.mrf.mxu0
        %v4191 = vadd.f32 0.0, %v4190
        %4192 = vdwg.mxu0
        %4193 = vrot.lane.b32.xlu0 %v3689, 64
        %v4194 = vpop.permute.xlu0 %4193
        %v4197 = vsel %vm457, %v4010, 0
        %4199 = vmatpush.msra.mxu0 0.0
        %4200 = vmatpush.msra.mxu0 0.0
        %4201 = vmatpush.msra.mxu0 0.0
        %4202 = vmatpush.msra.mxu0 0.0
        %4203 = vmatpush.msra.mxu0 0.0
        %4204 = vmatpush.msra.mxu0 0.0
        %4205 = vmatpush.msra.mxu0 0.0
        %4206 = vmatpush.msra.mxu0 0.0
        %4207 = vmatpush.msra.mxu0 0.0
        %4208 = vmatpush.msra.mxu0 0.0
        %4209 = vmatpush.msra.mxu0 0.0
        %4210 = vmatpush.msra.mxu0 0.0
        %4211 = vmatpush.msra.mxu0 0.0
        %4212 = vmatpush.msra.mxu0 0.0
        %4213 = vmatpush.msra.mxu0 0.0
        %4214 = vmatpush.msra.mxu0 %v4194
        %4215 = vmatmul.f32.gmra.mxu0 %v4197
        %v4216 = vpop.f32.mrf.mxu0
        %v4217 = vadd.f32 0.0, %v4216
        %4218 = vdwg.mxu0
        %4219 = vrot.lane.b32.xlu0 %v3672, 120
        %v4220 = vpop.permute.xlu0 %4219
        %4221 = vrot.lane.b32.xlu0 %v3672, 88
        %v4222 = vpop.permute.xlu0 %4221
        %v4223 = vsel %vm457, %v4220, 0
        %v4225 = vsel %vm457, %v4222, 0
        %4227 = vmatpush.xpose.msra.mxu0 0.0
        %4228 = vmatpush.xpose.msra.mxu0 0.0
        %4229 = vmatpush.xpose.msra.mxu0 0.0
        %4230 = vmatpush.xpose.msra.mxu0 0.0
        %4231 = vmatpush.xpose.msra.mxu0 0.0
        %4232 = vmatpush.xpose.msra.mxu0 0.0
        %4233 = vmatpush.xpose.msra.mxu0 0.0
        %4234 = vmatpush.xpose.msra.mxu0 0.0
        %4235 = vmatpush.xpose.msra.mxu0 0.0
        %4236 = vmatpush.xpose.msra.mxu0 0.0
        %4237 = vmatpush.xpose.msra.mxu0 0.0
        %4238 = vmatpush.xpose.msra.mxu0 0.0
        %4239 = vmatpush.xpose.msra.mxu0 0.0
        %4240 = vmatpush.xpose.msra.mxu0 0.0
        %4241 = vmatpush.xpose.msra.mxu0 0.0
        %4242 = vmatpush.xpose.msra.mxu0 %v4225
        %4243 = vmatmul.f32.gmra.mxu0 %v4223
        %v4244 = vpop.f32.mrf.mxu0
        %v4245 = vadd.f32 0.0, %v4244
        %4246 = vdwg.mxu0
        %4247 = vrot.lane.b32.xlu0 %v3674, 120
        %v4248 = vpop.permute.xlu0 %4247
        %4249 = vrot.lane.b32.xlu0 %v3674, 88
        %v4250 = vpop.permute.xlu0 %4249
        %v4251 = vsel %vm457, %v4248, 0
        %v4253 = vsel %vm457, %v4250, 0
        %4255 = vmatpush.xpose.msra.mxu0 0.0
        %4256 = vmatpush.xpose.msra.mxu0 0.0
        %4257 = vmatpush.xpose.msra.mxu0 0.0
        %4258 = vmatpush.xpose.msra.mxu0 0.0
        %4259 = vmatpush.xpose.msra.mxu0 0.0
        %4260 = vmatpush.xpose.msra.mxu0 0.0
        %4261 = vmatpush.xpose.msra.mxu0 0.0
        %4262 = vmatpush.xpose.msra.mxu0 0.0
        %4263 = vmatpush.xpose.msra.mxu0 0.0
        %4264 = vmatpush.xpose.msra.mxu0 0.0
        %4265 = vmatpush.xpose.msra.mxu0 0.0
        %4266 = vmatpush.xpose.msra.mxu0 0.0
        %4267 = vmatpush.xpose.msra.mxu0 0.0
        %4268 = vmatpush.xpose.msra.mxu0 0.0
        %4269 = vmatpush.xpose.msra.mxu0 0.0
        %4270 = vmatpush.xpose.msra.mxu0 %v4253
        %4271 = vmatmul.f32.gmra.mxu0 %v4251
        %v4272 = vpop.f32.mrf.mxu0
        %v4273 = vadd.f32 0.0, %v4272
        %4274 = vdwg.mxu0
        %4275 = vrot.lane.b32.xlu0 %v3677, 120
        %v4276 = vpop.permute.xlu0 %4275
        %4277 = vrot.lane.b32.xlu0 %v3677, 88
        %v4278 = vpop.permute.xlu0 %4277
        %v4279 = vsel %vm457, %v4276, 0
        %v4281 = vsel %vm457, %v4278, 0
        %4283 = vmatpush.xpose.msra.mxu0 0.0
        %4284 = vmatpush.xpose.msra.mxu0 0.0
        %4285 = vmatpush.xpose.msra.mxu0 0.0
        %4286 = vmatpush.xpose.msra.mxu0 0.0
        %4287 = vmatpush.xpose.msra.mxu0 0.0
        %4288 = vmatpush.xpose.msra.mxu0 0.0
        %4289 = vmatpush.xpose.msra.mxu0 0.0
        %4290 = vmatpush.xpose.msra.mxu0 0.0
        %4291 = vmatpush.xpose.msra.mxu0 0.0
        %4292 = vmatpush.xpose.msra.mxu0 0.0
        %4293 = vmatpush.xpose.msra.mxu0 0.0
        %4294 = vmatpush.xpose.msra.mxu0 0.0
        %4295 = vmatpush.xpose.msra.mxu0 0.0
        %4296 = vmatpush.xpose.msra.mxu0 0.0
        %4297 = vmatpush.xpose.msra.mxu0 0.0
        %4298 = vmatpush.xpose.msra.mxu0 %v4281
        %4299 = vmatmul.f32.gmra.mxu0 %v4279
        %v4300 = vpop.f32.mrf.mxu0
        %v4301 = vadd.f32 0.0, %v4300
        %4302 = vdwg.mxu0
        %4303 = vrot.lane.b32.xlu0 %v3679, 120
        %v4304 = vpop.permute.xlu0 %4303
        %4305 = vrot.lane.b32.xlu0 %v3679, 88
        %v4306 = vpop.permute.xlu0 %4305
        %v4307 = vsel %vm457, %v4304, 0
        %v4309 = vsel %vm457, %v4306, 0
        %4311 = vmatpush.xpose.msra.mxu0 0.0
        %4312 = vmatpush.xpose.msra.mxu0 0.0
        %4313 = vmatpush.xpose.msra.mxu0 0.0
        %4314 = vmatpush.xpose.msra.mxu0 0.0
        %4315 = vmatpush.xpose.msra.mxu0 0.0
        %4316 = vmatpush.xpose.msra.mxu0 0.0
        %4317 = vmatpush.xpose.msra.mxu0 0.0
        %4318 = vmatpush.xpose.msra.mxu0 0.0
        %4319 = vmatpush.xpose.msra.mxu0 0.0
        %4320 = vmatpush.xpose.msra.mxu0 0.0
        %4321 = vmatpush.xpose.msra.mxu0 0.0
        %4322 = vmatpush.xpose.msra.mxu0 0.0
        %4323 = vmatpush.xpose.msra.mxu0 0.0
        %4324 = vmatpush.xpose.msra.mxu0 0.0
        %4325 = vmatpush.xpose.msra.mxu0 0.0
        %4326 = vmatpush.xpose.msra.mxu0 %v4309
        %4327 = vmatmul.f32.gmra.mxu0 %v4307
        %v4328 = vpop.f32.mrf.mxu0
        %v4329 = vadd.f32 0.0, %v4328
        %4330 = vdwg.mxu0
        %4331 = vrot.lane.b32.xlu0 %v3682, 120
        %v4332 = vpop.permute.xlu0 %4331
        %4333 = vrot.lane.b32.xlu0 %v3682, 88
        %v4334 = vpop.permute.xlu0 %4333
        %v4335 = vsel %vm457, %v4332, 0
        %v4337 = vsel %vm457, %v4334, 0
        %4339 = vmatpush.xpose.msra.mxu0 0.0
        %4340 = vmatpush.xpose.msra.mxu0 0.0
        %4341 = vmatpush.xpose.msra.mxu0 0.0
        %4342 = vmatpush.xpose.msra.mxu0 0.0
        %4343 = vmatpush.xpose.msra.mxu0 0.0
        %4344 = vmatpush.xpose.msra.mxu0 0.0
        %4345 = vmatpush.xpose.msra.mxu0 0.0
        %4346 = vmatpush.xpose.msra.mxu0 0.0
        %4347 = vmatpush.xpose.msra.mxu0 0.0
        %4348 = vmatpush.xpose.msra.mxu0 0.0
        %4349 = vmatpush.xpose.msra.mxu0 0.0
        %4350 = vmatpush.xpose.msra.mxu0 0.0
        %4351 = vmatpush.xpose.msra.mxu0 0.0
        %4352 = vmatpush.xpose.msra.mxu0 0.0
        %4353 = vmatpush.xpose.msra.mxu0 0.0
        %4354 = vmatpush.xpose.msra.mxu0 %v4337
        %4355 = vmatmul.f32.gmra.mxu0 %v4335
        %v4356 = vpop.f32.mrf.mxu0
        %v4357 = vadd.f32 0.0, %v4356
        %4358 = vdwg.mxu0
        %4359 = vrot.lane.b32.xlu0 %v3684, 120
        %v4360 = vpop.permute.xlu0 %4359
        %4361 = vrot.lane.b32.xlu0 %v3684, 88
        %v4362 = vpop.permute.xlu0 %4361
        %v4363 = vsel %vm457, %v4360, 0
        %v4365 = vsel %vm457, %v4362, 0
        %4367 = vmatpush.xpose.msra.mxu0 0.0
        %4368 = vmatpush.xpose.msra.mxu0 0.0
        %4369 = vmatpush.xpose.msra.mxu0 0.0
        %4370 = vmatpush.xpose.msra.mxu0 0.0
        %4371 = vmatpush.xpose.msra.mxu0 0.0
        %4372 = vmatpush.xpose.msra.mxu0 0.0
        %4373 = vmatpush.xpose.msra.mxu0 0.0
        %4374 = vmatpush.xpose.msra.mxu0 0.0
        %4375 = vmatpush.xpose.msra.mxu0 0.0
        %4376 = vmatpush.xpose.msra.mxu0 0.0
        %4377 = vmatpush.xpose.msra.mxu0 0.0
        %4378 = vmatpush.xpose.msra.mxu0 0.0
        %4379 = vmatpush.xpose.msra.mxu0 0.0
        %4380 = vmatpush.xpose.msra.mxu0 0.0
        %4381 = vmatpush.xpose.msra.mxu0 0.0
        %4382 = vmatpush.xpose.msra.mxu0 %v4365
        %4383 = vmatmul.f32.gmra.mxu0 %v4363
        %v4384 = vpop.f32.mrf.mxu0
        %v4385 = vadd.f32 0.0, %v4384
        %4386 = vdwg.mxu0
        %4387 = vrot.lane.b32.xlu0 %v3687, 120
        %v4388 = vpop.permute.xlu0 %4387
        %4389 = vrot.lane.b32.xlu0 %v3687, 88
        %v4390 = vpop.permute.xlu0 %4389
        %v4391 = vsel %vm457, %v4388, 0
        %v4393 = vsel %vm457, %v4390, 0
        %4395 = vmatpush.xpose.msra.mxu0 0.0
        %4396 = vmatpush.xpose.msra.mxu0 0.0
        %4397 = vmatpush.xpose.msra.mxu0 0.0
        %4398 = vmatpush.xpose.msra.mxu0 0.0
        %4399 = vmatpush.xpose.msra.mxu0 0.0
        %4400 = vmatpush.xpose.msra.mxu0 0.0
        %4401 = vmatpush.xpose.msra.mxu0 0.0
        %4402 = vmatpush.xpose.msra.mxu0 0.0
        %4403 = vmatpush.xpose.msra.mxu0 0.0
        %4404 = vmatpush.xpose.msra.mxu0 0.0
        %4405 = vmatpush.xpose.msra.mxu0 0.0
        %4406 = vmatpush.xpose.msra.mxu0 0.0
        %4407 = vmatpush.xpose.msra.mxu0 0.0
        %4408 = vmatpush.xpose.msra.mxu0 0.0
        %4409 = vmatpush.xpose.msra.mxu0 0.0
        %4410 = vmatpush.xpose.msra.mxu0 %v4393
        %4411 = vmatmul.f32.gmra.mxu0 %v4391
        %v4412 = vpop.f32.mrf.mxu0
        %v4413 = vadd.f32 0.0, %v4412
        %4414 = vdwg.mxu0
        %4415 = vrot.lane.b32.xlu0 %v3689, 120
        %v4416 = vpop.permute.xlu0 %4415
        %4417 = vrot.lane.b32.xlu0 %v3689, 88
        %v4418 = vpop.permute.xlu0 %4417
        %v4419 = vsel %vm457, %v4416, 0
        %v4421 = vsel %vm457, %v4418, 0
        %4423 = vmatpush.xpose.msra.mxu0 0.0
        %4424 = vmatpush.xpose.msra.mxu0 0.0
        %4425 = vmatpush.xpose.msra.mxu0 0.0
        %4426 = vmatpush.xpose.msra.mxu0 0.0
        %4427 = vmatpush.xpose.msra.mxu0 0.0
        %4428 = vmatpush.xpose.msra.mxu0 0.0
        %4429 = vmatpush.xpose.msra.mxu0 0.0
        %4430 = vmatpush.xpose.msra.mxu0 0.0
        %4431 = vmatpush.xpose.msra.mxu0 0.0
        %4432 = vmatpush.xpose.msra.mxu0 0.0
        %4433 = vmatpush.xpose.msra.mxu0 0.0
        %4434 = vmatpush.xpose.msra.mxu0 0.0
        %4435 = vmatpush.xpose.msra.mxu0 0.0
        %4436 = vmatpush.xpose.msra.mxu0 0.0
        %4437 = vmatpush.xpose.msra.mxu0 0.0
        %4438 = vmatpush.xpose.msra.mxu0 %v4421
        %4439 = vmatmul.f32.gmra.mxu0 %v4419
        %v4440 = vpop.f32.mrf.mxu0
        %v4441 = vadd.f32 0.0, %v4440
        %4442 = vdwg.mxu0
        %v4443 = vmul.f32 %v4245, 0.35355338
        %v4444 = vmul.f32 %v4273, 0.35355338
        %v4445 = vmul.f32 %v4301, 0.35355338
        %v4446 = vmul.f32 %v4329, 0.35355338
        %v4447 = vmul.f32 %v4357, 0.35355338
        %v4448 = vmul.f32 %v4385, 0.35355338
        %v4449 = vmul.f32 %v4413, 0.35355338
        %v4450 = vmul.f32 %v4441, 0.35355338
        %s4451 = scalar_lea.vmem %s382, 64
        %4452 = vst.msk [vmem:[%s4451] sm:$0xff] %vm457, %v4443
        %4453 = vst.msk [vmem:[%s4451 + $0x8] sm:$0xff] %vm457, %v4444
        %4454 = vst.msk [vmem:[%s4451 + $0x10] sm:$0xff] %vm457, %v4445
        %4455 = vst.msk [vmem:[%s4451 + $0x18] sm:$0xff] %vm457, %v4446
        %4456 = vst.msk [vmem:[%s4451 + $0x20] sm:$0xff] %vm457, %v4447
        %4457 = vst.msk [vmem:[%s4451 + $0x28] sm:$0xff] %vm457, %v4448
        %4458 = vst.msk [vmem:[%s4451 + $0x30] sm:$0xff] %vm457, %v4449
        %4459 = vst.msk [vmem:[%s4451 + $0x38] sm:$0xff] %vm457, %v4450
        %v4460 = vsel %vm457, %v4443, -inf
        %4461 = vmax.xlane.f32.xlu0 %v4460
        %v4462 = vpop.xlane.xlu0 %4461
        %v4463 = vsel %vm457, %v4444, -inf
        %4464 = vmax.xlane.f32.xlu0 %v4463
        %v4465 = vpop.xlane.xlu0 %4464
        %v4466 = vsel %vm457, %v4445, -inf
        %4467 = vmax.xlane.f32.xlu0 %v4466
        %v4468 = vpop.xlane.xlu0 %4467
        %v4469 = vsel %vm457, %v4446, -inf
        %4470 = vmax.xlane.f32.xlu0 %v4469
        %v4471 = vpop.xlane.xlu0 %4470
        %v4472 = vsel %vm457, %v4447, -inf
        %4473 = vmax.xlane.f32.xlu0 %v4472
        %v4474 = vpop.xlane.xlu0 %4473
        %v4475 = vsel %vm457, %v4448, -inf
        %4476 = vmax.xlane.f32.xlu0 %v4475
        %v4477 = vpop.xlane.xlu0 %4476
        %v4478 = vsel %vm457, %v4449, -inf
        %4479 = vmax.xlane.f32.xlu0 %v4478
        %v4480 = vpop.xlane.xlu0 %4479
        %v4481 = vsel %vm457, %v4450, -inf
        %4482 = vmax.xlane.f32.xlu0 %v4481
        %v4483 = vpop.xlane.xlu0 %4482
        %v4484 = vsub.f32 %v4443, %v4462
        %v4485 = vsub.f32 %v4444, %v4465
        %v4486 = vsub.f32 %v4445, %v4468
        %v4487 = vsub.f32 %v4446, %v4471
        %v4488 = vsub.f32 %v4447, %v4474
        %v4489 = vsub.f32 %v4448, %v4477
        %v4490 = vsub.f32 %v4449, %v4480
        %v4491 = vsub.f32 %v4450, %v4483
        %v4492 = vmul.f32 %v4484, 1.442695
        %v4493 = vpow.pop %v4492
        %v4494 = vmul.f32 %v4485, 1.442695
        %v4495 = vpow.pop %v4494
        %v4496 = vmul.f32 %v4486, 1.442695
        %v4497 = vpow.pop %v4496
        %v4498 = vmul.f32 %v4487, 1.442695
        %v4499 = vpow.pop %v4498
        %v4500 = vmul.f32 %v4488, 1.442695
        %v4501 = vpow.pop %v4500
        %v4502 = vmul.f32 %v4489, 1.442695
        %v4503 = vpow.pop %v4502
        %v4504 = vmul.f32 %v4490, 1.442695
        %v4505 = vpow.pop %v4504
        %v4506 = vmul.f32 %v4491, 1.442695
        %v4507 = vpow.pop %v4506
        %v4508 = vsel %vm457, %v4493, 0.0
        %4509 = vadd.xlane.f32.xlu0 %v4508
        %v4510 = vpop.xlane.xlu0 %4509
        %v4511 = vsel %vm457, %v4495, 0.0
        %4512 = vadd.xlane.f32.xlu0 %v4511
        %v4513 = vpop.xlane.xlu0 %4512
        %v4514 = vsel %vm457, %v4497, 0.0
        %4515 = vadd.xlane.f32.xlu0 %v4514
        %v4516 = vpop.xlane.xlu0 %4515
        %v4517 = vsel %vm457, %v4499, 0.0
        %4518 = vadd.xlane.f32.xlu0 %v4517
        %v4519 = vpop.xlane.xlu0 %4518
        %v4520 = vsel %vm457, %v4501, 0.0
        %4521 = vadd.xlane.f32.xlu0 %v4520
        %v4522 = vpop.xlane.xlu0 %4521
        %v4523 = vsel %vm457, %v4503, 0.0
        %4524 = vadd.xlane.f32.xlu0 %v4523
        %v4525 = vpop.xlane.xlu0 %4524
        %v4526 = vsel %vm457, %v4505, 0.0
        %4527 = vadd.xlane.f32.xlu0 %v4526
        %v4528 = vpop.xlane.xlu0 %4527
        %v4529 = vsel %vm457, %v4507, 0.0
        %4530 = vadd.xlane.f32.xlu0 %v4529
        %v4531 = vpop.xlane.xlu0 %4530
        %v4532 = vrcp.pop %v4510
        %v4533 = vrcp.pop %v4513
        %v4534 = vrcp.pop %v4516
        %v4535 = vrcp.pop %v4519
        %v4536 = vrcp.pop %v4522
        %v4537 = vrcp.pop %v4525
        %v4538 = vrcp.pop %v4528
        %v4539 = vrcp.pop %v4531
        %v4540 = vmul.f32 %v4493, %v4532
        %v4541 = vmul.f32 %v4495, %v4533
        %v4542 = vmul.f32 %v4497, %v4534
        %v4543 = vmul.f32 %v4499, %v4535
        %v4544 = vmul.f32 %v4501, %v4536
        %v4545 = vmul.f32 %v4503, %v4537
        %v4546 = vmul.f32 %v4505, %v4538
        %v4547 = vmul.f32 %v4507, %v4539
        %4548 = vrot.lane.b32.xlu0 %v3672, 56
        %v4549 = vpop.permute.xlu0 %4548
        %v4552 = vsel %vm457, %v4540, 0
        %4554 = vmatpush.msra.mxu0 0.0
        %4555 = vmatpush.msra.mxu0 0.0
        %4556 = vmatpush.msra.mxu0 0.0
        %4557 = vmatpush.msra.mxu0 0.0
        %4558 = vmatpush.msra.mxu0 0.0
        %4559 = vmatpush.msra.mxu0 0.0
        %4560 = vmatpush.msra.mxu0 0.0
        %4561 = vmatpush.msra.mxu0 0.0
        %4562 = vmatpush.msra.mxu0 0.0
        %4563 = vmatpush.msra.mxu0 0.0
        %4564 = vmatpush.msra.mxu0 0.0
        %4565 = vmatpush.msra.mxu0 0.0
        %4566 = vmatpush.msra.mxu0 0.0
        %4567 = vmatpush.msra.mxu0 0.0
        %4568 = vmatpush.msra.mxu0 0.0
        %4569 = vmatpush.msra.mxu0 %v4549
        %4570 = vmatmul.f32.gmra.mxu0 %v4552
        %v4571 = vpop.f32.mrf.mxu0
        %v4572 = vadd.f32 0.0, %v4571
        %4573 = vdwg.mxu0
        %4574 = vrot.lane.b32.xlu0 %v3674, 56
        %v4575 = vpop.permute.xlu0 %4574
        %v4578 = vsel %vm457, %v4541, 0
        %4580 = vmatpush.msra.mxu0 0.0
        %4581 = vmatpush.msra.mxu0 0.0
        %4582 = vmatpush.msra.mxu0 0.0
        %4583 = vmatpush.msra.mxu0 0.0
        %4584 = vmatpush.msra.mxu0 0.0
        %4585 = vmatpush.msra.mxu0 0.0
        %4586 = vmatpush.msra.mxu0 0.0
        %4587 = vmatpush.msra.mxu0 0.0
        %4588 = vmatpush.msra.mxu0 0.0
        %4589 = vmatpush.msra.mxu0 0.0
        %4590 = vmatpush.msra.mxu0 0.0
        %4591 = vmatpush.msra.mxu0 0.0
        %4592 = vmatpush.msra.mxu0 0.0
        %4593 = vmatpush.msra.mxu0 0.0
        %4594 = vmatpush.msra.mxu0 0.0
        %4595 = vmatpush.msra.mxu0 %v4575
        %4596 = vmatmul.f32.gmra.mxu0 %v4578
        %v4597 = vpop.f32.mrf.mxu0
        %v4598 = vadd.f32 0.0, %v4597
        %4599 = vdwg.mxu0
        %4600 = vrot.lane.b32.xlu0 %v3677, 56
        %v4601 = vpop.permute.xlu0 %4600
        %v4604 = vsel %vm457, %v4542, 0
        %4606 = vmatpush.msra.mxu0 0.0
        %4607 = vmatpush.msra.mxu0 0.0
        %4608 = vmatpush.msra.mxu0 0.0
        %4609 = vmatpush.msra.mxu0 0.0
        %4610 = vmatpush.msra.mxu0 0.0
        %4611 = vmatpush.msra.mxu0 0.0
        %4612 = vmatpush.msra.mxu0 0.0
        %4613 = vmatpush.msra.mxu0 0.0
        %4614 = vmatpush.msra.mxu0 0.0
        %4615 = vmatpush.msra.mxu0 0.0
        %4616 = vmatpush.msra.mxu0 0.0
        %4617 = vmatpush.msra.mxu0 0.0
        %4618 = vmatpush.msra.mxu0 0.0
        %4619 = vmatpush.msra.mxu0 0.0
        %4620 = vmatpush.msra.mxu0 0.0
        %4621 = vmatpush.msra.mxu0 %v4601
        %4622 = vmatmul.f32.gmra.mxu0 %v4604
        %v4623 = vpop.f32.mrf.mxu0
        %v4624 = vadd.f32 0.0, %v4623
        %4625 = vdwg.mxu0
        %4626 = vrot.lane.b32.xlu0 %v3679, 56
        %v4627 = vpop.permute.xlu0 %4626
        %v4630 = vsel %vm457, %v4543, 0
        %4632 = vmatpush.msra.mxu0 0.0
        %4633 = vmatpush.msra.mxu0 0.0
        %4634 = vmatpush.msra.mxu0 0.0
        %4635 = vmatpush.msra.mxu0 0.0
        %4636 = vmatpush.msra.mxu0 0.0
        %4637 = vmatpush.msra.mxu0 0.0
        %4638 = vmatpush.msra.mxu0 0.0
        %4639 = vmatpush.msra.mxu0 0.0
        %4640 = vmatpush.msra.mxu0 0.0
        %4641 = vmatpush.msra.mxu0 0.0
        %4642 = vmatpush.msra.mxu0 0.0
        %4643 = vmatpush.msra.mxu0 0.0
        %4644 = vmatpush.msra.mxu0 0.0
        %4645 = vmatpush.msra.mxu0 0.0
        %4646 = vmatpush.msra.mxu0 0.0
        %4647 = vmatpush.msra.mxu0 %v4627
        %4648 = vmatmul.f32.gmra.mxu0 %v4630
        %v4649 = vpop.f32.mrf.mxu0
        %v4650 = vadd.f32 0.0, %v4649
        %4651 = vdwg.mxu0
        %4652 = vrot.lane.b32.xlu0 %v3682, 56
        %v4653 = vpop.permute.xlu0 %4652
        %v4656 = vsel %vm457, %v4544, 0
        %4658 = vmatpush.msra.mxu0 0.0
        %4659 = vmatpush.msra.mxu0 0.0
        %4660 = vmatpush.msra.mxu0 0.0
        %4661 = vmatpush.msra.mxu0 0.0
        %4662 = vmatpush.msra.mxu0 0.0
        %4663 = vmatpush.msra.mxu0 0.0
        %4664 = vmatpush.msra.mxu0 0.0
        %4665 = vmatpush.msra.mxu0 0.0
        %4666 = vmatpush.msra.mxu0 0.0
        %4667 = vmatpush.msra.mxu0 0.0
        %4668 = vmatpush.msra.mxu0 0.0
        %4669 = vmatpush.msra.mxu0 0.0
        %4670 = vmatpush.msra.mxu0 0.0
        %4671 = vmatpush.msra.mxu0 0.0
        %4672 = vmatpush.msra.mxu0 0.0
        %4673 = vmatpush.msra.mxu0 %v4653
        %4674 = vmatmul.f32.gmra.mxu0 %v4656
        %v4675 = vpop.f32.mrf.mxu0
        %v4676 = vadd.f32 0.0, %v4675
        %4677 = vdwg.mxu0
        %4678 = vrot.lane.b32.xlu0 %v3684, 56
        %v4679 = vpop.permute.xlu0 %4678
        %v4682 = vsel %vm457, %v4545, 0
        %4684 = vmatpush.msra.mxu0 0.0
        %4685 = vmatpush.msra.mxu0 0.0
        %4686 = vmatpush.msra.mxu0 0.0
        %4687 = vmatpush.msra.mxu0 0.0
        %4688 = vmatpush.msra.mxu0 0.0
        %4689 = vmatpush.msra.mxu0 0.0
        %4690 = vmatpush.msra.mxu0 0.0
        %4691 = vmatpush.msra.mxu0 0.0
        %4692 = vmatpush.msra.mxu0 0.0
        %4693 = vmatpush.msra.mxu0 0.0
        %4694 = vmatpush.msra.mxu0 0.0
        %4695 = vmatpush.msra.mxu0 0.0
        %4696 = vmatpush.msra.mxu0 0.0
        %4697 = vmatpush.msra.mxu0 0.0
        %4698 = vmatpush.msra.mxu0 0.0
        %4699 = vmatpush.msra.mxu0 %v4679
        %4700 = vmatmul.f32.gmra.mxu0 %v4682
        %v4701 = vpop.f32.mrf.mxu0
        %v4702 = vadd.f32 0.0, %v4701
        %4703 = vdwg.mxu0
        %4704 = vrot.lane.b32.xlu0 %v3687, 56
        %v4705 = vpop.permute.xlu0 %4704
        %v4708 = vsel %vm457, %v4546, 0
        %4710 = vmatpush.msra.mxu0 0.0
        %4711 = vmatpush.msra.mxu0 0.0
        %4712 = vmatpush.msra.mxu0 0.0
        %4713 = vmatpush.msra.mxu0 0.0
        %4714 = vmatpush.msra.mxu0 0.0
        %4715 = vmatpush.msra.mxu0 0.0
        %4716 = vmatpush.msra.mxu0 0.0
        %4717 = vmatpush.msra.mxu0 0.0
        %4718 = vmatpush.msra.mxu0 0.0
        %4719 = vmatpush.msra.mxu0 0.0
        %4720 = vmatpush.msra.mxu0 0.0
        %4721 = vmatpush.msra.mxu0 0.0
        %4722 = vmatpush.msra.mxu0 0.0
        %4723 = vmatpush.msra.mxu0 0.0
        %4724 = vmatpush.msra.mxu0 0.0
        %4725 = vmatpush.msra.mxu0 %v4705
        %4726 = vmatmul.f32.gmra.mxu0 %v4708
        %v4727 = vpop.f32.mrf.mxu0
        %v4728 = vadd.f32 0.0, %v4727
        %4729 = vdwg.mxu0
        %4730 = vrot.lane.b32.xlu0 %v3689, 56
        %v4731 = vpop.permute.xlu0 %4730
        %v4734 = vsel %vm457, %v4547, 0
        %4736 = vmatpush.msra.mxu0 0.0
        %4737 = vmatpush.msra.mxu0 0.0
        %4738 = vmatpush.msra.mxu0 0.0
        %4739 = vmatpush.msra.mxu0 0.0
        %4740 = vmatpush.msra.mxu0 0.0
        %4741 = vmatpush.msra.mxu0 0.0
        %4742 = vmatpush.msra.mxu0 0.0
        %4743 = vmatpush.msra.mxu0 0.0
        %4744 = vmatpush.msra.mxu0 0.0
        %4745 = vmatpush.msra.mxu0 0.0
        %4746 = vmatpush.msra.mxu0 0.0
        %4747 = vmatpush.msra.mxu0 0.0
        %4748 = vmatpush.msra.mxu0 0.0
        %4749 = vmatpush.msra.mxu0 0.0
        %4750 = vmatpush.msra.mxu0 0.0
        %4751 = vmatpush.msra.mxu0 %v4731
        %4752 = vmatmul.f32.gmra.mxu0 %v4734
        %v4753 = vpop.f32.mrf.mxu0
        %v4754 = vadd.f32 0.0, %v4753
        %4755 = vdwg.mxu0
        %4756 = vrot.lane.b32.xlu0 %v3672, 112
        %v4757 = vpop.permute.xlu0 %4756
        %4758 = vrot.lane.b32.xlu0 %v3672, 80
        %v4759 = vpop.permute.xlu0 %4758
        %v4760 = vsel %vm457, %v4757, 0
        %v4762 = vsel %vm457, %v4759, 0
        %4764 = vmatpush.xpose.msra.mxu0 0.0
        %4765 = vmatpush.xpose.msra.mxu0 0.0
        %4766 = vmatpush.xpose.msra.mxu0 0.0
        %4767 = vmatpush.xpose.msra.mxu0 0.0
        %4768 = vmatpush.xpose.msra.mxu0 0.0
        %4769 = vmatpush.xpose.msra.mxu0 0.0
        %4770 = vmatpush.xpose.msra.mxu0 0.0
        %4771 = vmatpush.xpose.msra.mxu0 0.0
        %4772 = vmatpush.xpose.msra.mxu0 0.0
        %4773 = vmatpush.xpose.msra.mxu0 0.0
        %4774 = vmatpush.xpose.msra.mxu0 0.0
        %4775 = vmatpush.xpose.msra.mxu0 0.0
        %4776 = vmatpush.xpose.msra.mxu0 0.0
        %4777 = vmatpush.xpose.msra.mxu0 0.0
        %4778 = vmatpush.xpose.msra.mxu0 0.0
        %4779 = vmatpush.xpose.msra.mxu0 %v4762
        %4780 = vmatmul.f32.gmra.mxu0 %v4760
        %v4781 = vpop.f32.mrf.mxu0
        %v4782 = vadd.f32 0.0, %v4781
        %4783 = vdwg.mxu0
        %4784 = vrot.lane.b32.xlu0 %v3674, 112
        %v4785 = vpop.permute.xlu0 %4784
        %4786 = vrot.lane.b32.xlu0 %v3674, 80
        %v4787 = vpop.permute.xlu0 %4786
        %v4788 = vsel %vm457, %v4785, 0
        %v4790 = vsel %vm457, %v4787, 0
        %4792 = vmatpush.xpose.msra.mxu0 0.0
        %4793 = vmatpush.xpose.msra.mxu0 0.0
        %4794 = vmatpush.xpose.msra.mxu0 0.0
        %4795 = vmatpush.xpose.msra.mxu0 0.0
        %4796 = vmatpush.xpose.msra.mxu0 0.0
        %4797 = vmatpush.xpose.msra.mxu0 0.0
        %4798 = vmatpush.xpose.msra.mxu0 0.0
        %4799 = vmatpush.xpose.msra.mxu0 0.0
        %4800 = vmatpush.xpose.msra.mxu0 0.0
        %4801 = vmatpush.xpose.msra.mxu0 0.0
        %4802 = vmatpush.xpose.msra.mxu0 0.0
        %4803 = vmatpush.xpose.msra.mxu0 0.0
        %4804 = vmatpush.xpose.msra.mxu0 0.0
        %4805 = vmatpush.xpose.msra.mxu0 0.0
        %4806 = vmatpush.xpose.msra.mxu0 0.0
        %4807 = vmatpush.xpose.msra.mxu0 %v4790
        %4808 = vmatmul.f32.gmra.mxu0 %v4788
        %v4809 = vpop.f32.mrf.mxu0
        %v4810 = vadd.f32 0.0, %v4809
        %4811 = vdwg.mxu0
        %4812 = vrot.lane.b32.xlu0 %v3677, 112
        %v4813 = vpop.permute.xlu0 %4812
        %4814 = vrot.lane.b32.xlu0 %v3677, 80
        %v4815 = vpop.permute.xlu0 %4814
        %v4816 = vsel %vm457, %v4813, 0
        %v4818 = vsel %vm457, %v4815, 0
        %4820 = vmatpush.xpose.msra.mxu0 0.0
        %4821 = vmatpush.xpose.msra.mxu0 0.0
        %4822 = vmatpush.xpose.msra.mxu0 0.0
        %4823 = vmatpush.xpose.msra.mxu0 0.0
        %4824 = vmatpush.xpose.msra.mxu0 0.0
        %4825 = vmatpush.xpose.msra.mxu0 0.0
        %4826 = vmatpush.xpose.msra.mxu0 0.0
        %4827 = vmatpush.xpose.msra.mxu0 0.0
        %4828 = vmatpush.xpose.msra.mxu0 0.0
        %4829 = vmatpush.xpose.msra.mxu0 0.0
        %4830 = vmatpush.xpose.msra.mxu0 0.0
        %4831 = vmatpush.xpose.msra.mxu0 0.0
        %4832 = vmatpush.xpose.msra.mxu0 0.0
        %4833 = vmatpush.xpose.msra.mxu0 0.0
        %4834 = vmatpush.xpose.msra.mxu0 0.0
        %4835 = vmatpush.xpose.msra.mxu0 %v4818
        %4836 = vmatmul.f32.gmra.mxu0 %v4816
        %v4837 = vpop.f32.mrf.mxu0
        %v4838 = vadd.f32 0.0, %v4837
        %4839 = vdwg.mxu0
        %4840 = vrot.lane.b32.xlu0 %v3679, 112
        %v4841 = vpop.permute.xlu0 %4840
        %4842 = vrot.lane.b32.xlu0 %v3679, 80
        %v4843 = vpop.permute.xlu0 %4842
        %v4844 = vsel %vm457, %v4841, 0
        %v4846 = vsel %vm457, %v4843, 0
        %4848 = vmatpush.xpose.msra.mxu0 0.0
        %4849 = vmatpush.xpose.msra.mxu0 0.0
        %4850 = vmatpush.xpose.msra.mxu0 0.0
        %4851 = vmatpush.xpose.msra.mxu0 0.0
        %4852 = vmatpush.xpose.msra.mxu0 0.0
        %4853 = vmatpush.xpose.msra.mxu0 0.0
        %4854 = vmatpush.xpose.msra.mxu0 0.0
        %4855 = vmatpush.xpose.msra.mxu0 0.0
        %4856 = vmatpush.xpose.msra.mxu0 0.0
        %4857 = vmatpush.xpose.msra.mxu0 0.0
        %4858 = vmatpush.xpose.msra.mxu0 0.0
        %4859 = vmatpush.xpose.msra.mxu0 0.0
        %4860 = vmatpush.xpose.msra.mxu0 0.0
        %4861 = vmatpush.xpose.msra.mxu0 0.0
        %4862 = vmatpush.xpose.msra.mxu0 0.0
        %4863 = vmatpush.xpose.msra.mxu0 %v4846
        %4864 = vmatmul.f32.gmra.mxu0 %v4844
        %v4865 = vpop.f32.mrf.mxu0
        %v4866 = vadd.f32 0.0, %v4865
        %4867 = vdwg.mxu0
        %4868 = vrot.lane.b32.xlu0 %v3682, 112
        %v4869 = vpop.permute.xlu0 %4868
        %4870 = vrot.lane.b32.xlu0 %v3682, 80
        %v4871 = vpop.permute.xlu0 %4870
        %v4872 = vsel %vm457, %v4869, 0
        %v4874 = vsel %vm457, %v4871, 0
        %4876 = vmatpush.xpose.msra.mxu0 0.0
        %4877 = vmatpush.xpose.msra.mxu0 0.0
        %4878 = vmatpush.xpose.msra.mxu0 0.0
        %4879 = vmatpush.xpose.msra.mxu0 0.0
        %4880 = vmatpush.xpose.msra.mxu0 0.0
        %4881 = vmatpush.xpose.msra.mxu0 0.0
        %4882 = vmatpush.xpose.msra.mxu0 0.0
        %4883 = vmatpush.xpose.msra.mxu0 0.0
        %4884 = vmatpush.xpose.msra.mxu0 0.0
        %4885 = vmatpush.xpose.msra.mxu0 0.0
        %4886 = vmatpush.xpose.msra.mxu0 0.0
        %4887 = vmatpush.xpose.msra.mxu0 0.0
        %4888 = vmatpush.xpose.msra.mxu0 0.0
        %4889 = vmatpush.xpose.msra.mxu0 0.0
        %4890 = vmatpush.xpose.msra.mxu0 0.0
        %4891 = vmatpush.xpose.msra.mxu0 %v4874
        %4892 = vmatmul.f32.gmra.mxu0 %v4872
        %v4893 = vpop.f32.mrf.mxu0
        %v4894 = vadd.f32 0.0, %v4893
        %4895 = vdwg.mxu0
        %4896 = vrot.lane.b32.xlu0 %v3684, 112
        %v4897 = vpop.permute.xlu0 %4896
        %4898 = vrot.lane.b32.xlu0 %v3684, 80
        %v4899 = vpop.permute.xlu0 %4898
        %v4900 = vsel %vm457, %v4897, 0
        %v4902 = vsel %vm457, %v4899, 0
        %4904 = vmatpush.xpose.msra.mxu0 0.0
        %4905 = vmatpush.xpose.msra.mxu0 0.0
        %4906 = vmatpush.xpose.msra.mxu0 0.0
        %4907 = vmatpush.xpose.msra.mxu0 0.0
        %4908 = vmatpush.xpose.msra.mxu0 0.0
        %4909 = vmatpush.xpose.msra.mxu0 0.0
        %4910 = vmatpush.xpose.msra.mxu0 0.0
        %4911 = vmatpush.xpose.msra.mxu0 0.0
        %4912 = vmatpush.xpose.msra.mxu0 0.0
        %4913 = vmatpush.xpose.msra.mxu0 0.0
        %4914 = vmatpush.xpose.msra.mxu0 0.0
        %4915 = vmatpush.xpose.msra.mxu0 0.0
        %4916 = vmatpush.xpose.msra.mxu0 0.0
        %4917 = vmatpush.xpose.msra.mxu0 0.0
        %4918 = vmatpush.xpose.msra.mxu0 0.0
        %4919 = vmatpush.xpose.msra.mxu0 %v4902
        %4920 = vmatmul.f32.gmra.mxu0 %v4900
        %v4921 = vpop.f32.mrf.mxu0
        %v4922 = vadd.f32 0.0, %v4921
        %4923 = vdwg.mxu0
        %4924 = vrot.lane.b32.xlu0 %v3687, 112
        %v4925 = vpop.permute.xlu0 %4924
        %4926 = vrot.lane.b32.xlu0 %v3687, 80
        %v4927 = vpop.permute.xlu0 %4926
        %v4928 = vsel %vm457, %v4925, 0
        %v4930 = vsel %vm457, %v4927, 0
        %4932 = vmatpush.xpose.msra.mxu0 0.0
        %4933 = vmatpush.xpose.msra.mxu0 0.0
        %4934 = vmatpush.xpose.msra.mxu0 0.0
        %4935 = vmatpush.xpose.msra.mxu0 0.0
        %4936 = vmatpush.xpose.msra.mxu0 0.0
        %4937 = vmatpush.xpose.msra.mxu0 0.0
        %4938 = vmatpush.xpose.msra.mxu0 0.0
        %4939 = vmatpush.xpose.msra.mxu0 0.0
        %4940 = vmatpush.xpose.msra.mxu0 0.0
        %4941 = vmatpush.xpose.msra.mxu0 0.0
        %4942 = vmatpush.xpose.msra.mxu0 0.0
        %4943 = vmatpush.xpose.msra.mxu0 0.0
        %4944 = vmatpush.xpose.msra.mxu0 0.0
        %4945 = vmatpush.xpose.msra.mxu0 0.0
        %4946 = vmatpush.xpose.msra.mxu0 0.0
        %4947 = vmatpush.xpose.msra.mxu0 %v4930
        %4948 = vmatmul.f32.gmra.mxu0 %v4928
        %v4949 = vpop.f32.mrf.mxu0
        %v4950 = vadd.f32 0.0, %v4949
        %4951 = vdwg.mxu0
        %4952 = vrot.lane.b32.xlu0 %v3689, 112
        %v4953 = vpop.permute.xlu0 %4952
        %4954 = vrot.lane.b32.xlu0 %v3689, 80
        %v4955 = vpop.permute.xlu0 %4954
        %v4956 = vsel %vm457, %v4953, 0
        %v4958 = vsel %vm457, %v4955, 0
        %4960 = vmatpush.xpose.msra.mxu0 0.0
        %4961 = vmatpush.xpose.msra.mxu0 0.0
        %4962 = vmatpush.xpose.msra.mxu0 0.0
        %4963 = vmatpush.xpose.msra.mxu0 0.0
        %4964 = vmatpush.xpose.msra.mxu0 0.0
        %4965 = vmatpush.xpose.msra.mxu0 0.0
        %4966 = vmatpush.xpose.msra.mxu0 0.0
        %4967 = vmatpush.xpose.msra.mxu0 0.0
        %4968 = vmatpush.xpose.msra.mxu0 0.0
        %4969 = vmatpush.xpose.msra.mxu0 0.0
        %4970 = vmatpush.xpose.msra.mxu0 0.0
        %4971 = vmatpush.xpose.msra.mxu0 0.0
        %4972 = vmatpush.xpose.msra.mxu0 0.0
        %4973 = vmatpush.xpose.msra.mxu0 0.0
        %4974 = vmatpush.xpose.msra.mxu0 0.0
        %4975 = vmatpush.xpose.msra.mxu0 %v4958
        %4976 = vmatmul.f32.gmra.mxu0 %v4956
        %v4977 = vpop.f32.mrf.mxu0
        %v4978 = vadd.f32 0.0, %v4977
        %4979 = vdwg.mxu0
        %v4980 = vmul.f32 %v4782, 0.35355338
        %v4981 = vmul.f32 %v4810, 0.35355338
        %v4982 = vmul.f32 %v4838, 0.35355338
        %v4983 = vmul.f32 %v4866, 0.35355338
        %v4984 = vmul.f32 %v4894, 0.35355338
        %v4985 = vmul.f32 %v4922, 0.35355338
        %v4986 = vmul.f32 %v4950, 0.35355338
        %v4987 = vmul.f32 %v4978, 0.35355338
        %s4988 = scalar_lea.vmem %s382, 128
        %4989 = vst.msk [vmem:[%s4988] sm:$0xff] %vm457, %v4980
        %4990 = vst.msk [vmem:[%s4988 + $0x8] sm:$0xff] %vm457, %v4981
        %4991 = vst.msk [vmem:[%s4988 + $0x10] sm:$0xff] %vm457, %v4982
        %4992 = vst.msk [vmem:[%s4988 + $0x18] sm:$0xff] %vm457, %v4983
        %4993 = vst.msk [vmem:[%s4988 + $0x20] sm:$0xff] %vm457, %v4984
        %4994 = vst.msk [vmem:[%s4988 + $0x28] sm:$0xff] %vm457, %v4985
        %4995 = vst.msk [vmem:[%s4988 + $0x30] sm:$0xff] %vm457, %v4986
        %4996 = vst.msk [vmem:[%s4988 + $0x38] sm:$0xff] %vm457, %v4987
        %v4997 = vsel %vm457, %v4980, -inf
        %4998 = vmax.xlane.f32.xlu0 %v4997
        %v4999 = vpop.xlane.xlu0 %4998
        %v5000 = vsel %vm457, %v4981, -inf
        %5001 = vmax.xlane.f32.xlu0 %v5000
        %v5002 = vpop.xlane.xlu0 %5001
        %v5003 = vsel %vm457, %v4982, -inf
        %5004 = vmax.xlane.f32.xlu0 %v5003
        %v5005 = vpop.xlane.xlu0 %5004
        %v5006 = vsel %vm457, %v4983, -inf
        %5007 = vmax.xlane.f32.xlu0 %v5006
        %v5008 = vpop.xlane.xlu0 %5007
        %v5009 = vsel %vm457, %v4984, -inf
        %5010 = vmax.xlane.f32.xlu0 %v5009
        %v5011 = vpop.xlane.xlu0 %5010
        %v5012 = vsel %vm457, %v4985, -inf
        %5013 = vmax.xlane.f32.xlu0 %v5012
        %v5014 = vpop.xlane.xlu0 %5013
        %v5015 = vsel %vm457, %v4986, -inf
        %5016 = vmax.xlane.f32.xlu0 %v5015
        %v5017 = vpop.xlane.xlu0 %5016
        %v5018 = vsel %vm457, %v4987, -inf
        %5019 = vmax.xlane.f32.xlu0 %v5018
        %v5020 = vpop.xlane.xlu0 %5019
        %v5021 = vsub.f32 %v4980, %v4999
        %v5022 = vsub.f32 %v4981, %v5002
        %v5023 = vsub.f32 %v4982, %v5005
        %v5024 = vsub.f32 %v4983, %v5008
        %v5025 = vsub.f32 %v4984, %v5011
        %v5026 = vsub.f32 %v4985, %v5014
        %v5027 = vsub.f32 %v4986, %v5017
        %v5028 = vsub.f32 %v4987, %v5020
        %v5029 = vmul.f32 %v5021, 1.442695
        %v5030 = vpow.pop %v5029
        %v5031 = vmul.f32 %v5022, 1.442695
        %v5032 = vpow.pop %v5031
        %v5033 = vmul.f32 %v5023, 1.442695
        %v5034 = vpow.pop %v5033
        %v5035 = vmul.f32 %v5024, 1.442695
        %v5036 = vpow.pop %v5035
        %v5037 = vmul.f32 %v5025, 1.442695
        %v5038 = vpow.pop %v5037
        %v5039 = vmul.f32 %v5026, 1.442695
        %v5040 = vpow.pop %v5039
        %v5041 = vmul.f32 %v5027, 1.442695
        %v5042 = vpow.pop %v5041
        %v5043 = vmul.f32 %v5028, 1.442695
        %v5044 = vpow.pop %v5043
        %v5045 = vsel %vm457, %v5030, 0.0
        %5046 = vadd.xlane.f32.xlu0 %v5045
        %v5047 = vpop.xlane.xlu0 %5046
        %v5048 = vsel %vm457, %v5032, 0.0
        %5049 = vadd.xlane.f32.xlu0 %v5048
        %v5050 = vpop.xlane.xlu0 %5049
        %v5051 = vsel %vm457, %v5034, 0.0
        %5052 = vadd.xlane.f32.xlu0 %v5051
        %v5053 = vpop.xlane.xlu0 %5052
        %v5054 = vsel %vm457, %v5036, 0.0
        %5055 = vadd.xlane.f32.xlu0 %v5054
        %v5056 = vpop.xlane.xlu0 %5055
        %v5057 = vsel %vm457, %v5038, 0.0
        %5058 = vadd.xlane.f32.xlu0 %v5057
        %v5059 = vpop.xlane.xlu0 %5058
        %v5060 = vsel %vm457, %v5040, 0.0
        %5061 = vadd.xlane.f32.xlu0 %v5060
        %v5062 = vpop.xlane.xlu0 %5061
        %v5063 = vsel %vm457, %v5042, 0.0
        %5064 = vadd.xlane.f32.xlu0 %v5063
        %v5065 = vpop.xlane.xlu0 %5064
        %v5066 = vsel %vm457, %v5044, 0.0
        %5067 = vadd.xlane.f32.xlu0 %v5066
        %v5068 = vpop.xlane.xlu0 %5067
        %v5069 = vrcp.pop %v5047
        %v5070 = vrcp.pop %v5050
        %v5071 = vrcp.pop %v5053
        %v5072 = vrcp.pop %v5056
        %v5073 = vrcp.pop %v5059
        %v5074 = vrcp.pop %v5062
        %v5075 = vrcp.pop %v5065
        %v5076 = vrcp.pop %v5068
        %v5077 = vmul.f32 %v5030, %v5069
        %v5078 = vmul.f32 %v5032, %v5070
        %v5079 = vmul.f32 %v5034, %v5071
        %v5080 = vmul.f32 %v5036, %v5072
        %v5081 = vmul.f32 %v5038, %v5073
        %v5082 = vmul.f32 %v5040, %v5074
        %v5083 = vmul.f32 %v5042, %v5075
        %v5084 = vmul.f32 %v5044, %v5076
        %5085 = vrot.lane.b32.xlu0 %v3672, 48
        %v5086 = vpop.permute.xlu0 %5085
        %v5089 = vsel %vm457, %v5077, 0
        %5091 = vmatpush.msra.mxu0 0.0
        %5092 = vmatpush.msra.mxu0 0.0
        %5093 = vmatpush.msra.mxu0 0.0
        %5094 = vmatpush.msra.mxu0 0.0
        %5095 = vmatpush.msra.mxu0 0.0
        %5096 = vmatpush.msra.mxu0 0.0
        %5097 = vmatpush.msra.mxu0 0.0
        %5098 = vmatpush.msra.mxu0 0.0
        %5099 = vmatpush.msra.mxu0 0.0
        %5100 = vmatpush.msra.mxu0 0.0
        %5101 = vmatpush.msra.mxu0 0.0
        %5102 = vmatpush.msra.mxu0 0.0
        %5103 = vmatpush.msra.mxu0 0.0
        %5104 = vmatpush.msra.mxu0 0.0
        %5105 = vmatpush.msra.mxu0 0.0
        %5106 = vmatpush.msra.mxu0 %v5086
        %5107 = vmatmul.f32.gmra.mxu0 %v5089
        %v5108 = vpop.f32.mrf.mxu0
        %v5109 = vadd.f32 0.0, %v5108
        %5110 = vdwg.mxu0
        %5111 = vrot.lane.b32.xlu0 %v3674, 48
        %v5112 = vpop.permute.xlu0 %5111
        %v5115 = vsel %vm457, %v5078, 0
        %5117 = vmatpush.msra.mxu0 0.0
        %5118 = vmatpush.msra.mxu0 0.0
        %5119 = vmatpush.msra.mxu0 0.0
        %5120 = vmatpush.msra.mxu0 0.0
        %5121 = vmatpush.msra.mxu0 0.0
        %5122 = vmatpush.msra.mxu0 0.0
        %5123 = vmatpush.msra.mxu0 0.0
        %5124 = vmatpush.msra.mxu0 0.0
        %5125 = vmatpush.msra.mxu0 0.0
        %5126 = vmatpush.msra.mxu0 0.0
        %5127 = vmatpush.msra.mxu0 0.0
        %5128 = vmatpush.msra.mxu0 0.0
        %5129 = vmatpush.msra.mxu0 0.0
        %5130 = vmatpush.msra.mxu0 0.0
        %5131 = vmatpush.msra.mxu0 0.0
        %5132 = vmatpush.msra.mxu0 %v5112
        %5133 = vmatmul.f32.gmra.mxu0 %v5115
        %v5134 = vpop.f32.mrf.mxu0
        %v5135 = vadd.f32 0.0, %v5134
        %5136 = vdwg.mxu0
        %5137 = vrot.lane.b32.xlu0 %v3677, 48
        %v5138 = vpop.permute.xlu0 %5137
        %v5141 = vsel %vm457, %v5079, 0
        %5143 = vmatpush.msra.mxu0 0.0
        %5144 = vmatpush.msra.mxu0 0.0
        %5145 = vmatpush.msra.mxu0 0.0
        %5146 = vmatpush.msra.mxu0 0.0
        %5147 = vmatpush.msra.mxu0 0.0
        %5148 = vmatpush.msra.mxu0 0.0
        %5149 = vmatpush.msra.mxu0 0.0
        %5150 = vmatpush.msra.mxu0 0.0
        %5151 = vmatpush.msra.mxu0 0.0
        %5152 = vmatpush.msra.mxu0 0.0
        %5153 = vmatpush.msra.mxu0 0.0
        %5154 = vmatpush.msra.mxu0 0.0
        %5155 = vmatpush.msra.mxu0 0.0
        %5156 = vmatpush.msra.mxu0 0.0
        %5157 = vmatpush.msra.mxu0 0.0
        %5158 = vmatpush.msra.mxu0 %v5138
        %5159 = vmatmul.f32.gmra.mxu0 %v5141
        %v5160 = vpop.f32.mrf.mxu0
        %v5161 = vadd.f32 0.0, %v5160
        %5162 = vdwg.mxu0
        %5163 = vrot.lane.b32.xlu0 %v3679, 48
        %v5164 = vpop.permute.xlu0 %5163
        %v5167 = vsel %vm457, %v5080, 0
        %5169 = vmatpush.msra.mxu0 0.0
        %5170 = vmatpush.msra.mxu0 0.0
        %5171 = vmatpush.msra.mxu0 0.0
        %5172 = vmatpush.msra.mxu0 0.0
        %5173 = vmatpush.msra.mxu0 0.0
        %5174 = vmatpush.msra.mxu0 0.0
        %5175 = vmatpush.msra.mxu0 0.0
        %5176 = vmatpush.msra.mxu0 0.0
        %5177 = vmatpush.msra.mxu0 0.0
        %5178 = vmatpush.msra.mxu0 0.0
        %5179 = vmatpush.msra.mxu0 0.0
        %5180 = vmatpush.msra.mxu0 0.0
        %5181 = vmatpush.msra.mxu0 0.0
        %5182 = vmatpush.msra.mxu0 0.0
        %5183 = vmatpush.msra.mxu0 0.0
        %5184 = vmatpush.msra.mxu0 %v5164
        %5185 = vmatmul.f32.gmra.mxu0 %v5167
        %v5186 = vpop.f32.mrf.mxu0
        %v5187 = vadd.f32 0.0, %v5186
        %5188 = vdwg.mxu0
        %5189 = vrot.lane.b32.xlu0 %v3682, 48
        %v5190 = vpop.permute.xlu0 %5189
        %v5193 = vsel %vm457, %v5081, 0
        %5195 = vmatpush.msra.mxu0 0.0
        %5196 = vmatpush.msra.mxu0 0.0
        %5197 = vmatpush.msra.mxu0 0.0
        %5198 = vmatpush.msra.mxu0 0.0
        %5199 = vmatpush.msra.mxu0 0.0
        %5200 = vmatpush.msra.mxu0 0.0
        %5201 = vmatpush.msra.mxu0 0.0
        %5202 = vmatpush.msra.mxu0 0.0
        %5203 = vmatpush.msra.mxu0 0.0
        %5204 = vmatpush.msra.mxu0 0.0
        %5205 = vmatpush.msra.mxu0 0.0
        %5206 = vmatpush.msra.mxu0 0.0
        %5207 = vmatpush.msra.mxu0 0.0
        %5208 = vmatpush.msra.mxu0 0.0
        %5209 = vmatpush.msra.mxu0 0.0
        %5210 = vmatpush.msra.mxu0 %v5190
        %5211 = vmatmul.f32.gmra.mxu0 %v5193
        %v5212 = vpop.f32.mrf.mxu0
        %v5213 = vadd.f32 0.0, %v5212
        %5214 = vdwg.mxu0
        %5215 = vrot.lane.b32.xlu0 %v3684, 48
        %v5216 = vpop.permute.xlu0 %5215
        %v5219 = vsel %vm457, %v5082, 0
        %5221 = vmatpush.msra.mxu0 0.0
        %5222 = vmatpush.msra.mxu0 0.0
        %5223 = vmatpush.msra.mxu0 0.0
        %5224 = vmatpush.msra.mxu0 0.0
        %5225 = vmatpush.msra.mxu0 0.0
        %5226 = vmatpush.msra.mxu0 0.0
        %5227 = vmatpush.msra.mxu0 0.0
        %5228 = vmatpush.msra.mxu0 0.0
        %5229 = vmatpush.msra.mxu0 0.0
        %5230 = vmatpush.msra.mxu0 0.0
        %5231 = vmatpush.msra.mxu0 0.0
        %5232 = vmatpush.msra.mxu0 0.0
        %5233 = vmatpush.msra.mxu0 0.0
        %5234 = vmatpush.msra.mxu0 0.0
        %5235 = vmatpush.msra.mxu0 0.0
        %5236 = vmatpush.msra.mxu0 %v5216
        %5237 = vmatmul.f32.gmra.mxu0 %v5219
        %v5238 = vpop.f32.mrf.mxu0
        %v5239 = vadd.f32 0.0, %v5238
        %5240 = vdwg.mxu0
        %5241 = vrot.lane.b32.xlu0 %v3687, 48
        %v5242 = vpop.permute.xlu0 %5241
        %v5245 = vsel %vm457, %v5083, 0
        %5247 = vmatpush.msra.mxu0 0.0
        %5248 = vmatpush.msra.mxu0 0.0
        %5249 = vmatpush.msra.mxu0 0.0
        %5250 = vmatpush.msra.mxu0 0.0
        %5251 = vmatpush.msra.mxu0 0.0
        %5252 = vmatpush.msra.mxu0 0.0
        %5253 = vmatpush.msra.mxu0 0.0
        %5254 = vmatpush.msra.mxu0 0.0
        %5255 = vmatpush.msra.mxu0 0.0
        %5256 = vmatpush.msra.mxu0 0.0
        %5257 = vmatpush.msra.mxu0 0.0
        %5258 = vmatpush.msra.mxu0 0.0
        %5259 = vmatpush.msra.mxu0 0.0
        %5260 = vmatpush.msra.mxu0 0.0
        %5261 = vmatpush.msra.mxu0 0.0
        %5262 = vmatpush.msra.mxu0 %v5242
        %5263 = vmatmul.f32.gmra.mxu0 %v5245
        %v5264 = vpop.f32.mrf.mxu0
        %v5265 = vadd.f32 0.0, %v5264
        %5266 = vdwg.mxu0
        %5267 = vrot.lane.b32.xlu0 %v3689, 48
        %v5268 = vpop.permute.xlu0 %5267
        %v5271 = vsel %vm457, %v5084, 0
        %5273 = vmatpush.msra.mxu0 0.0
        %5274 = vmatpush.msra.mxu0 0.0
        %5275 = vmatpush.msra.mxu0 0.0
        %5276 = vmatpush.msra.mxu0 0.0
        %5277 = vmatpush.msra.mxu0 0.0
        %5278 = vmatpush.msra.mxu0 0.0
        %5279 = vmatpush.msra.mxu0 0.0
        %5280 = vmatpush.msra.mxu0 0.0
        %5281 = vmatpush.msra.mxu0 0.0
        %5282 = vmatpush.msra.mxu0 0.0
        %5283 = vmatpush.msra.mxu0 0.0
        %5284 = vmatpush.msra.mxu0 0.0
        %5285 = vmatpush.msra.mxu0 0.0
        %5286 = vmatpush.msra.mxu0 0.0
        %5287 = vmatpush.msra.mxu0 0.0
        %5288 = vmatpush.msra.mxu0 %v5268
        %5289 = vmatmul.f32.gmra.mxu0 %v5271
        %v5290 = vpop.f32.mrf.mxu0
        %v5291 = vadd.f32 0.0, %v5290
        %5292 = vdwg.mxu0
        %5293 = vrot.lane.b32.xlu0 %v3672, 104
        %v5294 = vpop.permute.xlu0 %5293
        %5295 = vrot.lane.b32.xlu0 %v3672, 72
        %v5296 = vpop.permute.xlu0 %5295
        %v5297 = vsel %vm457, %v5294, 0
        %v5299 = vsel %vm457, %v5296, 0
        %5301 = vmatpush.xpose.msra.mxu0 0.0
        %5302 = vmatpush.xpose.msra.mxu0 0.0
        %5303 = vmatpush.xpose.msra.mxu0 0.0
        %5304 = vmatpush.xpose.msra.mxu0 0.0
        %5305 = vmatpush.xpose.msra.mxu0 0.0
        %5306 = vmatpush.xpose.msra.mxu0 0.0
        %5307 = vmatpush.xpose.msra.mxu0 0.0
        %5308 = vmatpush.xpose.msra.mxu0 0.0
        %5309 = vmatpush.xpose.msra.mxu0 0.0
        %5310 = vmatpush.xpose.msra.mxu0 0.0
        %5311 = vmatpush.xpose.msra.mxu0 0.0
        %5312 = vmatpush.xpose.msra.mxu0 0.0
        %5313 = vmatpush.xpose.msra.mxu0 0.0
        %5314 = vmatpush.xpose.msra.mxu0 0.0
        %5315 = vmatpush.xpose.msra.mxu0 0.0
        %5316 = vmatpush.xpose.msra.mxu0 %v5299
        %5317 = vmatmul.f32.gmra.mxu0 %v5297
        %v5318 = vpop.f32.mrf.mxu0
        %v5319 = vadd.f32 0.0, %v5318
        %5320 = vdwg.mxu0
        %5321 = vrot.lane.b32.xlu0 %v3674, 104
        %v5322 = vpop.permute.xlu0 %5321
        %5323 = vrot.lane.b32.xlu0 %v3674, 72
        %v5324 = vpop.permute.xlu0 %5323
        %v5325 = vsel %vm457, %v5322, 0
        %v5327 = vsel %vm457, %v5324, 0
        %5329 = vmatpush.xpose.msra.mxu0 0.0
        %5330 = vmatpush.xpose.msra.mxu0 0.0
        %5331 = vmatpush.xpose.msra.mxu0 0.0
        %5332 = vmatpush.xpose.msra.mxu0 0.0
        %5333 = vmatpush.xpose.msra.mxu0 0.0
        %5334 = vmatpush.xpose.msra.mxu0 0.0
        %5335 = vmatpush.xpose.msra.mxu0 0.0
        %5336 = vmatpush.xpose.msra.mxu0 0.0
        %5337 = vmatpush.xpose.msra.mxu0 0.0
        %5338 = vmatpush.xpose.msra.mxu0 0.0
        %5339 = vmatpush.xpose.msra.mxu0 0.0
        %5340 = vmatpush.xpose.msra.mxu0 0.0
        %5341 = vmatpush.xpose.msra.mxu0 0.0
        %5342 = vmatpush.xpose.msra.mxu0 0.0
        %5343 = vmatpush.xpose.msra.mxu0 0.0
        %5344 = vmatpush.xpose.msra.mxu0 %v5327
        %5345 = vmatmul.f32.gmra.mxu0 %v5325
        %v5346 = vpop.f32.mrf.mxu0
        %v5347 = vadd.f32 0.0, %v5346
        %5348 = vdwg.mxu0
        %5349 = vrot.lane.b32.xlu0 %v3677, 104
        %v5350 = vpop.permute.xlu0 %5349
        %5351 = vrot.lane.b32.xlu0 %v3677, 72
        %v5352 = vpop.permute.xlu0 %5351
        %v5353 = vsel %vm457, %v5350, 0
        %v5355 = vsel %vm457, %v5352, 0
        %5357 = vmatpush.xpose.msra.mxu0 0.0
        %5358 = vmatpush.xpose.msra.mxu0 0.0
        %5359 = vmatpush.xpose.msra.mxu0 0.0
        %5360 = vmatpush.xpose.msra.mxu0 0.0
        %5361 = vmatpush.xpose.msra.mxu0 0.0
        %5362 = vmatpush.xpose.msra.mxu0 0.0
        %5363 = vmatpush.xpose.msra.mxu0 0.0
        %5364 = vmatpush.xpose.msra.mxu0 0.0
        %5365 = vmatpush.xpose.msra.mxu0 0.0
        %5366 = vmatpush.xpose.msra.mxu0 0.0
        %5367 = vmatpush.xpose.msra.mxu0 0.0
        %5368 = vmatpush.xpose.msra.mxu0 0.0
        %5369 = vmatpush.xpose.msra.mxu0 0.0
        %5370 = vmatpush.xpose.msra.mxu0 0.0
        %5371 = vmatpush.xpose.msra.mxu0 0.0
        %5372 = vmatpush.xpose.msra.mxu0 %v5355
        %5373 = vmatmul.f32.gmra.mxu0 %v5353
        %v5374 = vpop.f32.mrf.mxu0
        %v5375 = vadd.f32 0.0, %v5374
        %5376 = vdwg.mxu0
        %5377 = vrot.lane.b32.xlu0 %v3679, 104
        %v5378 = vpop.permute.xlu0 %5377
        %5379 = vrot.lane.b32.xlu0 %v3679, 72
        %v5380 = vpop.permute.xlu0 %5379
        %v5381 = vsel %vm457, %v5378, 0
        %v5383 = vsel %vm457, %v5380, 0
        %5385 = vmatpush.xpose.msra.mxu0 0.0
        %5386 = vmatpush.xpose.msra.mxu0 0.0
        %5387 = vmatpush.xpose.msra.mxu0 0.0
        %5388 = vmatpush.xpose.msra.mxu0 0.0
        %5389 = vmatpush.xpose.msra.mxu0 0.0
        %5390 = vmatpush.xpose.msra.mxu0 0.0
        %5391 = vmatpush.xpose.msra.mxu0 0.0
        %5392 = vmatpush.xpose.msra.mxu0 0.0
        %5393 = vmatpush.xpose.msra.mxu0 0.0
        %5394 = vmatpush.xpose.msra.mxu0 0.0
        %5395 = vmatpush.xpose.msra.mxu0 0.0
        %5396 = vmatpush.xpose.msra.mxu0 0.0
        %5397 = vmatpush.xpose.msra.mxu0 0.0
        %5398 = vmatpush.xpose.msra.mxu0 0.0
        %5399 = vmatpush.xpose.msra.mxu0 0.0
        %5400 = vmatpush.xpose.msra.mxu0 %v5383
        %5401 = vmatmul.f32.gmra.mxu0 %v5381
        %v5402 = vpop.f32.mrf.mxu0
        %v5403 = vadd.f32 0.0, %v5402
        %5404 = vdwg.mxu0
        %5405 = vrot.lane.b32.xlu0 %v3682, 104
        %v5406 = vpop.permute.xlu0 %5405
        %5407 = vrot.lane.b32.xlu0 %v3682, 72
        %v5408 = vpop.permute.xlu0 %5407
        %v5409 = vsel %vm457, %v5406, 0
        %v5411 = vsel %vm457, %v5408, 0
        %5413 = vmatpush.xpose.msra.mxu0 0.0
        %5414 = vmatpush.xpose.msra.mxu0 0.0
        %5415 = vmatpush.xpose.msra.mxu0 0.0
        %5416 = vmatpush.xpose.msra.mxu0 0.0
        %5417 = vmatpush.xpose.msra.mxu0 0.0
        %5418 = vmatpush.xpose.msra.mxu0 0.0
        %5419 = vmatpush.xpose.msra.mxu0 0.0
        %5420 = vmatpush.xpose.msra.mxu0 0.0
        %5421 = vmatpush.xpose.msra.mxu0 0.0
        %5422 = vmatpush.xpose.msra.mxu0 0.0
        %5423 = vmatpush.xpose.msra.mxu0 0.0
        %5424 = vmatpush.xpose.msra.mxu0 0.0
        %5425 = vmatpush.xpose.msra.mxu0 0.0
        %5426 = vmatpush.xpose.msra.mxu0 0.0
        %5427 = vmatpush.xpose.msra.mxu0 0.0
        %5428 = vmatpush.xpose.msra.mxu0 %v5411
        %5429 = vmatmul.f32.gmra.mxu0 %v5409
        %v5430 = vpop.f32.mrf.mxu0
        %v5431 = vadd.f32 0.0, %v5430
        %5432 = vdwg.mxu0
        %5433 = vrot.lane.b32.xlu0 %v3684, 104
        %v5434 = vpop.permute.xlu0 %5433
        %5435 = vrot.lane.b32.xlu0 %v3684, 72
        %v5436 = vpop.permute.xlu0 %5435
        %v5437 = vsel %vm457, %v5434, 0
        %v5439 = vsel %vm457, %v5436, 0
        %5441 = vmatpush.xpose.msra.mxu0 0.0
        %5442 = vmatpush.xpose.msra.mxu0 0.0
        %5443 = vmatpush.xpose.msra.mxu0 0.0
        %5444 = vmatpush.xpose.msra.mxu0 0.0
        %5445 = vmatpush.xpose.msra.mxu0 0.0
        %5446 = vmatpush.xpose.msra.mxu0 0.0
        %5447 = vmatpush.xpose.msra.mxu0 0.0
        %5448 = vmatpush.xpose.msra.mxu0 0.0
        %5449 = vmatpush.xpose.msra.mxu0 0.0
        %5450 = vmatpush.xpose.msra.mxu0 0.0
        %5451 = vmatpush.xpose.msra.mxu0 0.0
        %5452 = vmatpush.xpose.msra.mxu0 0.0
        %5453 = vmatpush.xpose.msra.mxu0 0.0
        %5454 = vmatpush.xpose.msra.mxu0 0.0
        %5455 = vmatpush.xpose.msra.mxu0 0.0
        %5456 = vmatpush.xpose.msra.mxu0 %v5439
        %5457 = vmatmul.f32.gmra.mxu0 %v5437
        %v5458 = vpop.f32.mrf.mxu0
        %v5459 = vadd.f32 0.0, %v5458
        %5460 = vdwg.mxu0
        %5461 = vrot.lane.b32.xlu0 %v3687, 104
        %v5462 = vpop.permute.xlu0 %5461
        %5463 = vrot.lane.b32.xlu0 %v3687, 72
        %v5464 = vpop.permute.xlu0 %5463
        %v5465 = vsel %vm457, %v5462, 0
        %v5467 = vsel %vm457, %v5464, 0
        %5469 = vmatpush.xpose.msra.mxu0 0.0
        %5470 = vmatpush.xpose.msra.mxu0 0.0
        %5471 = vmatpush.xpose.msra.mxu0 0.0
        %5472 = vmatpush.xpose.msra.mxu0 0.0
        %5473 = vmatpush.xpose.msra.mxu0 0.0
        %5474 = vmatpush.xpose.msra.mxu0 0.0
        %5475 = vmatpush.xpose.msra.mxu0 0.0
        %5476 = vmatpush.xpose.msra.mxu0 0.0
        %5477 = vmatpush.xpose.msra.mxu0 0.0
        %5478 = vmatpush.xpose.msra.mxu0 0.0
        %5479 = vmatpush.xpose.msra.mxu0 0.0
        %5480 = vmatpush.xpose.msra.mxu0 0.0
        %5481 = vmatpush.xpose.msra.mxu0 0.0
        %5482 = vmatpush.xpose.msra.mxu0 0.0
        %5483 = vmatpush.xpose.msra.mxu0 0.0
        %5484 = vmatpush.xpose.msra.mxu0 %v5467
        %5485 = vmatmul.f32.gmra.mxu0 %v5465
        %v5486 = vpop.f32.mrf.mxu0
        %v5487 = vadd.f32 0.0, %v5486
        %5488 = vdwg.mxu0
        %5489 = vrot.lane.b32.xlu0 %v3689, 104
        %v5490 = vpop.permute.xlu0 %5489
        %5491 = vrot.lane.b32.xlu0 %v3689, 72
        %v5492 = vpop.permute.xlu0 %5491
        %v5493 = vsel %vm457, %v5490, 0
        %v5495 = vsel %vm457, %v5492, 0
        %5497 = vmatpush.xpose.msra.mxu0 0.0
        %5498 = vmatpush.xpose.msra.mxu0 0.0
        %5499 = vmatpush.xpose.msra.mxu0 0.0
        %5500 = vmatpush.xpose.msra.mxu0 0.0
        %5501 = vmatpush.xpose.msra.mxu0 0.0
        %5502 = vmatpush.xpose.msra.mxu0 0.0
        %5503 = vmatpush.xpose.msra.mxu0 0.0
        %5504 = vmatpush.xpose.msra.mxu0 0.0
        %5505 = vmatpush.xpose.msra.mxu0 0.0
        %5506 = vmatpush.xpose.msra.mxu0 0.0
        %5507 = vmatpush.xpose.msra.mxu0 0.0
        %5508 = vmatpush.xpose.msra.mxu0 0.0
        %5509 = vmatpush.xpose.msra.mxu0 0.0
        %5510 = vmatpush.xpose.msra.mxu0 0.0
        %5511 = vmatpush.xpose.msra.mxu0 0.0
        %5512 = vmatpush.xpose.msra.mxu0 %v5495
        %5513 = vmatmul.f32.gmra.mxu0 %v5493
        %v5514 = vpop.f32.mrf.mxu0
        %v5515 = vadd.f32 0.0, %v5514
        %5516 = vdwg.mxu0
        %v5517 = vmul.f32 %v5319, 0.35355338
        %v5518 = vmul.f32 %v5347, 0.35355338
        %v5519 = vmul.f32 %v5375, 0.35355338
        %v5520 = vmul.f32 %v5403, 0.35355338
        %v5521 = vmul.f32 %v5431, 0.35355338
        %v5522 = vmul.f32 %v5459, 0.35355338
        %v5523 = vmul.f32 %v5487, 0.35355338
        %v5524 = vmul.f32 %v5515, 0.35355338
        %s5525 = scalar_lea.vmem %s382, 192
        %5526 = vst.msk [vmem:[%s5525] sm:$0xff] %vm457, %v5517
        %5527 = vst.msk [vmem:[%s5525 + $0x8] sm:$0xff] %vm457, %v5518
        %5528 = vst.msk [vmem:[%s5525 + $0x10] sm:$0xff] %vm457, %v5519
        %5529 = vst.msk [vmem:[%s5525 + $0x18] sm:$0xff] %vm457, %v5520
        %5530 = vst.msk [vmem:[%s5525 + $0x20] sm:$0xff] %vm457, %v5521
        %5531 = vst.msk [vmem:[%s5525 + $0x28] sm:$0xff] %vm457, %v5522
        %5532 = vst.msk [vmem:[%s5525 + $0x30] sm:$0xff] %vm457, %v5523
        %5533 = vst.msk [vmem:[%s5525 + $0x38] sm:$0xff] %vm457, %v5524
        %v5534 = vsel %vm457, %v5517, -inf
        %5535 = vmax.xlane.f32.xlu0 %v5534
        %v5536 = vpop.xlane.xlu0 %5535
        %v5537 = vsel %vm457, %v5518, -inf
        %5538 = vmax.xlane.f32.xlu0 %v5537
        %v5539 = vpop.xlane.xlu0 %5538
        %v5540 = vsel %vm457, %v5519, -inf
        %5541 = vmax.xlane.f32.xlu0 %v5540
        %v5542 = vpop.xlane.xlu0 %5541
        %v5543 = vsel %vm457, %v5520, -inf
        %5544 = vmax.xlane.f32.xlu0 %v5543
        %v5545 = vpop.xlane.xlu0 %5544
        %v5546 = vsel %vm457, %v5521, -inf
        %5547 = vmax.xlane.f32.xlu0 %v5546
        %v5548 = vpop.xlane.xlu0 %5547
        %v5549 = vsel %vm457, %v5522, -inf
        %5550 = vmax.xlane.f32.xlu0 %v5549
        %v5551 = vpop.xlane.xlu0 %5550
        %v5552 = vsel %vm457, %v5523, -inf
        %5553 = vmax.xlane.f32.xlu0 %v5552
        %v5554 = vpop.xlane.xlu0 %5553
        %v5555 = vsel %vm457, %v5524, -inf
        %5556 = vmax.xlane.f32.xlu0 %v5555
        %v5557 = vpop.xlane.xlu0 %5556
        %v5558 = vsub.f32 %v5517, %v5536
        %v5559 = vsub.f32 %v5518, %v5539
        %v5560 = vsub.f32 %v5519, %v5542
        %v5561 = vsub.f32 %v5520, %v5545
        %v5562 = vsub.f32 %v5521, %v5548
        %v5563 = vsub.f32 %v5522, %v5551
        %v5564 = vsub.f32 %v5523, %v5554
        %v5565 = vsub.f32 %v5524, %v5557
        %v5566 = vmul.f32 %v5558, 1.442695
        %v5567 = vpow.pop %v5566
        %v5568 = vmul.f32 %v5559, 1.442695
        %v5569 = vpow.pop %v5568
        %v5570 = vmul.f32 %v5560, 1.442695
        %v5571 = vpow.pop %v5570
        %v5572 = vmul.f32 %v5561, 1.442695
        %v5573 = vpow.pop %v5572
        %v5574 = vmul.f32 %v5562, 1.442695
        %v5575 = vpow.pop %v5574
        %v5576 = vmul.f32 %v5563, 1.442695
        %v5577 = vpow.pop %v5576
        %v5578 = vmul.f32 %v5564, 1.442695
        %v5579 = vpow.pop %v5578
        %v5580 = vmul.f32 %v5565, 1.442695
        %v5581 = vpow.pop %v5580
        %v5582 = vsel %vm457, %v5567, 0.0
        %5583 = vadd.xlane.f32.xlu0 %v5582
        %v5584 = vpop.xlane.xlu0 %5583
        %v5585 = vsel %vm457, %v5569, 0.0
        %5586 = vadd.xlane.f32.xlu0 %v5585
        %v5587 = vpop.xlane.xlu0 %5586
        %v5588 = vsel %vm457, %v5571, 0.0
        %5589 = vadd.xlane.f32.xlu0 %v5588
        %v5590 = vpop.xlane.xlu0 %5589
        %v5591 = vsel %vm457, %v5573, 0.0
        %5592 = vadd.xlane.f32.xlu0 %v5591
        %v5593 = vpop.xlane.xlu0 %5592
        %v5594 = vsel %vm457, %v5575, 0.0
        %5595 = vadd.xlane.f32.xlu0 %v5594
        %v5596 = vpop.xlane.xlu0 %5595
        %v5597 = vsel %vm457, %v5577, 0.0
        %5598 = vadd.xlane.f32.xlu0 %v5597
        %v5599 = vpop.xlane.xlu0 %5598
        %v5600 = vsel %vm457, %v5579, 0.0
        %5601 = vadd.xlane.f32.xlu0 %v5600
        %v5602 = vpop.xlane.xlu0 %5601
        %v5603 = vsel %vm457, %v5581, 0.0
        %5604 = vadd.xlane.f32.xlu0 %v5603
        %v5605 = vpop.xlane.xlu0 %5604
        %v5606 = vrcp.pop %v5584
        %v5607 = vrcp.pop %v5587
        %v5608 = vrcp.pop %v5590
        %v5609 = vrcp.pop %v5593
        %v5610 = vrcp.pop %v5596
        %v5611 = vrcp.pop %v5599
        %v5612 = vrcp.pop %v5602
        %v5613 = vrcp.pop %v5605
        %v5614 = vmul.f32 %v5567, %v5606
        %v5615 = vmul.f32 %v5569, %v5607
        %v5616 = vmul.f32 %v5571, %v5608
        %v5617 = vmul.f32 %v5573, %v5609
        %v5618 = vmul.f32 %v5575, %v5610
        %v5619 = vmul.f32 %v5577, %v5611
        %v5620 = vmul.f32 %v5579, %v5612
        %v5621 = vmul.f32 %v5581, %v5613
        %5622 = vrot.lane.b32.xlu0 %v3672, 40
        %v5623 = vpop.permute.xlu0 %5622
        %v5626 = vsel %vm457, %v5614, 0
        %5628 = vmatpush.msra.mxu0 0.0
        %5629 = vmatpush.msra.mxu0 0.0
        %5630 = vmatpush.msra.mxu0 0.0
        %5631 = vmatpush.msra.mxu0 0.0
        %5632 = vmatpush.msra.mxu0 0.0
        %5633 = vmatpush.msra.mxu0 0.0
        %5634 = vmatpush.msra.mxu0 0.0
        %5635 = vmatpush.msra.mxu0 0.0
        %5636 = vmatpush.msra.mxu0 0.0
        %5637 = vmatpush.msra.mxu0 0.0
        %5638 = vmatpush.msra.mxu0 0.0
        %5639 = vmatpush.msra.mxu0 0.0
        %5640 = vmatpush.msra.mxu0 0.0
        %5641 = vmatpush.msra.mxu0 0.0
        %5642 = vmatpush.msra.mxu0 0.0
        %5643 = vmatpush.msra.mxu0 %v5623
        %5644 = vmatmul.f32.gmra.mxu0 %v5626
        %v5645 = vpop.f32.mrf.mxu0
        %v5646 = vadd.f32 0.0, %v5645
        %5647 = vdwg.mxu0
        %5648 = vrot.lane.b32.xlu0 %v3674, 40
        %v5649 = vpop.permute.xlu0 %5648
        %v5652 = vsel %vm457, %v5615, 0
        %5654 = vmatpush.msra.mxu0 0.0
        %5655 = vmatpush.msra.mxu0 0.0
        %5656 = vmatpush.msra.mxu0 0.0
        %5657 = vmatpush.msra.mxu0 0.0
        %5658 = vmatpush.msra.mxu0 0.0
        %5659 = vmatpush.msra.mxu0 0.0
        %5660 = vmatpush.msra.mxu0 0.0
        %5661 = vmatpush.msra.mxu0 0.0
        %5662 = vmatpush.msra.mxu0 0.0
        %5663 = vmatpush.msra.mxu0 0.0
        %5664 = vmatpush.msra.mxu0 0.0
        %5665 = vmatpush.msra.mxu0 0.0
        %5666 = vmatpush.msra.mxu0 0.0
        %5667 = vmatpush.msra.mxu0 0.0
        %5668 = vmatpush.msra.mxu0 0.0
        %5669 = vmatpush.msra.mxu0 %v5649
        %5670 = vmatmul.f32.gmra.mxu0 %v5652
        %v5671 = vpop.f32.mrf.mxu0
        %v5672 = vadd.f32 0.0, %v5671
        %5673 = vdwg.mxu0
        %5674 = vrot.lane.b32.xlu0 %v3677, 40
        %v5675 = vpop.permute.xlu0 %5674
        %v5678 = vsel %vm457, %v5616, 0
        %5680 = vmatpush.msra.mxu0 0.0
        %5681 = vmatpush.msra.mxu0 0.0
        %5682 = vmatpush.msra.mxu0 0.0
        %5683 = vmatpush.msra.mxu0 0.0
        %5684 = vmatpush.msra.mxu0 0.0
        %5685 = vmatpush.msra.mxu0 0.0
        %5686 = vmatpush.msra.mxu0 0.0
        %5687 = vmatpush.msra.mxu0 0.0
        %5688 = vmatpush.msra.mxu0 0.0
        %5689 = vmatpush.msra.mxu0 0.0
        %5690 = vmatpush.msra.mxu0 0.0
        %5691 = vmatpush.msra.mxu0 0.0
        %5692 = vmatpush.msra.mxu0 0.0
        %5693 = vmatpush.msra.mxu0 0.0
        %5694 = vmatpush.msra.mxu0 0.0
        %5695 = vmatpush.msra.mxu0 %v5675
        %5696 = vmatmul.f32.gmra.mxu0 %v5678
        %v5697 = vpop.f32.mrf.mxu0
        %v5698 = vadd.f32 0.0, %v5697
        %5699 = vdwg.mxu0
        %5700 = vrot.lane.b32.xlu0 %v3679, 40
        %v5701 = vpop.permute.xlu0 %5700
        %v5704 = vsel %vm457, %v5617, 0
        %5706 = vmatpush.msra.mxu0 0.0
        %5707 = vmatpush.msra.mxu0 0.0
        %5708 = vmatpush.msra.mxu0 0.0
        %5709 = vmatpush.msra.mxu0 0.0
        %5710 = vmatpush.msra.mxu0 0.0
        %5711 = vmatpush.msra.mxu0 0.0
        %5712 = vmatpush.msra.mxu0 0.0
        %5713 = vmatpush.msra.mxu0 0.0
        %5714 = vmatpush.msra.mxu0 0.0
        %5715 = vmatpush.msra.mxu0 0.0
        %5716 = vmatpush.msra.mxu0 0.0
        %5717 = vmatpush.msra.mxu0 0.0
        %5718 = vmatpush.msra.mxu0 0.0
        %5719 = vmatpush.msra.mxu0 0.0
        %5720 = vmatpush.msra.mxu0 0.0
        %5721 = vmatpush.msra.mxu0 %v5701
        %5722 = vmatmul.f32.gmra.mxu0 %v5704
        %v5723 = vpop.f32.mrf.mxu0
        %v5724 = vadd.f32 0.0, %v5723
        %5725 = vdwg.mxu0
        %5726 = vrot.lane.b32.xlu0 %v3682, 40
        %v5727 = vpop.permute.xlu0 %5726
        %v5730 = vsel %vm457, %v5618, 0
        %5732 = vmatpush.msra.mxu0 0.0
        %5733 = vmatpush.msra.mxu0 0.0
        %5734 = vmatpush.msra.mxu0 0.0
        %5735 = vmatpush.msra.mxu0 0.0
        %5736 = vmatpush.msra.mxu0 0.0
        %5737 = vmatpush.msra.mxu0 0.0
        %5738 = vmatpush.msra.mxu0 0.0
        %5739 = vmatpush.msra.mxu0 0.0
        %5740 = vmatpush.msra.mxu0 0.0
        %5741 = vmatpush.msra.mxu0 0.0
        %5742 = vmatpush.msra.mxu0 0.0
        %5743 = vmatpush.msra.mxu0 0.0
        %5744 = vmatpush.msra.mxu0 0.0
        %5745 = vmatpush.msra.mxu0 0.0
        %5746 = vmatpush.msra.mxu0 0.0
        %5747 = vmatpush.msra.mxu0 %v5727
        %5748 = vmatmul.f32.gmra.mxu0 %v5730
        %v5749 = vpop.f32.mrf.mxu0
        %v5750 = vadd.f32 0.0, %v5749
        %5751 = vdwg.mxu0
        %5752 = vrot.lane.b32.xlu0 %v3684, 40
        %v5753 = vpop.permute.xlu0 %5752
        %v5756 = vsel %vm457, %v5619, 0
        %5758 = vmatpush.msra.mxu0 0.0
        %5759 = vmatpush.msra.mxu0 0.0
        %5760 = vmatpush.msra.mxu0 0.0
        %5761 = vmatpush.msra.mxu0 0.0
        %5762 = vmatpush.msra.mxu0 0.0
        %5763 = vmatpush.msra.mxu0 0.0
        %5764 = vmatpush.msra.mxu0 0.0
        %5765 = vmatpush.msra.mxu0 0.0
        %5766 = vmatpush.msra.mxu0 0.0
        %5767 = vmatpush.msra.mxu0 0.0
        %5768 = vmatpush.msra.mxu0 0.0
        %5769 = vmatpush.msra.mxu0 0.0
        %5770 = vmatpush.msra.mxu0 0.0
        %5771 = vmatpush.msra.mxu0 0.0
        %5772 = vmatpush.msra.mxu0 0.0
        %5773 = vmatpush.msra.mxu0 %v5753
        %5774 = vmatmul.f32.gmra.mxu0 %v5756
        %v5775 = vpop.f32.mrf.mxu0
        %v5776 = vadd.f32 0.0, %v5775
        %5777 = vdwg.mxu0
        %5778 = vrot.lane.b32.xlu0 %v3687, 40
        %v5779 = vpop.permute.xlu0 %5778
        %v5782 = vsel %vm457, %v5620, 0
        %5784 = vmatpush.msra.mxu0 0.0
        %5785 = vmatpush.msra.mxu0 0.0
        %5786 = vmatpush.msra.mxu0 0.0
        %5787 = vmatpush.msra.mxu0 0.0
        %5788 = vmatpush.msra.mxu0 0.0
        %5789 = vmatpush.msra.mxu0 0.0
        %5790 = vmatpush.msra.mxu0 0.0
        %5791 = vmatpush.msra.mxu0 0.0
        %5792 = vmatpush.msra.mxu0 0.0
        %5793 = vmatpush.msra.mxu0 0.0
        %5794 = vmatpush.msra.mxu0 0.0
        %5795 = vmatpush.msra.mxu0 0.0
        %5796 = vmatpush.msra.mxu0 0.0
        %5797 = vmatpush.msra.mxu0 0.0
        %5798 = vmatpush.msra.mxu0 0.0
        %5799 = vmatpush.msra.mxu0 %v5779
        %5800 = vmatmul.f32.gmra.mxu0 %v5782
        %v5801 = vpop.f32.mrf.mxu0
        %v5802 = vadd.f32 0.0, %v5801
        %5803 = vdwg.mxu0
        %5804 = vrot.lane.b32.xlu0 %v3689, 40
        %v5805 = vpop.permute.xlu0 %5804
        %v5808 = vsel %vm457, %v5621, 0
        %5810 = vmatpush.msra.mxu0 0.0
        %5811 = vmatpush.msra.mxu0 0.0
        %5812 = vmatpush.msra.mxu0 0.0
        %5813 = vmatpush.msra.mxu0 0.0
        %5814 = vmatpush.msra.mxu0 0.0
        %5815 = vmatpush.msra.mxu0 0.0
        %5816 = vmatpush.msra.mxu0 0.0
        %5817 = vmatpush.msra.mxu0 0.0
        %5818 = vmatpush.msra.mxu0 0.0
        %5819 = vmatpush.msra.mxu0 0.0
        %5820 = vmatpush.msra.mxu0 0.0
        %5821 = vmatpush.msra.mxu0 0.0
        %5822 = vmatpush.msra.mxu0 0.0
        %5823 = vmatpush.msra.mxu0 0.0
        %5824 = vmatpush.msra.mxu0 0.0
        %5825 = vmatpush.msra.mxu0 %v5805
        %5826 = vmatmul.f32.gmra.mxu0 %v5808
        %v5827 = vpop.f32.mrf.mxu0
        %v5828 = vadd.f32 0.0, %v5827
        %5829 = vdwg.mxu0
        %5838 = vrot.lane.b32.xlu0 %v4572, 8
        %v5839 = vpop.permute.xlu0 %5838
        %5840 = vrot.lane.b32.xlu0 %v4598, 8
        %v5841 = vpop.permute.xlu0 %5840
        %5842 = vrot.lane.b32.xlu0 %v4624, 8
        %v5843 = vpop.permute.xlu0 %5842
        %5844 = vrot.lane.b32.xlu0 %v4650, 8
        %v5845 = vpop.permute.xlu0 %5844
        %5846 = vrot.lane.b32.xlu0 %v4676, 8
        %v5847 = vpop.permute.xlu0 %5846
        %5848 = vrot.lane.b32.xlu0 %v4702, 8
        %v5849 = vpop.permute.xlu0 %5848
        %5850 = vrot.lane.b32.xlu0 %v4728, 8
        %v5851 = vpop.permute.xlu0 %5850
        %5852 = vrot.lane.b32.xlu0 %v4754, 8
        %v5853 = vpop.permute.xlu0 %5852
        %5870 = vrot.lane.b32.xlu0 %v5109, 16
        %v5871 = vpop.permute.xlu0 %5870
        %5872 = vrot.lane.b32.xlu0 %v5135, 16
        %v5873 = vpop.permute.xlu0 %5872
        %5874 = vrot.lane.b32.xlu0 %v5161, 16
        %v5875 = vpop.permute.xlu0 %5874
        %5876 = vrot.lane.b32.xlu0 %v5187, 16
        %v5877 = vpop.permute.xlu0 %5876
        %5878 = vrot.lane.b32.xlu0 %v5213, 16
        %v5879 = vpop.permute.xlu0 %5878
        %5880 = vrot.lane.b32.xlu0 %v5239, 16
        %v5881 = vpop.permute.xlu0 %5880
        %5882 = vrot.lane.b32.xlu0 %v5265, 16
        %v5883 = vpop.permute.xlu0 %5882
        %5884 = vrot.lane.b32.xlu0 %v5291, 16
        %v5885 = vpop.permute.xlu0 %5884
        %5902 = vrot.lane.b32.xlu0 %v5646, 24
        %v5903 = vpop.permute.xlu0 %5902
        %5904 = vrot.lane.b32.xlu0 %v5672, 24
        %v5905 = vpop.permute.xlu0 %5904
        %5906 = vrot.lane.b32.xlu0 %v5698, 24
        %v5907 = vpop.permute.xlu0 %5906
        %5908 = vrot.lane.b32.xlu0 %v5724, 24
        %v5909 = vpop.permute.xlu0 %5908
        %5910 = vrot.lane.b32.xlu0 %v5750, 24
        %v5911 = vpop.permute.xlu0 %5910
        %5912 = vrot.lane.b32.xlu0 %v5776, 24
        %v5913 = vpop.permute.xlu0 %5912
        %5914 = vrot.lane.b32.xlu0 %v5802, 24
        %v5915 = vpop.permute.xlu0 %5914
        %5916 = vrot.lane.b32.xlu0 %v5828, 24
        %v5917 = vpop.permute.xlu0 %5916
        %v5926 = vsel %vm457, %v4035, %v5839
        %v5927 = vsel %vm457, %v4061, %v5841
        %v5928 = vsel %vm457, %v4087, %v5843
        %v5929 = vsel %vm457, %v4113, %v5845
        %v5930 = vsel %vm457, %v4139, %v5847
        %v5931 = vsel %vm457, %v4165, %v5849
        %v5932 = vsel %vm457, %v4191, %v5851
        %v5933 = vsel %vm457, %v4217, %v5853
        %v5934 = vsel %vm2698, %v5926, %v5871
        %v5935 = vsel %vm2698, %v5927, %v5873
        %v5936 = vsel %vm2698, %v5928, %v5875
        %v5937 = vsel %vm2698, %v5929, %v5877
        %v5938 = vsel %vm2698, %v5930, %v5879
        %v5939 = vsel %vm2698, %v5931, %v5881
        %v5940 = vsel %vm2698, %v5932, %v5883
        %v5941 = vsel %vm2698, %v5933, %v5885
        %v5942 = vsel %vm2707, %v5934, %v5903
        %v5943 = vsel %vm2707, %v5935, %v5905
        %v5944 = vsel %vm2707, %v5936, %v5907
        %v5945 = vsel %vm2707, %v5937, %v5909
        %v5946 = vsel %vm2707, %v5938, %v5911
        %v5947 = vsel %vm2707, %v5939, %v5913
        %v5948 = vsel %vm2707, %v5940, %v5915
        %v5949 = vsel %vm2707, %v5941, %v5917
        %v5950 = vpack.c.bf16 %v5943, %v5942
        %v5951 = vpack.c.bf16 %v5945, %v5944
        %v5952 = vpack.c.bf16 %v5947, %v5946
        %v5953 = vpack.c.bf16 %v5949, %v5948
        %s5954 = scalar_lea.vmem %s2, 32
        %v5955 = vld [vmem:[%s5954] sm:$0xf]
        %v5956 = vld [vmem:[%s5954 + $0x4] sm:$0xf]
        %v5957 = vld [vmem:[%s5954 + $0x8] sm:$0xf]
        %v5958 = vld [vmem:[%s5954 + $0xc] sm:$0xf]
        %v5963 = vunpack.c.l.b16 %v5955
        %v5964 = vunpack.c.l.b16 %v5956
        %v5965 = vunpack.c.l.b16 %v5957
        %v5966 = vunpack.c.l.b16 %v5958
        %v5967 = vpack.c.b16 %v5964, %v5963
        %v5968 = vpack.c.b16 %v5966, %v5965
        %v5972 = vsel %vm412, %v5950, 0
        %v5975 = vsel %vm412, %v5951, 0
        %v5978 = vsel %vm412, %v5952, 0
        %v5981 = vsel %vm412, %v5953, 0
        %5983 = vmatpush.bf16.msra.mxu0 0
        %5984 = vmatpush.bf16.msra.mxu0 0
        %5985 = vmatpush.bf16.msra.mxu0 0
        %5986 = vmatpush.bf16.msra.mxu0 0
        %5987 = vmatpush.bf16.msra.mxu0 0
        %5988 = vmatpush.bf16.msra.mxu0 0
        %5989 = vmatpush.bf16.msra.mxu0 %v5968
        %5990 = vmatpush.bf16.msra.mxu0 %v5967
        %5991 = vmatmul.bf16.gmra.mxu0 %v5972
        %v5992 = vpop.f32.mrf.mxu0
        %v5993 = vadd.f32 0.0, %v5992
        %v5994 = vpop.f32.mrf.mxu0
        %v5995 = vadd.f32 0.0, %v5994
        %5996 = vmatmul.bf16.gmra.mxu0 %v5975
        %v5997 = vpop.f32.mrf.mxu0
        %v5998 = vadd.f32 0.0, %v5997
        %v5999 = vpop.f32.mrf.mxu0
        %v6000 = vadd.f32 0.0, %v5999
        %6001 = vmatmul.bf16.gmra.mxu0 %v5978
        %v6002 = vpop.f32.mrf.mxu0
        %v6003 = vadd.f32 0.0, %v6002
        %v6004 = vpop.f32.mrf.mxu0
        %v6005 = vadd.f32 0.0, %v6004
        %6006 = vmatmul.bf16.gmra.mxu0 %v5981
        %v6007 = vpop.f32.mrf.mxu0
        %v6008 = vadd.f32 0.0, %v6007
        %v6009 = vpop.f32.mrf.mxu0
        %v6010 = vadd.f32 0.0, %v6009
        %6011 = vdwg.mxu0
        %s6012 = scalar_lea.vmem %s3, 2
        %v6013 = vld [vmem:[%s6012] sm:$0x1]
        %v6015 = vperm.slane %v6013, 0
        %v6017 = vmul.f32 %v5993, %v6015
        %v6018 = vmul.f32 %v5995, %v6015
        %v6019 = vmul.f32 %v5998, %v6015
        %v6020 = vmul.f32 %v6000, %v6015
        %v6021 = vmul.f32 %v6003, %v6015
        %v6022 = vmul.f32 %v6005, %v6015
        %v6023 = vmul.f32 %v6008, %v6015
        %v6024 = vmul.f32 %v6010, %v6015
        %s6025 = scalar_lea.vmem %s4, 2
        %v6026 = vld [vmem:[%s6025] sm:$0x1]
        %v6028 = vperm.slane %v6026, 0
        %v6030 = vadd.f32 %v6017, %v6028
        %v6031 = vadd.f32 %v6018, %v6028
        %v6032 = vadd.f32 %v6019, %v6028
        %v6033 = vadd.f32 %v6020, %v6028
        %v6034 = vadd.f32 %v6021, %v6028
        %v6035 = vadd.f32 %v6022, %v6028
        %v6036 = vadd.f32 %v6023, %v6028
        %v6037 = vadd.f32 %v6024, %v6028
        %v6038 = vmax.f32 %v6030, 0.0
        %v6039 = vmax.f32 %v6031, 0.0
        %v6040 = vmax.f32 %v6032, 0.0
        %v6041 = vmax.f32 %v6033, 0.0
        %v6042 = vmax.f32 %v6034, 0.0
        %v6043 = vmax.f32 %v6035, 0.0
        %v6044 = vmax.f32 %v6036, 0.0
        %v6045 = vmax.f32 %v6037, 0.0
        %v6046 = vpack.c.bf16 %v6039, %v6038
        %v6047 = vpack.c.bf16 %v6041, %v6040
        %v6048 = vpack.c.bf16 %v6043, %v6042
        %v6049 = vpack.c.bf16 %v6045, %v6044
        %s6050 = scalar_lea.vmem %s5, 128
        %v6051 = vld [vmem:[%s6050] sm:$0xf]
        %v6052 = vld [vmem:[%s6050 + $0x4] sm:$0xf]
        %v6053 = vld [vmem:[%s6050 + $0x8] sm:$0xf]
        %v6054 = vld [vmem:[%s6050 + $0xc] sm:$0xf]
        %v6055 = vld [vmem:[%s6050 + $0x10] sm:$0xf]
        %v6056 = vld [vmem:[%s6050 + $0x14] sm:$0xf]
        %v6057 = vld [vmem:[%s6050 + $0x18] sm:$0xf]
        %v6058 = vld [vmem:[%s6050 + $0x1c] sm:$0xf]
        %v6059 = vld [vmem:[%s6050 + $0x20] sm:$0xf]
        %v6060 = vld [vmem:[%s6050 + $0x24] sm:$0xf]
        %v6061 = vld [vmem:[%s6050 + $0x28] sm:$0xf]
        %v6062 = vld [vmem:[%s6050 + $0x2c] sm:$0xf]
        %v6063 = vld [vmem:[%s6050 + $0x30] sm:$0xf]
        %v6064 = vld [vmem:[%s6050 + $0x34] sm:$0xf]
        %v6065 = vld [vmem:[%s6050 + $0x38] sm:$0xf]
        %v6066 = vld [vmem:[%s6050 + $0x3c] sm:$0xf]
        %v6083 = vunpack.c.l.b16 %v6051
        %v6084 = vunpack.c.l.b16 %v6052
        %v6085 = vunpack.c.l.b16 %v6053
        %v6086 = vunpack.c.l.b16 %v6054
        %v6087 = vunpack.c.l.b16 %v6055
        %v6088 = vunpack.c.l.b16 %v6056
        %v6089 = vunpack.c.l.b16 %v6057
        %v6090 = vunpack.c.l.b16 %v6058
        %v6091 = vunpack.c.l.b16 %v6059
        %v6092 = vunpack.c.l.b16 %v6060
        %v6093 = vunpack.c.l.b16 %v6061
        %v6094 = vunpack.c.l.b16 %v6062
        %v6095 = vunpack.c.l.b16 %v6063
        %v6096 = vunpack.c.l.b16 %v6064
        %v6097 = vunpack.c.l.b16 %v6065
        %v6098 = vunpack.c.l.b16 %v6066
        %v6099 = vpack.c.b16 %v6084, %v6083
        %v6100 = vpack.c.b16 %v6086, %v6085
        %v6101 = vpack.c.b16 %v6088, %v6087
        %v6102 = vpack.c.b16 %v6090, %v6089
        %v6103 = vpack.c.b16 %v6092, %v6091
        %v6104 = vpack.c.b16 %v6094, %v6093
        %v6105 = vpack.c.b16 %v6096, %v6095
        %v6106 = vpack.c.b16 %v6098, %v6097
        %6115 = vmatpush.bf16.msra.mxu0 %v6106
        %6116 = vmatpush.bf16.msra.mxu0 %v6105
        %6117 = vmatpush.bf16.msra.mxu0 %v6104
        %6118 = vmatpush.bf16.msra.mxu0 %v6103
        %6119 = vmatpush.bf16.msra.mxu0 %v6102
        %6120 = vmatpush.bf16.msra.mxu0 %v6101
        %6121 = vmatpush.bf16.msra.mxu0 %v6100
        %6122 = vmatpush.bf16.msra.mxu0 %v6099
        %6123 = vmatmul.bf16.gmra.mxu0 %v6046
        %v6124 = vpop.f32.mrf.mxu0
        %v6125 = vadd.f32 0.0, %v6124
        %v6126 = vpop.f32.mrf.mxu0
        %v6127 = vadd.f32 0.0, %v6126
        %6128 = vmatmul.bf16.gmra.mxu0 %v6047
        %v6129 = vpop.f32.mrf.mxu0
        %v6130 = vadd.f32 0.0, %v6129
        %v6131 = vpop.f32.mrf.mxu0
        %v6132 = vadd.f32 0.0, %v6131
        %6133 = vmatmul.bf16.gmra.mxu0 %v6048
        %v6134 = vpop.f32.mrf.mxu0
        %v6135 = vadd.f32 0.0, %v6134
        %v6136 = vpop.f32.mrf.mxu0
        %v6137 = vadd.f32 0.0, %v6136
        %6138 = vmatmul.bf16.gmra.mxu0 %v6049
        %v6139 = vpop.f32.mrf.mxu0
        %v6140 = vadd.f32 0.0, %v6139
        %v6141 = vpop.f32.mrf.mxu0
        %v6142 = vadd.f32 0.0, %v6141
        %6143 = vdwg.mxu0
        %s6144 = scalar_lea.vmem %s6, 2
        %v6145 = vld [vmem:[%s6144] sm:$0x1]
        %v6147 = vperm.slane %v6145, 0
        %v6149 = vmul.f32 %v6125, %v6147
        %v6150 = vmul.f32 %v6127, %v6147
        %v6151 = vmul.f32 %v6130, %v6147
        %v6152 = vmul.f32 %v6132, %v6147
        %v6153 = vmul.f32 %v6135, %v6147
        %v6154 = vmul.f32 %v6137, %v6147
        %v6155 = vmul.f32 %v6140, %v6147
        %v6156 = vmul.f32 %v6142, %v6147
        %s6157 = scalar_lea.vmem %s7, 2
        %v6158 = vld [vmem:[%s6157] sm:$0x1]
        %v6160 = vperm.slane %v6158, 0
        %v6162 = vadd.f32 %v6149, %v6160
        %v6163 = vadd.f32 %v6150, %v6160
        %v6164 = vadd.f32 %v6151, %v6160
        %v6165 = vadd.f32 %v6152, %v6160
        %v6166 = vadd.f32 %v6153, %v6160
        %v6167 = vadd.f32 %v6154, %v6160
        %v6168 = vadd.f32 %v6155, %v6160
        %v6169 = vadd.f32 %v6156, %v6160
        %v6178 = vrot.slane %v6162, 1
        %v6179 = vrot.slane %v6162, 2
        %v6180 = vrot.slane %v6162, 3
        %v6181 = vrot.slane %v6162, 4
        %v6182 = vrot.slane %v6162, 5
        %v6183 = vrot.slane %v6162, 6
        %v6184 = vrot.slane %v6162, 7
        %v6185 = vrot.slane %v6163, 1
        %v6186 = vrot.slane %v6163, 2
        %v6187 = vrot.slane %v6163, 3
        %v6188 = vrot.slane %v6163, 4
        %v6189 = vrot.slane %v6163, 5
        %v6190 = vrot.slane %v6163, 6
        %v6191 = vrot.slane %v6163, 7
        %v6192 = vrot.slane %v6164, 1
        %v6193 = vrot.slane %v6164, 2
        %v6194 = vrot.slane %v6164, 3
        %v6195 = vrot.slane %v6164, 4
        %v6196 = vrot.slane %v6164, 5
        %v6197 = vrot.slane %v6164, 6
        %v6198 = vrot.slane %v6164, 7
        %v6199 = vrot.slane %v6165, 1
        %v6200 = vrot.slane %v6165, 2
        %v6201 = vrot.slane %v6165, 3
        %v6202 = vrot.slane %v6165, 4
        %v6203 = vrot.slane %v6165, 5
        %v6204 = vrot.slane %v6165, 6
        %v6205 = vrot.slane %v6165, 7
        %v6206 = vrot.slane %v6166, 1
        %v6207 = vrot.slane %v6166, 2
        %v6208 = vrot.slane %v6166, 3
        %v6209 = vrot.slane %v6166, 4
        %v6210 = vrot.slane %v6166, 5
        %v6211 = vrot.slane %v6166, 6
        %v6212 = vrot.slane %v6166, 7
        %v6213 = vrot.slane %v6167, 1
        %v6214 = vrot.slane %v6167, 2
        %v6215 = vrot.slane %v6167, 3
        %v6216 = vrot.slane %v6167, 4
        %v6217 = vrot.slane %v6167, 5
        %v6218 = vrot.slane %v6167, 6
        %v6219 = vrot.slane %v6167, 7
        %v6220 = vrot.slane %v6168, 1
        %v6221 = vrot.slane %v6168, 2
        %v6222 = vrot.slane %v6168, 3
        %v6223 = vrot.slane %v6168, 4
        %v6224 = vrot.slane %v6168, 5
        %v6225 = vrot.slane %v6168, 6
        %v6226 = vrot.slane %v6168, 7
        %v6227 = vrot.slane %v6169, 1
        %v6228 = vrot.slane %v6169, 2
        %v6229 = vrot.slane %v6169, 3
        %v6230 = vrot.slane %v6169, 4
        %v6231 = vrot.slane %v6169, 5
        %v6232 = vrot.slane %v6169, 6
        %v6233 = vrot.slane %v6169, 7
        %v6298 = vadd.f32 %v3190, %v6162
        %v6299 = vadd.f32 %v3191, %v6178
        %v6300 = vadd.f32 %v3192, %v6179
        %v6301 = vadd.f32 %v3193, %v6180
        %v6302 = vadd.f32 %v3194, %v6181
        %v6303 = vadd.f32 %v3195, %v6182
        %v6304 = vadd.f32 %v3196, %v6183
        %v6305 = vadd.f32 %v3197, %v6184
        %v6306 = vadd.f32 %v3206, %v6163
        %v6307 = vadd.f32 %v3207, %v6185
        %v6308 = vadd.f32 %v3208, %v6186
        %v6309 = vadd.f32 %v3209, %v6187
        %v6310 = vadd.f32 %v3210, %v6188
        %v6311 = vadd.f32 %v3211, %v6189
        %v6312 = vadd.f32 %v3212, %v6190
        %v6313 = vadd.f32 %v3213, %v6191
        %v6314 = vadd.f32 %v3222, %v6164
        %v6315 = vadd.f32 %v3223, %v6192
        %v6316 = vadd.f32 %v3224, %v6193
        %v6317 = vadd.f32 %v3225, %v6194
        %v6318 = vadd.f32 %v3226, %v6195
        %v6319 = vadd.f32 %v3227, %v6196
        %v6320 = vadd.f32 %v3228, %v6197
        %v6321 = vadd.f32 %v3229, %v6198
        %v6322 = vadd.f32 %v3238, %v6165
        %v6323 = vadd.f32 %v3239, %v6199
        %v6324 = vadd.f32 %v3240, %v6200
        %v6325 = vadd.f32 %v3241, %v6201
        %v6326 = vadd.f32 %v3242, %v6202
        %v6327 = vadd.f32 %v3243, %v6203
        %v6328 = vadd.f32 %v3244, %v6204
        %v6329 = vadd.f32 %v3245, %v6205
        %v6330 = vadd.f32 %v3254, %v6166
        %v6331 = vadd.f32 %v3255, %v6206
        %v6332 = vadd.f32 %v3256, %v6207
        %v6333 = vadd.f32 %v3257, %v6208
        %v6334 = vadd.f32 %v3258, %v6209
        %v6335 = vadd.f32 %v3259, %v6210
        %v6336 = vadd.f32 %v3260, %v6211
        %v6337 = vadd.f32 %v3261, %v6212
        %v6338 = vadd.f32 %v3270, %v6167
        %v6339 = vadd.f32 %v3271, %v6213
        %v6340 = vadd.f32 %v3272, %v6214
        %v6341 = vadd.f32 %v3273, %v6215
        %v6342 = vadd.f32 %v3274, %v6216
        %v6343 = vadd.f32 %v3275, %v6217
        %v6344 = vadd.f32 %v3276, %v6218
        %v6345 = vadd.f32 %v3277, %v6219
        %v6346 = vadd.f32 %v3286, %v6168
        %v6347 = vadd.f32 %v3287, %v6220
        %v6348 = vadd.f32 %v3288, %v6221
        %v6349 = vadd.f32 %v3289, %v6222
        %v6350 = vadd.f32 %v3290, %v6223
        %v6351 = vadd.f32 %v3291, %v6224
        %v6352 = vadd.f32 %v3292, %v6225
        %v6353 = vadd.f32 %v3293, %v6226
        %v6354 = vadd.f32 %v3302, %v6169
        %v6355 = vadd.f32 %v3303, %v6227
        %v6356 = vadd.f32 %v3304, %v6228
        %v6357 = vadd.f32 %v3305, %v6229
        %v6358 = vadd.f32 %v3306, %v6230
        %v6359 = vadd.f32 %v3307, %v6231
        %v6360 = vadd.f32 %v3308, %v6232
        %v6361 = vadd.f32 %v3309, %v6233
        %v6362 = vmax.f32 %v6298, 0.0
        %v6363 = vmax.f32 %v6299, 0.0
        %v6364 = vmax.f32 %v6300, 0.0
        %v6365 = vmax.f32 %v6301, 0.0
        %v6366 = vmax.f32 %v6302, 0.0
        %v6367 = vmax.f32 %v6303, 0.0
        %v6368 = vmax.f32 %v6304, 0.0
        %v6369 = vmax.f32 %v6305, 0.0
        %v6370 = vmax.f32 %v6306, 0.0
        %v6371 = vmax.f32 %v6307, 0.0
        %v6372 = vmax.f32 %v6308, 0.0
        %v6373 = vmax.f32 %v6309, 0.0
        %v6374 = vmax.f32 %v6310, 0.0
        %v6375 = vmax.f32 %v6311, 0.0
        %v6376 = vmax.f32 %v6312, 0.0
        %v6377 = vmax.f32 %v6313, 0.0
        %v6378 = vmax.f32 %v6314, 0.0
        %v6379 = vmax.f32 %v6315, 0.0
        %v6380 = vmax.f32 %v6316, 0.0
        %v6381 = vmax.f32 %v6317, 0.0
        %v6382 = vmax.f32 %v6318, 0.0
        %v6383 = vmax.f32 %v6319, 0.0
        %v6384 = vmax.f32 %v6320, 0.0
        %v6385 = vmax.f32 %v6321, 0.0
        %v6386 = vmax.f32 %v6322, 0.0
        %v6387 = vmax.f32 %v6323, 0.0
        %v6388 = vmax.f32 %v6324, 0.0
        %v6389 = vmax.f32 %v6325, 0.0
        %v6390 = vmax.f32 %v6326, 0.0
        %v6391 = vmax.f32 %v6327, 0.0
        %v6392 = vmax.f32 %v6328, 0.0
        %v6393 = vmax.f32 %v6329, 0.0
        %v6394 = vmax.f32 %v6330, 0.0
        %v6395 = vmax.f32 %v6331, 0.0
        %v6396 = vmax.f32 %v6332, 0.0
        %v6397 = vmax.f32 %v6333, 0.0
        %v6398 = vmax.f32 %v6334, 0.0
        %v6399 = vmax.f32 %v6335, 0.0
        %v6400 = vmax.f32 %v6336, 0.0
        %v6401 = vmax.f32 %v6337, 0.0
        %v6402 = vmax.f32 %v6338, 0.0
        %v6403 = vmax.f32 %v6339, 0.0
        %v6404 = vmax.f32 %v6340, 0.0
        %v6405 = vmax.f32 %v6341, 0.0
        %v6406 = vmax.f32 %v6342, 0.0
        %v6407 = vmax.f32 %v6343, 0.0
        %v6408 = vmax.f32 %v6344, 0.0
        %v6409 = vmax.f32 %v6345, 0.0
        %v6410 = vmax.f32 %v6346, 0.0
        %v6411 = vmax.f32 %v6347, 0.0
        %v6412 = vmax.f32 %v6348, 0.0
        %v6413 = vmax.f32 %v6349, 0.0
        %v6414 = vmax.f32 %v6350, 0.0
        %v6415 = vmax.f32 %v6351, 0.0
        %v6416 = vmax.f32 %v6352, 0.0
        %v6417 = vmax.f32 %v6353, 0.0
        %v6418 = vmax.f32 %v6354, 0.0
        %v6419 = vmax.f32 %v6355, 0.0
        %v6420 = vmax.f32 %v6356, 0.0
        %v6421 = vmax.f32 %v6357, 0.0
        %v6422 = vmax.f32 %v6358, 0.0
        %v6423 = vmax.f32 %v6359, 0.0
        %v6424 = vmax.f32 %v6360, 0.0
        %v6425 = vmax.f32 %v6361, 0.0
        %v6426 = vadd.f32 %v3190, %v6362
        %v6427 = vadd.f32 %v3191, %v6363
        %v6428 = vadd.f32 %v3192, %v6364
        %v6429 = vadd.f32 %v3193, %v6365
        %v6430 = vadd.f32 %v3194, %v6366
        %v6431 = vadd.f32 %v3195, %v6367
        %v6432 = vadd.f32 %v3196, %v6368
        %v6433 = vadd.f32 %v3197, %v6369
        %v6434 = vadd.f32 %v3206, %v6370
        %v6435 = vadd.f32 %v3207, %v6371
        %v6436 = vadd.f32 %v3208, %v6372
        %v6437 = vadd.f32 %v3209, %v6373
        %v6438 = vadd.f32 %v3210, %v6374
        %v6439 = vadd.f32 %v3211, %v6375
        %v6440 = vadd.f32 %v3212, %v6376
        %v6441 = vadd.f32 %v3213, %v6377
        %v6442 = vadd.f32 %v3222, %v6378
        %v6443 = vadd.f32 %v3223, %v6379
        %v6444 = vadd.f32 %v3224, %v6380
        %v6445 = vadd.f32 %v3225, %v6381
        %v6446 = vadd.f32 %v3226, %v6382
        %v6447 = vadd.f32 %v3227, %v6383
        %v6448 = vadd.f32 %v3228, %v6384
        %v6449 = vadd.f32 %v3229, %v6385
        %v6450 = vadd.f32 %v3238, %v6386
        %v6451 = vadd.f32 %v3239, %v6387
        %v6452 = vadd.f32 %v3240, %v6388
        %v6453 = vadd.f32 %v3241, %v6389
        %v6454 = vadd.f32 %v3242, %v6390
        %v6455 = vadd.f32 %v3243, %v6391
        %v6456 = vadd.f32 %v3244, %v6392
        %v6457 = vadd.f32 %v3245, %v6393
        %v6458 = vadd.f32 %v3254, %v6394
        %v6459 = vadd.f32 %v3255, %v6395
        %v6460 = vadd.f32 %v3256, %v6396
        %v6461 = vadd.f32 %v3257, %v6397
        %v6462 = vadd.f32 %v3258, %v6398
        %v6463 = vadd.f32 %v3259, %v6399
        %v6464 = vadd.f32 %v3260, %v6400
        %v6465 = vadd.f32 %v3261, %v6401
        %v6466 = vadd.f32 %v3270, %v6402
        %v6467 = vadd.f32 %v3271, %v6403
        %v6468 = vadd.f32 %v3272, %v6404
        %v6469 = vadd.f32 %v3273, %v6405
        %v6470 = vadd.f32 %v3274, %v6406
        %v6471 = vadd.f32 %v3275, %v6407
        %v6472 = vadd.f32 %v3276, %v6408
        %v6473 = vadd.f32 %v3277, %v6409
        %v6474 = vadd.f32 %v3286, %v6410
        %v6475 = vadd.f32 %v3287, %v6411
        %v6476 = vadd.f32 %v3288, %v6412
        %v6477 = vadd.f32 %v3289, %v6413
        %v6478 = vadd.f32 %v3290, %v6414
        %v6479 = vadd.f32 %v3291, %v6415
        %v6480 = vadd.f32 %v3292, %v6416
        %v6481 = vadd.f32 %v3293, %v6417
        %v6482 = vadd.f32 %v3302, %v6418
        %v6483 = vadd.f32 %v3303, %v6419
        %v6484 = vadd.f32 %v3304, %v6420
        %v6485 = vadd.f32 %v3305, %v6421
        %v6486 = vadd.f32 %v3306, %v6422
        %v6487 = vadd.f32 %v3307, %v6423
        %v6488 = vadd.f32 %v3308, %v6424
        %v6489 = vadd.f32 %v3309, %v6425
        %v6490 = vmax.f32 %v6426, 0.0
        %v6491 = vmax.f32 %v6427, 0.0
        %v6492 = vmax.f32 %v6428, 0.0
        %v6493 = vmax.f32 %v6429, 0.0
        %v6494 = vmax.f32 %v6430, 0.0
        %v6495 = vmax.f32 %v6431, 0.0
        %v6496 = vmax.f32 %v6432, 0.0
        %v6497 = vmax.f32 %v6433, 0.0
        %v6498 = vmax.f32 %v6434, 0.0
        %v6499 = vmax.f32 %v6435, 0.0
        %v6500 = vmax.f32 %v6436, 0.0
        %v6501 = vmax.f32 %v6437, 0.0
        %v6502 = vmax.f32 %v6438, 0.0
        %v6503 = vmax.f32 %v6439, 0.0
        %v6504 = vmax.f32 %v6440, 0.0
        %v6505 = vmax.f32 %v6441, 0.0
        %v6506 = vmax.f32 %v6442, 0.0
        %v6507 = vmax.f32 %v6443, 0.0
        %v6508 = vmax.f32 %v6444, 0.0
        %v6509 = vmax.f32 %v6445, 0.0
        %v6510 = vmax.f32 %v6446, 0.0
        %v6511 = vmax.f32 %v6447, 0.0
        %v6512 = vmax.f32 %v6448, 0.0
        %v6513 = vmax.f32 %v6449, 0.0
        %v6514 = vmax.f32 %v6450, 0.0
        %v6515 = vmax.f32 %v6451, 0.0
        %v6516 = vmax.f32 %v6452, 0.0
        %v6517 = vmax.f32 %v6453, 0.0
        %v6518 = vmax.f32 %v6454, 0.0
        %v6519 = vmax.f32 %v6455, 0.0
        %v6520 = vmax.f32 %v6456, 0.0
        %v6521 = vmax.f32 %v6457, 0.0
        %v6522 = vmax.f32 %v6458, 0.0
        %v6523 = vmax.f32 %v6459, 0.0
        %v6524 = vmax.f32 %v6460, 0.0
        %v6525 = vmax.f32 %v6461, 0.0
        %v6526 = vmax.f32 %v6462, 0.0
        %v6527 = vmax.f32 %v6463, 0.0
        %v6528 = vmax.f32 %v6464, 0.0
        %v6529 = vmax.f32 %v6465, 0.0
        %v6530 = vmax.f32 %v6466, 0.0
        %v6531 = vmax.f32 %v6467, 0.0
        %v6532 = vmax.f32 %v6468, 0.0
        %v6533 = vmax.f32 %v6469, 0.0
        %v6534 = vmax.f32 %v6470, 0.0
        %v6535 = vmax.f32 %v6471, 0.0
        %v6536 = vmax.f32 %v6472, 0.0
        %v6537 = vmax.f32 %v6473, 0.0
        %v6538 = vmax.f32 %v6474, 0.0
        %v6539 = vmax.f32 %v6475, 0.0
        %v6540 = vmax.f32 %v6476, 0.0
        %v6541 = vmax.f32 %v6477, 0.0
        %v6542 = vmax.f32 %v6478, 0.0
        %v6543 = vmax.f32 %v6479, 0.0
        %v6544 = vmax.f32 %v6480, 0.0
        %v6545 = vmax.f32 %v6481, 0.0
        %v6546 = vmax.f32 %v6482, 0.0
        %v6547 = vmax.f32 %v6483, 0.0
        %v6548 = vmax.f32 %v6484, 0.0
        %v6549 = vmax.f32 %v6485, 0.0
        %v6550 = vmax.f32 %v6486, 0.0
        %v6551 = vmax.f32 %v6487, 0.0
        %v6552 = vmax.f32 %v6488, 0.0
        %v6553 = vmax.f32 %v6489, 0.0
        %v6554 = vpack.c.bf16 %v6490, %v6490
        %v6555 = vpack.c.bf16 %v6491, %v6491
        %v6556 = vpack.c.bf16 %v6492, %v6492
        %v6557 = vpack.c.bf16 %v6493, %v6493
        %v6558 = vpack.c.bf16 %v6494, %v6494
        %v6559 = vpack.c.bf16 %v6495, %v6495
        %v6560 = vpack.c.bf16 %v6496, %v6496
        %v6561 = vpack.c.bf16 %v6497, %v6497
        %v6562 = vpack.c.bf16 %v6498, %v6498
        %v6563 = vpack.c.bf16 %v6499, %v6499
        %v6564 = vpack.c.bf16 %v6500, %v6500
        %v6565 = vpack.c.bf16 %v6501, %v6501
        %v6566 = vpack.c.bf16 %v6502, %v6502
        %v6567 = vpack.c.bf16 %v6503, %v6503
        %v6568 = vpack.c.bf16 %v6504, %v6504
        %v6569 = vpack.c.bf16 %v6505, %v6505
        %v6570 = vpack.c.bf16 %v6506, %v6506
        %v6571 = vpack.c.bf16 %v6507, %v6507
        %v6572 = vpack.c.bf16 %v6508, %v6508
        %v6573 = vpack.c.bf16 %v6509, %v6509
        %v6574 = vpack.c.bf16 %v6510, %v6510
        %v6575 = vpack.c.bf16 %v6511, %v6511
        %v6576 = vpack.c.bf16 %v6512, %v6512
        %v6577 = vpack.c.bf16 %v6513, %v6513
        %v6578 = vpack.c.bf16 %v6514, %v6514
        %v6579 = vpack.c.bf16 %v6515, %v6515
        %v6580 = vpack.c.bf16 %v6516, %v6516
        %v6581 = vpack.c.bf16 %v6517, %v6517
        %v6582 = vpack.c.bf16 %v6518, %v6518
        %v6583 = vpack.c.bf16 %v6519, %v6519
        %v6584 = vpack.c.bf16 %v6520, %v6520
        %v6585 = vpack.c.bf16 %v6521, %v6521
        %v6586 = vpack.c.bf16 %v6522, %v6522
        %v6587 = vpack.c.bf16 %v6523, %v6523
        %v6588 = vpack.c.bf16 %v6524, %v6524
        %v6589 = vpack.c.bf16 %v6525, %v6525
        %v6590 = vpack.c.bf16 %v6526, %v6526
        %v6591 = vpack.c.bf16 %v6527, %v6527
        %v6592 = vpack.c.bf16 %v6528, %v6528
        %v6593 = vpack.c.bf16 %v6529, %v6529
        %v6594 = vpack.c.bf16 %v6530, %v6530
        %v6595 = vpack.c.bf16 %v6531, %v6531
        %v6596 = vpack.c.bf16 %v6532, %v6532
        %v6597 = vpack.c.bf16 %v6533, %v6533
        %v6598 = vpack.c.bf16 %v6534, %v6534
        %v6599 = vpack.c.bf16 %v6535, %v6535
        %v6600 = vpack.c.bf16 %v6536, %v6536
        %v6601 = vpack.c.bf16 %v6537, %v6537
        %v6602 = vpack.c.bf16 %v6538, %v6538
        %v6603 = vpack.c.bf16 %v6539, %v6539
        %v6604 = vpack.c.bf16 %v6540, %v6540
        %v6605 = vpack.c.bf16 %v6541, %v6541
        %v6606 = vpack.c.bf16 %v6542, %v6542
        %v6607 = vpack.c.bf16 %v6543, %v6543
        %v6608 = vpack.c.bf16 %v6544, %v6544
        %v6609 = vpack.c.bf16 %v6545, %v6545
        %v6610 = vpack.c.bf16 %v6546, %v6546
        %v6611 = vpack.c.bf16 %v6547, %v6547
        %v6612 = vpack.c.bf16 %v6548, %v6548
        %v6613 = vpack.c.bf16 %v6549, %v6549
        %v6614 = vpack.c.bf16 %v6550, %v6550
        %v6615 = vpack.c.bf16 %v6551, %v6551
        %v6616 = vpack.c.bf16 %v6552, %v6552
        %v6617 = vpack.c.bf16 %v6553, %v6553
        %s6618 = scalar_lea.vmem %s2, 48
        %v6619 = vld [vmem:[%s6618] sm:$0xf]
        %v6620 = vld [vmem:[%s6618 + $0x4] sm:$0xf]
        %v6621 = vld [vmem:[%s6618 + $0x8] sm:$0xf]
        %v6622 = vld [vmem:[%s6618 + $0xc] sm:$0xf]
        %v6687 = vunpack.c.l.b16 %v6554
        %v6688 = vunpack.c.l.b16 %v6555
        %v6689 = vunpack.c.l.b16 %v6556
        %v6690 = vunpack.c.l.b16 %v6557
        %v6691 = vunpack.c.l.b16 %v6558
        %v6692 = vunpack.c.l.b16 %v6559
        %v6693 = vunpack.c.l.b16 %v6560
        %v6694 = vunpack.c.l.b16 %v6561
        %v6695 = vunpack.c.l.b16 %v6562
        %v6696 = vunpack.c.l.b16 %v6563
        %v6697 = vunpack.c.l.b16 %v6564
        %v6698 = vunpack.c.l.b16 %v6565
        %v6699 = vunpack.c.l.b16 %v6566
        %v6700 = vunpack.c.l.b16 %v6567
        %v6701 = vunpack.c.l.b16 %v6568
        %v6702 = vunpack.c.l.b16 %v6569
        %v6703 = vunpack.c.l.b16 %v6570
        %v6704 = vunpack.c.l.b16 %v6571
        %v6705 = vunpack.c.l.b16 %v6572
        %v6706 = vunpack.c.l.b16 %v6573
        %v6707 = vunpack.c.l.b16 %v6574
        %v6708 = vunpack.c.l.b16 %v6575
        %v6709 = vunpack.c.l.b16 %v6576
        %v6710 = vunpack.c.l.b16 %v6577
        %v6711 = vunpack.c.l.b16 %v6578
        %v6712 = vunpack.c.l.b16 %v6579
        %v6713 = vunpack.c.l.b16 %v6580
        %v6714 = vunpack.c.l.b16 %v6581
        %v6715 = vunpack.c.l.b16 %v6582
        %v6716 = vunpack.c.l.b16 %v6583
        %v6717 = vunpack.c.l.b16 %v6584
        %v6718 = vunpack.c.l.b16 %v6585
        %v6719 = vunpack.c.l.b16 %v6586
        %v6720 = vunpack.c.l.b16 %v6587
        %v6721 = vunpack.c.l.b16 %v6588
        %v6722 = vunpack.c.l.b16 %v6589
        %v6723 = vunpack.c.l.b16 %v6590
        %v6724 = vunpack.c.l.b16 %v6591
        %v6725 = vunpack.c.l.b16 %v6592
        %v6726 = vunpack.c.l.b16 %v6593
        %v6727 = vunpack.c.l.b16 %v6594
        %v6728 = vunpack.c.l.b16 %v6595
        %v6729 = vunpack.c.l.b16 %v6596
        %v6730 = vunpack.c.l.b16 %v6597
        %v6731 = vunpack.c.l.b16 %v6598
        %v6732 = vunpack.c.l.b16 %v6599
        %v6733 = vunpack.c.l.b16 %v6600
        %v6734 = vunpack.c.l.b16 %v6601
        %v6735 = vunpack.c.l.b16 %v6602
        %v6736 = vunpack.c.l.b16 %v6603
        %v6737 = vunpack.c.l.b16 %v6604
        %v6738 = vunpack.c.l.b16 %v6605
        %v6739 = vunpack.c.l.b16 %v6606
        %v6740 = vunpack.c.l.b16 %v6607
        %v6741 = vunpack.c.l.b16 %v6608
        %v6742 = vunpack.c.l.b16 %v6609
        %v6743 = vunpack.c.l.b16 %v6610
        %v6744 = vunpack.c.l.b16 %v6611
        %v6745 = vunpack.c.l.b16 %v6612
        %v6746 = vunpack.c.l.b16 %v6613
        %v6747 = vunpack.c.l.b16 %v6614
        %v6748 = vunpack.c.l.b16 %v6615
        %v6749 = vunpack.c.l.b16 %v6616
        %v6750 = vunpack.c.l.b16 %v6617
        %v6751 = vrot.slane %v6688, 7
        %v6752 = vsel %vm3516, %v6751, %v6687
        %v6753 = vrot.slane %v6689, 6
        %v6754 = vsel %vm3519, %v6753, %v6752
        %v6755 = vrot.slane %v6690, 5
        %v6756 = vsel %vm3522, %v6755, %v6754
        %v6757 = vrot.slane %v6691, 4
        %v6758 = vsel %vm3525, %v6757, %v6756
        %v6759 = vrot.slane %v6692, 3
        %v6760 = vsel %vm3528, %v6759, %v6758
        %v6761 = vrot.slane %v6693, 2
        %v6762 = vsel %vm3531, %v6761, %v6760
        %v6763 = vrot.slane %v6694, 1
        %v6764 = vsel %vm3534, %v6763, %v6762
        %v6765 = vrot.slane %v6696, 7
        %v6766 = vsel %vm3516, %v6765, %v6695
        %v6767 = vrot.slane %v6697, 6
        %v6768 = vsel %vm3519, %v6767, %v6766
        %v6769 = vrot.slane %v6698, 5
        %v6770 = vsel %vm3522, %v6769, %v6768
        %v6771 = vrot.slane %v6699, 4
        %v6772 = vsel %vm3525, %v6771, %v6770
        %v6773 = vrot.slane %v6700, 3
        %v6774 = vsel %vm3528, %v6773, %v6772
        %v6775 = vrot.slane %v6701, 2
        %v6776 = vsel %vm3531, %v6775, %v6774
        %v6777 = vrot.slane %v6702, 1
        %v6778 = vsel %vm3534, %v6777, %v6776
        %v6779 = vrot.slane %v6704, 7
        %v6780 = vsel %vm3516, %v6779, %v6703
        %v6781 = vrot.slane %v6705, 6
        %v6782 = vsel %vm3519, %v6781, %v6780
        %v6783 = vrot.slane %v6706, 5
        %v6784 = vsel %vm3522, %v6783, %v6782
        %v6785 = vrot.slane %v6707, 4
        %v6786 = vsel %vm3525, %v6785, %v6784
        %v6787 = vrot.slane %v6708, 3
        %v6788 = vsel %vm3528, %v6787, %v6786
        %v6789 = vrot.slane %v6709, 2
        %v6790 = vsel %vm3531, %v6789, %v6788
        %v6791 = vrot.slane %v6710, 1
        %v6792 = vsel %vm3534, %v6791, %v6790
        %v6793 = vrot.slane %v6712, 7
        %v6794 = vsel %vm3516, %v6793, %v6711
        %v6795 = vrot.slane %v6713, 6
        %v6796 = vsel %vm3519, %v6795, %v6794
        %v6797 = vrot.slane %v6714, 5
        %v6798 = vsel %vm3522, %v6797, %v6796
        %v6799 = vrot.slane %v6715, 4
        %v6800 = vsel %vm3525, %v6799, %v6798
        %v6801 = vrot.slane %v6716, 3
        %v6802 = vsel %vm3528, %v6801, %v6800
        %v6803 = vrot.slane %v6717, 2
        %v6804 = vsel %vm3531, %v6803, %v6802
        %v6805 = vrot.slane %v6718, 1
        %v6806 = vsel %vm3534, %v6805, %v6804
        %v6807 = vrot.slane %v6720, 7
        %v6808 = vsel %vm3516, %v6807, %v6719
        %v6809 = vrot.slane %v6721, 6
        %v6810 = vsel %vm3519, %v6809, %v6808
        %v6811 = vrot.slane %v6722, 5
        %v6812 = vsel %vm3522, %v6811, %v6810
        %v6813 = vrot.slane %v6723, 4
        %v6814 = vsel %vm3525, %v6813, %v6812
        %v6815 = vrot.slane %v6724, 3
        %v6816 = vsel %vm3528, %v6815, %v6814
        %v6817 = vrot.slane %v6725, 2
        %v6818 = vsel %vm3531, %v6817, %v6816
        %v6819 = vrot.slane %v6726, 1
        %v6820 = vsel %vm3534, %v6819, %v6818
        %v6821 = vrot.slane %v6728, 7
        %v6822 = vsel %vm3516, %v6821, %v6727
        %v6823 = vrot.slane %v6729, 6
        %v6824 = vsel %vm3519, %v6823, %v6822
        %v6825 = vrot.slane %v6730, 5
        %v6826 = vsel %vm3522, %v6825, %v6824
        %v6827 = vrot.slane %v6731, 4
        %v6828 = vsel %vm3525, %v6827, %v6826
        %v6829 = vrot.slane %v6732, 3
        %v6830 = vsel %vm3528, %v6829, %v6828
        %v6831 = vrot.slane %v6733, 2
        %v6832 = vsel %vm3531, %v6831, %v6830
        %v6833 = vrot.slane %v6734, 1
        %v6834 = vsel %vm3534, %v6833, %v6832
        %v6835 = vrot.slane %v6736, 7
        %v6836 = vsel %vm3516, %v6835, %v6735
        %v6837 = vrot.slane %v6737, 6
        %v6838 = vsel %vm3519, %v6837, %v6836
        %v6839 = vrot.slane %v6738, 5
        %v6840 = vsel %vm3522, %v6839, %v6838
        %v6841 = vrot.slane %v6739, 4
        %v6842 = vsel %vm3525, %v6841, %v6840
        %v6843 = vrot.slane %v6740, 3
        %v6844 = vsel %vm3528, %v6843, %v6842
        %v6845 = vrot.slane %v6741, 2
        %v6846 = vsel %vm3531, %v6845, %v6844
        %v6847 = vrot.slane %v6742, 1
        %v6848 = vsel %vm3534, %v6847, %v6846
        %v6849 = vrot.slane %v6744, 7
        %v6850 = vsel %vm3516, %v6849, %v6743
        %v6851 = vrot.slane %v6745, 6
        %v6852 = vsel %vm3519, %v6851, %v6850
        %v6853 = vrot.slane %v6746, 5
        %v6854 = vsel %vm3522, %v6853, %v6852
        %v6855 = vrot.slane %v6747, 4
        %v6856 = vsel %vm3525, %v6855, %v6854
        %v6857 = vrot.slane %v6748, 3
        %v6858 = vsel %vm3528, %v6857, %v6856
        %v6859 = vrot.slane %v6749, 2
        %v6860 = vsel %vm3531, %v6859, %v6858
        %v6861 = vrot.slane %v6750, 1
        %v6862 = vsel %vm3534, %v6861, %v6860
        %v6863 = vpack.c.b16 %v6778, %v6764
        %v6864 = vpack.c.b16 %v6806, %v6792
        %v6865 = vpack.c.b16 %v6834, %v6820
        %v6866 = vpack.c.b16 %v6862, %v6848
        %v6871 = vunpack.c.l.b16 %v6619
        %v6872 = vunpack.c.l.b16 %v6620
        %v6873 = vunpack.c.l.b16 %v6621
        %v6874 = vunpack.c.l.b16 %v6622
        %v6875 = vpack.c.b16 %v6872, %v6871
        %v6876 = vpack.c.b16 %v6874, %v6873
        %v6880 = vsel %vm412, %v6863, 0
        %v6883 = vsel %vm412, %v6864, 0
        %v6886 = vsel %vm412, %v6865, 0
        %v6889 = vsel %vm412, %v6866, 0
        %6891 = vmatpush.bf16.msra.mxu0 0
        %6892 = vmatpush.bf16.msra.mxu0 0
        %6893 = vmatpush.bf16.msra.mxu0 0
        %6894 = vmatpush.bf16.msra.mxu0 0
        %6895 = vmatpush.bf16.msra.mxu0 0
        %6896 = vmatpush.bf16.msra.mxu0 0
        %6897 = vmatpush.bf16.msra.mxu0 %v6876
        %6898 = vmatpush.bf16.msra.mxu0 %v6875
        %6899 = vmatmul.bf16.gmra.mxu0 %v6880
        %v6900 = vpop.f32.mrf.mxu0
        %v6901 = vadd.f32 0.0, %v6900
        %v6902 = vpop.f32.mrf.mxu0
        %v6903 = vadd.f32 0.0, %v6902
        %6904 = vmatmul.bf16.gmra.mxu0 %v6883
        %v6905 = vpop.f32.mrf.mxu0
        %v6906 = vadd.f32 0.0, %v6905
        %v6907 = vpop.f32.mrf.mxu0
        %v6908 = vadd.f32 0.0, %v6907
        %6909 = vmatmul.bf16.gmra.mxu0 %v6886
        %v6910 = vpop.f32.mrf.mxu0
        %v6911 = vadd.f32 0.0, %v6910
        %v6912 = vpop.f32.mrf.mxu0
        %v6913 = vadd.f32 0.0, %v6912
        %6914 = vmatmul.bf16.gmra.mxu0 %v6889
        %v6915 = vpop.f32.mrf.mxu0
        %v6916 = vadd.f32 0.0, %v6915
        %v6917 = vpop.f32.mrf.mxu0
        %v6918 = vadd.f32 0.0, %v6917
        %6919 = vdwg.mxu0
        %s6920 = scalar_lea.vmem %s3, 3
        %v6921 = vld [vmem:[%s6920] sm:$0x1]
        %v6923 = vperm.slane %v6921, 0
        %v6925 = vmul.f32 %v6901, %v6923
        %v6926 = vmul.f32 %v6903, %v6923
        %v6927 = vmul.f32 %v6906, %v6923
        %v6928 = vmul.f32 %v6908, %v6923
        %v6929 = vmul.f32 %v6911, %v6923
        %v6930 = vmul.f32 %v6913, %v6923
        %v6931 = vmul.f32 %v6916, %v6923
        %v6932 = vmul.f32 %v6918, %v6923
        %s6933 = scalar_lea.vmem %s4, 3
        %v6934 = vld [vmem:[%s6933] sm:$0x1]
        %v6936 = vperm.slane %v6934, 0
        %v6938 = vadd.f32 %v6925, %v6936
        %v6939 = vadd.f32 %v6926, %v6936
        %v6940 = vadd.f32 %v6927, %v6936
        %v6941 = vadd.f32 %v6928, %v6936
        %v6942 = vadd.f32 %v6929, %v6936
        %v6943 = vadd.f32 %v6930, %v6936
        %v6944 = vadd.f32 %v6931, %v6936
        %v6945 = vadd.f32 %v6932, %v6936
        %v6946 = vmax.f32 %v6938, 0.0
        %v6947 = vmax.f32 %v6939, 0.0
        %v6948 = vmax.f32 %v6940, 0.0
        %v6949 = vmax.f32 %v6941, 0.0
        %v6950 = vmax.f32 %v6942, 0.0
        %v6951 = vmax.f32 %v6943, 0.0
        %v6952 = vmax.f32 %v6944, 0.0
        %v6953 = vmax.f32 %v6945, 0.0
        %v6954 = vpack.c.bf16 %v6947, %v6946
        %v6955 = vpack.c.bf16 %v6949, %v6948
        %v6956 = vpack.c.bf16 %v6951, %v6950
        %v6957 = vpack.c.bf16 %v6953, %v6952
        %s6958 = scalar_lea.vmem %s5, 192
        %v6959 = vld [vmem:[%s6958] sm:$0xf]
        %v6960 = vld [vmem:[%s6958 + $0x4] sm:$0xf]
        %v6961 = vld [vmem:[%s6958 + $0x8] sm:$0xf]
        %v6962 = vld [vmem:[%s6958 + $0xc] sm:$0xf]
        %v6963 = vld [vmem:[%s6958 + $0x10] sm:$0xf]
        %v6964 = vld [vmem:[%s6958 + $0x14] sm:$0xf]
        %v6965 = vld [vmem:[%s6958 + $0x18] sm:$0xf]
        %v6966 = vld [vmem:[%s6958 + $0x1c] sm:$0xf]
        %v6967 = vld [vmem:[%s6958 + $0x20] sm:$0xf]
        %v6968 = vld [vmem:[%s6958 + $0x24] sm:$0xf]
        %v6969 = vld [vmem:[%s6958 + $0x28] sm:$0xf]
        %v6970 = vld [vmem:[%s6958 + $0x2c] sm:$0xf]
        %v6971 = vld [vmem:[%s6958 + $0x30] sm:$0xf]
        %v6972 = vld [vmem:[%s6958 + $0x34] sm:$0xf]
        %v6973 = vld [vmem:[%s6958 + $0x38] sm:$0xf]
        %v6974 = vld [vmem:[%s6958 + $0x3c] sm:$0xf]
        %v6991 = vunpack.c.l.b16 %v6959
        %v6992 = vunpack.c.l.b16 %v6960
        %v6993 = vunpack.c.l.b16 %v6961
        %v6994 = vunpack.c.l.b16 %v6962
        %v6995 = vunpack.c.l.b16 %v6963
        %v6996 = vunpack.c.l.b16 %v6964
        %v6997 = vunpack.c.l.b16 %v6965
        %v6998 = vunpack.c.l.b16 %v6966
        %v6999 = vunpack.c.l.b16 %v6967
        %v7000 = vunpack.c.l.b16 %v6968
        %v7001 = vunpack.c.l.b16 %v6969
        %v7002 = vunpack.c.l.b16 %v6970
        %v7003 = vunpack.c.l.b16 %v6971
        %v7004 = vunpack.c.l.b16 %v6972
        %v7005 = vunpack.c.l.b16 %v6973
        %v7006 = vunpack.c.l.b16 %v6974
        %v7007 = vpack.c.b16 %v6992, %v6991
        %v7008 = vpack.c.b16 %v6994, %v6993
        %v7009 = vpack.c.b16 %v6996, %v6995
        %v7010 = vpack.c.b16 %v6998, %v6997
        %v7011 = vpack.c.b16 %v7000, %v6999
        %v7012 = vpack.c.b16 %v7002, %v7001
        %v7013 = vpack.c.b16 %v7004, %v7003
        %v7014 = vpack.c.b16 %v7006, %v7005
        %7023 = vmatpush.bf16.msra.mxu0 %v7014
        %7024 = vmatpush.bf16.msra.mxu0 %v7013
        %7025 = vmatpush.bf16.msra.mxu0 %v7012
        %7026 = vmatpush.bf16.msra.mxu0 %v7011
        %7027 = vmatpush.bf16.msra.mxu0 %v7010
        %7028 = vmatpush.bf16.msra.mxu0 %v7009
        %7029 = vmatpush.bf16.msra.mxu0 %v7008
        %7030 = vmatpush.bf16.msra.mxu0 %v7007
        %7031 = vmatmul.bf16.gmra.mxu0 %v6954
        %v7032 = vpop.f32.mrf.mxu0
        %v7033 = vadd.f32 0.0, %v7032
        %v7034 = vpop.f32.mrf.mxu0
        %v7035 = vadd.f32 0.0, %v7034
        %7036 = vmatmul.bf16.gmra.mxu0 %v6955
        %v7037 = vpop.f32.mrf.mxu0
        %v7038 = vadd.f32 0.0, %v7037
        %v7039 = vpop.f32.mrf.mxu0
        %v7040 = vadd.f32 0.0, %v7039
        %7041 = vmatmul.bf16.gmra.mxu0 %v6956
        %v7042 = vpop.f32.mrf.mxu0
        %v7043 = vadd.f32 0.0, %v7042
        %v7044 = vpop.f32.mrf.mxu0
        %v7045 = vadd.f32 0.0, %v7044
        %7046 = vmatmul.bf16.gmra.mxu0 %v6957
        %v7047 = vpop.f32.mrf.mxu0
        %v7048 = vadd.f32 0.0, %v7047
        %v7049 = vpop.f32.mrf.mxu0
        %v7050 = vadd.f32 0.0, %v7049
        %7051 = vdwg.mxu0
        %s7052 = scalar_lea.vmem %s6, 3
        %v7053 = vld [vmem:[%s7052] sm:$0x1]
        %v7055 = vperm.slane %v7053, 0
        %v7057 = vmul.f32 %v7033, %v7055
        %v7058 = vmul.f32 %v7035, %v7055
        %v7059 = vmul.f32 %v7038, %v7055
        %v7060 = vmul.f32 %v7040, %v7055
        %v7061 = vmul.f32 %v7043, %v7055
        %v7062 = vmul.f32 %v7045, %v7055
        %v7063 = vmul.f32 %v7048, %v7055
        %v7064 = vmul.f32 %v7050, %v7055
        %s7065 = scalar_lea.vmem %s7, 3
        %v7066 = vld [vmem:[%s7065] sm:$0x1]
        %v7068 = vperm.slane %v7066, 0
        %v7070 = vadd.f32 %v7057, %v7068
        %v7071 = vadd.f32 %v7058, %v7068
        %v7072 = vadd.f32 %v7059, %v7068
        %v7073 = vadd.f32 %v7060, %v7068
        %v7074 = vadd.f32 %v7061, %v7068
        %v7075 = vadd.f32 %v7062, %v7068
        %v7076 = vadd.f32 %v7063, %v7068
        %v7077 = vadd.f32 %v7064, %v7068
        %v7086 = vrot.slane %v7070, 1
        %v7087 = vrot.slane %v7070, 2
        %v7088 = vrot.slane %v7070, 3
        %v7089 = vrot.slane %v7070, 4
        %v7090 = vrot.slane %v7070, 5
        %v7091 = vrot.slane %v7070, 6
        %v7092 = vrot.slane %v7070, 7
        %v7093 = vrot.slane %v7071, 1
        %v7094 = vrot.slane %v7071, 2
        %v7095 = vrot.slane %v7071, 3
        %v7096 = vrot.slane %v7071, 4
        %v7097 = vrot.slane %v7071, 5
        %v7098 = vrot.slane %v7071, 6
        %v7099 = vrot.slane %v7071, 7
        %v7100 = vrot.slane %v7072, 1
        %v7101 = vrot.slane %v7072, 2
        %v7102 = vrot.slane %v7072, 3
        %v7103 = vrot.slane %v7072, 4
        %v7104 = vrot.slane %v7072, 5
        %v7105 = vrot.slane %v7072, 6
        %v7106 = vrot.slane %v7072, 7
        %v7107 = vrot.slane %v7073, 1
        %v7108 = vrot.slane %v7073, 2
        %v7109 = vrot.slane %v7073, 3
        %v7110 = vrot.slane %v7073, 4
        %v7111 = vrot.slane %v7073, 5
        %v7112 = vrot.slane %v7073, 6
        %v7113 = vrot.slane %v7073, 7
        %v7114 = vrot.slane %v7074, 1
        %v7115 = vrot.slane %v7074, 2
        %v7116 = vrot.slane %v7074, 3
        %v7117 = vrot.slane %v7074, 4
        %v7118 = vrot.slane %v7074, 5
        %v7119 = vrot.slane %v7074, 6
        %v7120 = vrot.slane %v7074, 7
        %v7121 = vrot.slane %v7075, 1
        %v7122 = vrot.slane %v7075, 2
        %v7123 = vrot.slane %v7075, 3
        %v7124 = vrot.slane %v7075, 4
        %v7125 = vrot.slane %v7075, 5
        %v7126 = vrot.slane %v7075, 6
        %v7127 = vrot.slane %v7075, 7
        %v7128 = vrot.slane %v7076, 1
        %v7129 = vrot.slane %v7076, 2
        %v7130 = vrot.slane %v7076, 3
        %v7131 = vrot.slane %v7076, 4
        %v7132 = vrot.slane %v7076, 5
        %v7133 = vrot.slane %v7076, 6
        %v7134 = vrot.slane %v7076, 7
        %v7135 = vrot.slane %v7077, 1
        %v7136 = vrot.slane %v7077, 2
        %v7137 = vrot.slane %v7077, 3
        %v7138 = vrot.slane %v7077, 4
        %v7139 = vrot.slane %v7077, 5
        %v7140 = vrot.slane %v7077, 6
        %v7141 = vrot.slane %v7077, 7
        %v7206 = vadd.f32 %v6490, %v7070
        %v7207 = vadd.f32 %v6491, %v7086
        %v7208 = vadd.f32 %v6492, %v7087
        %v7209 = vadd.f32 %v6493, %v7088
        %v7210 = vadd.f32 %v6494, %v7089
        %v7211 = vadd.f32 %v6495, %v7090
        %v7212 = vadd.f32 %v6496, %v7091
        %v7213 = vadd.f32 %v6497, %v7092
        %v7214 = vadd.f32 %v6498, %v7071
        %v7215 = vadd.f32 %v6499, %v7093
        %v7216 = vadd.f32 %v6500, %v7094
        %v7217 = vadd.f32 %v6501, %v7095
        %v7218 = vadd.f32 %v6502, %v7096
        %v7219 = vadd.f32 %v6503, %v7097
        %v7220 = vadd.f32 %v6504, %v7098
        %v7221 = vadd.f32 %v6505, %v7099
        %v7222 = vadd.f32 %v6506, %v7072
        %v7223 = vadd.f32 %v6507, %v7100
        %v7224 = vadd.f32 %v6508, %v7101
        %v7225 = vadd.f32 %v6509, %v7102
        %v7226 = vadd.f32 %v6510, %v7103
        %v7227 = vadd.f32 %v6511, %v7104
        %v7228 = vadd.f32 %v6512, %v7105
        %v7229 = vadd.f32 %v6513, %v7106
        %v7230 = vadd.f32 %v6514, %v7073
        %v7231 = vadd.f32 %v6515, %v7107
        %v7232 = vadd.f32 %v6516, %v7108
        %v7233 = vadd.f32 %v6517, %v7109
        %v7234 = vadd.f32 %v6518, %v7110
        %v7235 = vadd.f32 %v6519, %v7111
        %v7236 = vadd.f32 %v6520, %v7112
        %v7237 = vadd.f32 %v6521, %v7113
        %v7238 = vadd.f32 %v6522, %v7074
        %v7239 = vadd.f32 %v6523, %v7114
        %v7240 = vadd.f32 %v6524, %v7115
        %v7241 = vadd.f32 %v6525, %v7116
        %v7242 = vadd.f32 %v6526, %v7117
        %v7243 = vadd.f32 %v6527, %v7118
        %v7244 = vadd.f32 %v6528, %v7119
        %v7245 = vadd.f32 %v6529, %v7120
        %v7246 = vadd.f32 %v6530, %v7075
        %v7247 = vadd.f32 %v6531, %v7121
        %v7248 = vadd.f32 %v6532, %v7122
        %v7249 = vadd.f32 %v6533, %v7123
        %v7250 = vadd.f32 %v6534, %v7124
        %v7251 = vadd.f32 %v6535, %v7125
        %v7252 = vadd.f32 %v6536, %v7126
        %v7253 = vadd.f32 %v6537, %v7127
        %v7254 = vadd.f32 %v6538, %v7076
        %v7255 = vadd.f32 %v6539, %v7128
        %v7256 = vadd.f32 %v6540, %v7129
        %v7257 = vadd.f32 %v6541, %v7130
        %v7258 = vadd.f32 %v6542, %v7131
        %v7259 = vadd.f32 %v6543, %v7132
        %v7260 = vadd.f32 %v6544, %v7133
        %v7261 = vadd.f32 %v6545, %v7134
        %v7262 = vadd.f32 %v6546, %v7077
        %v7263 = vadd.f32 %v6547, %v7135
        %v7264 = vadd.f32 %v6548, %v7136
        %v7265 = vadd.f32 %v6549, %v7137
        %v7266 = vadd.f32 %v6550, %v7138
        %v7267 = vadd.f32 %v6551, %v7139
        %v7268 = vadd.f32 %v6552, %v7140
        %v7269 = vadd.f32 %v6553, %v7141
        %v7270 = vmax.f32 %v7206, 0.0
        %v7271 = vmax.f32 %v7207, 0.0
        %v7272 = vmax.f32 %v7208, 0.0
        %v7273 = vmax.f32 %v7209, 0.0
        %v7274 = vmax.f32 %v7210, 0.0
        %v7275 = vmax.f32 %v7211, 0.0
        %v7276 = vmax.f32 %v7212, 0.0
        %v7277 = vmax.f32 %v7213, 0.0
        %v7278 = vmax.f32 %v7214, 0.0
        %v7279 = vmax.f32 %v7215, 0.0
        %v7280 = vmax.f32 %v7216, 0.0
        %v7281 = vmax.f32 %v7217, 0.0
        %v7282 = vmax.f32 %v7218, 0.0
        %v7283 = vmax.f32 %v7219, 0.0
        %v7284 = vmax.f32 %v7220, 0.0
        %v7285 = vmax.f32 %v7221, 0.0
        %v7286 = vmax.f32 %v7222, 0.0
        %v7287 = vmax.f32 %v7223, 0.0
        %v7288 = vmax.f32 %v7224, 0.0
        %v7289 = vmax.f32 %v7225, 0.0
        %v7290 = vmax.f32 %v7226, 0.0
        %v7291 = vmax.f32 %v7227, 0.0
        %v7292 = vmax.f32 %v7228, 0.0
        %v7293 = vmax.f32 %v7229, 0.0
        %v7294 = vmax.f32 %v7230, 0.0
        %v7295 = vmax.f32 %v7231, 0.0
        %v7296 = vmax.f32 %v7232, 0.0
        %v7297 = vmax.f32 %v7233, 0.0
        %v7298 = vmax.f32 %v7234, 0.0
        %v7299 = vmax.f32 %v7235, 0.0
        %v7300 = vmax.f32 %v7236, 0.0
        %v7301 = vmax.f32 %v7237, 0.0
        %v7302 = vmax.f32 %v7238, 0.0
        %v7303 = vmax.f32 %v7239, 0.0
        %v7304 = vmax.f32 %v7240, 0.0
        %v7305 = vmax.f32 %v7241, 0.0
        %v7306 = vmax.f32 %v7242, 0.0
        %v7307 = vmax.f32 %v7243, 0.0
        %v7308 = vmax.f32 %v7244, 0.0
        %v7309 = vmax.f32 %v7245, 0.0
        %v7310 = vmax.f32 %v7246, 0.0
        %v7311 = vmax.f32 %v7247, 0.0
        %v7312 = vmax.f32 %v7248, 0.0
        %v7313 = vmax.f32 %v7249, 0.0
        %v7314 = vmax.f32 %v7250, 0.0
        %v7315 = vmax.f32 %v7251, 0.0
        %v7316 = vmax.f32 %v7252, 0.0
        %v7317 = vmax.f32 %v7253, 0.0
        %v7318 = vmax.f32 %v7254, 0.0
        %v7319 = vmax.f32 %v7255, 0.0
        %v7320 = vmax.f32 %v7256, 0.0
        %v7321 = vmax.f32 %v7257, 0.0
        %v7322 = vmax.f32 %v7258, 0.0
        %v7323 = vmax.f32 %v7259, 0.0
        %v7324 = vmax.f32 %v7260, 0.0
        %v7325 = vmax.f32 %v7261, 0.0
        %v7326 = vmax.f32 %v7262, 0.0
        %v7327 = vmax.f32 %v7263, 0.0
        %v7328 = vmax.f32 %v7264, 0.0
        %v7329 = vmax.f32 %v7265, 0.0
        %v7330 = vmax.f32 %v7266, 0.0
        %v7331 = vmax.f32 %v7267, 0.0
        %v7332 = vmax.f32 %v7268, 0.0
        %v7333 = vmax.f32 %v7269, 0.0
        %v7398 = vrot.slane %v7271, 7
        %v7399 = vsel %vm3516, %v7398, %v7270
        %v7400 = vrot.slane %v7272, 6
        %v7401 = vsel %vm3519, %v7400, %v7399
        %v7402 = vrot.slane %v7273, 5
        %v7403 = vsel %vm3522, %v7402, %v7401
        %v7404 = vrot.slane %v7274, 4
        %v7405 = vsel %vm3525, %v7404, %v7403
        %v7406 = vrot.slane %v7275, 3
        %v7407 = vsel %vm3528, %v7406, %v7405
        %v7408 = vrot.slane %v7276, 2
        %v7409 = vsel %vm3531, %v7408, %v7407
        %v7410 = vrot.slane %v7277, 1
        %v7411 = vsel %vm3534, %v7410, %v7409
        %v7412 = vrot.slane %v7279, 7
        %v7413 = vsel %vm3516, %v7412, %v7278
        %v7414 = vrot.slane %v7280, 6
        %v7415 = vsel %vm3519, %v7414, %v7413
        %v7416 = vrot.slane %v7281, 5
        %v7417 = vsel %vm3522, %v7416, %v7415
        %v7418 = vrot.slane %v7282, 4
        %v7419 = vsel %vm3525, %v7418, %v7417
        %v7420 = vrot.slane %v7283, 3
        %v7421 = vsel %vm3528, %v7420, %v7419
        %v7422 = vrot.slane %v7284, 2
        %v7423 = vsel %vm3531, %v7422, %v7421
        %v7424 = vrot.slane %v7285, 1
        %v7425 = vsel %vm3534, %v7424, %v7423
        %v7426 = vrot.slane %v7287, 7
        %v7427 = vsel %vm3516, %v7426, %v7286
        %v7428 = vrot.slane %v7288, 6
        %v7429 = vsel %vm3519, %v7428, %v7427
        %v7430 = vrot.slane %v7289, 5
        %v7431 = vsel %vm3522, %v7430, %v7429
        %v7432 = vrot.slane %v7290, 4
        %v7433 = vsel %vm3525, %v7432, %v7431
        %v7434 = vrot.slane %v7291, 3
        %v7435 = vsel %vm3528, %v7434, %v7433
        %v7436 = vrot.slane %v7292, 2
        %v7437 = vsel %vm3531, %v7436, %v7435
        %v7438 = vrot.slane %v7293, 1
        %v7439 = vsel %vm3534, %v7438, %v7437
        %v7440 = vrot.slane %v7295, 7
        %v7441 = vsel %vm3516, %v7440, %v7294
        %v7442 = vrot.slane %v7296, 6
        %v7443 = vsel %vm3519, %v7442, %v7441
        %v7444 = vrot.slane %v7297, 5
        %v7445 = vsel %vm3522, %v7444, %v7443
        %v7446 = vrot.slane %v7298, 4
        %v7447 = vsel %vm3525, %v7446, %v7445
        %v7448 = vrot.slane %v7299, 3
        %v7449 = vsel %vm3528, %v7448, %v7447
        %v7450 = vrot.slane %v7300, 2
        %v7451 = vsel %vm3531, %v7450, %v7449
        %v7452 = vrot.slane %v7301, 1
        %v7453 = vsel %vm3534, %v7452, %v7451
        %v7454 = vrot.slane %v7303, 7
        %v7455 = vsel %vm3516, %v7454, %v7302
        %v7456 = vrot.slane %v7304, 6
        %v7457 = vsel %vm3519, %v7456, %v7455
        %v7458 = vrot.slane %v7305, 5
        %v7459 = vsel %vm3522, %v7458, %v7457
        %v7460 = vrot.slane %v7306, 4
        %v7461 = vsel %vm3525, %v7460, %v7459
        %v7462 = vrot.slane %v7307, 3
        %v7463 = vsel %vm3528, %v7462, %v7461
        %v7464 = vrot.slane %v7308, 2
        %v7465 = vsel %vm3531, %v7464, %v7463
        %v7466 = vrot.slane %v7309, 1
        %v7467 = vsel %vm3534, %v7466, %v7465
        %v7468 = vrot.slane %v7311, 7
        %v7469 = vsel %vm3516, %v7468, %v7310
        %v7470 = vrot.slane %v7312, 6
        %v7471 = vsel %vm3519, %v7470, %v7469
        %v7472 = vrot.slane %v7313, 5
        %v7473 = vsel %vm3522, %v7472, %v7471
        %v7474 = vrot.slane %v7314, 4
        %v7475 = vsel %vm3525, %v7474, %v7473
        %v7476 = vrot.slane %v7315, 3
        %v7477 = vsel %vm3528, %v7476, %v7475
        %v7478 = vrot.slane %v7316, 2
        %v7479 = vsel %vm3531, %v7478, %v7477
        %v7480 = vrot.slane %v7317, 1
        %v7481 = vsel %vm3534, %v7480, %v7479
        %v7482 = vrot.slane %v7319, 7
        %v7483 = vsel %vm3516, %v7482, %v7318
        %v7484 = vrot.slane %v7320, 6
        %v7485 = vsel %vm3519, %v7484, %v7483
        %v7486 = vrot.slane %v7321, 5
        %v7487 = vsel %vm3522, %v7486, %v7485
        %v7488 = vrot.slane %v7322, 4
        %v7489 = vsel %vm3525, %v7488, %v7487
        %v7490 = vrot.slane %v7323, 3
        %v7491 = vsel %vm3528, %v7490, %v7489
        %v7492 = vrot.slane %v7324, 2
        %v7493 = vsel %vm3531, %v7492, %v7491
        %v7494 = vrot.slane %v7325, 1
        %v7495 = vsel %vm3534, %v7494, %v7493
        %v7496 = vrot.slane %v7327, 7
        %v7497 = vsel %vm3516, %v7496, %v7326
        %v7498 = vrot.slane %v7328, 6
        %v7499 = vsel %vm3519, %v7498, %v7497
        %v7500 = vrot.slane %v7329, 5
        %v7501 = vsel %vm3522, %v7500, %v7499
        %v7502 = vrot.slane %v7330, 4
        %v7503 = vsel %vm3525, %v7502, %v7501
        %v7504 = vrot.slane %v7331, 3
        %v7505 = vsel %vm3528, %v7504, %v7503
        %v7506 = vrot.slane %v7332, 2
        %v7507 = vsel %vm3531, %v7506, %v7505
        %v7508 = vrot.slane %v7333, 1
        %v7509 = vsel %vm3534, %v7508, %v7507
        %7518 = vst.msk [vmem:[%s353] sm:$0xff] %vm412, %v7411
        %7519 = vst.msk [vmem:[%s353 + $0x8] sm:$0xff] %vm412, %v7425
        %7520 = vst.msk [vmem:[%s353 + $0x10] sm:$0xff] %vm412, %v7439
        %7521 = vst.msk [vmem:[%s353 + $0x18] sm:$0xff] %vm412, %v7453
        %7522 = vst.msk [vmem:[%s353 + $0x20] sm:$0xff] %vm412, %v7467
        %7523 = vst.msk [vmem:[%s353 + $0x28] sm:$0xff] %vm412, %v7481
        %7524 = vst.msk [vmem:[%s353 + $0x30] sm:$0xff] %vm412, %v7495
        %7525 = vst.msk [vmem:[%s353 + $0x38] sm:$0xff] %vm412, %v7509
        %s7526 = sand.u32 %s206, 1
        %s7527 = scalar_lea.sflag [#allocation3], %s7526
        %s7528 = sand.u32 %s206, 1
        %s7529 = smul.addr %s7528, 64
        %s7530 = scalar_lea.vmem [#allocation2], %s7529
        %p7531 = scmp.lt.s32.totalorder %s25, 1
        %s7532 = scalar_select %p7531, %s25, 1
        %s7533 = smul.addr %s7532, 32
        %s7534 = smul.addr %s7533, 8
        %s7535 = scalar_lea.vmem %s9, %s7534
        %p7536 = scmp.lt.s32.totalorder %s25, 1
        %s7537 = scalar_select %p7536, %s25, 1
        %s7538 = smul.addr %s7537, 32
        %s7539 = smul.addr %s7538, 8
        %s7540 = scalar_lea.vmem %s10, %s7539
        // Predicated region
        $region53: #{group_block_forward.1} parent=51 // pred_check
          %p7541 = pneg %p216
        $region54: #{group_block_forward.1} parent=51 // pred_check_branch
          %7543 = sbr.rel (%p7541) target = $region56
        $region55: #{group_block_forward.1} parent=51 // pred_region
          %7545 = vsyncadd %s7527, 0
          %s7546 = smul.addr %s25, 8
          %s7547 = smul.addr %s7546, 8
          %s7548 = scalar_lea.hbm %s8, %s7547
          %s7549 = sshll.u32 %s7530, 4
          %s7550 = int_to_ptr.vmem [resolvable:$true] %s7549
          %s7551 = sshll.u32 %s7548, 4
          %s7552 = int_to_ptr.hbm [resolvable:$true] %s7551
          %7557 = dma.vmem_to_hbm [thread:$0]  %s7550, 1024, %s7552, %s7527, 128, 128, 8
        $region56: #{group_block_forward.1} parent=51 // pred_fallthru
          _
        // Predicated region
        $region57: #{group_block_forward.1} parent=51 // pred_check
          %p7558 = pneg %p242
        $region58: #{group_block_forward.1} parent=51 // pred_check_branch
          %7560 = sbr.rel (%p7558) target = $region60
        $region59: #{group_block_forward.1} parent=51 // pred_region
          _
        $region60: #{group_block_forward.1} parent=51 // pred_fallthru
          _
        // Predicated region
        $region61: #{group_block_forward.1} parent=51 // pred_check
          %p7561 = pneg %p268
        $region62: #{group_block_forward.1} parent=51 // pred_check_branch
          %7563 = sbr.rel (%p7561) target = $region64
        $region63: #{group_block_forward.1} parent=51 // pred_region
          _
        $region64: #{group_block_forward.1} parent=51 // pred_fallthru
          _
      $region52: #{group_block_forward.1} parent=5 // pred_fallthru
        _
      %p7564 = scmp.le.s32.totalorder 2, %s20
      // Predicated region
      $region65: #{group_block_forward.1} parent=5 // pred_check
        %p7565 = pneg %p7564
      $region66: #{group_block_forward.1} parent=5 // pred_check_branch
        %7567 = sbr.rel (%p7565) target = $region68
      $region67: #{group_block_forward.1} parent=5 // pred_region
        %s7568 = ssub.s32 %s20, 2
        // Predicated region
        $region69: #{group_block_forward.1} parent=67 // pred_check
          %p7569 = pneg %p222
        $region70: #{group_block_forward.1} parent=67 // pred_check_branch
          %7571 = sbr.rel (%p7569) target = $region72
        $region71: #{group_block_forward.1} parent=67 // pred_region
          %s7572 = sand.u32 %s207, 1
          %s7573 = scalar_lea.sflag [#allocation3], %s7572
          %s7574 = sand.u32 %s207, 1
          %s7575 = smul.addr %s7574, 64
          %s7576 = scalar_lea.vmem [#allocation2], %s7575
          %7578 = dma.done %s7573, 1024
        $region72: #{group_block_forward.1} parent=67 // pred_fallthru
          _
        // Predicated region
        $region73: #{group_block_forward.1} parent=67 // pred_check
          %p7579 = pneg %p248
        $region74: #{group_block_forward.1} parent=67 // pred_check_branch
          %7581 = sbr.rel (%p7579) target = $region76
        $region75: #{group_block_forward.1} parent=67 // pred_region
          %p7582 = scmp.lt.s32.totalorder %s26, 1
          %s7583 = scalar_select %p7582, %s26, 1
          %s7584 = smul.addr %s7583, 32
          %s7585 = smul.addr %s7584, 8
          %s7586 = scalar_lea.vmem %s9, %s7585
        $region76: #{group_block_forward.1} parent=67 // pred_fallthru
          _
        // Predicated region
        $region77: #{group_block_forward.1} parent=67 // pred_check
          %p7587 = pneg %p274
        $region78: #{group_block_forward.1} parent=67 // pred_check_branch
          %7589 = sbr.rel (%p7587) target = $region80
        $region79: #{group_block_forward.1} parent=67 // pred_region
          %p7590 = scmp.lt.s32.totalorder %s26, 1
          %s7591 = scalar_select %p7590, %s26, 1
          %s7592 = smul.addr %s7591, 32
          %s7593 = smul.addr %s7592, 8
          %s7594 = scalar_lea.vmem %s10, %s7593
        $region80: #{group_block_forward.1} parent=67 // pred_fallthru
          _
      $region68: #{group_block_forward.1} parent=5 // pred_fallthru
        _
    $region6: #{group_block_forward.1} parent=1 // loop_footer
      %s24 = sadd.s32 1, %s20
    $region7: #{group_block_forward.1} parent=1 // loop_footer_branch
      %19 = sbr.rel target = $region3
    $region8: #{group_block_forward.1} parent=1 // loop_exit
      _
    %7595 = vsyncpa [#allocation3], 1
    %s7596 = scalar_lea.sflag [#allocation3], 1
    %7597 = vsyncpa %s7596, 1

</llo_original>
